<compile_context>
chip_gen: v5e
topology: v5e:2x2
jax: 0.10.0
libtpu: 0.0.40
codegen_flags: <defaults>
</compile_context>

<pallas_src>
import functools

import jax
import jax.numpy as jnp
from jax.experimental import pallas as pl
from jax.experimental.pallas import tpu as pltpu

BN_EPS = 1e-5
LANE = 128
SUBLANE = 8
HIDDEN = 1000


def _round_up(x, m):
    return (x + m - 1) // m * m


def _pad2(a, rows, cols):
    r, c = a.shape
    return jnp.pad(a, ((0, rows - r), (0, cols - c)))


# ------------------------------ fused Pallas kernel ------------------------------- #

def _classifier_kernel(x_ref, wbb_ref, bbb_ref,
                       w1c_ref, b1c_ref,
                       w2_ref, b2_ref, w2a_ref, b2a_ref,
                       w3_ref, b3_ref, w3a_ref, b3a_ref,
                       pred_ref, pred_aux_ref, f_ref):
    """One grid step == TM samples, full forward fused.

    backbone : 1x1 conv as a channels-last (TM*S, C8) @ (C8, Dp) MXU matmul
               + bias + ReLU + global average pool (per-sample sublane-group mean)
               -> lane-dense (TM, Dp) feature rows, no in-kernel transpose tricks.
    heads    : eval-mode Dropout == identity, BatchNorm folded into the Linear weights,
               layer-1 of head and head_aux fused into a single concatenated matmul.
    """
    tm, dp = f_ref.shape
    hp = w2_ref.shape[0]
    s = x_ref.shape[0] // tm

    # ---------------- backbone ----------------
    yt = jnp.dot(x_ref[...], wbb_ref[...],
                 preferred_element_type=jnp.float32)              # (TM*S, Dp)
    yt = jnp.maximum(yt + bbb_ref[...], 0.0)                      # bias + ReLU
    # global avg pool: mean over the S sublane rows of each sample -> (TM, Dp) rows
    f = jnp.sum(yt.reshape(tm, s, dp), axis=1) * (1.0 / s)
    f_ref[...] = f

    # ---------------- heads (bf16 matmul operands, f32 MXU accumulation) -------------
    fb = f.astype(jnp.bfloat16)
    h_cat = jnp.maximum(
        jnp.dot(fb, w1c_ref[...], preferred_element_type=jnp.float32) + b1c_ref[...],
        0.0)                                                      # (TM, 2*Hp)
    h = h_cat[:, :hp].astype(jnp.bfloat16)
    h_aux = h_cat[:, hp:].astype(jnp.bfloat16)

    h2 = jnp.maximum(
        jnp.dot(h, w2_ref[...], preferred_element_type=jnp.float32) + b2_ref[...],
        0.0)
    pred_ref[...] = (jnp.dot(h2.astype(jnp.bfloat16), w3_ref[...],
                             preferred_element_type=jnp.float32) + b3_ref[...])

    h2a = jnp.maximum(
        jnp.dot(h_aux, w2a_ref[...], preferred_element_type=jnp.float32) + b2a_ref[...],
        0.0)
    pred_aux_ref[...] = (jnp.dot(h2a.astype(jnp.bfloat16), w3a_ref[...],
                                 preferred_element_type=jnp.float32) + b3a_ref[...])


# ---------------------------------- wrapper --------------------------------------- #

@functools.partial(jax.jit, static_argnames=("out_features", "num_classes"))
def classifier_forward(x_nchw, w, *, out_features, num_classes):
    """Fused ClassifierBase.forward (eval mode): returns (predictions, predictions_aux, f)."""
    n, cin, hh, ww = x_nchw.shape
    s = hh * ww
    c8 = w["bb_w"].shape[0]        # channel dim padded to a multiple of 8
    dp = w["bb_w"].shape[1]        # padded feature width
    hp = w["w2"].shape[0]          # padded hidden width
    cp = w["w3"].shape[1]          # padded class width

    # Batch tile: multiple of 8 sublanes, capped at 64 so the f32 backbone intermediate
    # (TM*S*Dp*4 B) and the lane-padded x tile stay inside v7x's 64 MiB per-core VMEM
    # (each TC holds its own weight copy). v5e/v6e could run TM=128/256 with a larger
    # vmem limit.
    tm = min(64, _round_up(n, SUBLANE))
    n_pad = _round_up(n, tm)

    # channels-last + lane-friendly flattening: (N,C,H,W) -> (N,HW,C) -> (Npad*HW, C8).
    # Padded batch rows / channels are zeros (zero weight rows => no contribution).
    x = jnp.transpose(x_nchw, (0, 2, 3, 1)).reshape(n, s, cin)
    x = jnp.pad(x, ((0, n_pad - n), (0, 0), (0, c8 - cin)))
    x = x.reshape(n_pad * s, c8)

    flops = 2 * n_pad * (s * c8 * dp + dp * 2 * hp + 2 * hp * hp + 2 * hp * cp)
    weight_bytes = sum(int(w[k].size) * w[k].dtype.itemsize for k in (
        "bb_w", "bb_b", "w1c", "b1c", "w2", "b2", "w2a", "b2a",
        "w3", "b3", "w3a", "b3a"))
    bytes_accessed = int(x.size) * 4 + weight_bytes + n_pad * (2 * cp + dp) * 4

    grid_spec = pltpu.PrefetchScalarGridSpec(
        num_scalar_prefetch=0,
        grid=(n_pad // tm,),
        in_specs=[
            pl.BlockSpec((tm * s, c8), lambda i: (i, 0)),       # TM samples of pixels
            # weights/biases: constant index maps -> DMA'd once, VMEM-resident across
            # grid steps (double-buffered copies of the ~5 MiB bf16 weights still fit
            # the vmem limit here; pl.Buffered(1) is the knob if TM/weights grow).
            pl.BlockSpec((c8, dp), lambda i: (0, 0)),
            pl.BlockSpec((1, dp), lambda i: (0, 0)),
            pl.BlockSpec((dp, 2 * hp), lambda i: (0, 0)),
            pl.BlockSpec((1, 2 * hp), lambda i: (0, 0)),
            pl.BlockSpec((hp, hp), lambda i: (0, 0)),
            pl.BlockSpec((1, hp), lambda i: (0, 0)),
            pl.BlockSpec((hp, hp), lambda i: (0, 0)),
            pl.BlockSpec((1, hp), lambda i: (0, 0)),
            pl.BlockSpec((hp, cp), lambda i: (0, 0)),
            pl.BlockSpec((1, cp), lambda i: (0, 0)),
            pl.BlockSpec((hp, cp), lambda i: (0, 0)),
            pl.BlockSpec((1, cp), lambda i: (0, 0)),
        ],
        out_specs=[
            pl.BlockSpec((tm, cp), lambda i: (i, 0)),
            pl.BlockSpec((tm, cp), lambda i: (i, 0)),
            pl.BlockSpec((tm, dp), lambda i: (i, 0)),
        ],
    )

    pred_p, pred_aux_p, f_p = pl.pallas_call(
        _classifier_kernel,
        out_shape=[
            jax.ShapeDtypeStruct((n_pad, cp), jnp.float32),
            jax.ShapeDtypeStruct((n_pad, cp), jnp.float32),
            jax.ShapeDtypeStruct((n_pad, dp), jnp.float32),
        ],
        grid_spec=grid_spec,
        compiler_params=pltpu.CompilerParams(
            dimension_semantics=("parallel",),       # batch tiles independent (megacore)
            vmem_limit_bytes=48 * 1024 * 1024),
        cost_estimate=pl.CostEstimate(
            flops=flops, transcendentals=0, bytes_accessed=bytes_accessed),
    )(x, w["bb_w"], w["bb_b"], w["w1c"], w["b1c"],
      w["w2"], w["b2"], w["w2a"], w["b2a"],
      w["w3"], w["b3"], w["w3a"], w["b3a"])

    # un-pad outside the kernel (tiny XLA slices)
    predictions = pred_p[:n, :num_classes]
    predictions_aux = pred_aux_p[:n, :num_classes]
    f = f_p[:n, :out_features]
    return predictions, predictions_aux, f


# ------------------------------ parameter construction ----------------------------- #

def _linear_init(key, fan_in, fan_out):
    # Mirrors torch.nn.Linear default init (uniform +-1/sqrt(fan_in)); stored as (in, out).
    kw, kb = jax.random.split(key)
    bound = 1.0 / jnp.sqrt(jnp.float32(fan_in))
    w = jax.random.uniform(kw, (fan_in, fan_out), jnp.float32, -bound, bound)
    b = jax.random.uniform(kb, (1, fan_out), jnp.float32, -bound, bound)
    return w, b


def _bn_fold(gamma, beta, running_mean, running_var):
    # eval-mode BatchNorm1d folded to a per-feature scale/shift
    s = gamma / jnp.sqrt(running_var + BN_EPS)
    t = beta - running_mean * s
    return s[None, :], t[None, :]


def make_raw_head_params(key, features_dim, num_classes, hidden):
    k1, k2, k3 = jax.random.split(key, 3)
    w1, b1 = _linear_init(k1, features_dim, hidden)   # Linear(features_dim, 1000)
    w2, b2 = _linear_init(k2, hidden, hidden)         # Linear(1000, 1000)
    w3, b3 = _linear_init(k3, hidden, num_classes)    # Linear(1000, num_classes)
    ones = jnp.ones((hidden,), jnp.float32)
    zeros = jnp.zeros((hidden,), jnp.float32)
    # PyTorch BatchNorm1d defaults: gamma=1, beta=0, running_mean=0, running_var=1
    return dict(w1=w1, b1=b1, bn1=(ones, zeros, zeros, ones),
                w2=w2, b2=b2, bn2=(ones, zeros, zeros, ones),
                w3=w3, b3=b3)


def make_raw_params(key, in_channels, out_features, num_classes, hidden=HIDDEN):
    kbb, kh, kha = jax.random.split(key, 3)
    bb_w, bb_b = _linear_init(kbb, in_channels, out_features)   # synthetic 1x1-conv backbone
    return dict(bb_w=bb_w, bb_b=bb_b,
                head=make_raw_head_params(kh, out_features, num_classes, hidden),
                head_aux=make_raw_head_params(kha, out_features, num_classes, hidden))


def prepare_weights(raw, in_channels, out_features, num_classes, hidden=HIDDEN):
    """Fold BN, pad to sublane/lane multiples, cast big weights to bf16, fuse layer-1."""
    c8 = _round_up(in_channels, SUBLANE)   # 4    -> 8
    dp = _round_up(out_features, LANE)     # 32   -> 128
    hp = _round_up(hidden, LANE)           # 1000 -> 1024
    cp = _round_up(num_classes, LANE)      # 8    -> 128

    # backbone 1x1-conv weight as (C8, Dp) for the channels-last matmul; bias (1, Dp)
    bb_w = _pad2(raw["bb_w"], c8, dp)
    bb_b = _pad2(raw["bb_b"], 1, dp)

    def fold(hd):
        s1, t1 = _bn_fold(*hd["bn1"])
        s2, t2 = _bn_fold(*hd["bn2"])
        # zero padding guarantees padded feature/hidden/class lanes stay exactly 0
        w1 = _pad2(hd["w1"] * s1, dp, hp).astype(jnp.bfloat16)
        b1 = _pad2(hd["b1"] * s1 + t1, 1, hp)
        w2 = _pad2(hd["w2"] * s2, hp, hp).astype(jnp.bfloat16)
        b2 = _pad2(hd["b2"] * s2 + t2, 1, hp)
        w3 = _pad2(hd["w3"], hp, cp).astype(jnp.bfloat16)
        b3 = _pad2(hd["b3"], 1, cp)
        return w1, b1, w2, b2, w3, b3

    w1, b1, w2, b2, w3, b3 = fold(raw["head"])
    w1a, b1a, w2a, b2a, w3a, b3a = fold(raw["head_aux"])
    return dict(
        bb_w=bb_w, bb_b=bb_b,
        # first Linear of head and head_aux fused into one (Dp, 2*Hp) matmul
        w1c=jnp.concatenate([w1, w1a], axis=1),
        b1c=jnp.concatenate([b1, b1a], axis=1),
        w2=w2, b2=b2, w2a=w2a, b2a=b2a,
        w3=w3, b3=b3, w3a=w3a, b3a=b3a,
    )


# ------------------------------ pure-JAX reference --------------------------------- #

def reference_forward(x_nchw, raw):
    n, cin, hh, ww = x_nchw.shape
    s = hh * ww
    xr = jnp.transpose(x_nchw, (0, 2, 3, 1)).reshape(n * s, cin)
    y = jnp.maximum(xr @ raw["bb_w"] + raw["bb_b"], 0.0)
    f = jnp.mean(y.reshape(n, s, -1), axis=1)

    def bn(z, p):
        g, b, m, v = p
        return (z - m) / jnp.sqrt(v + BN_EPS) * g + b

    def head(hd):
        h = jnp.maximum(bn(f @ hd["w1"] + hd["b1"], hd["bn1"]), 0.0)
        h = jnp.maximum(bn(h @ hd["w2"] + hd["b2"], hd["bn2"]), 0.0)
        return h @ hd["w3"] + hd["b3"]

    return head(raw["head"]), head(raw["head_aux"]), f


# ------------------------------------- main ---------------------------------------- #

if __name__ == "__main__":
    batch, in_channels, spatial = 2, 4, 16
    out_features = 32        # synthetic backbone.out_features == features_dim (bottleneck=None)
    num_classes = 8
    hidden = 1000            # head hidden width, as in the module

    key = jax.random.PRNGKey(0)
    kx, kp = jax.random.split(key)
    x = jax.random.normal(kx, (batch, in_channels, spatial, spatial), jnp.float32)

    raw = make_raw_params(kp, in_channels, out_features, num_classes, hidden)
    weights = prepare_weights(raw, in_channels, out_features, num_classes, hidden)

    # TODO(synk): training-mode Dropout(0.5) and BatchNorm batch-stat updates are
    # stochastic/stateful; this kernel implements the deterministic eval-mode forward.
    predictions, predictions_aux, f = jax.block_until_ready(
        classifier_forward(x, weights,
                           out_features=out_features, num_classes=num_classes))

    pred_r, pred_aux_r, f_r = reference_forward(x, raw)

    assert predictions.shape == (batch, num_classes)
    assert predictions_aux.shape == (batch, num_classes)
    assert f.shape == (batch, out_features)
    assert jnp.all(jnp.isfinite(predictions))
    assert jnp.all(jnp.isfinite(predictions_aux))
    assert jnp.all(jnp.isfinite(f))
    # f is computed in f32; head logits use bf16 weights => loose tolerance there.
    assert jnp.allclose(f, f_r, rtol=1e-2, atol=1e-2)
    assert jnp.allclose(predictions, pred_r, rtol=1e-1, atol=5e-2)
    assert jnp.allclose(predictions_aux, pred_aux_r, rtol=1e-1, atol=5e-2)
    print("KERNEL_OK")
</pallas_src>

<mosaic_0001>
module attributes {stable_mosaic.version = 11 : i64} {
  func.func @_classifier_kernel(%arg0: i32, %arg1: memref<2048x8xf32, #tpu.memory_space<vmem>>, %arg2: memref<8x128xf32, #tpu.memory_space<vmem>>, %arg3: memref<1x128xf32, #tpu.memory_space<vmem>>, %arg4: memref<128x2048xbf16, #tpu.memory_space<vmem>>, %arg5: memref<1x2048xf32, #tpu.memory_space<vmem>>, %arg6: memref<1024x1024xbf16, #tpu.memory_space<vmem>>, %arg7: memref<1x1024xf32, #tpu.memory_space<vmem>>, %arg8: memref<1024x1024xbf16, #tpu.memory_space<vmem>>, %arg9: memref<1x1024xf32, #tpu.memory_space<vmem>>, %arg10: memref<1024x128xbf16, #tpu.memory_space<vmem>>, %arg11: memref<1x128xf32, #tpu.memory_space<vmem>>, %arg12: memref<1024x128xbf16, #tpu.memory_space<vmem>>, %arg13: memref<1x128xf32, #tpu.memory_space<vmem>>, %arg14: memref<8x128xf32, #tpu.memory_space<vmem>>, %arg15: memref<8x128xf32, #tpu.memory_space<vmem>>, %arg16: memref<8x128xf32, #tpu.memory_space<vmem>>) attributes {dimension_semantics = [#tpu.dimension_semantics<parallel>], iteration_bounds = array<i64: 1>, scalar_prefetch = 0 : i64, scratch_operands = 0 : i64, tpu.core_type = #tpu.core_type<tc>, window_params = [{transform_indices = @transform_0, window_bounds = array<i64: 2048, 8>}, {pipeline_mode = #tpu.pipeline_mode<synchronous>, transform_indices = @transform_1, window_bounds = array<i64: 8, 128>}, {pipeline_mode = #tpu.pipeline_mode<synchronous>, transform_indices = @transform_2, window_bounds = array<i64: 1, 128>}, {pipeline_mode = #tpu.pipeline_mode<synchronous>, transform_indices = @transform_3, window_bounds = array<i64: 128, 2048>}, {pipeline_mode = #tpu.pipeline_mode<synchronous>, transform_indices = @transform_4, window_bounds = array<i64: 1, 2048>}, {pipeline_mode = #tpu.pipeline_mode<synchronous>, transform_indices = @transform_5, window_bounds = array<i64: 1024, 1024>}, {pipeline_mode = #tpu.pipeline_mode<synchronous>, transform_indices = @transform_6, window_bounds = array<i64: 1, 1024>}, {pipeline_mode = #tpu.pipeline_mode<synchronous>, transform_indices = @transform_7, window_bounds = array<i64: 1024, 1024>}, {pipeline_mode = #tpu.pipeline_mode<synchronous>, transform_indices = @transform_8, window_bounds = array<i64: 1, 1024>}, {pipeline_mode = #tpu.pipeline_mode<synchronous>, transform_indices = @transform_9, window_bounds = array<i64: 1024, 128>}, {pipeline_mode = #tpu.pipeline_mode<synchronous>, transform_indices = @transform_10, window_bounds = array<i64: 1, 128>}, {pipeline_mode = #tpu.pipeline_mode<synchronous>, transform_indices = @transform_11, window_bounds = array<i64: 1024, 128>}, {pipeline_mode = #tpu.pipeline_mode<synchronous>, transform_indices = @transform_12, window_bounds = array<i64: 1, 128>}, {transform_indices = @transform_13, window_bounds = array<i64: 8, 128>}, {transform_indices = @transform_14, window_bounds = array<i64: 8, 128>}, {transform_indices = @transform_15, window_bounds = array<i64: 8, 128>}]} {
    %c0 = arith.constant 0 : index
    %c0_0 = arith.constant 0 : index
    %0 = vector.load %arg1[%c0, %c0_0] : memref<2048x8xf32, #tpu.memory_space<vmem>>, vector<2048x8xf32>
    %c0_1 = arith.constant 0 : index
    %c0_2 = arith.constant 0 : index
    %1 = vector.load %arg2[%c0_1, %c0_2] : memref<8x128xf32, #tpu.memory_space<vmem>>, vector<8x128xf32>
    %cst = arith.constant dense<0.000000e+00> : vector<2048x128xf32>
    %2 = tpu.matmul %0, %1, %cst {dimension_numbers = #tpu.dot_dimension_numbers<[1], [0], [0], [1], [0, 0, 1, 1], [], []>} : vector<2048x8xf32>, vector<8x128xf32>, vector<2048x128xf32> -> vector<2048x128xf32>
    %c0_3 = arith.constant 0 : index
    %c0_4 = arith.constant 0 : index
    %3 = vector.load %arg3[%c0_3, %c0_4] : memref<1x128xf32, #tpu.memory_space<vmem>>, vector<1x128xf32>
    %4 = vector.broadcast %3 : vector<1x128xf32> to vector<2048x128xf32>
    %5 = arith.addf %2, %4 : vector<2048x128xf32>
    %cst_5 = arith.constant 0.000000e+00 : f32
    %6 = vector.broadcast %cst_5 : f32 to vector<2048x128xf32>
    %7 = arith.maximumf %5, %6 : vector<2048x128xf32>
    %8 = vector.shape_cast %7 : vector<2048x128xf32> to vector<8x256x128xf32>
    %cst_6 = arith.constant dense<0.000000e+00> : vector<8x128xf32>
    %9 = vector.multi_reduction <add>, %8, %cst_6 [1] : vector<8x256x128xf32> to vector<8x128xf32>
    %cst_7 = arith.constant 3.906250e-03 : f32
    %10 = vector.broadcast %cst_7 : f32 to vector<8x128xf32>
    %11 = arith.mulf %9, %10 : vector<8x128xf32>
    %c0_8 = arith.constant 0 : index
    %c0_9 = arith.constant 0 : index
    %12 = vector.load %arg16[%c0_8, %c0_9] : memref<8x128xf32, #tpu.memory_space<vmem>>, vector<8x128xf32>
    tpu.vector_store %arg16[%c0_8, %c0_9], %11 {strides = array<i32>} : memref<8x128xf32, #tpu.memory_space<vmem>>, vector<8x128xf32>,
    %13 = arith.truncf %11 : vector<8x128xf32> to vector<8x128xbf16>
    %c0_10 = arith.constant 0 : index
    %c0_11 = arith.constant 0 : index
    %14 = vector.load %arg4[%c0_10, %c0_11] : memref<128x2048xbf16, #tpu.memory_space<vmem>>, vector<128x2048xbf16>
    %cst_12 = arith.constant dense<0.000000e+00> : vector<8x2048xf32>
    %15 = tpu.matmul %13, %14, %cst_12 {dimension_numbers = #tpu.dot_dimension_numbers<[1], [0], [0], [1], [0, 0, 1, 1], [], []>} : vector<8x128xbf16>, vector<128x2048xbf16>, vector<8x2048xf32> -> vector<8x2048xf32>
    %c0_13 = arith.constant 0 : index
    %c0_14 = arith.constant 0 : index
    %16 = vector.load %arg5[%c0_13, %c0_14] : memref<1x2048xf32, #tpu.memory_space<vmem>>, vector<1x2048xf32>
    %17 = vector.broadcast %16 : vector<1x2048xf32> to vector<8x2048xf32>
    %18 = arith.addf %15, %17 : vector<8x2048xf32>
    %cst_15 = arith.constant 0.000000e+00 : f32
    %19 = vector.broadcast %cst_15 : f32 to vector<8x2048xf32>
    %20 = arith.maximumf %18, %19 : vector<8x2048xf32>
    %21 = vector.extract_strided_slice %20 {offsets = [0, 0], sizes = [8, 1024], strides = [1, 1]} : vector<8x2048xf32> to vector<8x1024xf32>
    %22 = arith.truncf %21 : vector<8x1024xf32> to vector<8x1024xbf16>
    %23 = vector.extract_strided_slice %20 {offsets = [0, 1024], sizes = [8, 1024], strides = [1, 1]} : vector<8x2048xf32> to vector<8x1024xf32>
    %24 = arith.truncf %23 : vector<8x1024xf32> to vector<8x1024xbf16>
    %c0_16 = arith.constant 0 : index
    %c0_17 = arith.constant 0 : index
    %25 = vector.load %arg6[%c0_16, %c0_17] : memref<1024x1024xbf16, #tpu.memory_space<vmem>>, vector<1024x1024xbf16>
    %cst_18 = arith.constant dense<0.000000e+00> : vector<8x1024xf32>
    %26 = tpu.matmul %22, %25, %cst_18 {dimension_numbers = #tpu.dot_dimension_numbers<[1], [0], [0], [1], [0, 0, 1, 1], [], []>} : vector<8x1024xbf16>, vector<1024x1024xbf16>, vector<8x1024xf32> -> vector<8x1024xf32>
    %c0_19 = arith.constant 0 : index
    %c0_20 = arith.constant 0 : index
    %27 = vector.load %arg7[%c0_19, %c0_20] : memref<1x1024xf32, #tpu.memory_space<vmem>>, vector<1x1024xf32>
    %28 = vector.broadcast %27 : vector<1x1024xf32> to vector<8x1024xf32>
    %29 = arith.addf %26, %28 : vector<8x1024xf32>
    %cst_21 = arith.constant 0.000000e+00 : f32
    %30 = vector.broadcast %cst_21 : f32 to vector<8x1024xf32>
    %31 = arith.maximumf %29, %30 : vector<8x1024xf32>
    %32 = arith.truncf %31 : vector<8x1024xf32> to vector<8x1024xbf16>
    %c0_22 = arith.constant 0 : index
    %c0_23 = arith.constant 0 : index
    %33 = vector.load %arg10[%c0_22, %c0_23] : memref<1024x128xbf16, #tpu.memory_space<vmem>>, vector<1024x128xbf16>
    %cst_24 = arith.constant dense<0.000000e+00> : vector<8x128xf32>
    %34 = tpu.matmul %32, %33, %cst_24 {dimension_numbers = #tpu.dot_dimension_numbers<[1], [0], [0], [1], [0, 0, 1, 1], [], []>} : vector<8x1024xbf16>, vector<1024x128xbf16>, vector<8x128xf32> -> vector<8x128xf32>
    %c0_25 = arith.constant 0 : index
    %c0_26 = arith.constant 0 : index
    %35 = vector.load %arg11[%c0_25, %c0_26] : memref<1x128xf32, #tpu.memory_space<vmem>>, vector<1x128xf32>
    %36 = vector.broadcast %35 : vector<1x128xf32> to vector<8x128xf32>
    %37 = arith.addf %34, %36 : vector<8x128xf32>
    %c0_27 = arith.constant 0 : index
    %c0_28 = arith.constant 0 : index
    %38 = vector.load %arg14[%c0_27, %c0_28] : memref<8x128xf32, #tpu.memory_space<vmem>>, vector<8x128xf32>
    tpu.vector_store %arg14[%c0_27, %c0_28], %37 {strides = array<i32>} : memref<8x128xf32, #tpu.memory_space<vmem>>, vector<8x128xf32>,
    %c0_29 = arith.constant 0 : index
    %c0_30 = arith.constant 0 : index
    %39 = vector.load %arg8[%c0_29, %c0_30] : memref<1024x1024xbf16, #tpu.memory_space<vmem>>, vector<1024x1024xbf16>
    %cst_31 = arith.constant dense<0.000000e+00> : vector<8x1024xf32>
    %40 = tpu.matmul %24, %39, %cst_31 {dimension_numbers = #tpu.dot_dimension_numbers<[1], [0], [0], [1], [0, 0, 1, 1], [], []>} : vector<8x1024xbf16>, vector<1024x1024xbf16>, vector<8x1024xf32> -> vector<8x1024xf32>
    %c0_32 = arith.constant 0 : index
    %c0_33 = arith.constant 0 : index
    %41 = vector.load %arg9[%c0_32, %c0_33] : memref<1x1024xf32, #tpu.memory_space<vmem>>, vector<1x1024xf32>
    %42 = vector.broadcast %41 : vector<1x1024xf32> to vector<8x1024xf32>
    %43 = arith.addf %40, %42 : vector<8x1024xf32>
    %cst_34 = arith.constant 0.000000e+00 : f32
    %44 = vector.broadcast %cst_34 : f32 to vector<8x1024xf32>
    %45 = arith.maximumf %43, %44 : vector<8x1024xf32>
    %46 = arith.truncf %45 : vector<8x1024xf32> to vector<8x1024xbf16>
    %c0_35 = arith.constant 0 : index
    %c0_36 = arith.constant 0 : index
    %47 = vector.load %arg12[%c0_35, %c0_36] : memref<1024x128xbf16, #tpu.memory_space<vmem>>, vector<1024x128xbf16>
    %cst_37 = arith.constant dense<0.000000e+00> : vector<8x128xf32>
    %48 = tpu.matmul %46, %47, %cst_37 {dimension_numbers = #tpu.dot_dimension_numbers<[1], [0], [0], [1], [0, 0, 1, 1], [], []>} : vector<8x1024xbf16>, vector<1024x128xbf16>, vector<8x128xf32> -> vector<8x128xf32>
    %c0_38 = arith.constant 0 : index
    %c0_39 = arith.constant 0 : index
    %49 = vector.load %arg13[%c0_38, %c0_39] : memref<1x128xf32, #tpu.memory_space<vmem>>, vector<1x128xf32>
    %50 = vector.broadcast %49 : vector<1x128xf32> to vector<8x128xf32>
    %51 = arith.addf %48, %50 : vector<8x128xf32>
    %c0_40 = arith.constant 0 : index
    %c0_41 = arith.constant 0 : index
    %52 = vector.load %arg15[%c0_40, %c0_41] : memref<8x128xf32, #tpu.memory_space<vmem>>, vector<8x128xf32>
    tpu.vector_store %arg15[%c0_40, %c0_41], %51 {strides = array<i32>} : memref<8x128xf32, #tpu.memory_space<vmem>>, vector<8x128xf32>,
    return
  }
  func.func @transform_0(%arg0: i32) -> (i32, i32) {
    %c0_i32 = arith.constant 0 : i32
    %c0_i32_0 = arith.constant 0 : i32
    return %arg0, %c0_i32 : i32, i32
  }
  func.func @transform_1(%arg0: i32) -> (i32, i32) {
    %c0_i32 = arith.constant 0 : i32
    %c0_i32_0 = arith.constant 0 : i32
    %c0_i32_1 = arith.constant 0 : i32
    return %c0_i32, %c0_i32_0 : i32, i32
  }
  func.func @transform_2(%arg0: i32) -> (i32, i32) {
    %c0_i32 = arith.constant 0 : i32
    %c0_i32_0 = arith.constant 0 : i32
    %c0_i32_1 = arith.constant 0 : i32
    return %c0_i32, %c0_i32_0 : i32, i32
  }
  func.func @transform_3(%arg0: i32) -> (i32, i32) {
    %c0_i32 = arith.constant 0 : i32
    %c0_i32_0 = arith.constant 0 : i32
    %c0_i32_1 = arith.constant 0 : i32
    return %c0_i32, %c0_i32_0 : i32, i32
  }
  func.func @transform_4(%arg0: i32) -> (i32, i32) {
    %c0_i32 = arith.constant 0 : i32
    %c0_i32_0 = arith.constant 0 : i32
    %c0_i32_1 = arith.constant 0 : i32
    return %c0_i32, %c0_i32_0 : i32, i32
  }
  func.func @transform_5(%arg0: i32) -> (i32, i32) {
    %c0_i32 = arith.constant 0 : i32
    %c0_i32_0 = arith.constant 0 : i32
    %c0_i32_1 = arith.constant 0 : i32
    return %c0_i32, %c0_i32_0 : i32, i32
  }
  func.func @transform_6(%arg0: i32) -> (i32, i32) {
    %c0_i32 = arith.constant 0 : i32
    %c0_i32_0 = arith.constant 0 : i32
    %c0_i32_1 = arith.constant 0 : i32
    return %c0_i32, %c0_i32_0 : i32, i32
  }
  func.func @transform_7(%arg0: i32) -> (i32, i32) {
    %c0_i32 = arith.constant 0 : i32
    %c0_i32_0 = arith.constant 0 : i32
    %c0_i32_1 = arith.constant 0 : i32
    return %c0_i32, %c0_i32_0 : i32, i32
  }
  func.func @transform_8(%arg0: i32) -> (i32, i32) {
    %c0_i32 = arith.constant 0 : i32
    %c0_i32_0 = arith.constant 0 : i32
    %c0_i32_1 = arith.constant 0 : i32
    return %c0_i32, %c0_i32_0 : i32, i32
  }
  func.func @transform_9(%arg0: i32) -> (i32, i32) {
    %c0_i32 = arith.constant 0 : i32
    %c0_i32_0 = arith.constant 0 : i32
    %c0_i32_1 = arith.constant 0 : i32
    return %c0_i32, %c0_i32_0 : i32, i32
  }
  func.func @transform_10(%arg0: i32) -> (i32, i32) {
    %c0_i32 = arith.constant 0 : i32
    %c0_i32_0 = arith.constant 0 : i32
    %c0_i32_1 = arith.constant 0 : i32
    return %c0_i32, %c0_i32_0 : i32, i32
  }
  func.func @transform_11(%arg0: i32) -> (i32, i32) {
    %c0_i32 = arith.constant 0 : i32
    %c0_i32_0 = arith.constant 0 : i32
    %c0_i32_1 = arith.constant 0 : i32
    return %c0_i32, %c0_i32_0 : i32, i32
  }
  func.func @transform_12(%arg0: i32) -> (i32, i32) {
    %c0_i32 = arith.constant 0 : i32
    %c0_i32_0 = arith.constant 0 : i32
    %c0_i32_1 = arith.constant 0 : i32
    return %c0_i32, %c0_i32_0 : i32, i32
  }
  func.func @transform_13(%arg0: i32) -> (i32, i32) {
    %c0_i32 = arith.constant 0 : i32
    %c0_i32_0 = arith.constant 0 : i32
    return %arg0, %c0_i32 : i32, i32
  }
  func.func @transform_14(%arg0: i32) -> (i32, i32) {
    %c0_i32 = arith.constant 0 : i32
    %c0_i32_0 = arith.constant 0 : i32
    return %arg0, %c0_i32 : i32, i32
  }
  func.func @transform_15(%arg0: i32) -> (i32, i32) {
    %c0_i32 = arith.constant 0 : i32
    %c0_i32_0 = arith.constant 0 : i32
    return %arg0, %c0_i32 : i32, i32
  }
}

</mosaic_0001>

<llo_original>
// kernel: classifier_forward.1
$region0: #{classifier_forward.1}
  #allocation0 [shape = 'u32[]', space=smem, size = 0x4, offset = 0x4, fixed_abs, tag = 'smem constant byte address 0x4 - core index']
  #allocation1 [shape = 'u32[72,128]{1,0:T(1,128)}', space=vmem, size = 0x9000, scoped, tag = 'internal scratch']
  %s0 = inlined_call_operand.vmem [shape: f32[2048,8], index: 0, kind: input, shape index: {}]
  %s1 = inlined_call_operand.hbm [shape: f32[8,128], index: 1, kind: input, shape index: {}]
  %s2 = inlined_call_operand.hbm [shape: f32[1,128], index: 2, kind: input, shape index: {}]
  %s3 = inlined_call_operand.vmem [shape: bf16[128,2048], index: 3, kind: input, shape index: {}]
  %s4 = inlined_call_operand.hbm [shape: f32[1,2048], index: 4, kind: input, shape index: {}]
  %s5 = inlined_call_operand.hbm [shape: bf16[1024,1024], index: 5, kind: input, shape index: {}]
  %s6 = inlined_call_operand.hbm [shape: f32[1,1024], index: 6, kind: input, shape index: {}]
  %s7 = inlined_call_operand.hbm [shape: bf16[1024,1024], index: 7, kind: input, shape index: {}]
  %s8 = inlined_call_operand.hbm [shape: f32[1,1024], index: 8, kind: input, shape index: {}]
  %s9 = inlined_call_operand.hbm [shape: bf16[1024,128], index: 9, kind: input, shape index: {}]
  %s10 = inlined_call_operand.hbm [shape: f32[1,128], index: 10, kind: input, shape index: {}]
  %s11 = inlined_call_operand.hbm [shape: bf16[1024,128], index: 11, kind: input, shape index: {}]
  %s12 = inlined_call_operand.hbm [shape: f32[1,128], index: 12, kind: input, shape index: {}]
  %s13 = inlined_call_operand.vmem [shape: f32[8,128], index: 13, kind: output, shape index: {0}]
  %s14 = inlined_call_operand.vmem [shape: f32[8,128], index: 14, kind: output, shape index: {1}]
  %s15 = inlined_call_operand.vmem [shape: f32[8,128], index: 15, kind: output, shape index: {2}]
  %16 = xla_tuple %s13, %s14, %s15
  %s17 = sld [smem:[#allocation0]]
  $region122: #{classifier_forward.1} parent=0
    _
  %s19 = ssub.s32 1, %s17
  %s20 = scalar_select 0, %s19, %s17
  $region1: #{classifier_forward.1} parent=0
    #allocation2 [shape = 'u8[4096]{0}', space=vmem, size = 0x1000, scoped, tag = 'input window, operand 1, single buffered']
    #allocation3 [shape = 's32[1]{0}', space=sflag, size = 0x4, scoped, tag = 'scoped memory for classifier_forward.1']
    #allocation4 [shape = 'u8[512]{0}', space=vmem, size = 0x400, scoped, tag = 'input window, operand 2, single buffered']
    #allocation5 [shape = 's32[1]{0}', space=sflag, size = 0x4, scoped, tag = 'scoped memory for classifier_forward.1']
    #allocation6 [shape = 'u8[8192]{0}', space=vmem, size = 0x2000, scoped, tag = 'input window, operand 4, single buffered']
    #allocation7 [shape = 'u8[2097152]{0}', space=vmem, size = 0x200000, scoped, tag = 'input window, operand 5, single buffered']
    #allocation8 [shape = 's32[1]{0}', space=sflag, size = 0x4, scoped, tag = 'scoped memory for classifier_forward.1']
    #allocation9 [shape = 'u8[4096]{0}', space=vmem, size = 0x1000, scoped, tag = 'input window, operand 6, single buffered']
    #allocation10 [shape = 'u8[2097152]{0}', space=vmem, size = 0x200000, scoped, tag = 'input window, operand 7, single buffered']
    #allocation11 [shape = 's32[1]{0}', space=sflag, size = 0x4, scoped, tag = 'scoped memory for classifier_forward.1']
    #allocation12 [shape = 'u8[4096]{0}', space=vmem, size = 0x1000, scoped, tag = 'input window, operand 8, single buffered']
    #allocation13 [shape = 'u8[262144]{0}', space=vmem, size = 0x40000, scoped, tag = 'input window, operand 9, single buffered']
    #allocation14 [shape = 's32[1]{0}', space=sflag, size = 0x4, scoped, tag = 'scoped memory for classifier_forward.1']
    #allocation15 [shape = 'u8[512]{0}', space=vmem, size = 0x400, scoped, tag = 'input window, operand 10, single buffered']
    #allocation16 [shape = 'u8[262144]{0}', space=vmem, size = 0x40000, scoped, tag = 'input window, operand 11, single buffered']
    #allocation17 [shape = 's32[1]{0}', space=sflag, size = 0x4, scoped, tag = 'scoped memory for classifier_forward.1']
    #allocation18 [shape = 'u8[512]{0}', space=vmem, size = 0x400, scoped, tag = 'input window, operand 12, single buffered']
    %21 = vsyncpa [#allocation3], 0
    %22 = vsyncpa [#allocation5], 0
    %23 = vsyncpa [#allocation8], 0
    %24 = vsyncpa [#allocation11], 0
    %25 = vsyncpa [#allocation14], 0
    %26 = vsyncpa [#allocation17], 0
    // Predicated region
    $region2: #{classifier_forward.1} parent=1 // pred_check
      _
    $region3: #{classifier_forward.1} parent=1 // pred_check_branch
      %28 = sbr.rel (0) target = $region5
    $region4: #{classifier_forward.1} parent=1 // pred_region
      _
    $region5: #{classifier_forward.1} parent=1 // pred_fallthru
      _
    // Predicated region
    $region6: #{classifier_forward.1} parent=1 // pred_check
      _
    $region7: #{classifier_forward.1} parent=1 // pred_check_branch
      %30 = sbr.rel (0) target = $region9
    $region8: #{classifier_forward.1} parent=1 // pred_region
      %32 = vsyncadd [#allocation3], 0
      %s34 = sshll.u32 %s1, 4
      %s35 = int_to_ptr.hbm [resolvable:$true] %s34
      %s36 = sshll.u32 [#allocation2], 4
      %s37 = int_to_ptr.vmem [resolvable:$true] %s36
      %39 = dma.hbm_to_vmem [thread:$0]  %s35, 128, %s37, [#allocation3]
    $region9: #{classifier_forward.1} parent=1 // pred_fallthru
      _
    // Predicated region
    $region10: #{classifier_forward.1} parent=1 // pred_check
      _
    $region11: #{classifier_forward.1} parent=1 // pred_check_branch
      %41 = sbr.rel (0) target = $region13
    $region12: #{classifier_forward.1} parent=1 // pred_region
      %43 = vsyncadd [#allocation5], 0
      %s45 = sshll.u32 %s2, 4
      %s46 = int_to_ptr.hbm [resolvable:$true] %s45
      %s47 = sshll.u32 [#allocation4], 4
      %s48 = int_to_ptr.vmem [resolvable:$true] %s47
      %50 = dma.hbm_to_vmem [thread:$0]  %s46, 16, %s48, [#allocation5]
    $region13: #{classifier_forward.1} parent=1 // pred_fallthru
      _
    // Predicated region
    $region14: #{classifier_forward.1} parent=1 // pred_check
      _
    $region15: #{classifier_forward.1} parent=1 // pred_check_branch
      %52 = sbr.rel (0) target = $region17
    $region16: #{classifier_forward.1} parent=1 // pred_region
      _
    $region17: #{classifier_forward.1} parent=1 // pred_fallthru
      _
    // Predicated region
    $region18: #{classifier_forward.1} parent=1 // pred_check
      _
    $region19: #{classifier_forward.1} parent=1 // pred_check_branch
      %54 = sbr.rel (0) target = $region21
    $region20: #{classifier_forward.1} parent=1 // pred_region
      %56 = vsyncadd [#allocation5], 0
      %s58 = sshll.u32 %s4, 4
      %s59 = int_to_ptr.hbm [resolvable:$true] %s58
      %s60 = sshll.u32 [#allocation6], 4
      %s61 = int_to_ptr.vmem [resolvable:$true] %s60
      %63 = dma.hbm_to_vmem [thread:$0]  %s59, 256, %s61, [#allocation5]
    $region21: #{classifier_forward.1} parent=1 // pred_fallthru
      _
    // Predicated region
    $region22: #{classifier_forward.1} parent=1 // pred_check
      _
    $region23: #{classifier_forward.1} parent=1 // pred_check_branch
      %65 = sbr.rel (0) target = $region25
    $region24: #{classifier_forward.1} parent=1 // pred_region
      %67 = vsyncadd [#allocation8], 0
      %s68 = sshll.u32 %s5, 4
      %s69 = int_to_ptr.hbm [resolvable:$true] %s68
      %s70 = sshll.u32 [#allocation7], 4
      %s71 = int_to_ptr.vmem [resolvable:$true] %s70
      %76 = dma.hbm_to_vmem [thread:$0]  %s69, 65536, %s71, [#allocation8], 512, 512, 32
    $region25: #{classifier_forward.1} parent=1 // pred_fallthru
      _
    // Predicated region
    $region26: #{classifier_forward.1} parent=1 // pred_check
      _
    $region27: #{classifier_forward.1} parent=1 // pred_check_branch
      %78 = sbr.rel (0) target = $region29
    $region28: #{classifier_forward.1} parent=1 // pred_region
      %80 = vsyncadd [#allocation8], 0
      %s82 = sshll.u32 %s6, 4
      %s83 = int_to_ptr.hbm [resolvable:$true] %s82
      %s84 = sshll.u32 [#allocation9], 4
      %s85 = int_to_ptr.vmem [resolvable:$true] %s84
      %87 = dma.hbm_to_vmem [thread:$0]  %s83, 128, %s85, [#allocation8]
    $region29: #{classifier_forward.1} parent=1 // pred_fallthru
      _
    // Predicated region
    $region30: #{classifier_forward.1} parent=1 // pred_check
      _
    $region31: #{classifier_forward.1} parent=1 // pred_check_branch
      %89 = sbr.rel (0) target = $region33
    $region32: #{classifier_forward.1} parent=1 // pred_region
      %91 = vsyncadd [#allocation11], 0
      %s92 = sshll.u32 %s7, 4
      %s93 = int_to_ptr.hbm [resolvable:$true] %s92
      %s94 = sshll.u32 [#allocation10], 4
      %s95 = int_to_ptr.vmem [resolvable:$true] %s94
      %100 = dma.hbm_to_vmem [thread:$0]  %s93, 65536, %s95, [#allocation11], 512, 512, 32
    $region33: #{classifier_forward.1} parent=1 // pred_fallthru
      _
    // Predicated region
    $region34: #{classifier_forward.1} parent=1 // pred_check
      _
    $region35: #{classifier_forward.1} parent=1 // pred_check_branch
      %102 = sbr.rel (0) target = $region37
    $region36: #{classifier_forward.1} parent=1 // pred_region
      %104 = vsyncadd [#allocation11], 0
      %s106 = sshll.u32 %s8, 4
      %s107 = int_to_ptr.hbm [resolvable:$true] %s106
      %s108 = sshll.u32 [#allocation12], 4
      %s109 = int_to_ptr.vmem [resolvable:$true] %s108
      %111 = dma.hbm_to_vmem [thread:$0]  %s107, 128, %s109, [#allocation11]
    $region37: #{classifier_forward.1} parent=1 // pred_fallthru
      _
    // Predicated region
    $region38: #{classifier_forward.1} parent=1 // pred_check
      _
    $region39: #{classifier_forward.1} parent=1 // pred_check_branch
      %113 = sbr.rel (0) target = $region41
    $region40: #{classifier_forward.1} parent=1 // pred_region
      %115 = vsyncadd [#allocation14], 0
      %s116 = sshll.u32 %s9, 4
      %s117 = int_to_ptr.hbm [resolvable:$true] %s116
      %s118 = sshll.u32 [#allocation13], 4
      %s119 = int_to_ptr.vmem [resolvable:$true] %s118
      %124 = dma.hbm_to_vmem [thread:$0]  %s117, 8192, %s119, [#allocation14], 64, 64, 4
    $region41: #{classifier_forward.1} parent=1 // pred_fallthru
      _
    // Predicated region
    $region42: #{classifier_forward.1} parent=1 // pred_check
      _
    $region43: #{classifier_forward.1} parent=1 // pred_check_branch
      %126 = sbr.rel (0) target = $region45
    $region44: #{classifier_forward.1} parent=1 // pred_region
      %128 = vsyncadd [#allocation14], 0
      %s130 = sshll.u32 %s10, 4
      %s131 = int_to_ptr.hbm [resolvable:$true] %s130
      %s132 = sshll.u32 [#allocation15], 4
      %s133 = int_to_ptr.vmem [resolvable:$true] %s132
      %135 = dma.hbm_to_vmem [thread:$0]  %s131, 16, %s133, [#allocation14]
    $region45: #{classifier_forward.1} parent=1 // pred_fallthru
      _
    // Predicated region
    $region46: #{classifier_forward.1} parent=1 // pred_check
      _
    $region47: #{classifier_forward.1} parent=1 // pred_check_branch
      %137 = sbr.rel (0) target = $region49
    $region48: #{classifier_forward.1} parent=1 // pred_region
      %139 = vsyncadd [#allocation17], 0
      %s140 = sshll.u32 %s11, 4
      %s141 = int_to_ptr.hbm [resolvable:$true] %s140
      %s142 = sshll.u32 [#allocation16], 4
      %s143 = int_to_ptr.vmem [resolvable:$true] %s142
      %148 = dma.hbm_to_vmem [thread:$0]  %s141, 8192, %s143, [#allocation17], 64, 64, 4
    $region49: #{classifier_forward.1} parent=1 // pred_fallthru
      _
    // Predicated region
    $region50: #{classifier_forward.1} parent=1 // pred_check
      _
    $region51: #{classifier_forward.1} parent=1 // pred_check_branch
      %150 = sbr.rel (0) target = $region53
    $region52: #{classifier_forward.1} parent=1 // pred_region
      %152 = vsyncadd [#allocation17], 0
      %s154 = sshll.u32 %s12, 4
      %s155 = int_to_ptr.hbm [resolvable:$true] %s154
      %s156 = sshll.u32 [#allocation18], 4
      %s157 = int_to_ptr.vmem [resolvable:$true] %s156
      %159 = dma.hbm_to_vmem [thread:$0]  %s155, 16, %s157, [#allocation17]
    $region53: #{classifier_forward.1} parent=1 // pred_fallthru
      _
    // Predicated region
    $region54: #{classifier_forward.1} parent=1 // pred_check
      _
    $region55: #{classifier_forward.1} parent=1 // pred_check_branch
      %161 = sbr.rel (0) target = $region57
    $region56: #{classifier_forward.1} parent=1 // pred_region
      %163 = dma.done [#allocation3], 128
    $region57: #{classifier_forward.1} parent=1 // pred_fallthru
      _
    // Predicated region
    $region58: #{classifier_forward.1} parent=1 // pred_check
      _
    $region59: #{classifier_forward.1} parent=1 // pred_check_branch
      %165 = sbr.rel (0) target = $region61
    $region60: #{classifier_forward.1} parent=1 // pred_region
      %167 = dma.done [#allocation5], 16
    $region61: #{classifier_forward.1} parent=1 // pred_fallthru
      _
    // Predicated region
    $region62: #{classifier_forward.1} parent=1 // pred_check
      _
    $region63: #{classifier_forward.1} parent=1 // pred_check_branch
      %169 = sbr.rel (0) target = $region65
    $region64: #{classifier_forward.1} parent=1 // pred_region
      %171 = dma.done [#allocation5], 256
    $region65: #{classifier_forward.1} parent=1 // pred_fallthru
      _
    // Predicated region
    $region66: #{classifier_forward.1} parent=1 // pred_check
      _
    $region67: #{classifier_forward.1} parent=1 // pred_check_branch
      %173 = sbr.rel (0) target = $region69
    $region68: #{classifier_forward.1} parent=1 // pred_region
      %175 = dma.done [#allocation8], 65536
    $region69: #{classifier_forward.1} parent=1 // pred_fallthru
      _
    // Predicated region
    $region70: #{classifier_forward.1} parent=1 // pred_check
      _
    $region71: #{classifier_forward.1} parent=1 // pred_check_branch
      %177 = sbr.rel (0) target = $region73
    $region72: #{classifier_forward.1} parent=1 // pred_region
      %179 = dma.done [#allocation8], 128
    $region73: #{classifier_forward.1} parent=1 // pred_fallthru
      _
    // Predicated region
    $region74: #{classifier_forward.1} parent=1 // pred_check
      _
    $region75: #{classifier_forward.1} parent=1 // pred_check_branch
      %181 = sbr.rel (0) target = $region77
    $region76: #{classifier_forward.1} parent=1 // pred_region
      %183 = dma.done [#allocation11], 65536
    $region77: #{classifier_forward.1} parent=1 // pred_fallthru
      _
    // Predicated region
    $region78: #{classifier_forward.1} parent=1 // pred_check
      _
    $region79: #{classifier_forward.1} parent=1 // pred_check_branch
      %185 = sbr.rel (0) target = $region81
    $region80: #{classifier_forward.1} parent=1 // pred_region
      %187 = dma.done [#allocation11], 128
    $region81: #{classifier_forward.1} parent=1 // pred_fallthru
      _
    // Predicated region
    $region82: #{classifier_forward.1} parent=1 // pred_check
      _
    $region83: #{classifier_forward.1} parent=1 // pred_check_branch
      %189 = sbr.rel (0) target = $region85
    $region84: #{classifier_forward.1} parent=1 // pred_region
      %191 = dma.done [#allocation14], 8192
    $region85: #{classifier_forward.1} parent=1 // pred_fallthru
      _
    // Predicated region
    $region86: #{classifier_forward.1} parent=1 // pred_check
      _
    $region87: #{classifier_forward.1} parent=1 // pred_check_branch
      %193 = sbr.rel (0) target = $region89
    $region88: #{classifier_forward.1} parent=1 // pred_region
      %195 = dma.done [#allocation14], 16
    $region89: #{classifier_forward.1} parent=1 // pred_fallthru
      _
    // Predicated region
    $region90: #{classifier_forward.1} parent=1 // pred_check
      _
    $region91: #{classifier_forward.1} parent=1 // pred_check_branch
      %197 = sbr.rel (0) target = $region93
    $region92: #{classifier_forward.1} parent=1 // pred_region
      %199 = dma.done [#allocation17], 8192
    $region93: #{classifier_forward.1} parent=1 // pred_fallthru
      _
    // Predicated region
    $region94: #{classifier_forward.1} parent=1 // pred_check
      _
    $region95: #{classifier_forward.1} parent=1 // pred_check_branch
      %201 = sbr.rel (0) target = $region97
    $region96: #{classifier_forward.1} parent=1 // pred_region
      %203 = dma.done [#allocation17], 16
    $region97: #{classifier_forward.1} parent=1 // pred_fallthru
      _
    %v204 = vld [vmem:[%s0] sm:$0xff]
    %v205 = vld [vmem:[%s0 + $0x8] sm:$0xff]
    %v206 = vld [vmem:[%s0 + $0x10] sm:$0xff]
    %v207 = vld [vmem:[%s0 + $0x18] sm:$0xff]
    %v208 = vld [vmem:[%s0 + $0x20] sm:$0xff]
    %v209 = vld [vmem:[%s0 + $0x28] sm:$0xff]
    %v210 = vld [vmem:[%s0 + $0x30] sm:$0xff]
    %v211 = vld [vmem:[%s0 + $0x38] sm:$0xff]
    %v212 = vld [vmem:[%s0 + $0x40] sm:$0xff]
    %v213 = vld [vmem:[%s0 + $0x48] sm:$0xff]
    %v214 = vld [vmem:[%s0 + $0x50] sm:$0xff]
    %v215 = vld [vmem:[%s0 + $0x58] sm:$0xff]
    %v216 = vld [vmem:[%s0 + $0x60] sm:$0xff]
    %v217 = vld [vmem:[%s0 + $0x68] sm:$0xff]
    %v218 = vld [vmem:[%s0 + $0x70] sm:$0xff]
    %v219 = vld [vmem:[%s0 + $0x78] sm:$0xff]
    %v220 = vld [vmem:[%s0 + $0x80] sm:$0xff]
    %v221 = vld [vmem:[%s0 + $0x88] sm:$0xff]
    %v222 = vld [vmem:[%s0 + $0x90] sm:$0xff]
    %v223 = vld [vmem:[%s0 + $0x98] sm:$0xff]
    %v224 = vld [vmem:[%s0 + $0xa0] sm:$0xff]
    %v225 = vld [vmem:[%s0 + $0xa8] sm:$0xff]
    %v226 = vld [vmem:[%s0 + $0xb0] sm:$0xff]
    %v227 = vld [vmem:[%s0 + $0xb8] sm:$0xff]
    %v228 = vld [vmem:[%s0 + $0xc0] sm:$0xff]
    %v229 = vld [vmem:[%s0 + $0xc8] sm:$0xff]
    %v230 = vld [vmem:[%s0 + $0xd0] sm:$0xff]
    %v231 = vld [vmem:[%s0 + $0xd8] sm:$0xff]
    %v232 = vld [vmem:[%s0 + $0xe0] sm:$0xff]
    %v233 = vld [vmem:[%s0 + $0xe8] sm:$0xff]
    %v234 = vld [vmem:[%s0 + $0xf0] sm:$0xff]
    %v235 = vld [vmem:[%s0 + $0xf8] sm:$0xff]
    %v236 = vld [vmem:[%s0 + $0x100] sm:$0xff]
    %v237 = vld [vmem:[%s0 + $0x108] sm:$0xff]
    %v238 = vld [vmem:[%s0 + $0x110] sm:$0xff]
    %v239 = vld [vmem:[%s0 + $0x118] sm:$0xff]
    %v240 = vld [vmem:[%s0 + $0x120] sm:$0xff]
    %v241 = vld [vmem:[%s0 + $0x128] sm:$0xff]
    %v242 = vld [vmem:[%s0 + $0x130] sm:$0xff]
    %v243 = vld [vmem:[%s0 + $0x138] sm:$0xff]
    %v244 = vld [vmem:[%s0 + $0x140] sm:$0xff]
    %v245 = vld [vmem:[%s0 + $0x148] sm:$0xff]
    %v246 = vld [vmem:[%s0 + $0x150] sm:$0xff]
    %v247 = vld [vmem:[%s0 + $0x158] sm:$0xff]
    %v248 = vld [vmem:[%s0 + $0x160] sm:$0xff]
    %v249 = vld [vmem:[%s0 + $0x168] sm:$0xff]
    %v250 = vld [vmem:[%s0 + $0x170] sm:$0xff]
    %v251 = vld [vmem:[%s0 + $0x178] sm:$0xff]
    %v252 = vld [vmem:[%s0 + $0x180] sm:$0xff]
    %v253 = vld [vmem:[%s0 + $0x188] sm:$0xff]
    %v254 = vld [vmem:[%s0 + $0x190] sm:$0xff]
    %v255 = vld [vmem:[%s0 + $0x198] sm:$0xff]
    %v256 = vld [vmem:[%s0 + $0x1a0] sm:$0xff]
    %v257 = vld [vmem:[%s0 + $0x1a8] sm:$0xff]
    %v258 = vld [vmem:[%s0 + $0x1b0] sm:$0xff]
    %v259 = vld [vmem:[%s0 + $0x1b8] sm:$0xff]
    %v260 = vld [vmem:[%s0 + $0x1c0] sm:$0xff]
    %v261 = vld [vmem:[%s0 + $0x1c8] sm:$0xff]
    %v262 = vld [vmem:[%s0 + $0x1d0] sm:$0xff]
    %v263 = vld [vmem:[%s0 + $0x1d8] sm:$0xff]
    %v264 = vld [vmem:[%s0 + $0x1e0] sm:$0xff]
    %v265 = vld [vmem:[%s0 + $0x1e8] sm:$0xff]
    %v266 = vld [vmem:[%s0 + $0x1f0] sm:$0xff]
    %v267 = vld [vmem:[%s0 + $0x1f8] sm:$0xff]
    %v268 = vld [vmem:[%s0 + $0x200] sm:$0xff]
    %v269 = vld [vmem:[%s0 + $0x208] sm:$0xff]
    %v270 = vld [vmem:[%s0 + $0x210] sm:$0xff]
    %v271 = vld [vmem:[%s0 + $0x218] sm:$0xff]
    %v272 = vld [vmem:[%s0 + $0x220] sm:$0xff]
    %v273 = vld [vmem:[%s0 + $0x228] sm:$0xff]
    %v274 = vld [vmem:[%s0 + $0x230] sm:$0xff]
    %v275 = vld [vmem:[%s0 + $0x238] sm:$0xff]
    %v276 = vld [vmem:[%s0 + $0x240] sm:$0xff]
    %v277 = vld [vmem:[%s0 + $0x248] sm:$0xff]
    %v278 = vld [vmem:[%s0 + $0x250] sm:$0xff]
    %v279 = vld [vmem:[%s0 + $0x258] sm:$0xff]
    %v280 = vld [vmem:[%s0 + $0x260] sm:$0xff]
    %v281 = vld [vmem:[%s0 + $0x268] sm:$0xff]
    %v282 = vld [vmem:[%s0 + $0x270] sm:$0xff]
    %v283 = vld [vmem:[%s0 + $0x278] sm:$0xff]
    %v284 = vld [vmem:[%s0 + $0x280] sm:$0xff]
    %v285 = vld [vmem:[%s0 + $0x288] sm:$0xff]
    %v286 = vld [vmem:[%s0 + $0x290] sm:$0xff]
    %v287 = vld [vmem:[%s0 + $0x298] sm:$0xff]
    %v288 = vld [vmem:[%s0 + $0x2a0] sm:$0xff]
    %v289 = vld [vmem:[%s0 + $0x2a8] sm:$0xff]
    %v290 = vld [vmem:[%s0 + $0x2b0] sm:$0xff]
    %v291 = vld [vmem:[%s0 + $0x2b8] sm:$0xff]
    %v292 = vld [vmem:[%s0 + $0x2c0] sm:$0xff]
    %v293 = vld [vmem:[%s0 + $0x2c8] sm:$0xff]
    %v294 = vld [vmem:[%s0 + $0x2d0] sm:$0xff]
    %v295 = vld [vmem:[%s0 + $0x2d8] sm:$0xff]
    %v296 = vld [vmem:[%s0 + $0x2e0] sm:$0xff]
    %v297 = vld [vmem:[%s0 + $0x2e8] sm:$0xff]
    %v298 = vld [vmem:[%s0 + $0x2f0] sm:$0xff]
    %v299 = vld [vmem:[%s0 + $0x2f8] sm:$0xff]
    %v300 = vld [vmem:[%s0 + $0x300] sm:$0xff]
    %v301 = vld [vmem:[%s0 + $0x308] sm:$0xff]
    %v302 = vld [vmem:[%s0 + $0x310] sm:$0xff]
    %v303 = vld [vmem:[%s0 + $0x318] sm:$0xff]
    %v304 = vld [vmem:[%s0 + $0x320] sm:$0xff]
    %v305 = vld [vmem:[%s0 + $0x328] sm:$0xff]
    %v306 = vld [vmem:[%s0 + $0x330] sm:$0xff]
    %v307 = vld [vmem:[%s0 + $0x338] sm:$0xff]
    %v308 = vld [vmem:[%s0 + $0x340] sm:$0xff]
    %v309 = vld [vmem:[%s0 + $0x348] sm:$0xff]
    %v310 = vld [vmem:[%s0 + $0x350] sm:$0xff]
    %v311 = vld [vmem:[%s0 + $0x358] sm:$0xff]
    %v312 = vld [vmem:[%s0 + $0x360] sm:$0xff]
    %v313 = vld [vmem:[%s0 + $0x368] sm:$0xff]
    %v314 = vld [vmem:[%s0 + $0x370] sm:$0xff]
    %v315 = vld [vmem:[%s0 + $0x378] sm:$0xff]
    %v316 = vld [vmem:[%s0 + $0x380] sm:$0xff]
    %v317 = vld [vmem:[%s0 + $0x388] sm:$0xff]
    %v318 = vld [vmem:[%s0 + $0x390] sm:$0xff]
    %v319 = vld [vmem:[%s0 + $0x398] sm:$0xff]
    %v320 = vld [vmem:[%s0 + $0x3a0] sm:$0xff]
    %v321 = vld [vmem:[%s0 + $0x3a8] sm:$0xff]
    %v322 = vld [vmem:[%s0 + $0x3b0] sm:$0xff]
    %v323 = vld [vmem:[%s0 + $0x3b8] sm:$0xff]
    %v324 = vld [vmem:[%s0 + $0x3c0] sm:$0xff]
    %v325 = vld [vmem:[%s0 + $0x3c8] sm:$0xff]
    %v326 = vld [vmem:[%s0 + $0x3d0] sm:$0xff]
    %v327 = vld [vmem:[%s0 + $0x3d8] sm:$0xff]
    %v328 = vld [vmem:[%s0 + $0x3e0] sm:$0xff]
    %v329 = vld [vmem:[%s0 + $0x3e8] sm:$0xff]
    %v330 = vld [vmem:[%s0 + $0x3f0] sm:$0xff]
    %v331 = vld [vmem:[%s0 + $0x3f8] sm:$0xff]
    %v332 = vld [vmem:[%s0 + $0x400] sm:$0xff]
    %v333 = vld [vmem:[%s0 + $0x408] sm:$0xff]
    %v334 = vld [vmem:[%s0 + $0x410] sm:$0xff]
    %v335 = vld [vmem:[%s0 + $0x418] sm:$0xff]
    %v336 = vld [vmem:[%s0 + $0x420] sm:$0xff]
    %v337 = vld [vmem:[%s0 + $0x428] sm:$0xff]
    %v338 = vld [vmem:[%s0 + $0x430] sm:$0xff]
    %v339 = vld [vmem:[%s0 + $0x438] sm:$0xff]
    %v340 = vld [vmem:[%s0 + $0x440] sm:$0xff]
    %v341 = vld [vmem:[%s0 + $0x448] sm:$0xff]
    %v342 = vld [vmem:[%s0 + $0x450] sm:$0xff]
    %v343 = vld [vmem:[%s0 + $0x458] sm:$0xff]
    %v344 = vld [vmem:[%s0 + $0x460] sm:$0xff]
    %v345 = vld [vmem:[%s0 + $0x468] sm:$0xff]
    %v346 = vld [vmem:[%s0 + $0x470] sm:$0xff]
    %v347 = vld [vmem:[%s0 + $0x478] sm:$0xff]
    %v348 = vld [vmem:[%s0 + $0x480] sm:$0xff]
    %v349 = vld [vmem:[%s0 + $0x488] sm:$0xff]
    %v350 = vld [vmem:[%s0 + $0x490] sm:$0xff]
    %v351 = vld [vmem:[%s0 + $0x498] sm:$0xff]
    %v352 = vld [vmem:[%s0 + $0x4a0] sm:$0xff]
    %v353 = vld [vmem:[%s0 + $0x4a8] sm:$0xff]
    %v354 = vld [vmem:[%s0 + $0x4b0] sm:$0xff]
    %v355 = vld [vmem:[%s0 + $0x4b8] sm:$0xff]
    %v356 = vld [vmem:[%s0 + $0x4c0] sm:$0xff]
    %v357 = vld [vmem:[%s0 + $0x4c8] sm:$0xff]
    %v358 = vld [vmem:[%s0 + $0x4d0] sm:$0xff]
    %v359 = vld [vmem:[%s0 + $0x4d8] sm:$0xff]
    %v360 = vld [vmem:[%s0 + $0x4e0] sm:$0xff]
    %v361 = vld [vmem:[%s0 + $0x4e8] sm:$0xff]
    %v362 = vld [vmem:[%s0 + $0x4f0] sm:$0xff]
    %v363 = vld [vmem:[%s0 + $0x4f8] sm:$0xff]
    %v364 = vld [vmem:[%s0 + $0x500] sm:$0xff]
    %v365 = vld [vmem:[%s0 + $0x508] sm:$0xff]
    %v366 = vld [vmem:[%s0 + $0x510] sm:$0xff]
    %v367 = vld [vmem:[%s0 + $0x518] sm:$0xff]
    %v368 = vld [vmem:[%s0 + $0x520] sm:$0xff]
    %v369 = vld [vmem:[%s0 + $0x528] sm:$0xff]
    %v370 = vld [vmem:[%s0 + $0x530] sm:$0xff]
    %v371 = vld [vmem:[%s0 + $0x538] sm:$0xff]
    %v372 = vld [vmem:[%s0 + $0x540] sm:$0xff]
    %v373 = vld [vmem:[%s0 + $0x548] sm:$0xff]
    %v374 = vld [vmem:[%s0 + $0x550] sm:$0xff]
    %v375 = vld [vmem:[%s0 + $0x558] sm:$0xff]
    %v376 = vld [vmem:[%s0 + $0x560] sm:$0xff]
    %v377 = vld [vmem:[%s0 + $0x568] sm:$0xff]
    %v378 = vld [vmem:[%s0 + $0x570] sm:$0xff]
    %v379 = vld [vmem:[%s0 + $0x578] sm:$0xff]
    %v380 = vld [vmem:[%s0 + $0x580] sm:$0xff]
    %v381 = vld [vmem:[%s0 + $0x588] sm:$0xff]
    %v382 = vld [vmem:[%s0 + $0x590] sm:$0xff]
    %v383 = vld [vmem:[%s0 + $0x598] sm:$0xff]
    %v384 = vld [vmem:[%s0 + $0x5a0] sm:$0xff]
    %v385 = vld [vmem:[%s0 + $0x5a8] sm:$0xff]
    %v386 = vld [vmem:[%s0 + $0x5b0] sm:$0xff]
    %v387 = vld [vmem:[%s0 + $0x5b8] sm:$0xff]
    %v388 = vld [vmem:[%s0 + $0x5c0] sm:$0xff]
    %v389 = vld [vmem:[%s0 + $0x5c8] sm:$0xff]
    %v390 = vld [vmem:[%s0 + $0x5d0] sm:$0xff]
    %v391 = vld [vmem:[%s0 + $0x5d8] sm:$0xff]
    %v392 = vld [vmem:[%s0 + $0x5e0] sm:$0xff]
    %v393 = vld [vmem:[%s0 + $0x5e8] sm:$0xff]
    %v394 = vld [vmem:[%s0 + $0x5f0] sm:$0xff]
    %v395 = vld [vmem:[%s0 + $0x5f8] sm:$0xff]
    %v396 = vld [vmem:[%s0 + $0x600] sm:$0xff]
    %v397 = vld [vmem:[%s0 + $0x608] sm:$0xff]
    %v398 = vld [vmem:[%s0 + $0x610] sm:$0xff]
    %v399 = vld [vmem:[%s0 + $0x618] sm:$0xff]
    %v400 = vld [vmem:[%s0 + $0x620] sm:$0xff]
    %v401 = vld [vmem:[%s0 + $0x628] sm:$0xff]
    %v402 = vld [vmem:[%s0 + $0x630] sm:$0xff]
    %v403 = vld [vmem:[%s0 + $0x638] sm:$0xff]
    %v404 = vld [vmem:[%s0 + $0x640] sm:$0xff]
    %v405 = vld [vmem:[%s0 + $0x648] sm:$0xff]
    %v406 = vld [vmem:[%s0 + $0x650] sm:$0xff]
    %v407 = vld [vmem:[%s0 + $0x658] sm:$0xff]
    %v408 = vld [vmem:[%s0 + $0x660] sm:$0xff]
    %v409 = vld [vmem:[%s0 + $0x668] sm:$0xff]
    %v410 = vld [vmem:[%s0 + $0x670] sm:$0xff]
    %v411 = vld [vmem:[%s0 + $0x678] sm:$0xff]
    %v412 = vld [vmem:[%s0 + $0x680] sm:$0xff]
    %v413 = vld [vmem:[%s0 + $0x688] sm:$0xff]
    %v414 = vld [vmem:[%s0 + $0x690] sm:$0xff]
    %v415 = vld [vmem:[%s0 + $0x698] sm:$0xff]
    %v416 = vld [vmem:[%s0 + $0x6a0] sm:$0xff]
    %v417 = vld [vmem:[%s0 + $0x6a8] sm:$0xff]
    %v418 = vld [vmem:[%s0 + $0x6b0] sm:$0xff]
    %v419 = vld [vmem:[%s0 + $0x6b8] sm:$0xff]
    %v420 = vld [vmem:[%s0 + $0x6c0] sm:$0xff]
    %v421 = vld [vmem:[%s0 + $0x6c8] sm:$0xff]
    %v422 = vld [vmem:[%s0 + $0x6d0] sm:$0xff]
    %v423 = vld [vmem:[%s0 + $0x6d8] sm:$0xff]
    %v424 = vld [vmem:[%s0 + $0x6e0] sm:$0xff]
    %v425 = vld [vmem:[%s0 + $0x6e8] sm:$0xff]
    %v426 = vld [vmem:[%s0 + $0x6f0] sm:$0xff]
    %v427 = vld [vmem:[%s0 + $0x6f8] sm:$0xff]
    %v428 = vld [vmem:[%s0 + $0x700] sm:$0xff]
    %v429 = vld [vmem:[%s0 + $0x708] sm:$0xff]
    %v430 = vld [vmem:[%s0 + $0x710] sm:$0xff]
    %v431 = vld [vmem:[%s0 + $0x718] sm:$0xff]
    %v432 = vld [vmem:[%s0 + $0x720] sm:$0xff]
    %v433 = vld [vmem:[%s0 + $0x728] sm:$0xff]
    %v434 = vld [vmem:[%s0 + $0x730] sm:$0xff]
    %v435 = vld [vmem:[%s0 + $0x738] sm:$0xff]
    %v436 = vld [vmem:[%s0 + $0x740] sm:$0xff]
    %v437 = vld [vmem:[%s0 + $0x748] sm:$0xff]
    %v438 = vld [vmem:[%s0 + $0x750] sm:$0xff]
    %v439 = vld [vmem:[%s0 + $0x758] sm:$0xff]
    %v440 = vld [vmem:[%s0 + $0x760] sm:$0xff]
    %v441 = vld [vmem:[%s0 + $0x768] sm:$0xff]
    %v442 = vld [vmem:[%s0 + $0x770] sm:$0xff]
    %v443 = vld [vmem:[%s0 + $0x778] sm:$0xff]
    %v444 = vld [vmem:[%s0 + $0x780] sm:$0xff]
    %v445 = vld [vmem:[%s0 + $0x788] sm:$0xff]
    %v446 = vld [vmem:[%s0 + $0x790] sm:$0xff]
    %v447 = vld [vmem:[%s0 + $0x798] sm:$0xff]
    %v448 = vld [vmem:[%s0 + $0x7a0] sm:$0xff]
    %v449 = vld [vmem:[%s0 + $0x7a8] sm:$0xff]
    %v450 = vld [vmem:[%s0 + $0x7b0] sm:$0xff]
    %v451 = vld [vmem:[%s0 + $0x7b8] sm:$0xff]
    %v452 = vld [vmem:[%s0 + $0x7c0] sm:$0xff]
    %v453 = vld [vmem:[%s0 + $0x7c8] sm:$0xff]
    %v454 = vld [vmem:[%s0 + $0x7d0] sm:$0xff]
    %v455 = vld [vmem:[%s0 + $0x7d8] sm:$0xff]
    %v456 = vld [vmem:[%s0 + $0x7e0] sm:$0xff]
    %v457 = vld [vmem:[%s0 + $0x7e8] sm:$0xff]
    %v458 = vld [vmem:[%s0 + $0x7f0] sm:$0xff]
    %v459 = vld [vmem:[%s0 + $0x7f8] sm:$0xff]
    %v460 = vld [vmem:[#allocation2] sm:$0xff]
    %v461 = vld [vmem:[#allocation4] sm:$0x1]
    %v463 = vperm.slane %v461, 0
    %vm465 = vcmask 64512
    %v467 = vsel %vm465, %v204, 0
    %v470 = vsel %vm465, %v205, 0
    %v473 = vsel %vm465, %v206, 0
    %v476 = vsel %vm465, %v207, 0
    %v479 = vsel %vm465, %v208, 0
    %v482 = vsel %vm465, %v209, 0
    %v485 = vsel %vm465, %v210, 0
    %v488 = vsel %vm465, %v211, 0
    %v491 = vsel %vm465, %v212, 0
    %v494 = vsel %vm465, %v213, 0
    %v497 = vsel %vm465, %v214, 0
    %v500 = vsel %vm465, %v215, 0
    %v503 = vsel %vm465, %v216, 0
    %v506 = vsel %vm465, %v217, 0
    %v509 = vsel %vm465, %v218, 0
    %v512 = vsel %vm465, %v219, 0
    %v515 = vsel %vm465, %v220, 0
    %v518 = vsel %vm465, %v221, 0
    %v521 = vsel %vm465, %v222, 0
    %v524 = vsel %vm465, %v223, 0
    %v527 = vsel %vm465, %v224, 0
    %v530 = vsel %vm465, %v225, 0
    %v533 = vsel %vm465, %v226, 0
    %v536 = vsel %vm465, %v227, 0
    %v539 = vsel %vm465, %v228, 0
    %v542 = vsel %vm465, %v229, 0
    %v545 = vsel %vm465, %v230, 0
    %v548 = vsel %vm465, %v231, 0
    %v551 = vsel %vm465, %v232, 0
    %v554 = vsel %vm465, %v233, 0
    %v557 = vsel %vm465, %v234, 0
    %v560 = vsel %vm465, %v235, 0
    %v563 = vsel %vm465, %v236, 0
    %v566 = vsel %vm465, %v237, 0
    %v569 = vsel %vm465, %v238, 0
    %v572 = vsel %vm465, %v239, 0
    %v575 = vsel %vm465, %v240, 0
    %v578 = vsel %vm465, %v241, 0
    %v581 = vsel %vm465, %v242, 0
    %v584 = vsel %vm465, %v243, 0
    %v587 = vsel %vm465, %v244, 0
    %v590 = vsel %vm465, %v245, 0
    %v593 = vsel %vm465, %v246, 0
    %v596 = vsel %vm465, %v247, 0
    %v599 = vsel %vm465, %v248, 0
    %v602 = vsel %vm465, %v249, 0
    %v605 = vsel %vm465, %v250, 0
    %v608 = vsel %vm465, %v251, 0
    %v611 = vsel %vm465, %v252, 0
    %v614 = vsel %vm465, %v253, 0
    %v617 = vsel %vm465, %v254, 0
    %v620 = vsel %vm465, %v255, 0
    %v623 = vsel %vm465, %v256, 0
    %v626 = vsel %vm465, %v257, 0
    %v629 = vsel %vm465, %v258, 0
    %v632 = vsel %vm465, %v259, 0
    %v635 = vsel %vm465, %v260, 0
    %v638 = vsel %vm465, %v261, 0
    %v641 = vsel %vm465, %v262, 0
    %v644 = vsel %vm465, %v263, 0
    %v647 = vsel %vm465, %v264, 0
    %v650 = vsel %vm465, %v265, 0
    %v653 = vsel %vm465, %v266, 0
    %v656 = vsel %vm465, %v267, 0
    %v659 = vsel %vm465, %v268, 0
    %v662 = vsel %vm465, %v269, 0
    %v665 = vsel %vm465, %v270, 0
    %v668 = vsel %vm465, %v271, 0
    %v671 = vsel %vm465, %v272, 0
    %v674 = vsel %vm465, %v273, 0
    %v677 = vsel %vm465, %v274, 0
    %v680 = vsel %vm465, %v275, 0
    %v683 = vsel %vm465, %v276, 0
    %v686 = vsel %vm465, %v277, 0
    %v689 = vsel %vm465, %v278, 0
    %v692 = vsel %vm465, %v279, 0
    %v695 = vsel %vm465, %v280, 0
    %v698 = vsel %vm465, %v281, 0
    %v701 = vsel %vm465, %v282, 0
    %v704 = vsel %vm465, %v283, 0
    %v707 = vsel %vm465, %v284, 0
    %v710 = vsel %vm465, %v285, 0
    %v713 = vsel %vm465, %v286, 0
    %v716 = vsel %vm465, %v287, 0
    %v719 = vsel %vm465, %v288, 0
    %v722 = vsel %vm465, %v289, 0
    %v725 = vsel %vm465, %v290, 0
    %v728 = vsel %vm465, %v291, 0
    %v731 = vsel %vm465, %v292, 0
    %v734 = vsel %vm465, %v293, 0
    %v737 = vsel %vm465, %v294, 0
    %v740 = vsel %vm465, %v295, 0
    %v743 = vsel %vm465, %v296, 0
    %v746 = vsel %vm465, %v297, 0
    %v749 = vsel %vm465, %v298, 0
    %v752 = vsel %vm465, %v299, 0
    %v755 = vsel %vm465, %v300, 0
    %v758 = vsel %vm465, %v301, 0
    %v761 = vsel %vm465, %v302, 0
    %v764 = vsel %vm465, %v303, 0
    %v767 = vsel %vm465, %v304, 0
    %v770 = vsel %vm465, %v305, 0
    %v773 = vsel %vm465, %v306, 0
    %v776 = vsel %vm465, %v307, 0
    %v779 = vsel %vm465, %v308, 0
    %v782 = vsel %vm465, %v309, 0
    %v785 = vsel %vm465, %v310, 0
    %v788 = vsel %vm465, %v311, 0
    %v791 = vsel %vm465, %v312, 0
    %v794 = vsel %vm465, %v313, 0
    %v797 = vsel %vm465, %v314, 0
    %v800 = vsel %vm465, %v315, 0
    %v803 = vsel %vm465, %v316, 0
    %v806 = vsel %vm465, %v317, 0
    %v809 = vsel %vm465, %v318, 0
    %v812 = vsel %vm465, %v319, 0
    %v815 = vsel %vm465, %v320, 0
    %v818 = vsel %vm465, %v321, 0
    %v821 = vsel %vm465, %v322, 0
    %v824 = vsel %vm465, %v323, 0
    %v827 = vsel %vm465, %v324, 0
    %v830 = vsel %vm465, %v325, 0
    %v833 = vsel %vm465, %v326, 0
    %v836 = vsel %vm465, %v327, 0
    %v839 = vsel %vm465, %v328, 0
    %v842 = vsel %vm465, %v329, 0
    %v845 = vsel %vm465, %v330, 0
    %v848 = vsel %vm465, %v331, 0
    %v851 = vsel %vm465, %v332, 0
    %v854 = vsel %vm465, %v333, 0
    %v857 = vsel %vm465, %v334, 0
    %v860 = vsel %vm465, %v335, 0
    %v863 = vsel %vm465, %v336, 0
    %v866 = vsel %vm465, %v337, 0
    %v869 = vsel %vm465, %v338, 0
    %v872 = vsel %vm465, %v339, 0
    %v875 = vsel %vm465, %v340, 0
    %v878 = vsel %vm465, %v341, 0
    %v881 = vsel %vm465, %v342, 0
    %v884 = vsel %vm465, %v343, 0
    %v887 = vsel %vm465, %v344, 0
    %v890 = vsel %vm465, %v345, 0
    %v893 = vsel %vm465, %v346, 0
    %v896 = vsel %vm465, %v347, 0
    %v899 = vsel %vm465, %v348, 0
    %v902 = vsel %vm465, %v349, 0
    %v905 = vsel %vm465, %v350, 0
    %v908 = vsel %vm465, %v351, 0
    %v911 = vsel %vm465, %v352, 0
    %v914 = vsel %vm465, %v353, 0
    %v917 = vsel %vm465, %v354, 0
    %v920 = vsel %vm465, %v355, 0
    %v923 = vsel %vm465, %v356, 0
    %v926 = vsel %vm465, %v357, 0
    %v929 = vsel %vm465, %v358, 0
    %v932 = vsel %vm465, %v359, 0
    %v935 = vsel %vm465, %v360, 0
    %v938 = vsel %vm465, %v361, 0
    %v941 = vsel %vm465, %v362, 0
    %v944 = vsel %vm465, %v363, 0
    %v947 = vsel %vm465, %v364, 0
    %v950 = vsel %vm465, %v365, 0
    %v953 = vsel %vm465, %v366, 0
    %v956 = vsel %vm465, %v367, 0
    %v959 = vsel %vm465, %v368, 0
    %v962 = vsel %vm465, %v369, 0
    %v965 = vsel %vm465, %v370, 0
    %v968 = vsel %vm465, %v371, 0
    %v971 = vsel %vm465, %v372, 0
    %v974 = vsel %vm465, %v373, 0
    %v977 = vsel %vm465, %v374, 0
    %v980 = vsel %vm465, %v375, 0
    %v983 = vsel %vm465, %v376, 0
    %v986 = vsel %vm465, %v377, 0
    %v989 = vsel %vm465, %v378, 0
    %v992 = vsel %vm465, %v379, 0
    %v995 = vsel %vm465, %v380, 0
    %v998 = vsel %vm465, %v381, 0
    %v1001 = vsel %vm465, %v382, 0
    %v1004 = vsel %vm465, %v383, 0
    %v1007 = vsel %vm465, %v384, 0
    %v1010 = vsel %vm465, %v385, 0
    %v1013 = vsel %vm465, %v386, 0
    %v1016 = vsel %vm465, %v387, 0
    %v1019 = vsel %vm465, %v388, 0
    %v1022 = vsel %vm465, %v389, 0
    %v1025 = vsel %vm465, %v390, 0
    %v1028 = vsel %vm465, %v391, 0
    %v1031 = vsel %vm465, %v392, 0
    %v1034 = vsel %vm465, %v393, 0
    %v1037 = vsel %vm465, %v394, 0
    %v1040 = vsel %vm465, %v395, 0
    %v1043 = vsel %vm465, %v396, 0
    %v1046 = vsel %vm465, %v397, 0
    %v1049 = vsel %vm465, %v398, 0
    %v1052 = vsel %vm465, %v399, 0
    %v1055 = vsel %vm465, %v400, 0
    %v1058 = vsel %vm465, %v401, 0
    %v1061 = vsel %vm465, %v402, 0
    %v1064 = vsel %vm465, %v403, 0
    %v1067 = vsel %vm465, %v404, 0
    %v1070 = vsel %vm465, %v405, 0
    %v1073 = vsel %vm465, %v406, 0
    %v1076 = vsel %vm465, %v407, 0
    %v1079 = vsel %vm465, %v408, 0
    %v1082 = vsel %vm465, %v409, 0
    %v1085 = vsel %vm465, %v410, 0
    %v1088 = vsel %vm465, %v411, 0
    %v1091 = vsel %vm465, %v412, 0
    %v1094 = vsel %vm465, %v413, 0
    %v1097 = vsel %vm465, %v414, 0
    %v1100 = vsel %vm465, %v415, 0
    %v1103 = vsel %vm465, %v416, 0
    %v1106 = vsel %vm465, %v417, 0
    %v1109 = vsel %vm465, %v418, 0
    %v1112 = vsel %vm465, %v419, 0
    %v1115 = vsel %vm465, %v420, 0
    %v1118 = vsel %vm465, %v421, 0
    %v1121 = vsel %vm465, %v422, 0
    %v1124 = vsel %vm465, %v423, 0
    %v1127 = vsel %vm465, %v424, 0
    %v1130 = vsel %vm465, %v425, 0
    %v1133 = vsel %vm465, %v426, 0
    %v1136 = vsel %vm465, %v427, 0
    %v1139 = vsel %vm465, %v428, 0
    %v1142 = vsel %vm465, %v429, 0
    %v1145 = vsel %vm465, %v430, 0
    %v1148 = vsel %vm465, %v431, 0
    %v1151 = vsel %vm465, %v432, 0
    %v1154 = vsel %vm465, %v433, 0
    %v1157 = vsel %vm465, %v434, 0
    %v1160 = vsel %vm465, %v435, 0
    %v1163 = vsel %vm465, %v436, 0
    %v1166 = vsel %vm465, %v437, 0
    %v1169 = vsel %vm465, %v438, 0
    %v1172 = vsel %vm465, %v439, 0
    %v1175 = vsel %vm465, %v440, 0
    %v1178 = vsel %vm465, %v441, 0
    %v1181 = vsel %vm465, %v442, 0
    %v1184 = vsel %vm465, %v443, 0
    %v1187 = vsel %vm465, %v444, 0
    %v1190 = vsel %vm465, %v445, 0
    %v1193 = vsel %vm465, %v446, 0
    %v1196 = vsel %vm465, %v447, 0
    %v1199 = vsel %vm465, %v448, 0
    %v1202 = vsel %vm465, %v449, 0
    %v1205 = vsel %vm465, %v450, 0
    %v1208 = vsel %vm465, %v451, 0
    %v1211 = vsel %vm465, %v452, 0
    %v1214 = vsel %vm465, %v453, 0
    %v1217 = vsel %vm465, %v454, 0
    %v1220 = vsel %vm465, %v455, 0
    %v1223 = vsel %vm465, %v456, 0
    %v1226 = vsel %vm465, %v457, 0
    %v1229 = vsel %vm465, %v458, 0
    %v1232 = vsel %vm465, %v459, 0
    %1234 = vmatpush.msra.mxu0 0.0
    %1235 = vmatpush.msra.mxu0 0.0
    %1236 = vmatpush.msra.mxu0 0.0
    %1237 = vmatpush.msra.mxu0 0.0
    %1238 = vmatpush.msra.mxu0 0.0
    %1239 = vmatpush.msra.mxu0 0.0
    %1240 = vmatpush.msra.mxu0 0.0
    %1241 = vmatpush.msra.mxu0 0.0
    %1242 = vmatpush.msra.mxu0 0.0
    %1243 = vmatpush.msra.mxu0 0.0
    %1244 = vmatpush.msra.mxu0 0.0
    %1245 = vmatpush.msra.mxu0 0.0
    %1246 = vmatpush.msra.mxu0 0.0
    %1247 = vmatpush.msra.mxu0 0.0
    %1248 = vmatpush.msra.mxu0 0.0
    %1249 = vmatpush.msra.mxu0 %v460
    %1250 = vmatmul.f32.gmra.mxu0 %v467
    %v1251 = vpop.f32.mrf.mxu0
    %v1252 = vadd.f32 %v463, %v1251
    %1253 = vmatmul.f32.gmra.mxu0 %v470
    %v1254 = vpop.f32.mrf.mxu0
    %v1255 = vadd.f32 %v463, %v1254
    %1256 = vmatmul.f32.gmra.mxu0 %v473
    %v1257 = vpop.f32.mrf.mxu0
    %v1258 = vadd.f32 %v463, %v1257
    %1259 = vmatmul.f32.gmra.mxu0 %v476
    %v1260 = vpop.f32.mrf.mxu0
    %v1261 = vadd.f32 %v463, %v1260
    %1262 = vmatmul.f32.gmra.mxu0 %v479
    %v1263 = vpop.f32.mrf.mxu0
    %v1264 = vadd.f32 %v463, %v1263
    %1265 = vmatmul.f32.gmra.mxu0 %v482
    %v1266 = vpop.f32.mrf.mxu0
    %v1267 = vadd.f32 %v463, %v1266
    %1268 = vmatmul.f32.gmra.mxu0 %v485
    %v1269 = vpop.f32.mrf.mxu0
    %v1270 = vadd.f32 %v463, %v1269
    %1271 = vmatmul.f32.gmra.mxu0 %v488
    %v1272 = vpop.f32.mrf.mxu0
    %v1273 = vadd.f32 %v463, %v1272
    %1274 = vmatmul.f32.gmra.mxu0 %v491
    %v1275 = vpop.f32.mrf.mxu0
    %v1276 = vadd.f32 %v463, %v1275
    %1277 = vmatmul.f32.gmra.mxu0 %v494
    %v1278 = vpop.f32.mrf.mxu0
    %v1279 = vadd.f32 %v463, %v1278
    %1280 = vmatmul.f32.gmra.mxu0 %v497
    %v1281 = vpop.f32.mrf.mxu0
    %v1282 = vadd.f32 %v463, %v1281
    %1283 = vmatmul.f32.gmra.mxu0 %v500
    %v1284 = vpop.f32.mrf.mxu0
    %v1285 = vadd.f32 %v463, %v1284
    %1286 = vmatmul.f32.gmra.mxu0 %v503
    %v1287 = vpop.f32.mrf.mxu0
    %v1288 = vadd.f32 %v463, %v1287
    %1289 = vmatmul.f32.gmra.mxu0 %v506
    %v1290 = vpop.f32.mrf.mxu0
    %v1291 = vadd.f32 %v463, %v1290
    %1292 = vmatmul.f32.gmra.mxu0 %v509
    %v1293 = vpop.f32.mrf.mxu0
    %v1294 = vadd.f32 %v463, %v1293
    %1295 = vmatmul.f32.gmra.mxu0 %v512
    %v1296 = vpop.f32.mrf.mxu0
    %v1297 = vadd.f32 %v463, %v1296
    %1298 = vmatmul.f32.gmra.mxu0 %v515
    %v1299 = vpop.f32.mrf.mxu0
    %v1300 = vadd.f32 %v463, %v1299
    %1301 = vmatmul.f32.gmra.mxu0 %v518
    %v1302 = vpop.f32.mrf.mxu0
    %v1303 = vadd.f32 %v463, %v1302
    %1304 = vmatmul.f32.gmra.mxu0 %v521
    %v1305 = vpop.f32.mrf.mxu0
    %v1306 = vadd.f32 %v463, %v1305
    %1307 = vmatmul.f32.gmra.mxu0 %v524
    %v1308 = vpop.f32.mrf.mxu0
    %v1309 = vadd.f32 %v463, %v1308
    %1310 = vmatmul.f32.gmra.mxu0 %v527
    %v1311 = vpop.f32.mrf.mxu0
    %v1312 = vadd.f32 %v463, %v1311
    %1313 = vmatmul.f32.gmra.mxu0 %v530
    %v1314 = vpop.f32.mrf.mxu0
    %v1315 = vadd.f32 %v463, %v1314
    %1316 = vmatmul.f32.gmra.mxu0 %v533
    %v1317 = vpop.f32.mrf.mxu0
    %v1318 = vadd.f32 %v463, %v1317
    %1319 = vmatmul.f32.gmra.mxu0 %v536
    %v1320 = vpop.f32.mrf.mxu0
    %v1321 = vadd.f32 %v463, %v1320
    %1322 = vmatmul.f32.gmra.mxu0 %v539
    %v1323 = vpop.f32.mrf.mxu0
    %v1324 = vadd.f32 %v463, %v1323
    %1325 = vmatmul.f32.gmra.mxu0 %v542
    %v1326 = vpop.f32.mrf.mxu0
    %v1327 = vadd.f32 %v463, %v1326
    %1328 = vmatmul.f32.gmra.mxu0 %v545
    %v1329 = vpop.f32.mrf.mxu0
    %v1330 = vadd.f32 %v463, %v1329
    %1331 = vmatmul.f32.gmra.mxu0 %v548
    %v1332 = vpop.f32.mrf.mxu0
    %v1333 = vadd.f32 %v463, %v1332
    %1334 = vmatmul.f32.gmra.mxu0 %v551
    %v1335 = vpop.f32.mrf.mxu0
    %v1336 = vadd.f32 %v463, %v1335
    %1337 = vmatmul.f32.gmra.mxu0 %v554
    %v1338 = vpop.f32.mrf.mxu0
    %v1339 = vadd.f32 %v463, %v1338
    %1340 = vmatmul.f32.gmra.mxu0 %v557
    %v1341 = vpop.f32.mrf.mxu0
    %v1342 = vadd.f32 %v463, %v1341
    %1343 = vmatmul.f32.gmra.mxu0 %v560
    %v1344 = vpop.f32.mrf.mxu0
    %v1345 = vadd.f32 %v463, %v1344
    %1346 = vmatmul.f32.gmra.mxu0 %v563
    %v1347 = vpop.f32.mrf.mxu0
    %v1348 = vadd.f32 %v463, %v1347
    %1349 = vmatmul.f32.gmra.mxu0 %v566
    %v1350 = vpop.f32.mrf.mxu0
    %v1351 = vadd.f32 %v463, %v1350
    %1352 = vmatmul.f32.gmra.mxu0 %v569
    %v1353 = vpop.f32.mrf.mxu0
    %v1354 = vadd.f32 %v463, %v1353
    %1355 = vmatmul.f32.gmra.mxu0 %v572
    %v1356 = vpop.f32.mrf.mxu0
    %v1357 = vadd.f32 %v463, %v1356
    %1358 = vmatmul.f32.gmra.mxu0 %v575
    %v1359 = vpop.f32.mrf.mxu0
    %v1360 = vadd.f32 %v463, %v1359
    %1361 = vmatmul.f32.gmra.mxu0 %v578
    %v1362 = vpop.f32.mrf.mxu0
    %v1363 = vadd.f32 %v463, %v1362
    %1364 = vmatmul.f32.gmra.mxu0 %v581
    %v1365 = vpop.f32.mrf.mxu0
    %v1366 = vadd.f32 %v463, %v1365
    %1367 = vmatmul.f32.gmra.mxu0 %v584
    %v1368 = vpop.f32.mrf.mxu0
    %v1369 = vadd.f32 %v463, %v1368
    %1370 = vmatmul.f32.gmra.mxu0 %v587
    %v1371 = vpop.f32.mrf.mxu0
    %v1372 = vadd.f32 %v463, %v1371
    %1373 = vmatmul.f32.gmra.mxu0 %v590
    %v1374 = vpop.f32.mrf.mxu0
    %v1375 = vadd.f32 %v463, %v1374
    %1376 = vmatmul.f32.gmra.mxu0 %v593
    %v1377 = vpop.f32.mrf.mxu0
    %v1378 = vadd.f32 %v463, %v1377
    %1379 = vmatmul.f32.gmra.mxu0 %v596
    %v1380 = vpop.f32.mrf.mxu0
    %v1381 = vadd.f32 %v463, %v1380
    %1382 = vmatmul.f32.gmra.mxu0 %v599
    %v1383 = vpop.f32.mrf.mxu0
    %v1384 = vadd.f32 %v463, %v1383
    %1385 = vmatmul.f32.gmra.mxu0 %v602
    %v1386 = vpop.f32.mrf.mxu0
    %v1387 = vadd.f32 %v463, %v1386
    %1388 = vmatmul.f32.gmra.mxu0 %v605
    %v1389 = vpop.f32.mrf.mxu0
    %v1390 = vadd.f32 %v463, %v1389
    %1391 = vmatmul.f32.gmra.mxu0 %v608
    %v1392 = vpop.f32.mrf.mxu0
    %v1393 = vadd.f32 %v463, %v1392
    %1394 = vmatmul.f32.gmra.mxu0 %v611
    %v1395 = vpop.f32.mrf.mxu0
    %v1396 = vadd.f32 %v463, %v1395
    %1397 = vmatmul.f32.gmra.mxu0 %v614
    %v1398 = vpop.f32.mrf.mxu0
    %v1399 = vadd.f32 %v463, %v1398
    %1400 = vmatmul.f32.gmra.mxu0 %v617
    %v1401 = vpop.f32.mrf.mxu0
    %v1402 = vadd.f32 %v463, %v1401
    %1403 = vmatmul.f32.gmra.mxu0 %v620
    %v1404 = vpop.f32.mrf.mxu0
    %v1405 = vadd.f32 %v463, %v1404
    %1406 = vmatmul.f32.gmra.mxu0 %v623
    %v1407 = vpop.f32.mrf.mxu0
    %v1408 = vadd.f32 %v463, %v1407
    %1409 = vmatmul.f32.gmra.mxu0 %v626
    %v1410 = vpop.f32.mrf.mxu0
    %v1411 = vadd.f32 %v463, %v1410
    %1412 = vmatmul.f32.gmra.mxu0 %v629
    %v1413 = vpop.f32.mrf.mxu0
    %v1414 = vadd.f32 %v463, %v1413
    %1415 = vmatmul.f32.gmra.mxu0 %v632
    %v1416 = vpop.f32.mrf.mxu0
    %v1417 = vadd.f32 %v463, %v1416
    %1418 = vmatmul.f32.gmra.mxu0 %v635
    %v1419 = vpop.f32.mrf.mxu0
    %v1420 = vadd.f32 %v463, %v1419
    %1421 = vmatmul.f32.gmra.mxu0 %v638
    %v1422 = vpop.f32.mrf.mxu0
    %v1423 = vadd.f32 %v463, %v1422
    %1424 = vmatmul.f32.gmra.mxu0 %v641
    %v1425 = vpop.f32.mrf.mxu0
    %v1426 = vadd.f32 %v463, %v1425
    %1427 = vmatmul.f32.gmra.mxu0 %v644
    %v1428 = vpop.f32.mrf.mxu0
    %v1429 = vadd.f32 %v463, %v1428
    %1430 = vmatmul.f32.gmra.mxu0 %v647
    %v1431 = vpop.f32.mrf.mxu0
    %v1432 = vadd.f32 %v463, %v1431
    %1433 = vmatmul.f32.gmra.mxu0 %v650
    %v1434 = vpop.f32.mrf.mxu0
    %v1435 = vadd.f32 %v463, %v1434
    %1436 = vmatmul.f32.gmra.mxu0 %v653
    %v1437 = vpop.f32.mrf.mxu0
    %v1438 = vadd.f32 %v463, %v1437
    %1439 = vmatmul.f32.gmra.mxu0 %v656
    %v1440 = vpop.f32.mrf.mxu0
    %v1441 = vadd.f32 %v463, %v1440
    %1442 = vmatmul.f32.gmra.mxu0 %v659
    %v1443 = vpop.f32.mrf.mxu0
    %v1444 = vadd.f32 %v463, %v1443
    %1445 = vmatmul.f32.gmra.mxu0 %v662
    %v1446 = vpop.f32.mrf.mxu0
    %v1447 = vadd.f32 %v463, %v1446
    %1448 = vmatmul.f32.gmra.mxu0 %v665
    %v1449 = vpop.f32.mrf.mxu0
    %v1450 = vadd.f32 %v463, %v1449
    %1451 = vmatmul.f32.gmra.mxu0 %v668
    %v1452 = vpop.f32.mrf.mxu0
    %v1453 = vadd.f32 %v463, %v1452
    %1454 = vmatmul.f32.gmra.mxu0 %v671
    %v1455 = vpop.f32.mrf.mxu0
    %v1456 = vadd.f32 %v463, %v1455
    %1457 = vmatmul.f32.gmra.mxu0 %v674
    %v1458 = vpop.f32.mrf.mxu0
    %v1459 = vadd.f32 %v463, %v1458
    %1460 = vmatmul.f32.gmra.mxu0 %v677
    %v1461 = vpop.f32.mrf.mxu0
    %v1462 = vadd.f32 %v463, %v1461
    %1463 = vmatmul.f32.gmra.mxu0 %v680
    %v1464 = vpop.f32.mrf.mxu0
    %v1465 = vadd.f32 %v463, %v1464
    %1466 = vmatmul.f32.gmra.mxu0 %v683
    %v1467 = vpop.f32.mrf.mxu0
    %v1468 = vadd.f32 %v463, %v1467
    %1469 = vmatmul.f32.gmra.mxu0 %v686
    %v1470 = vpop.f32.mrf.mxu0
    %v1471 = vadd.f32 %v463, %v1470
    %1472 = vmatmul.f32.gmra.mxu0 %v689
    %v1473 = vpop.f32.mrf.mxu0
    %v1474 = vadd.f32 %v463, %v1473
    %1475 = vmatmul.f32.gmra.mxu0 %v692
    %v1476 = vpop.f32.mrf.mxu0
    %v1477 = vadd.f32 %v463, %v1476
    %1478 = vmatmul.f32.gmra.mxu0 %v695
    %v1479 = vpop.f32.mrf.mxu0
    %v1480 = vadd.f32 %v463, %v1479
    %1481 = vmatmul.f32.gmra.mxu0 %v698
    %v1482 = vpop.f32.mrf.mxu0
    %v1483 = vadd.f32 %v463, %v1482
    %1484 = vmatmul.f32.gmra.mxu0 %v701
    %v1485 = vpop.f32.mrf.mxu0
    %v1486 = vadd.f32 %v463, %v1485
    %1487 = vmatmul.f32.gmra.mxu0 %v704
    %v1488 = vpop.f32.mrf.mxu0
    %v1489 = vadd.f32 %v463, %v1488
    %1490 = vmatmul.f32.gmra.mxu0 %v707
    %v1491 = vpop.f32.mrf.mxu0
    %v1492 = vadd.f32 %v463, %v1491
    %1493 = vmatmul.f32.gmra.mxu0 %v710
    %v1494 = vpop.f32.mrf.mxu0
    %v1495 = vadd.f32 %v463, %v1494
    %1496 = vmatmul.f32.gmra.mxu0 %v713
    %v1497 = vpop.f32.mrf.mxu0
    %v1498 = vadd.f32 %v463, %v1497
    %1499 = vmatmul.f32.gmra.mxu0 %v716
    %v1500 = vpop.f32.mrf.mxu0
    %v1501 = vadd.f32 %v463, %v1500
    %1502 = vmatmul.f32.gmra.mxu0 %v719
    %v1503 = vpop.f32.mrf.mxu0
    %v1504 = vadd.f32 %v463, %v1503
    %1505 = vmatmul.f32.gmra.mxu0 %v722
    %v1506 = vpop.f32.mrf.mxu0
    %v1507 = vadd.f32 %v463, %v1506
    %1508 = vmatmul.f32.gmra.mxu0 %v725
    %v1509 = vpop.f32.mrf.mxu0
    %v1510 = vadd.f32 %v463, %v1509
    %1511 = vmatmul.f32.gmra.mxu0 %v728
    %v1512 = vpop.f32.mrf.mxu0
    %v1513 = vadd.f32 %v463, %v1512
    %1514 = vmatmul.f32.gmra.mxu0 %v731
    %v1515 = vpop.f32.mrf.mxu0
    %v1516 = vadd.f32 %v463, %v1515
    %1517 = vmatmul.f32.gmra.mxu0 %v734
    %v1518 = vpop.f32.mrf.mxu0
    %v1519 = vadd.f32 %v463, %v1518
    %1520 = vmatmul.f32.gmra.mxu0 %v737
    %v1521 = vpop.f32.mrf.mxu0
    %v1522 = vadd.f32 %v463, %v1521
    %1523 = vmatmul.f32.gmra.mxu0 %v740
    %v1524 = vpop.f32.mrf.mxu0
    %v1525 = vadd.f32 %v463, %v1524
    %1526 = vmatmul.f32.gmra.mxu0 %v743
    %v1527 = vpop.f32.mrf.mxu0
    %v1528 = vadd.f32 %v463, %v1527
    %1529 = vmatmul.f32.gmra.mxu0 %v746
    %v1530 = vpop.f32.mrf.mxu0
    %v1531 = vadd.f32 %v463, %v1530
    %1532 = vmatmul.f32.gmra.mxu0 %v749
    %v1533 = vpop.f32.mrf.mxu0
    %v1534 = vadd.f32 %v463, %v1533
    %1535 = vmatmul.f32.gmra.mxu0 %v752
    %v1536 = vpop.f32.mrf.mxu0
    %v1537 = vadd.f32 %v463, %v1536
    %1538 = vmatmul.f32.gmra.mxu0 %v755
    %v1539 = vpop.f32.mrf.mxu0
    %v1540 = vadd.f32 %v463, %v1539
    %1541 = vmatmul.f32.gmra.mxu0 %v758
    %v1542 = vpop.f32.mrf.mxu0
    %v1543 = vadd.f32 %v463, %v1542
    %1544 = vmatmul.f32.gmra.mxu0 %v761
    %v1545 = vpop.f32.mrf.mxu0
    %v1546 = vadd.f32 %v463, %v1545
    %1547 = vmatmul.f32.gmra.mxu0 %v764
    %v1548 = vpop.f32.mrf.mxu0
    %v1549 = vadd.f32 %v463, %v1548
    %1550 = vmatmul.f32.gmra.mxu0 %v767
    %v1551 = vpop.f32.mrf.mxu0
    %v1552 = vadd.f32 %v463, %v1551
    %1553 = vmatmul.f32.gmra.mxu0 %v770
    %v1554 = vpop.f32.mrf.mxu0
    %v1555 = vadd.f32 %v463, %v1554
    %1556 = vmatmul.f32.gmra.mxu0 %v773
    %v1557 = vpop.f32.mrf.mxu0
    %v1558 = vadd.f32 %v463, %v1557
    %1559 = vmatmul.f32.gmra.mxu0 %v776
    %v1560 = vpop.f32.mrf.mxu0
    %v1561 = vadd.f32 %v463, %v1560
    %1562 = vmatmul.f32.gmra.mxu0 %v779
    %v1563 = vpop.f32.mrf.mxu0
    %v1564 = vadd.f32 %v463, %v1563
    %1565 = vmatmul.f32.gmra.mxu0 %v782
    %v1566 = vpop.f32.mrf.mxu0
    %v1567 = vadd.f32 %v463, %v1566
    %1568 = vmatmul.f32.gmra.mxu0 %v785
    %v1569 = vpop.f32.mrf.mxu0
    %v1570 = vadd.f32 %v463, %v1569
    %1571 = vmatmul.f32.gmra.mxu0 %v788
    %v1572 = vpop.f32.mrf.mxu0
    %v1573 = vadd.f32 %v463, %v1572
    %1574 = vmatmul.f32.gmra.mxu0 %v791
    %v1575 = vpop.f32.mrf.mxu0
    %v1576 = vadd.f32 %v463, %v1575
    %1577 = vmatmul.f32.gmra.mxu0 %v794
    %v1578 = vpop.f32.mrf.mxu0
    %v1579 = vadd.f32 %v463, %v1578
    %1580 = vmatmul.f32.gmra.mxu0 %v797
    %v1581 = vpop.f32.mrf.mxu0
    %v1582 = vadd.f32 %v463, %v1581
    %1583 = vmatmul.f32.gmra.mxu0 %v800
    %v1584 = vpop.f32.mrf.mxu0
    %v1585 = vadd.f32 %v463, %v1584
    %1586 = vmatmul.f32.gmra.mxu0 %v803
    %v1587 = vpop.f32.mrf.mxu0
    %v1588 = vadd.f32 %v463, %v1587
    %1589 = vmatmul.f32.gmra.mxu0 %v806
    %v1590 = vpop.f32.mrf.mxu0
    %v1591 = vadd.f32 %v463, %v1590
    %1592 = vmatmul.f32.gmra.mxu0 %v809
    %v1593 = vpop.f32.mrf.mxu0
    %v1594 = vadd.f32 %v463, %v1593
    %1595 = vmatmul.f32.gmra.mxu0 %v812
    %v1596 = vpop.f32.mrf.mxu0
    %v1597 = vadd.f32 %v463, %v1596
    %1598 = vmatmul.f32.gmra.mxu0 %v815
    %v1599 = vpop.f32.mrf.mxu0
    %v1600 = vadd.f32 %v463, %v1599
    %1601 = vmatmul.f32.gmra.mxu0 %v818
    %v1602 = vpop.f32.mrf.mxu0
    %v1603 = vadd.f32 %v463, %v1602
    %1604 = vmatmul.f32.gmra.mxu0 %v821
    %v1605 = vpop.f32.mrf.mxu0
    %v1606 = vadd.f32 %v463, %v1605
    %1607 = vmatmul.f32.gmra.mxu0 %v824
    %v1608 = vpop.f32.mrf.mxu0
    %v1609 = vadd.f32 %v463, %v1608
    %1610 = vmatmul.f32.gmra.mxu0 %v827
    %v1611 = vpop.f32.mrf.mxu0
    %v1612 = vadd.f32 %v463, %v1611
    %1613 = vmatmul.f32.gmra.mxu0 %v830
    %v1614 = vpop.f32.mrf.mxu0
    %v1615 = vadd.f32 %v463, %v1614
    %1616 = vmatmul.f32.gmra.mxu0 %v833
    %v1617 = vpop.f32.mrf.mxu0
    %v1618 = vadd.f32 %v463, %v1617
    %1619 = vmatmul.f32.gmra.mxu0 %v836
    %v1620 = vpop.f32.mrf.mxu0
    %v1621 = vadd.f32 %v463, %v1620
    %1622 = vmatmul.f32.gmra.mxu0 %v839
    %v1623 = vpop.f32.mrf.mxu0
    %v1624 = vadd.f32 %v463, %v1623
    %1625 = vmatmul.f32.gmra.mxu0 %v842
    %v1626 = vpop.f32.mrf.mxu0
    %v1627 = vadd.f32 %v463, %v1626
    %1628 = vmatmul.f32.gmra.mxu0 %v845
    %v1629 = vpop.f32.mrf.mxu0
    %v1630 = vadd.f32 %v463, %v1629
    %1631 = vmatmul.f32.gmra.mxu0 %v848
    %v1632 = vpop.f32.mrf.mxu0
    %v1633 = vadd.f32 %v463, %v1632
    %1634 = vmatmul.f32.gmra.mxu0 %v851
    %v1635 = vpop.f32.mrf.mxu0
    %v1636 = vadd.f32 %v463, %v1635
    %1637 = vmatmul.f32.gmra.mxu0 %v854
    %v1638 = vpop.f32.mrf.mxu0
    %v1639 = vadd.f32 %v463, %v1638
    %1640 = vmatmul.f32.gmra.mxu0 %v857
    %v1641 = vpop.f32.mrf.mxu0
    %v1642 = vadd.f32 %v463, %v1641
    %1643 = vmatmul.f32.gmra.mxu0 %v860
    %v1644 = vpop.f32.mrf.mxu0
    %v1645 = vadd.f32 %v463, %v1644
    %1646 = vmatmul.f32.gmra.mxu0 %v863
    %v1647 = vpop.f32.mrf.mxu0
    %v1648 = vadd.f32 %v463, %v1647
    %1649 = vmatmul.f32.gmra.mxu0 %v866
    %v1650 = vpop.f32.mrf.mxu0
    %v1651 = vadd.f32 %v463, %v1650
    %1652 = vmatmul.f32.gmra.mxu0 %v869
    %v1653 = vpop.f32.mrf.mxu0
    %v1654 = vadd.f32 %v463, %v1653
    %1655 = vmatmul.f32.gmra.mxu0 %v872
    %v1656 = vpop.f32.mrf.mxu0
    %v1657 = vadd.f32 %v463, %v1656
    %1658 = vmatmul.f32.gmra.mxu0 %v875
    %v1659 = vpop.f32.mrf.mxu0
    %v1660 = vadd.f32 %v463, %v1659
    %1661 = vmatmul.f32.gmra.mxu0 %v878
    %v1662 = vpop.f32.mrf.mxu0
    %v1663 = vadd.f32 %v463, %v1662
    %1664 = vmatmul.f32.gmra.mxu0 %v881
    %v1665 = vpop.f32.mrf.mxu0
    %v1666 = vadd.f32 %v463, %v1665
    %1667 = vmatmul.f32.gmra.mxu0 %v884
    %v1668 = vpop.f32.mrf.mxu0
    %v1669 = vadd.f32 %v463, %v1668
    %1670 = vmatmul.f32.gmra.mxu0 %v887
    %v1671 = vpop.f32.mrf.mxu0
    %v1672 = vadd.f32 %v463, %v1671
    %1673 = vmatmul.f32.gmra.mxu0 %v890
    %v1674 = vpop.f32.mrf.mxu0
    %v1675 = vadd.f32 %v463, %v1674
    %1676 = vmatmul.f32.gmra.mxu0 %v893
    %v1677 = vpop.f32.mrf.mxu0
    %v1678 = vadd.f32 %v463, %v1677
    %1679 = vmatmul.f32.gmra.mxu0 %v896
    %v1680 = vpop.f32.mrf.mxu0
    %v1681 = vadd.f32 %v463, %v1680
    %1682 = vmatmul.f32.gmra.mxu0 %v899
    %v1683 = vpop.f32.mrf.mxu0
    %v1684 = vadd.f32 %v463, %v1683
    %1685 = vmatmul.f32.gmra.mxu0 %v902
    %v1686 = vpop.f32.mrf.mxu0
    %v1687 = vadd.f32 %v463, %v1686
    %1688 = vmatmul.f32.gmra.mxu0 %v905
    %v1689 = vpop.f32.mrf.mxu0
    %v1690 = vadd.f32 %v463, %v1689
    %1691 = vmatmul.f32.gmra.mxu0 %v908
    %v1692 = vpop.f32.mrf.mxu0
    %v1693 = vadd.f32 %v463, %v1692
    %1694 = vmatmul.f32.gmra.mxu0 %v911
    %v1695 = vpop.f32.mrf.mxu0
    %v1696 = vadd.f32 %v463, %v1695
    %1697 = vmatmul.f32.gmra.mxu0 %v914
    %v1698 = vpop.f32.mrf.mxu0
    %v1699 = vadd.f32 %v463, %v1698
    %1700 = vmatmul.f32.gmra.mxu0 %v917
    %v1701 = vpop.f32.mrf.mxu0
    %v1702 = vadd.f32 %v463, %v1701
    %1703 = vmatmul.f32.gmra.mxu0 %v920
    %v1704 = vpop.f32.mrf.mxu0
    %v1705 = vadd.f32 %v463, %v1704
    %1706 = vmatmul.f32.gmra.mxu0 %v923
    %v1707 = vpop.f32.mrf.mxu0
    %v1708 = vadd.f32 %v463, %v1707
    %1709 = vmatmul.f32.gmra.mxu0 %v926
    %v1710 = vpop.f32.mrf.mxu0
    %v1711 = vadd.f32 %v463, %v1710
    %1712 = vmatmul.f32.gmra.mxu0 %v929
    %v1713 = vpop.f32.mrf.mxu0
    %v1714 = vadd.f32 %v463, %v1713
    %1715 = vmatmul.f32.gmra.mxu0 %v932
    %v1716 = vpop.f32.mrf.mxu0
    %v1717 = vadd.f32 %v463, %v1716
    %1718 = vmatmul.f32.gmra.mxu0 %v935
    %v1719 = vpop.f32.mrf.mxu0
    %v1720 = vadd.f32 %v463, %v1719
    %1721 = vmatmul.f32.gmra.mxu0 %v938
    %v1722 = vpop.f32.mrf.mxu0
    %v1723 = vadd.f32 %v463, %v1722
    %1724 = vmatmul.f32.gmra.mxu0 %v941
    %v1725 = vpop.f32.mrf.mxu0
    %v1726 = vadd.f32 %v463, %v1725
    %1727 = vmatmul.f32.gmra.mxu0 %v944
    %v1728 = vpop.f32.mrf.mxu0
    %v1729 = vadd.f32 %v463, %v1728
    %1730 = vmatmul.f32.gmra.mxu0 %v947
    %v1731 = vpop.f32.mrf.mxu0
    %v1732 = vadd.f32 %v463, %v1731
    %1733 = vmatmul.f32.gmra.mxu0 %v950
    %v1734 = vpop.f32.mrf.mxu0
    %v1735 = vadd.f32 %v463, %v1734
    %1736 = vmatmul.f32.gmra.mxu0 %v953
    %v1737 = vpop.f32.mrf.mxu0
    %v1738 = vadd.f32 %v463, %v1737
    %1739 = vmatmul.f32.gmra.mxu0 %v956
    %v1740 = vpop.f32.mrf.mxu0
    %v1741 = vadd.f32 %v463, %v1740
    %1742 = vmatmul.f32.gmra.mxu0 %v959
    %v1743 = vpop.f32.mrf.mxu0
    %v1744 = vadd.f32 %v463, %v1743
    %1745 = vmatmul.f32.gmra.mxu0 %v962
    %v1746 = vpop.f32.mrf.mxu0
    %v1747 = vadd.f32 %v463, %v1746
    %1748 = vmatmul.f32.gmra.mxu0 %v965
    %v1749 = vpop.f32.mrf.mxu0
    %v1750 = vadd.f32 %v463, %v1749
    %1751 = vmatmul.f32.gmra.mxu0 %v968
    %v1752 = vpop.f32.mrf.mxu0
    %v1753 = vadd.f32 %v463, %v1752
    %1754 = vmatmul.f32.gmra.mxu0 %v971
    %v1755 = vpop.f32.mrf.mxu0
    %v1756 = vadd.f32 %v463, %v1755
    %1757 = vmatmul.f32.gmra.mxu0 %v974
    %v1758 = vpop.f32.mrf.mxu0
    %v1759 = vadd.f32 %v463, %v1758
    %1760 = vmatmul.f32.gmra.mxu0 %v977
    %v1761 = vpop.f32.mrf.mxu0
    %v1762 = vadd.f32 %v463, %v1761
    %1763 = vmatmul.f32.gmra.mxu0 %v980
    %v1764 = vpop.f32.mrf.mxu0
    %v1765 = vadd.f32 %v463, %v1764
    %1766 = vmatmul.f32.gmra.mxu0 %v983
    %v1767 = vpop.f32.mrf.mxu0
    %v1768 = vadd.f32 %v463, %v1767
    %1769 = vmatmul.f32.gmra.mxu0 %v986
    %v1770 = vpop.f32.mrf.mxu0
    %v1771 = vadd.f32 %v463, %v1770
    %1772 = vmatmul.f32.gmra.mxu0 %v989
    %v1773 = vpop.f32.mrf.mxu0
    %v1774 = vadd.f32 %v463, %v1773
    %1775 = vmatmul.f32.gmra.mxu0 %v992
    %v1776 = vpop.f32.mrf.mxu0
    %v1777 = vadd.f32 %v463, %v1776
    %1778 = vmatmul.f32.gmra.mxu0 %v995
    %v1779 = vpop.f32.mrf.mxu0
    %v1780 = vadd.f32 %v463, %v1779
    %1781 = vmatmul.f32.gmra.mxu0 %v998
    %v1782 = vpop.f32.mrf.mxu0
    %v1783 = vadd.f32 %v463, %v1782
    %1784 = vmatmul.f32.gmra.mxu0 %v1001
    %v1785 = vpop.f32.mrf.mxu0
    %v1786 = vadd.f32 %v463, %v1785
    %1787 = vmatmul.f32.gmra.mxu0 %v1004
    %v1788 = vpop.f32.mrf.mxu0
    %v1789 = vadd.f32 %v463, %v1788
    %1790 = vmatmul.f32.gmra.mxu0 %v1007
    %v1791 = vpop.f32.mrf.mxu0
    %v1792 = vadd.f32 %v463, %v1791
    %1793 = vmatmul.f32.gmra.mxu0 %v1010
    %v1794 = vpop.f32.mrf.mxu0
    %v1795 = vadd.f32 %v463, %v1794
    %1796 = vmatmul.f32.gmra.mxu0 %v1013
    %v1797 = vpop.f32.mrf.mxu0
    %v1798 = vadd.f32 %v463, %v1797
    %1799 = vmatmul.f32.gmra.mxu0 %v1016
    %v1800 = vpop.f32.mrf.mxu0
    %v1801 = vadd.f32 %v463, %v1800
    %1802 = vmatmul.f32.gmra.mxu0 %v1019
    %v1803 = vpop.f32.mrf.mxu0
    %v1804 = vadd.f32 %v463, %v1803
    %1805 = vmatmul.f32.gmra.mxu0 %v1022
    %v1806 = vpop.f32.mrf.mxu0
    %v1807 = vadd.f32 %v463, %v1806
    %1808 = vmatmul.f32.gmra.mxu0 %v1025
    %v1809 = vpop.f32.mrf.mxu0
    %v1810 = vadd.f32 %v463, %v1809
    %1811 = vmatmul.f32.gmra.mxu0 %v1028
    %v1812 = vpop.f32.mrf.mxu0
    %v1813 = vadd.f32 %v463, %v1812
    %1814 = vmatmul.f32.gmra.mxu0 %v1031
    %v1815 = vpop.f32.mrf.mxu0
    %v1816 = vadd.f32 %v463, %v1815
    %1817 = vmatmul.f32.gmra.mxu0 %v1034
    %v1818 = vpop.f32.mrf.mxu0
    %v1819 = vadd.f32 %v463, %v1818
    %1820 = vmatmul.f32.gmra.mxu0 %v1037
    %v1821 = vpop.f32.mrf.mxu0
    %v1822 = vadd.f32 %v463, %v1821
    %1823 = vmatmul.f32.gmra.mxu0 %v1040
    %v1824 = vpop.f32.mrf.mxu0
    %v1825 = vadd.f32 %v463, %v1824
    %1826 = vmatmul.f32.gmra.mxu0 %v1043
    %v1827 = vpop.f32.mrf.mxu0
    %v1828 = vadd.f32 %v463, %v1827
    %1829 = vmatmul.f32.gmra.mxu0 %v1046
    %v1830 = vpop.f32.mrf.mxu0
    %v1831 = vadd.f32 %v463, %v1830
    %1832 = vmatmul.f32.gmra.mxu0 %v1049
    %v1833 = vpop.f32.mrf.mxu0
    %v1834 = vadd.f32 %v463, %v1833
    %1835 = vmatmul.f32.gmra.mxu0 %v1052
    %v1836 = vpop.f32.mrf.mxu0
    %v1837 = vadd.f32 %v463, %v1836
    %1838 = vmatmul.f32.gmra.mxu0 %v1055
    %v1839 = vpop.f32.mrf.mxu0
    %v1840 = vadd.f32 %v463, %v1839
    %1841 = vmatmul.f32.gmra.mxu0 %v1058
    %v1842 = vpop.f32.mrf.mxu0
    %v1843 = vadd.f32 %v463, %v1842
    %1844 = vmatmul.f32.gmra.mxu0 %v1061
    %v1845 = vpop.f32.mrf.mxu0
    %v1846 = vadd.f32 %v463, %v1845
    %1847 = vmatmul.f32.gmra.mxu0 %v1064
    %v1848 = vpop.f32.mrf.mxu0
    %v1849 = vadd.f32 %v463, %v1848
    %1850 = vmatmul.f32.gmra.mxu0 %v1067
    %v1851 = vpop.f32.mrf.mxu0
    %v1852 = vadd.f32 %v463, %v1851
    %1853 = vmatmul.f32.gmra.mxu0 %v1070
    %v1854 = vpop.f32.mrf.mxu0
    %v1855 = vadd.f32 %v463, %v1854
    %1856 = vmatmul.f32.gmra.mxu0 %v1073
    %v1857 = vpop.f32.mrf.mxu0
    %v1858 = vadd.f32 %v463, %v1857
    %1859 = vmatmul.f32.gmra.mxu0 %v1076
    %v1860 = vpop.f32.mrf.mxu0
    %v1861 = vadd.f32 %v463, %v1860
    %1862 = vmatmul.f32.gmra.mxu0 %v1079
    %v1863 = vpop.f32.mrf.mxu0
    %v1864 = vadd.f32 %v463, %v1863
    %1865 = vmatmul.f32.gmra.mxu0 %v1082
    %v1866 = vpop.f32.mrf.mxu0
    %v1867 = vadd.f32 %v463, %v1866
    %1868 = vmatmul.f32.gmra.mxu0 %v1085
    %v1869 = vpop.f32.mrf.mxu0
    %v1870 = vadd.f32 %v463, %v1869
    %1871 = vmatmul.f32.gmra.mxu0 %v1088
    %v1872 = vpop.f32.mrf.mxu0
    %v1873 = vadd.f32 %v463, %v1872
    %1874 = vmatmul.f32.gmra.mxu0 %v1091
    %v1875 = vpop.f32.mrf.mxu0
    %v1876 = vadd.f32 %v463, %v1875
    %1877 = vmatmul.f32.gmra.mxu0 %v1094
    %v1878 = vpop.f32.mrf.mxu0
    %v1879 = vadd.f32 %v463, %v1878
    %1880 = vmatmul.f32.gmra.mxu0 %v1097
    %v1881 = vpop.f32.mrf.mxu0
    %v1882 = vadd.f32 %v463, %v1881
    %1883 = vmatmul.f32.gmra.mxu0 %v1100
    %v1884 = vpop.f32.mrf.mxu0
    %v1885 = vadd.f32 %v463, %v1884
    %1886 = vmatmul.f32.gmra.mxu0 %v1103
    %v1887 = vpop.f32.mrf.mxu0
    %v1888 = vadd.f32 %v463, %v1887
    %1889 = vmatmul.f32.gmra.mxu0 %v1106
    %v1890 = vpop.f32.mrf.mxu0
    %v1891 = vadd.f32 %v463, %v1890
    %1892 = vmatmul.f32.gmra.mxu0 %v1109
    %v1893 = vpop.f32.mrf.mxu0
    %v1894 = vadd.f32 %v463, %v1893
    %1895 = vmatmul.f32.gmra.mxu0 %v1112
    %v1896 = vpop.f32.mrf.mxu0
    %v1897 = vadd.f32 %v463, %v1896
    %1898 = vmatmul.f32.gmra.mxu0 %v1115
    %v1899 = vpop.f32.mrf.mxu0
    %v1900 = vadd.f32 %v463, %v1899
    %1901 = vmatmul.f32.gmra.mxu0 %v1118
    %v1902 = vpop.f32.mrf.mxu0
    %v1903 = vadd.f32 %v463, %v1902
    %1904 = vmatmul.f32.gmra.mxu0 %v1121
    %v1905 = vpop.f32.mrf.mxu0
    %v1906 = vadd.f32 %v463, %v1905
    %1907 = vmatmul.f32.gmra.mxu0 %v1124
    %v1908 = vpop.f32.mrf.mxu0
    %v1909 = vadd.f32 %v463, %v1908
    %1910 = vmatmul.f32.gmra.mxu0 %v1127
    %v1911 = vpop.f32.mrf.mxu0
    %v1912 = vadd.f32 %v463, %v1911
    %1913 = vmatmul.f32.gmra.mxu0 %v1130
    %v1914 = vpop.f32.mrf.mxu0
    %v1915 = vadd.f32 %v463, %v1914
    %1916 = vmatmul.f32.gmra.mxu0 %v1133
    %v1917 = vpop.f32.mrf.mxu0
    %v1918 = vadd.f32 %v463, %v1917
    %1919 = vmatmul.f32.gmra.mxu0 %v1136
    %v1920 = vpop.f32.mrf.mxu0
    %v1921 = vadd.f32 %v463, %v1920
    %1922 = vmatmul.f32.gmra.mxu0 %v1139
    %v1923 = vpop.f32.mrf.mxu0
    %v1924 = vadd.f32 %v463, %v1923
    %1925 = vmatmul.f32.gmra.mxu0 %v1142
    %v1926 = vpop.f32.mrf.mxu0
    %v1927 = vadd.f32 %v463, %v1926
    %1928 = vmatmul.f32.gmra.mxu0 %v1145
    %v1929 = vpop.f32.mrf.mxu0
    %v1930 = vadd.f32 %v463, %v1929
    %1931 = vmatmul.f32.gmra.mxu0 %v1148
    %v1932 = vpop.f32.mrf.mxu0
    %v1933 = vadd.f32 %v463, %v1932
    %1934 = vmatmul.f32.gmra.mxu0 %v1151
    %v1935 = vpop.f32.mrf.mxu0
    %v1936 = vadd.f32 %v463, %v1935
    %1937 = vmatmul.f32.gmra.mxu0 %v1154
    %v1938 = vpop.f32.mrf.mxu0
    %v1939 = vadd.f32 %v463, %v1938
    %1940 = vmatmul.f32.gmra.mxu0 %v1157
    %v1941 = vpop.f32.mrf.mxu0
    %v1942 = vadd.f32 %v463, %v1941
    %1943 = vmatmul.f32.gmra.mxu0 %v1160
    %v1944 = vpop.f32.mrf.mxu0
    %v1945 = vadd.f32 %v463, %v1944
    %1946 = vmatmul.f32.gmra.mxu0 %v1163
    %v1947 = vpop.f32.mrf.mxu0
    %v1948 = vadd.f32 %v463, %v1947
    %1949 = vmatmul.f32.gmra.mxu0 %v1166
    %v1950 = vpop.f32.mrf.mxu0
    %v1951 = vadd.f32 %v463, %v1950
    %1952 = vmatmul.f32.gmra.mxu0 %v1169
    %v1953 = vpop.f32.mrf.mxu0
    %v1954 = vadd.f32 %v463, %v1953
    %1955 = vmatmul.f32.gmra.mxu0 %v1172
    %v1956 = vpop.f32.mrf.mxu0
    %v1957 = vadd.f32 %v463, %v1956
    %1958 = vmatmul.f32.gmra.mxu0 %v1175
    %v1959 = vpop.f32.mrf.mxu0
    %v1960 = vadd.f32 %v463, %v1959
    %1961 = vmatmul.f32.gmra.mxu0 %v1178
    %v1962 = vpop.f32.mrf.mxu0
    %v1963 = vadd.f32 %v463, %v1962
    %1964 = vmatmul.f32.gmra.mxu0 %v1181
    %v1965 = vpop.f32.mrf.mxu0
    %v1966 = vadd.f32 %v463, %v1965
    %1967 = vmatmul.f32.gmra.mxu0 %v1184
    %v1968 = vpop.f32.mrf.mxu0
    %v1969 = vadd.f32 %v463, %v1968
    %1970 = vmatmul.f32.gmra.mxu0 %v1187
    %v1971 = vpop.f32.mrf.mxu0
    %v1972 = vadd.f32 %v463, %v1971
    %1973 = vmatmul.f32.gmra.mxu0 %v1190
    %v1974 = vpop.f32.mrf.mxu0
    %v1975 = vadd.f32 %v463, %v1974
    %1976 = vmatmul.f32.gmra.mxu0 %v1193
    %v1977 = vpop.f32.mrf.mxu0
    %v1978 = vadd.f32 %v463, %v1977
    %1979 = vmatmul.f32.gmra.mxu0 %v1196
    %v1980 = vpop.f32.mrf.mxu0
    %v1981 = vadd.f32 %v463, %v1980
    %1982 = vmatmul.f32.gmra.mxu0 %v1199
    %v1983 = vpop.f32.mrf.mxu0
    %v1984 = vadd.f32 %v463, %v1983
    %1985 = vmatmul.f32.gmra.mxu0 %v1202
    %v1986 = vpop.f32.mrf.mxu0
    %v1987 = vadd.f32 %v463, %v1986
    %1988 = vmatmul.f32.gmra.mxu0 %v1205
    %v1989 = vpop.f32.mrf.mxu0
    %v1990 = vadd.f32 %v463, %v1989
    %1991 = vmatmul.f32.gmra.mxu0 %v1208
    %v1992 = vpop.f32.mrf.mxu0
    %v1993 = vadd.f32 %v463, %v1992
    %1994 = vmatmul.f32.gmra.mxu0 %v1211
    %v1995 = vpop.f32.mrf.mxu0
    %v1996 = vadd.f32 %v463, %v1995
    %1997 = vmatmul.f32.gmra.mxu0 %v1214
    %v1998 = vpop.f32.mrf.mxu0
    %v1999 = vadd.f32 %v463, %v1998
    %2000 = vmatmul.f32.gmra.mxu0 %v1217
    %v2001 = vpop.f32.mrf.mxu0
    %v2002 = vadd.f32 %v463, %v2001
    %2003 = vmatmul.f32.gmra.mxu0 %v1220
    %v2004 = vpop.f32.mrf.mxu0
    %v2005 = vadd.f32 %v463, %v2004
    %2006 = vmatmul.f32.gmra.mxu0 %v1223
    %v2007 = vpop.f32.mrf.mxu0
    %v2008 = vadd.f32 %v463, %v2007
    %2009 = vmatmul.f32.gmra.mxu0 %v1226
    %v2010 = vpop.f32.mrf.mxu0
    %v2011 = vadd.f32 %v463, %v2010
    %2012 = vmatmul.f32.gmra.mxu0 %v1229
    %v2013 = vpop.f32.mrf.mxu0
    %v2014 = vadd.f32 %v463, %v2013
    %2015 = vmatmul.f32.gmra.mxu0 %v1232
    %v2016 = vpop.f32.mrf.mxu0
    %v2017 = vadd.f32 %v463, %v2016
    %2018 = vdwg.mxu0
    %v2019 = vmax.f32 %v1252, 0.0
    %v2020 = vmax.f32 %v1255, 0.0
    %v2021 = vmax.f32 %v1258, 0.0
    %v2022 = vmax.f32 %v1261, 0.0
    %v2023 = vmax.f32 %v1264, 0.0
    %v2024 = vmax.f32 %v1267, 0.0
    %v2025 = vmax.f32 %v1270, 0.0
    %v2026 = vmax.f32 %v1273, 0.0
    %v2027 = vmax.f32 %v1276, 0.0
    %v2028 = vmax.f32 %v1279, 0.0
    %v2029 = vmax.f32 %v1282, 0.0
    %v2030 = vmax.f32 %v1285, 0.0
    %v2031 = vmax.f32 %v1288, 0.0
    %v2032 = vmax.f32 %v1291, 0.0
    %v2033 = vmax.f32 %v1294, 0.0
    %v2034 = vmax.f32 %v1297, 0.0
    %v2035 = vmax.f32 %v1300, 0.0
    %v2036 = vmax.f32 %v1303, 0.0
    %v2037 = vmax.f32 %v1306, 0.0
    %v2038 = vmax.f32 %v1309, 0.0
    %v2039 = vmax.f32 %v1312, 0.0
    %v2040 = vmax.f32 %v1315, 0.0
    %v2041 = vmax.f32 %v1318, 0.0
    %v2042 = vmax.f32 %v1321, 0.0
    %v2043 = vmax.f32 %v1324, 0.0
    %v2044 = vmax.f32 %v1327, 0.0
    %v2045 = vmax.f32 %v1330, 0.0
    %v2046 = vmax.f32 %v1333, 0.0
    %v2047 = vmax.f32 %v1336, 0.0
    %v2048 = vmax.f32 %v1339, 0.0
    %v2049 = vmax.f32 %v1342, 0.0
    %v2050 = vmax.f32 %v1345, 0.0
    %v2051 = vmax.f32 %v1348, 0.0
    %v2052 = vmax.f32 %v1351, 0.0
    %v2053 = vmax.f32 %v1354, 0.0
    %v2054 = vmax.f32 %v1357, 0.0
    %v2055 = vmax.f32 %v1360, 0.0
    %v2056 = vmax.f32 %v1363, 0.0
    %v2057 = vmax.f32 %v1366, 0.0
    %v2058 = vmax.f32 %v1369, 0.0
    %v2059 = vmax.f32 %v1372, 0.0
    %v2060 = vmax.f32 %v1375, 0.0
    %v2061 = vmax.f32 %v1378, 0.0
    %v2062 = vmax.f32 %v1381, 0.0
    %v2063 = vmax.f32 %v1384, 0.0
    %v2064 = vmax.f32 %v1387, 0.0
    %v2065 = vmax.f32 %v1390, 0.0
    %v2066 = vmax.f32 %v1393, 0.0
    %v2067 = vmax.f32 %v1396, 0.0
    %v2068 = vmax.f32 %v1399, 0.0
    %v2069 = vmax.f32 %v1402, 0.0
    %v2070 = vmax.f32 %v1405, 0.0
    %v2071 = vmax.f32 %v1408, 0.0
    %v2072 = vmax.f32 %v1411, 0.0
    %v2073 = vmax.f32 %v1414, 0.0
    %v2074 = vmax.f32 %v1417, 0.0
    %v2075 = vmax.f32 %v1420, 0.0
    %v2076 = vmax.f32 %v1423, 0.0
    %v2077 = vmax.f32 %v1426, 0.0
    %v2078 = vmax.f32 %v1429, 0.0
    %v2079 = vmax.f32 %v1432, 0.0
    %v2080 = vmax.f32 %v1435, 0.0
    %v2081 = vmax.f32 %v1438, 0.0
    %v2082 = vmax.f32 %v1441, 0.0
    %v2083 = vmax.f32 %v1444, 0.0
    %v2084 = vmax.f32 %v1447, 0.0
    %v2085 = vmax.f32 %v1450, 0.0
    %v2086 = vmax.f32 %v1453, 0.0
    %v2087 = vmax.f32 %v1456, 0.0
    %v2088 = vmax.f32 %v1459, 0.0
    %v2089 = vmax.f32 %v1462, 0.0
    %v2090 = vmax.f32 %v1465, 0.0
    %v2091 = vmax.f32 %v1468, 0.0
    %v2092 = vmax.f32 %v1471, 0.0
    %v2093 = vmax.f32 %v1474, 0.0
    %v2094 = vmax.f32 %v1477, 0.0
    %v2095 = vmax.f32 %v1480, 0.0
    %v2096 = vmax.f32 %v1483, 0.0
    %v2097 = vmax.f32 %v1486, 0.0
    %v2098 = vmax.f32 %v1489, 0.0
    %v2099 = vmax.f32 %v1492, 0.0
    %v2100 = vmax.f32 %v1495, 0.0
    %v2101 = vmax.f32 %v1498, 0.0
    %v2102 = vmax.f32 %v1501, 0.0
    %v2103 = vmax.f32 %v1504, 0.0
    %v2104 = vmax.f32 %v1507, 0.0
    %v2105 = vmax.f32 %v1510, 0.0
    %v2106 = vmax.f32 %v1513, 0.0
    %v2107 = vmax.f32 %v1516, 0.0
    %v2108 = vmax.f32 %v1519, 0.0
    %v2109 = vmax.f32 %v1522, 0.0
    %v2110 = vmax.f32 %v1525, 0.0
    %v2111 = vmax.f32 %v1528, 0.0
    %v2112 = vmax.f32 %v1531, 0.0
    %v2113 = vmax.f32 %v1534, 0.0
    %v2114 = vmax.f32 %v1537, 0.0
    %v2115 = vmax.f32 %v1540, 0.0
    %v2116 = vmax.f32 %v1543, 0.0
    %v2117 = vmax.f32 %v1546, 0.0
    %v2118 = vmax.f32 %v1549, 0.0
    %v2119 = vmax.f32 %v1552, 0.0
    %v2120 = vmax.f32 %v1555, 0.0
    %v2121 = vmax.f32 %v1558, 0.0
    %v2122 = vmax.f32 %v1561, 0.0
    %v2123 = vmax.f32 %v1564, 0.0
    %v2124 = vmax.f32 %v1567, 0.0
    %v2125 = vmax.f32 %v1570, 0.0
    %v2126 = vmax.f32 %v1573, 0.0
    %v2127 = vmax.f32 %v1576, 0.0
    %v2128 = vmax.f32 %v1579, 0.0
    %v2129 = vmax.f32 %v1582, 0.0
    %v2130 = vmax.f32 %v1585, 0.0
    %v2131 = vmax.f32 %v1588, 0.0
    %v2132 = vmax.f32 %v1591, 0.0
    %v2133 = vmax.f32 %v1594, 0.0
    %v2134 = vmax.f32 %v1597, 0.0
    %v2135 = vmax.f32 %v1600, 0.0
    %v2136 = vmax.f32 %v1603, 0.0
    %v2137 = vmax.f32 %v1606, 0.0
    %v2138 = vmax.f32 %v1609, 0.0
    %v2139 = vmax.f32 %v1612, 0.0
    %v2140 = vmax.f32 %v1615, 0.0
    %v2141 = vmax.f32 %v1618, 0.0
    %v2142 = vmax.f32 %v1621, 0.0
    %v2143 = vmax.f32 %v1624, 0.0
    %v2144 = vmax.f32 %v1627, 0.0
    %v2145 = vmax.f32 %v1630, 0.0
    %v2146 = vmax.f32 %v1633, 0.0
    %v2147 = vmax.f32 %v1636, 0.0
    %v2148 = vmax.f32 %v1639, 0.0
    %v2149 = vmax.f32 %v1642, 0.0
    %v2150 = vmax.f32 %v1645, 0.0
    %v2151 = vmax.f32 %v1648, 0.0
    %v2152 = vmax.f32 %v1651, 0.0
    %v2153 = vmax.f32 %v1654, 0.0
    %v2154 = vmax.f32 %v1657, 0.0
    %v2155 = vmax.f32 %v1660, 0.0
    %v2156 = vmax.f32 %v1663, 0.0
    %v2157 = vmax.f32 %v1666, 0.0
    %v2158 = vmax.f32 %v1669, 0.0
    %v2159 = vmax.f32 %v1672, 0.0
    %v2160 = vmax.f32 %v1675, 0.0
    %v2161 = vmax.f32 %v1678, 0.0
    %v2162 = vmax.f32 %v1681, 0.0
    %v2163 = vmax.f32 %v1684, 0.0
    %v2164 = vmax.f32 %v1687, 0.0
    %v2165 = vmax.f32 %v1690, 0.0
    %v2166 = vmax.f32 %v1693, 0.0
    %v2167 = vmax.f32 %v1696, 0.0
    %v2168 = vmax.f32 %v1699, 0.0
    %v2169 = vmax.f32 %v1702, 0.0
    %v2170 = vmax.f32 %v1705, 0.0
    %v2171 = vmax.f32 %v1708, 0.0
    %v2172 = vmax.f32 %v1711, 0.0
    %v2173 = vmax.f32 %v1714, 0.0
    %v2174 = vmax.f32 %v1717, 0.0
    %v2175 = vmax.f32 %v1720, 0.0
    %v2176 = vmax.f32 %v1723, 0.0
    %v2177 = vmax.f32 %v1726, 0.0
    %v2178 = vmax.f32 %v1729, 0.0
    %v2179 = vmax.f32 %v1732, 0.0
    %v2180 = vmax.f32 %v1735, 0.0
    %v2181 = vmax.f32 %v1738, 0.0
    %v2182 = vmax.f32 %v1741, 0.0
    %v2183 = vmax.f32 %v1744, 0.0
    %v2184 = vmax.f32 %v1747, 0.0
    %v2185 = vmax.f32 %v1750, 0.0
    %v2186 = vmax.f32 %v1753, 0.0
    %v2187 = vmax.f32 %v1756, 0.0
    %v2188 = vmax.f32 %v1759, 0.0
    %v2189 = vmax.f32 %v1762, 0.0
    %v2190 = vmax.f32 %v1765, 0.0
    %v2191 = vmax.f32 %v1768, 0.0
    %v2192 = vmax.f32 %v1771, 0.0
    %v2193 = vmax.f32 %v1774, 0.0
    %v2194 = vmax.f32 %v1777, 0.0
    %v2195 = vmax.f32 %v1780, 0.0
    %v2196 = vmax.f32 %v1783, 0.0
    %v2197 = vmax.f32 %v1786, 0.0
    %v2198 = vmax.f32 %v1789, 0.0
    %v2199 = vmax.f32 %v1792, 0.0
    %v2200 = vmax.f32 %v1795, 0.0
    %v2201 = vmax.f32 %v1798, 0.0
    %v2202 = vmax.f32 %v1801, 0.0
    %v2203 = vmax.f32 %v1804, 0.0
    %v2204 = vmax.f32 %v1807, 0.0
    %v2205 = vmax.f32 %v1810, 0.0
    %v2206 = vmax.f32 %v1813, 0.0
    %v2207 = vmax.f32 %v1816, 0.0
    %v2208 = vmax.f32 %v1819, 0.0
    %v2209 = vmax.f32 %v1822, 0.0
    %v2210 = vmax.f32 %v1825, 0.0
    %v2211 = vmax.f32 %v1828, 0.0
    %v2212 = vmax.f32 %v1831, 0.0
    %v2213 = vmax.f32 %v1834, 0.0
    %v2214 = vmax.f32 %v1837, 0.0
    %v2215 = vmax.f32 %v1840, 0.0
    %v2216 = vmax.f32 %v1843, 0.0
    %v2217 = vmax.f32 %v1846, 0.0
    %v2218 = vmax.f32 %v1849, 0.0
    %v2219 = vmax.f32 %v1852, 0.0
    %v2220 = vmax.f32 %v1855, 0.0
    %v2221 = vmax.f32 %v1858, 0.0
    %v2222 = vmax.f32 %v1861, 0.0
    %v2223 = vmax.f32 %v1864, 0.0
    %v2224 = vmax.f32 %v1867, 0.0
    %v2225 = vmax.f32 %v1870, 0.0
    %v2226 = vmax.f32 %v1873, 0.0
    %v2227 = vmax.f32 %v1876, 0.0
    %v2228 = vmax.f32 %v1879, 0.0
    %v2229 = vmax.f32 %v1882, 0.0
    %v2230 = vmax.f32 %v1885, 0.0
    %v2231 = vmax.f32 %v1888, 0.0
    %v2232 = vmax.f32 %v1891, 0.0
    %v2233 = vmax.f32 %v1894, 0.0
    %v2234 = vmax.f32 %v1897, 0.0
    %v2235 = vmax.f32 %v1900, 0.0
    %v2236 = vmax.f32 %v1903, 0.0
    %v2237 = vmax.f32 %v1906, 0.0
    %v2238 = vmax.f32 %v1909, 0.0
    %v2239 = vmax.f32 %v1912, 0.0
    %v2240 = vmax.f32 %v1915, 0.0
    %v2241 = vmax.f32 %v1918, 0.0
    %v2242 = vmax.f32 %v1921, 0.0
    %v2243 = vmax.f32 %v1924, 0.0
    %v2244 = vmax.f32 %v1927, 0.0
    %v2245 = vmax.f32 %v1930, 0.0
    %v2246 = vmax.f32 %v1933, 0.0
    %v2247 = vmax.f32 %v1936, 0.0
    %v2248 = vmax.f32 %v1939, 0.0
    %v2249 = vmax.f32 %v1942, 0.0
    %v2250 = vmax.f32 %v1945, 0.0
    %v2251 = vmax.f32 %v1948, 0.0
    %v2252 = vmax.f32 %v1951, 0.0
    %v2253 = vmax.f32 %v1954, 0.0
    %v2254 = vmax.f32 %v1957, 0.0
    %v2255 = vmax.f32 %v1960, 0.0
    %v2256 = vmax.f32 %v1963, 0.0
    %v2257 = vmax.f32 %v1966, 0.0
    %v2258 = vmax.f32 %v1969, 0.0
    %v2259 = vmax.f32 %v1972, 0.0
    %v2260 = vmax.f32 %v1975, 0.0
    %v2261 = vmax.f32 %v1978, 0.0
    %v2262 = vmax.f32 %v1981, 0.0
    %v2263 = vmax.f32 %v1984, 0.0
    %v2264 = vmax.f32 %v1987, 0.0
    %v2265 = vmax.f32 %v1990, 0.0
    %v2266 = vmax.f32 %v1993, 0.0
    %v2267 = vmax.f32 %v1996, 0.0
    %v2268 = vmax.f32 %v1999, 0.0
    %v2269 = vmax.f32 %v2002, 0.0
    %v2270 = vmax.f32 %v2005, 0.0
    %v2271 = vmax.f32 %v2008, 0.0
    %v2272 = vmax.f32 %v2011, 0.0
    %v2273 = vmax.f32 %v2014, 0.0
    %v2274 = vmax.f32 %v2017, 0.0
    %v2275 = vadd.f32 %v2019, %v2020
    %v2276 = vadd.f32 %v2275, %v2021
    %v2277 = vadd.f32 %v2276, %v2022
    %v2278 = vadd.f32 %v2277, %v2023
    %v2279 = vadd.f32 %v2278, %v2024
    %v2280 = vadd.f32 %v2279, %v2025
    %v2281 = vadd.f32 %v2280, %v2026
    %v2282 = vadd.f32 %v2281, %v2027
    %v2283 = vadd.f32 %v2282, %v2028
    %v2284 = vadd.f32 %v2283, %v2029
    %v2285 = vadd.f32 %v2284, %v2030
    %v2286 = vadd.f32 %v2285, %v2031
    %v2287 = vadd.f32 %v2286, %v2032
    %v2288 = vadd.f32 %v2287, %v2033
    %v2289 = vadd.f32 %v2288, %v2034
    %v2290 = vadd.f32 %v2289, %v2035
    %v2291 = vadd.f32 %v2290, %v2036
    %v2292 = vadd.f32 %v2291, %v2037
    %v2293 = vadd.f32 %v2292, %v2038
    %v2294 = vadd.f32 %v2293, %v2039
    %v2295 = vadd.f32 %v2294, %v2040
    %v2296 = vadd.f32 %v2295, %v2041
    %v2297 = vadd.f32 %v2296, %v2042
    %v2298 = vadd.f32 %v2297, %v2043
    %v2299 = vadd.f32 %v2298, %v2044
    %v2300 = vadd.f32 %v2299, %v2045
    %v2301 = vadd.f32 %v2300, %v2046
    %v2302 = vadd.f32 %v2301, %v2047
    %v2303 = vadd.f32 %v2302, %v2048
    %v2304 = vadd.f32 %v2303, %v2049
    %v2305 = vadd.f32 %v2304, %v2050
    %v2306 = vrot.slane %v2305, 4
    %v2307 = vadd.f32 %v2305, %v2306
    %v2308 = vrot.slane %v2307, 2
    %v2309 = vadd.f32 %v2307, %v2308
    %v2310 = vrot.slane %v2309, 1
    %v2311 = vadd.f32 %v2309, %v2310
    %v2312 = vadd.f32 %v2051, %v2052
    %v2313 = vadd.f32 %v2312, %v2053
    %v2314 = vadd.f32 %v2313, %v2054
    %v2315 = vadd.f32 %v2314, %v2055
    %v2316 = vadd.f32 %v2315, %v2056
    %v2317 = vadd.f32 %v2316, %v2057
    %v2318 = vadd.f32 %v2317, %v2058
    %v2319 = vadd.f32 %v2318, %v2059
    %v2320 = vadd.f32 %v2319, %v2060
    %v2321 = vadd.f32 %v2320, %v2061
    %v2322 = vadd.f32 %v2321, %v2062
    %v2323 = vadd.f32 %v2322, %v2063
    %v2324 = vadd.f32 %v2323, %v2064
    %v2325 = vadd.f32 %v2324, %v2065
    %v2326 = vadd.f32 %v2325, %v2066
    %v2327 = vadd.f32 %v2326, %v2067
    %v2328 = vadd.f32 %v2327, %v2068
    %v2329 = vadd.f32 %v2328, %v2069
    %v2330 = vadd.f32 %v2329, %v2070
    %v2331 = vadd.f32 %v2330, %v2071
    %v2332 = vadd.f32 %v2331, %v2072
    %v2333 = vadd.f32 %v2332, %v2073
    %v2334 = vadd.f32 %v2333, %v2074
    %v2335 = vadd.f32 %v2334, %v2075
    %v2336 = vadd.f32 %v2335, %v2076
    %v2337 = vadd.f32 %v2336, %v2077
    %v2338 = vadd.f32 %v2337, %v2078
    %v2339 = vadd.f32 %v2338, %v2079
    %v2340 = vadd.f32 %v2339, %v2080
    %v2341 = vadd.f32 %v2340, %v2081
    %v2342 = vadd.f32 %v2341, %v2082
    %v2343 = vrot.slane %v2342, 4
    %v2344 = vadd.f32 %v2342, %v2343
    %v2345 = vrot.slane %v2344, 2
    %v2346 = vadd.f32 %v2344, %v2345
    %v2347 = vrot.slane %v2346, 1
    %v2348 = vadd.f32 %v2346, %v2347
    %v2349 = vadd.f32 %v2083, %v2084
    %v2350 = vadd.f32 %v2349, %v2085
    %v2351 = vadd.f32 %v2350, %v2086
    %v2352 = vadd.f32 %v2351, %v2087
    %v2353 = vadd.f32 %v2352, %v2088
    %v2354 = vadd.f32 %v2353, %v2089
    %v2355 = vadd.f32 %v2354, %v2090
    %v2356 = vadd.f32 %v2355, %v2091
    %v2357 = vadd.f32 %v2356, %v2092
    %v2358 = vadd.f32 %v2357, %v2093
    %v2359 = vadd.f32 %v2358, %v2094
    %v2360 = vadd.f32 %v2359, %v2095
    %v2361 = vadd.f32 %v2360, %v2096
    %v2362 = vadd.f32 %v2361, %v2097
    %v2363 = vadd.f32 %v2362, %v2098
    %v2364 = vadd.f32 %v2363, %v2099
    %v2365 = vadd.f32 %v2364, %v2100
    %v2366 = vadd.f32 %v2365, %v2101
    %v2367 = vadd.f32 %v2366, %v2102
    %v2368 = vadd.f32 %v2367, %v2103
    %v2369 = vadd.f32 %v2368, %v2104
    %v2370 = vadd.f32 %v2369, %v2105
    %v2371 = vadd.f32 %v2370, %v2106
    %v2372 = vadd.f32 %v2371, %v2107
    %v2373 = vadd.f32 %v2372, %v2108
    %v2374 = vadd.f32 %v2373, %v2109
    %v2375 = vadd.f32 %v2374, %v2110
    %v2376 = vadd.f32 %v2375, %v2111
    %v2377 = vadd.f32 %v2376, %v2112
    %v2378 = vadd.f32 %v2377, %v2113
    %v2379 = vadd.f32 %v2378, %v2114
    %v2380 = vrot.slane %v2379, 4
    %v2381 = vadd.f32 %v2379, %v2380
    %v2382 = vrot.slane %v2381, 2
    %v2383 = vadd.f32 %v2381, %v2382
    %v2384 = vrot.slane %v2383, 1
    %v2385 = vadd.f32 %v2383, %v2384
    %v2386 = vadd.f32 %v2115, %v2116
    %v2387 = vadd.f32 %v2386, %v2117
    %v2388 = vadd.f32 %v2387, %v2118
    %v2389 = vadd.f32 %v2388, %v2119
    %v2390 = vadd.f32 %v2389, %v2120
    %v2391 = vadd.f32 %v2390, %v2121
    %v2392 = vadd.f32 %v2391, %v2122
    %v2393 = vadd.f32 %v2392, %v2123
    %v2394 = vadd.f32 %v2393, %v2124
    %v2395 = vadd.f32 %v2394, %v2125
    %v2396 = vadd.f32 %v2395, %v2126
    %v2397 = vadd.f32 %v2396, %v2127
    %v2398 = vadd.f32 %v2397, %v2128
    %v2399 = vadd.f32 %v2398, %v2129
    %v2400 = vadd.f32 %v2399, %v2130
    %v2401 = vadd.f32 %v2400, %v2131
    %v2402 = vadd.f32 %v2401, %v2132
    %v2403 = vadd.f32 %v2402, %v2133
    %v2404 = vadd.f32 %v2403, %v2134
    %v2405 = vadd.f32 %v2404, %v2135
    %v2406 = vadd.f32 %v2405, %v2136
    %v2407 = vadd.f32 %v2406, %v2137
    %v2408 = vadd.f32 %v2407, %v2138
    %v2409 = vadd.f32 %v2408, %v2139
    %v2410 = vadd.f32 %v2409, %v2140
    %v2411 = vadd.f32 %v2410, %v2141
    %v2412 = vadd.f32 %v2411, %v2142
    %v2413 = vadd.f32 %v2412, %v2143
    %v2414 = vadd.f32 %v2413, %v2144
    %v2415 = vadd.f32 %v2414, %v2145
    %v2416 = vadd.f32 %v2415, %v2146
    %v2417 = vrot.slane %v2416, 4
    %v2418 = vadd.f32 %v2416, %v2417
    %v2419 = vrot.slane %v2418, 2
    %v2420 = vadd.f32 %v2418, %v2419
    %v2421 = vrot.slane %v2420, 1
    %v2422 = vadd.f32 %v2420, %v2421
    %v2423 = vadd.f32 %v2147, %v2148
    %v2424 = vadd.f32 %v2423, %v2149
    %v2425 = vadd.f32 %v2424, %v2150
    %v2426 = vadd.f32 %v2425, %v2151
    %v2427 = vadd.f32 %v2426, %v2152
    %v2428 = vadd.f32 %v2427, %v2153
    %v2429 = vadd.f32 %v2428, %v2154
    %v2430 = vadd.f32 %v2429, %v2155
    %v2431 = vadd.f32 %v2430, %v2156
    %v2432 = vadd.f32 %v2431, %v2157
    %v2433 = vadd.f32 %v2432, %v2158
    %v2434 = vadd.f32 %v2433, %v2159
    %v2435 = vadd.f32 %v2434, %v2160
    %v2436 = vadd.f32 %v2435, %v2161
    %v2437 = vadd.f32 %v2436, %v2162
    %v2438 = vadd.f32 %v2437, %v2163
    %v2439 = vadd.f32 %v2438, %v2164
    %v2440 = vadd.f32 %v2439, %v2165
    %v2441 = vadd.f32 %v2440, %v2166
    %v2442 = vadd.f32 %v2441, %v2167
    %v2443 = vadd.f32 %v2442, %v2168
    %v2444 = vadd.f32 %v2443, %v2169
    %v2445 = vadd.f32 %v2444, %v2170
    %v2446 = vadd.f32 %v2445, %v2171
    %v2447 = vadd.f32 %v2446, %v2172
    %v2448 = vadd.f32 %v2447, %v2173
    %v2449 = vadd.f32 %v2448, %v2174
    %v2450 = vadd.f32 %v2449, %v2175
    %v2451 = vadd.f32 %v2450, %v2176
    %v2452 = vadd.f32 %v2451, %v2177
    %v2453 = vadd.f32 %v2452, %v2178
    %v2454 = vrot.slane %v2453, 4
    %v2455 = vadd.f32 %v2453, %v2454
    %v2456 = vrot.slane %v2455, 2
    %v2457 = vadd.f32 %v2455, %v2456
    %v2458 = vrot.slane %v2457, 1
    %v2459 = vadd.f32 %v2457, %v2458
    %v2460 = vadd.f32 %v2179, %v2180
    %v2461 = vadd.f32 %v2460, %v2181
    %v2462 = vadd.f32 %v2461, %v2182
    %v2463 = vadd.f32 %v2462, %v2183
    %v2464 = vadd.f32 %v2463, %v2184
    %v2465 = vadd.f32 %v2464, %v2185
    %v2466 = vadd.f32 %v2465, %v2186
    %v2467 = vadd.f32 %v2466, %v2187
    %v2468 = vadd.f32 %v2467, %v2188
    %v2469 = vadd.f32 %v2468, %v2189
    %v2470 = vadd.f32 %v2469, %v2190
    %v2471 = vadd.f32 %v2470, %v2191
    %v2472 = vadd.f32 %v2471, %v2192
    %v2473 = vadd.f32 %v2472, %v2193
    %v2474 = vadd.f32 %v2473, %v2194
    %v2475 = vadd.f32 %v2474, %v2195
    %v2476 = vadd.f32 %v2475, %v2196
    %v2477 = vadd.f32 %v2476, %v2197
    %v2478 = vadd.f32 %v2477, %v2198
    %v2479 = vadd.f32 %v2478, %v2199
    %v2480 = vadd.f32 %v2479, %v2200
    %v2481 = vadd.f32 %v2480, %v2201
    %v2482 = vadd.f32 %v2481, %v2202
    %v2483 = vadd.f32 %v2482, %v2203
    %v2484 = vadd.f32 %v2483, %v2204
    %v2485 = vadd.f32 %v2484, %v2205
    %v2486 = vadd.f32 %v2485, %v2206
    %v2487 = vadd.f32 %v2486, %v2207
    %v2488 = vadd.f32 %v2487, %v2208
    %v2489 = vadd.f32 %v2488, %v2209
    %v2490 = vadd.f32 %v2489, %v2210
    %v2491 = vrot.slane %v2490, 4
    %v2492 = vadd.f32 %v2490, %v2491
    %v2493 = vrot.slane %v2492, 2
    %v2494 = vadd.f32 %v2492, %v2493
    %v2495 = vrot.slane %v2494, 1
    %v2496 = vadd.f32 %v2494, %v2495
    %v2497 = vadd.f32 %v2211, %v2212
    %v2498 = vadd.f32 %v2497, %v2213
    %v2499 = vadd.f32 %v2498, %v2214
    %v2500 = vadd.f32 %v2499, %v2215
    %v2501 = vadd.f32 %v2500, %v2216
    %v2502 = vadd.f32 %v2501, %v2217
    %v2503 = vadd.f32 %v2502, %v2218
    %v2504 = vadd.f32 %v2503, %v2219
    %v2505 = vadd.f32 %v2504, %v2220
    %v2506 = vadd.f32 %v2505, %v2221
    %v2507 = vadd.f32 %v2506, %v2222
    %v2508 = vadd.f32 %v2507, %v2223
    %v2509 = vadd.f32 %v2508, %v2224
    %v2510 = vadd.f32 %v2509, %v2225
    %v2511 = vadd.f32 %v2510, %v2226
    %v2512 = vadd.f32 %v2511, %v2227
    %v2513 = vadd.f32 %v2512, %v2228
    %v2514 = vadd.f32 %v2513, %v2229
    %v2515 = vadd.f32 %v2514, %v2230
    %v2516 = vadd.f32 %v2515, %v2231
    %v2517 = vadd.f32 %v2516, %v2232
    %v2518 = vadd.f32 %v2517, %v2233
    %v2519 = vadd.f32 %v2518, %v2234
    %v2520 = vadd.f32 %v2519, %v2235
    %v2521 = vadd.f32 %v2520, %v2236
    %v2522 = vadd.f32 %v2521, %v2237
    %v2523 = vadd.f32 %v2522, %v2238
    %v2524 = vadd.f32 %v2523, %v2239
    %v2525 = vadd.f32 %v2524, %v2240
    %v2526 = vadd.f32 %v2525, %v2241
    %v2527 = vadd.f32 %v2526, %v2242
    %v2528 = vrot.slane %v2527, 4
    %v2529 = vadd.f32 %v2527, %v2528
    %v2530 = vrot.slane %v2529, 2
    %v2531 = vadd.f32 %v2529, %v2530
    %v2532 = vrot.slane %v2531, 1
    %v2533 = vadd.f32 %v2531, %v2532
    %v2534 = vadd.f32 %v2243, %v2244
    %v2535 = vadd.f32 %v2534, %v2245
    %v2536 = vadd.f32 %v2535, %v2246
    %v2537 = vadd.f32 %v2536, %v2247
    %v2538 = vadd.f32 %v2537, %v2248
    %v2539 = vadd.f32 %v2538, %v2249
    %v2540 = vadd.f32 %v2539, %v2250
    %v2541 = vadd.f32 %v2540, %v2251
    %v2542 = vadd.f32 %v2541, %v2252
    %v2543 = vadd.f32 %v2542, %v2253
    %v2544 = vadd.f32 %v2543, %v2254
    %v2545 = vadd.f32 %v2544, %v2255
    %v2546 = vadd.f32 %v2545, %v2256
    %v2547 = vadd.f32 %v2546, %v2257
    %v2548 = vadd.f32 %v2547, %v2258
    %v2549 = vadd.f32 %v2548, %v2259
    %v2550 = vadd.f32 %v2549, %v2260
    %v2551 = vadd.f32 %v2550, %v2261
    %v2552 = vadd.f32 %v2551, %v2262
    %v2553 = vadd.f32 %v2552, %v2263
    %v2554 = vadd.f32 %v2553, %v2264
    %v2555 = vadd.f32 %v2554, %v2265
    %v2556 = vadd.f32 %v2555, %v2266
    %v2557 = vadd.f32 %v2556, %v2267
    %v2558 = vadd.f32 %v2557, %v2268
    %v2559 = vadd.f32 %v2558, %v2269
    %v2560 = vadd.f32 %v2559, %v2270
    %v2561 = vadd.f32 %v2560, %v2271
    %v2562 = vadd.f32 %v2561, %v2272
    %v2563 = vadd.f32 %v2562, %v2273
    %v2564 = vadd.f32 %v2563, %v2274
    %v2565 = vrot.slane %v2564, 4
    %v2566 = vadd.f32 %v2564, %v2565
    %v2567 = vrot.slane %v2566, 2
    %v2568 = vadd.f32 %v2566, %v2567
    %v2569 = vrot.slane %v2568, 1
    %v2570 = vadd.f32 %v2568, %v2569
    %v2571 = vmul.f32 %v2311, 0.00390625
    %v2572 = vmul.f32 %v2348, 0.00390625
    %v2573 = vmul.f32 %v2385, 0.00390625
    %v2574 = vmul.f32 %v2422, 0.00390625
    %v2575 = vmul.f32 %v2459, 0.00390625
    %v2576 = vmul.f32 %v2496, 0.00390625
    %v2577 = vmul.f32 %v2533, 0.00390625
    %v2578 = vmul.f32 %v2570, 0.00390625
    %vm2587 = vcmask 1041409
    %v2588 = vsel %vm2587, %v2572, %v2571
    %vm2589 = vcmask 1042434
    %v2590 = vsel %vm2589, %v2573, %v2588
    %vm2591 = vcmask 1043459
    %v2592 = vsel %vm2591, %v2574, %v2590
    %vm2593 = vcmask 1044484
    %v2594 = vsel %vm2593, %v2575, %v2592
    %vm2595 = vcmask 1045509
    %v2596 = vsel %vm2595, %v2576, %v2594
    %vm2597 = vcmask 1046534
    %v2598 = vsel %vm2597, %v2577, %v2596
    %vm2599 = vcmask 1047559
    %v2600 = vsel %vm2599, %v2578, %v2598
    %2602 = vst [vmem:[%s15] sm:$0xff] %v2600
    %v2603 = vpack.c.bf16 %v2571, %v2571
    %v2604 = vpack.c.bf16 %v2572, %v2572
    %v2605 = vpack.c.bf16 %v2573, %v2573
    %v2606 = vpack.c.bf16 %v2574, %v2574
    %v2607 = vpack.c.bf16 %v2575, %v2575
    %v2608 = vpack.c.bf16 %v2576, %v2576
    %v2609 = vpack.c.bf16 %v2577, %v2577
    %v2610 = vpack.c.bf16 %v2578, %v2578
    %v2611 = vld [vmem:[%s3] sm:$0xff]
    %v2612 = vld [vmem:[%s3 + $0x8] sm:$0xff]
    %v2613 = vld [vmem:[%s3 + $0x10] sm:$0xff]
    %v2614 = vld [vmem:[%s3 + $0x18] sm:$0xff]
    %v2615 = vld [vmem:[%s3 + $0x20] sm:$0xff]
    %v2616 = vld [vmem:[%s3 + $0x28] sm:$0xff]
    %v2617 = vld [vmem:[%s3 + $0x30] sm:$0xff]
    %v2618 = vld [vmem:[%s3 + $0x38] sm:$0xff]
    %v2619 = vld [vmem:[%s3 + $0x40] sm:$0xff]
    %v2620 = vld [vmem:[%s3 + $0x48] sm:$0xff]
    %v2621 = vld [vmem:[%s3 + $0x50] sm:$0xff]
    %v2622 = vld [vmem:[%s3 + $0x58] sm:$0xff]
    %v2623 = vld [vmem:[%s3 + $0x60] sm:$0xff]
    %v2624 = vld [vmem:[%s3 + $0x68] sm:$0xff]
    %v2625 = vld [vmem:[%s3 + $0x70] sm:$0xff]
    %v2626 = vld [vmem:[%s3 + $0x78] sm:$0xff]
    %v2627 = vld [vmem:[%s3 + $0x80] sm:$0xff]
    %v2628 = vld [vmem:[%s3 + $0x88] sm:$0xff]
    %v2629 = vld [vmem:[%s3 + $0x90] sm:$0xff]
    %v2630 = vld [vmem:[%s3 + $0x98] sm:$0xff]
    %v2631 = vld [vmem:[%s3 + $0xa0] sm:$0xff]
    %v2632 = vld [vmem:[%s3 + $0xa8] sm:$0xff]
    %v2633 = vld [vmem:[%s3 + $0xb0] sm:$0xff]
    %v2634 = vld [vmem:[%s3 + $0xb8] sm:$0xff]
    %v2635 = vld [vmem:[%s3 + $0xc0] sm:$0xff]
    %v2636 = vld [vmem:[%s3 + $0xc8] sm:$0xff]
    %v2637 = vld [vmem:[%s3 + $0xd0] sm:$0xff]
    %v2638 = vld [vmem:[%s3 + $0xd8] sm:$0xff]
    %v2639 = vld [vmem:[%s3 + $0xe0] sm:$0xff]
    %v2640 = vld [vmem:[%s3 + $0xe8] sm:$0xff]
    %v2641 = vld [vmem:[%s3 + $0xf0] sm:$0xff]
    %v2642 = vld [vmem:[%s3 + $0xf8] sm:$0xff]
    %v2643 = vld [vmem:[%s3 + $0x100] sm:$0xff]
    %v2644 = vld [vmem:[%s3 + $0x108] sm:$0xff]
    %v2645 = vld [vmem:[%s3 + $0x110] sm:$0xff]
    %v2646 = vld [vmem:[%s3 + $0x118] sm:$0xff]
    %v2647 = vld [vmem:[%s3 + $0x120] sm:$0xff]
    %v2648 = vld [vmem:[%s3 + $0x128] sm:$0xff]
    %v2649 = vld [vmem:[%s3 + $0x130] sm:$0xff]
    %v2650 = vld [vmem:[%s3 + $0x138] sm:$0xff]
    %v2651 = vld [vmem:[%s3 + $0x140] sm:$0xff]
    %v2652 = vld [vmem:[%s3 + $0x148] sm:$0xff]
    %v2653 = vld [vmem:[%s3 + $0x150] sm:$0xff]
    %v2654 = vld [vmem:[%s3 + $0x158] sm:$0xff]
    %v2655 = vld [vmem:[%s3 + $0x160] sm:$0xff]
    %v2656 = vld [vmem:[%s3 + $0x168] sm:$0xff]
    %v2657 = vld [vmem:[%s3 + $0x170] sm:$0xff]
    %v2658 = vld [vmem:[%s3 + $0x178] sm:$0xff]
    %v2659 = vld [vmem:[%s3 + $0x180] sm:$0xff]
    %v2660 = vld [vmem:[%s3 + $0x188] sm:$0xff]
    %v2661 = vld [vmem:[%s3 + $0x190] sm:$0xff]
    %v2662 = vld [vmem:[%s3 + $0x198] sm:$0xff]
    %v2663 = vld [vmem:[%s3 + $0x1a0] sm:$0xff]
    %v2664 = vld [vmem:[%s3 + $0x1a8] sm:$0xff]
    %v2665 = vld [vmem:[%s3 + $0x1b0] sm:$0xff]
    %v2666 = vld [vmem:[%s3 + $0x1b8] sm:$0xff]
    %v2667 = vld [vmem:[%s3 + $0x1c0] sm:$0xff]
    %v2668 = vld [vmem:[%s3 + $0x1c8] sm:$0xff]
    %v2669 = vld [vmem:[%s3 + $0x1d0] sm:$0xff]
    %v2670 = vld [vmem:[%s3 + $0x1d8] sm:$0xff]
    %v2671 = vld [vmem:[%s3 + $0x1e0] sm:$0xff]
    %v2672 = vld [vmem:[%s3 + $0x1e8] sm:$0xff]
    %v2673 = vld [vmem:[%s3 + $0x1f0] sm:$0xff]
    %v2674 = vld [vmem:[%s3 + $0x1f8] sm:$0xff]
    %v2675 = vld [vmem:[%s3 + $0x200] sm:$0xff]
    %v2676 = vld [vmem:[%s3 + $0x208] sm:$0xff]
    %v2677 = vld [vmem:[%s3 + $0x210] sm:$0xff]
    %v2678 = vld [vmem:[%s3 + $0x218] sm:$0xff]
    %v2679 = vld [vmem:[%s3 + $0x220] sm:$0xff]
    %v2680 = vld [vmem:[%s3 + $0x228] sm:$0xff]
    %v2681 = vld [vmem:[%s3 + $0x230] sm:$0xff]
    %v2682 = vld [vmem:[%s3 + $0x238] sm:$0xff]
    %v2683 = vld [vmem:[%s3 + $0x240] sm:$0xff]
    %v2684 = vld [vmem:[%s3 + $0x248] sm:$0xff]
    %v2685 = vld [vmem:[%s3 + $0x250] sm:$0xff]
    %v2686 = vld [vmem:[%s3 + $0x258] sm:$0xff]
    %v2687 = vld [vmem:[%s3 + $0x260] sm:$0xff]
    %v2688 = vld [vmem:[%s3 + $0x268] sm:$0xff]
    %v2689 = vld [vmem:[%s3 + $0x270] sm:$0xff]
    %v2690 = vld [vmem:[%s3 + $0x278] sm:$0xff]
    %v2691 = vld [vmem:[%s3 + $0x280] sm:$0xff]
    %v2692 = vld [vmem:[%s3 + $0x288] sm:$0xff]
    %v2693 = vld [vmem:[%s3 + $0x290] sm:$0xff]
    %v2694 = vld [vmem:[%s3 + $0x298] sm:$0xff]
    %v2695 = vld [vmem:[%s3 + $0x2a0] sm:$0xff]
    %v2696 = vld [vmem:[%s3 + $0x2a8] sm:$0xff]
    %v2697 = vld [vmem:[%s3 + $0x2b0] sm:$0xff]
    %v2698 = vld [vmem:[%s3 + $0x2b8] sm:$0xff]
    %v2699 = vld [vmem:[%s3 + $0x2c0] sm:$0xff]
    %v2700 = vld [vmem:[%s3 + $0x2c8] sm:$0xff]
    %v2701 = vld [vmem:[%s3 + $0x2d0] sm:$0xff]
    %v2702 = vld [vmem:[%s3 + $0x2d8] sm:$0xff]
    %v2703 = vld [vmem:[%s3 + $0x2e0] sm:$0xff]
    %v2704 = vld [vmem:[%s3 + $0x2e8] sm:$0xff]
    %v2705 = vld [vmem:[%s3 + $0x2f0] sm:$0xff]
    %v2706 = vld [vmem:[%s3 + $0x2f8] sm:$0xff]
    %v2707 = vld [vmem:[%s3 + $0x300] sm:$0xff]
    %v2708 = vld [vmem:[%s3 + $0x308] sm:$0xff]
    %v2709 = vld [vmem:[%s3 + $0x310] sm:$0xff]
    %v2710 = vld [vmem:[%s3 + $0x318] sm:$0xff]
    %v2711 = vld [vmem:[%s3 + $0x320] sm:$0xff]
    %v2712 = vld [vmem:[%s3 + $0x328] sm:$0xff]
    %v2713 = vld [vmem:[%s3 + $0x330] sm:$0xff]
    %v2714 = vld [vmem:[%s3 + $0x338] sm:$0xff]
    %v2715 = vld [vmem:[%s3 + $0x340] sm:$0xff]
    %v2716 = vld [vmem:[%s3 + $0x348] sm:$0xff]
    %v2717 = vld [vmem:[%s3 + $0x350] sm:$0xff]
    %v2718 = vld [vmem:[%s3 + $0x358] sm:$0xff]
    %v2719 = vld [vmem:[%s3 + $0x360] sm:$0xff]
    %v2720 = vld [vmem:[%s3 + $0x368] sm:$0xff]
    %v2721 = vld [vmem:[%s3 + $0x370] sm:$0xff]
    %v2722 = vld [vmem:[%s3 + $0x378] sm:$0xff]
    %v2723 = vld [vmem:[%s3 + $0x380] sm:$0xff]
    %v2724 = vld [vmem:[%s3 + $0x388] sm:$0xff]
    %v2725 = vld [vmem:[%s3 + $0x390] sm:$0xff]
    %v2726 = vld [vmem:[%s3 + $0x398] sm:$0xff]
    %v2727 = vld [vmem:[%s3 + $0x3a0] sm:$0xff]
    %v2728 = vld [vmem:[%s3 + $0x3a8] sm:$0xff]
    %v2729 = vld [vmem:[%s3 + $0x3b0] sm:$0xff]
    %v2730 = vld [vmem:[%s3 + $0x3b8] sm:$0xff]
    %v2731 = vld [vmem:[%s3 + $0x3c0] sm:$0xff]
    %v2732 = vld [vmem:[%s3 + $0x3c8] sm:$0xff]
    %v2733 = vld [vmem:[%s3 + $0x3d0] sm:$0xff]
    %v2734 = vld [vmem:[%s3 + $0x3d8] sm:$0xff]
    %v2735 = vld [vmem:[%s3 + $0x3e0] sm:$0xff]
    %v2736 = vld [vmem:[%s3 + $0x3e8] sm:$0xff]
    %v2737 = vld [vmem:[%s3 + $0x3f0] sm:$0xff]
    %v2738 = vld [vmem:[%s3 + $0x3f8] sm:$0xff]
    %v2739 = vld [vmem:[#allocation6] sm:$0xff]
    %v2740 = vld [vmem:[#allocation6 + $0x8] sm:$0xff]
    %v2743 = vperm.slane %v2739, 0
    %v2744 = vperm.slane %v2739, 1
    %v2745 = vperm.slane %v2739, 2
    %v2746 = vperm.slane %v2739, 3
    %v2747 = vperm.slane %v2739, 4
    %v2748 = vperm.slane %v2739, 5
    %v2749 = vperm.slane %v2739, 6
    %v2750 = vperm.slane %v2739, 7
    %v2751 = vperm.slane %v2740, 0
    %v2752 = vperm.slane %v2740, 1
    %v2753 = vperm.slane %v2740, 2
    %v2754 = vperm.slane %v2740, 3
    %v2755 = vperm.slane %v2740, 4
    %v2756 = vperm.slane %v2740, 5
    %v2757 = vperm.slane %v2740, 6
    %v2758 = vperm.slane %v2740, 7
    %v2783 = vunpack.c.l.b16 %v2603
    %v2784 = vunpack.c.l.b16 %v2604
    %v2785 = vunpack.c.l.b16 %v2605
    %v2786 = vunpack.c.l.b16 %v2606
    %v2787 = vunpack.c.l.b16 %v2607
    %v2788 = vunpack.c.l.b16 %v2608
    %v2789 = vunpack.c.l.b16 %v2609
    %v2790 = vunpack.c.l.b16 %v2610
    %v2791 = vsel %vm2587, %v2784, %v2783
    %v2792 = vsel %vm2589, %v2785, %v2791
    %v2793 = vsel %vm2591, %v2786, %v2792
    %v2794 = vsel %vm2593, %v2787, %v2793
    %v2795 = vsel %vm2595, %v2788, %v2794
    %v2796 = vsel %vm2597, %v2789, %v2795
    %v2797 = vsel %vm2599, %v2790, %v2796
    %v2798 = vpack.c.b16 %v2797, %v2797
    %v2928 = vunpack.c.l.b16 %v2611
    %v2929 = vunpack.c.h.b16 %v2611
    %v2930 = vunpack.c.l.b16 %v2612
    %v2931 = vunpack.c.h.b16 %v2612
    %v2932 = vunpack.c.l.b16 %v2613
    %v2933 = vunpack.c.h.b16 %v2613
    %v2934 = vunpack.c.l.b16 %v2614
    %v2935 = vunpack.c.h.b16 %v2614
    %v2936 = vunpack.c.l.b16 %v2615
    %v2937 = vunpack.c.h.b16 %v2615
    %v2938 = vunpack.c.l.b16 %v2616
    %v2939 = vunpack.c.h.b16 %v2616
    %v2940 = vunpack.c.l.b16 %v2617
    %v2941 = vunpack.c.h.b16 %v2617
    %v2942 = vunpack.c.l.b16 %v2618
    %v2943 = vunpack.c.h.b16 %v2618
    %v2944 = vunpack.c.l.b16 %v2619
    %v2945 = vunpack.c.h.b16 %v2619
    %v2946 = vunpack.c.l.b16 %v2620
    %v2947 = vunpack.c.h.b16 %v2620
    %v2948 = vunpack.c.l.b16 %v2621
    %v2949 = vunpack.c.h.b16 %v2621
    %v2950 = vunpack.c.l.b16 %v2622
    %v2951 = vunpack.c.h.b16 %v2622
    %v2952 = vunpack.c.l.b16 %v2623
    %v2953 = vunpack.c.h.b16 %v2623
    %v2954 = vunpack.c.l.b16 %v2624
    %v2955 = vunpack.c.h.b16 %v2624
    %v2956 = vunpack.c.l.b16 %v2625
    %v2957 = vunpack.c.h.b16 %v2625
    %v2958 = vunpack.c.l.b16 %v2626
    %v2959 = vunpack.c.h.b16 %v2626
    %v2960 = vunpack.c.l.b16 %v2627
    %v2961 = vunpack.c.h.b16 %v2627
    %v2962 = vunpack.c.l.b16 %v2628
    %v2963 = vunpack.c.h.b16 %v2628
    %v2964 = vunpack.c.l.b16 %v2629
    %v2965 = vunpack.c.h.b16 %v2629
    %v2966 = vunpack.c.l.b16 %v2630
    %v2967 = vunpack.c.h.b16 %v2630
    %v2968 = vunpack.c.l.b16 %v2631
    %v2969 = vunpack.c.h.b16 %v2631
    %v2970 = vunpack.c.l.b16 %v2632
    %v2971 = vunpack.c.h.b16 %v2632
    %v2972 = vunpack.c.l.b16 %v2633
    %v2973 = vunpack.c.h.b16 %v2633
    %v2974 = vunpack.c.l.b16 %v2634
    %v2975 = vunpack.c.h.b16 %v2634
    %v2976 = vunpack.c.l.b16 %v2635
    %v2977 = vunpack.c.h.b16 %v2635
    %v2978 = vunpack.c.l.b16 %v2636
    %v2979 = vunpack.c.h.b16 %v2636
    %v2980 = vunpack.c.l.b16 %v2637
    %v2981 = vunpack.c.h.b16 %v2637
    %v2982 = vunpack.c.l.b16 %v2638
    %v2983 = vunpack.c.h.b16 %v2638
    %v2984 = vunpack.c.l.b16 %v2639
    %v2985 = vunpack.c.h.b16 %v2639
    %v2986 = vunpack.c.l.b16 %v2640
    %v2987 = vunpack.c.h.b16 %v2640
    %v2988 = vunpack.c.l.b16 %v2641
    %v2989 = vunpack.c.h.b16 %v2641
    %v2990 = vunpack.c.l.b16 %v2642
    %v2991 = vunpack.c.h.b16 %v2642
    %v2992 = vunpack.c.l.b16 %v2643
    %v2993 = vunpack.c.h.b16 %v2643
    %v2994 = vunpack.c.l.b16 %v2644
    %v2995 = vunpack.c.h.b16 %v2644
    %v2996 = vunpack.c.l.b16 %v2645
    %v2997 = vunpack.c.h.b16 %v2645
    %v2998 = vunpack.c.l.b16 %v2646
    %v2999 = vunpack.c.h.b16 %v2646
    %v3000 = vunpack.c.l.b16 %v2647
    %v3001 = vunpack.c.h.b16 %v2647
    %v3002 = vunpack.c.l.b16 %v2648
    %v3003 = vunpack.c.h.b16 %v2648
    %v3004 = vunpack.c.l.b16 %v2649
    %v3005 = vunpack.c.h.b16 %v2649
    %v3006 = vunpack.c.l.b16 %v2650
    %v3007 = vunpack.c.h.b16 %v2650
    %v3008 = vunpack.c.l.b16 %v2651
    %v3009 = vunpack.c.h.b16 %v2651
    %v3010 = vunpack.c.l.b16 %v2652
    %v3011 = vunpack.c.h.b16 %v2652
    %v3012 = vunpack.c.l.b16 %v2653
    %v3013 = vunpack.c.h.b16 %v2653
    %v3014 = vunpack.c.l.b16 %v2654
    %v3015 = vunpack.c.h.b16 %v2654
    %v3016 = vunpack.c.l.b16 %v2655
    %v3017 = vunpack.c.h.b16 %v2655
    %v3018 = vunpack.c.l.b16 %v2656
    %v3019 = vunpack.c.h.b16 %v2656
    %v3020 = vunpack.c.l.b16 %v2657
    %v3021 = vunpack.c.h.b16 %v2657
    %v3022 = vunpack.c.l.b16 %v2658
    %v3023 = vunpack.c.h.b16 %v2658
    %v3024 = vunpack.c.l.b16 %v2659
    %v3025 = vunpack.c.h.b16 %v2659
    %v3026 = vunpack.c.l.b16 %v2660
    %v3027 = vunpack.c.h.b16 %v2660
    %v3028 = vunpack.c.l.b16 %v2661
    %v3029 = vunpack.c.h.b16 %v2661
    %v3030 = vunpack.c.l.b16 %v2662
    %v3031 = vunpack.c.h.b16 %v2662
    %v3032 = vunpack.c.l.b16 %v2663
    %v3033 = vunpack.c.h.b16 %v2663
    %v3034 = vunpack.c.l.b16 %v2664
    %v3035 = vunpack.c.h.b16 %v2664
    %v3036 = vunpack.c.l.b16 %v2665
    %v3037 = vunpack.c.h.b16 %v2665
    %v3038 = vunpack.c.l.b16 %v2666
    %v3039 = vunpack.c.h.b16 %v2666
    %v3040 = vunpack.c.l.b16 %v2667
    %v3041 = vunpack.c.h.b16 %v2667
    %v3042 = vunpack.c.l.b16 %v2668
    %v3043 = vunpack.c.h.b16 %v2668
    %v3044 = vunpack.c.l.b16 %v2669
    %v3045 = vunpack.c.h.b16 %v2669
    %v3046 = vunpack.c.l.b16 %v2670
    %v3047 = vunpack.c.h.b16 %v2670
    %v3048 = vunpack.c.l.b16 %v2671
    %v3049 = vunpack.c.h.b16 %v2671
    %v3050 = vunpack.c.l.b16 %v2672
    %v3051 = vunpack.c.h.b16 %v2672
    %v3052 = vunpack.c.l.b16 %v2673
    %v3053 = vunpack.c.h.b16 %v2673
    %v3054 = vunpack.c.l.b16 %v2674
    %v3055 = vunpack.c.h.b16 %v2674
    %v3056 = vunpack.c.l.b16 %v2675
    %v3057 = vunpack.c.h.b16 %v2675
    %v3058 = vunpack.c.l.b16 %v2676
    %v3059 = vunpack.c.h.b16 %v2676
    %v3060 = vunpack.c.l.b16 %v2677
    %v3061 = vunpack.c.h.b16 %v2677
    %v3062 = vunpack.c.l.b16 %v2678
    %v3063 = vunpack.c.h.b16 %v2678
    %v3064 = vunpack.c.l.b16 %v2679
    %v3065 = vunpack.c.h.b16 %v2679
    %v3066 = vunpack.c.l.b16 %v2680
    %v3067 = vunpack.c.h.b16 %v2680
    %v3068 = vunpack.c.l.b16 %v2681
    %v3069 = vunpack.c.h.b16 %v2681
    %v3070 = vunpack.c.l.b16 %v2682
    %v3071 = vunpack.c.h.b16 %v2682
    %v3072 = vunpack.c.l.b16 %v2683
    %v3073 = vunpack.c.h.b16 %v2683
    %v3074 = vunpack.c.l.b16 %v2684
    %v3075 = vunpack.c.h.b16 %v2684
    %v3076 = vunpack.c.l.b16 %v2685
    %v3077 = vunpack.c.h.b16 %v2685
    %v3078 = vunpack.c.l.b16 %v2686
    %v3079 = vunpack.c.h.b16 %v2686
    %v3080 = vunpack.c.l.b16 %v2687
    %v3081 = vunpack.c.h.b16 %v2687
    %v3082 = vunpack.c.l.b16 %v2688
    %v3083 = vunpack.c.h.b16 %v2688
    %v3084 = vunpack.c.l.b16 %v2689
    %v3085 = vunpack.c.h.b16 %v2689
    %v3086 = vunpack.c.l.b16 %v2690
    %v3087 = vunpack.c.h.b16 %v2690
    %v3088 = vunpack.c.l.b16 %v2691
    %v3089 = vunpack.c.h.b16 %v2691
    %v3090 = vunpack.c.l.b16 %v2692
    %v3091 = vunpack.c.h.b16 %v2692
    %v3092 = vunpack.c.l.b16 %v2693
    %v3093 = vunpack.c.h.b16 %v2693
    %v3094 = vunpack.c.l.b16 %v2694
    %v3095 = vunpack.c.h.b16 %v2694
    %v3096 = vunpack.c.l.b16 %v2695
    %v3097 = vunpack.c.h.b16 %v2695
    %v3098 = vunpack.c.l.b16 %v2696
    %v3099 = vunpack.c.h.b16 %v2696
    %v3100 = vunpack.c.l.b16 %v2697
    %v3101 = vunpack.c.h.b16 %v2697
    %v3102 = vunpack.c.l.b16 %v2698
    %v3103 = vunpack.c.h.b16 %v2698
    %v3104 = vunpack.c.l.b16 %v2699
    %v3105 = vunpack.c.h.b16 %v2699
    %v3106 = vunpack.c.l.b16 %v2700
    %v3107 = vunpack.c.h.b16 %v2700
    %v3108 = vunpack.c.l.b16 %v2701
    %v3109 = vunpack.c.h.b16 %v2701
    %v3110 = vunpack.c.l.b16 %v2702
    %v3111 = vunpack.c.h.b16 %v2702
    %v3112 = vunpack.c.l.b16 %v2703
    %v3113 = vunpack.c.h.b16 %v2703
    %v3114 = vunpack.c.l.b16 %v2704
    %v3115 = vunpack.c.h.b16 %v2704
    %v3116 = vunpack.c.l.b16 %v2705
    %v3117 = vunpack.c.h.b16 %v2705
    %v3118 = vunpack.c.l.b16 %v2706
    %v3119 = vunpack.c.h.b16 %v2706
    %v3120 = vunpack.c.l.b16 %v2707
    %v3121 = vunpack.c.h.b16 %v2707
    %v3122 = vunpack.c.l.b16 %v2708
    %v3123 = vunpack.c.h.b16 %v2708
    %v3124 = vunpack.c.l.b16 %v2709
    %v3125 = vunpack.c.h.b16 %v2709
    %v3126 = vunpack.c.l.b16 %v2710
    %v3127 = vunpack.c.h.b16 %v2710
    %v3128 = vunpack.c.l.b16 %v2711
    %v3129 = vunpack.c.h.b16 %v2711
    %v3130 = vunpack.c.l.b16 %v2712
    %v3131 = vunpack.c.h.b16 %v2712
    %v3132 = vunpack.c.l.b16 %v2713
    %v3133 = vunpack.c.h.b16 %v2713
    %v3134 = vunpack.c.l.b16 %v2714
    %v3135 = vunpack.c.h.b16 %v2714
    %v3136 = vunpack.c.l.b16 %v2715
    %v3137 = vunpack.c.h.b16 %v2715
    %v3138 = vunpack.c.l.b16 %v2716
    %v3139 = vunpack.c.h.b16 %v2716
    %v3140 = vunpack.c.l.b16 %v2717
    %v3141 = vunpack.c.h.b16 %v2717
    %v3142 = vunpack.c.l.b16 %v2718
    %v3143 = vunpack.c.h.b16 %v2718
    %v3144 = vunpack.c.l.b16 %v2719
    %v3145 = vunpack.c.h.b16 %v2719
    %v3146 = vunpack.c.l.b16 %v2720
    %v3147 = vunpack.c.h.b16 %v2720
    %v3148 = vunpack.c.l.b16 %v2721
    %v3149 = vunpack.c.h.b16 %v2721
    %v3150 = vunpack.c.l.b16 %v2722
    %v3151 = vunpack.c.h.b16 %v2722
    %v3152 = vunpack.c.l.b16 %v2723
    %v3153 = vunpack.c.h.b16 %v2723
    %v3154 = vunpack.c.l.b16 %v2724
    %v3155 = vunpack.c.h.b16 %v2724
    %v3156 = vunpack.c.l.b16 %v2725
    %v3157 = vunpack.c.h.b16 %v2725
    %v3158 = vunpack.c.l.b16 %v2726
    %v3159 = vunpack.c.h.b16 %v2726
    %v3160 = vunpack.c.l.b16 %v2727
    %v3161 = vunpack.c.h.b16 %v2727
    %v3162 = vunpack.c.l.b16 %v2728
    %v3163 = vunpack.c.h.b16 %v2728
    %v3164 = vunpack.c.l.b16 %v2729
    %v3165 = vunpack.c.h.b16 %v2729
    %v3166 = vunpack.c.l.b16 %v2730
    %v3167 = vunpack.c.h.b16 %v2730
    %v3168 = vunpack.c.l.b16 %v2731
    %v3169 = vunpack.c.h.b16 %v2731
    %v3170 = vunpack.c.l.b16 %v2732
    %v3171 = vunpack.c.h.b16 %v2732
    %v3172 = vunpack.c.l.b16 %v2733
    %v3173 = vunpack.c.h.b16 %v2733
    %v3174 = vunpack.c.l.b16 %v2734
    %v3175 = vunpack.c.h.b16 %v2734
    %v3176 = vunpack.c.l.b16 %v2735
    %v3177 = vunpack.c.h.b16 %v2735
    %v3178 = vunpack.c.l.b16 %v2736
    %v3179 = vunpack.c.h.b16 %v2736
    %v3180 = vunpack.c.l.b16 %v2737
    %v3181 = vunpack.c.h.b16 %v2737
    %v3182 = vunpack.c.l.b16 %v2738
    %v3183 = vunpack.c.h.b16 %v2738
    %v3184 = vpack.c.b16 %v2944, %v2928
    %v3185 = vpack.c.b16 %v2945, %v2929
    %v3186 = vpack.c.b16 %v2946, %v2930
    %v3187 = vpack.c.b16 %v2947, %v2931
    %v3188 = vpack.c.b16 %v2948, %v2932
    %v3189 = vpack.c.b16 %v2949, %v2933
    %v3190 = vpack.c.b16 %v2950, %v2934
    %v3191 = vpack.c.b16 %v2951, %v2935
    %v3192 = vpack.c.b16 %v2952, %v2936
    %v3193 = vpack.c.b16 %v2953, %v2937
    %v3194 = vpack.c.b16 %v2954, %v2938
    %v3195 = vpack.c.b16 %v2955, %v2939
    %v3196 = vpack.c.b16 %v2956, %v2940
    %v3197 = vpack.c.b16 %v2957, %v2941
    %v3198 = vpack.c.b16 %v2958, %v2942
    %v3199 = vpack.c.b16 %v2959, %v2943
    %v3200 = vpack.c.b16 %v2976, %v2960
    %v3201 = vpack.c.b16 %v2977, %v2961
    %v3202 = vpack.c.b16 %v2978, %v2962
    %v3203 = vpack.c.b16 %v2979, %v2963
    %v3204 = vpack.c.b16 %v2980, %v2964
    %v3205 = vpack.c.b16 %v2981, %v2965
    %v3206 = vpack.c.b16 %v2982, %v2966
    %v3207 = vpack.c.b16 %v2983, %v2967
    %v3208 = vpack.c.b16 %v2984, %v2968
    %v3209 = vpack.c.b16 %v2985, %v2969
    %v3210 = vpack.c.b16 %v2986, %v2970
    %v3211 = vpack.c.b16 %v2987, %v2971
    %v3212 = vpack.c.b16 %v2988, %v2972
    %v3213 = vpack.c.b16 %v2989, %v2973
    %v3214 = vpack.c.b16 %v2990, %v2974
    %v3215 = vpack.c.b16 %v2991, %v2975
    %v3216 = vpack.c.b16 %v3008, %v2992
    %v3217 = vpack.c.b16 %v3009, %v2993
    %v3218 = vpack.c.b16 %v3010, %v2994
    %v3219 = vpack.c.b16 %v3011, %v2995
    %v3220 = vpack.c.b16 %v3012, %v2996
    %v3221 = vpack.c.b16 %v3013, %v2997
    %v3222 = vpack.c.b16 %v3014, %v2998
    %v3223 = vpack.c.b16 %v3015, %v2999
    %v3224 = vpack.c.b16 %v3016, %v3000
    %v3225 = vpack.c.b16 %v3017, %v3001
    %v3226 = vpack.c.b16 %v3018, %v3002
    %v3227 = vpack.c.b16 %v3019, %v3003
    %v3228 = vpack.c.b16 %v3020, %v3004
    %v3229 = vpack.c.b16 %v3021, %v3005
    %v3230 = vpack.c.b16 %v3022, %v3006
    %v3231 = vpack.c.b16 %v3023, %v3007
    %v3232 = vpack.c.b16 %v3040, %v3024
    %v3233 = vpack.c.b16 %v3041, %v3025
    %v3234 = vpack.c.b16 %v3042, %v3026
    %v3235 = vpack.c.b16 %v3043, %v3027
    %v3236 = vpack.c.b16 %v3044, %v3028
    %v3237 = vpack.c.b16 %v3045, %v3029
    %v3238 = vpack.c.b16 %v3046, %v3030
    %v3239 = vpack.c.b16 %v3047, %v3031
    %v3240 = vpack.c.b16 %v3048, %v3032
    %v3241 = vpack.c.b16 %v3049, %v3033
    %v3242 = vpack.c.b16 %v3050, %v3034
    %v3243 = vpack.c.b16 %v3051, %v3035
    %v3244 = vpack.c.b16 %v3052, %v3036
    %v3245 = vpack.c.b16 %v3053, %v3037
    %v3246 = vpack.c.b16 %v3054, %v3038
    %v3247 = vpack.c.b16 %v3055, %v3039
    %v3248 = vpack.c.b16 %v3072, %v3056
    %v3249 = vpack.c.b16 %v3073, %v3057
    %v3250 = vpack.c.b16 %v3074, %v3058
    %v3251 = vpack.c.b16 %v3075, %v3059
    %v3252 = vpack.c.b16 %v3076, %v3060
    %v3253 = vpack.c.b16 %v3077, %v3061
    %v3254 = vpack.c.b16 %v3078, %v3062
    %v3255 = vpack.c.b16 %v3079, %v3063
    %v3256 = vpack.c.b16 %v3080, %v3064
    %v3257 = vpack.c.b16 %v3081, %v3065
    %v3258 = vpack.c.b16 %v3082, %v3066
    %v3259 = vpack.c.b16 %v3083, %v3067
    %v3260 = vpack.c.b16 %v3084, %v3068
    %v3261 = vpack.c.b16 %v3085, %v3069
    %v3262 = vpack.c.b16 %v3086, %v3070
    %v3263 = vpack.c.b16 %v3087, %v3071
    %v3264 = vpack.c.b16 %v3104, %v3088
    %v3265 = vpack.c.b16 %v3105, %v3089
    %v3266 = vpack.c.b16 %v3106, %v3090
    %v3267 = vpack.c.b16 %v3107, %v3091
    %v3268 = vpack.c.b16 %v3108, %v3092
    %v3269 = vpack.c.b16 %v3109, %v3093
    %v3270 = vpack.c.b16 %v3110, %v3094
    %v3271 = vpack.c.b16 %v3111, %v3095
    %v3272 = vpack.c.b16 %v3112, %v3096
    %v3273 = vpack.c.b16 %v3113, %v3097
    %v3274 = vpack.c.b16 %v3114, %v3098
    %v3275 = vpack.c.b16 %v3115, %v3099
    %v3276 = vpack.c.b16 %v3116, %v3100
    %v3277 = vpack.c.b16 %v3117, %v3101
    %v3278 = vpack.c.b16 %v3118, %v3102
    %v3279 = vpack.c.b16 %v3119, %v3103
    %v3280 = vpack.c.b16 %v3136, %v3120
    %v3281 = vpack.c.b16 %v3137, %v3121
    %v3282 = vpack.c.b16 %v3138, %v3122
    %v3283 = vpack.c.b16 %v3139, %v3123
    %v3284 = vpack.c.b16 %v3140, %v3124
    %v3285 = vpack.c.b16 %v3141, %v3125
    %v3286 = vpack.c.b16 %v3142, %v3126
    %v3287 = vpack.c.b16 %v3143, %v3127
    %v3288 = vpack.c.b16 %v3144, %v3128
    %v3289 = vpack.c.b16 %v3145, %v3129
    %v3290 = vpack.c.b16 %v3146, %v3130
    %v3291 = vpack.c.b16 %v3147, %v3131
    %v3292 = vpack.c.b16 %v3148, %v3132
    %v3293 = vpack.c.b16 %v3149, %v3133
    %v3294 = vpack.c.b16 %v3150, %v3134
    %v3295 = vpack.c.b16 %v3151, %v3135
    %v3296 = vpack.c.b16 %v3168, %v3152
    %v3297 = vpack.c.b16 %v3169, %v3153
    %v3298 = vpack.c.b16 %v3170, %v3154
    %v3299 = vpack.c.b16 %v3171, %v3155
    %v3300 = vpack.c.b16 %v3172, %v3156
    %v3301 = vpack.c.b16 %v3173, %v3157
    %v3302 = vpack.c.b16 %v3174, %v3158
    %v3303 = vpack.c.b16 %v3175, %v3159
    %v3304 = vpack.c.b16 %v3176, %v3160
    %v3305 = vpack.c.b16 %v3177, %v3161
    %v3306 = vpack.c.b16 %v3178, %v3162
    %v3307 = vpack.c.b16 %v3179, %v3163
    %v3308 = vpack.c.b16 %v3180, %v3164
    %v3309 = vpack.c.b16 %v3181, %v3165
    %v3310 = vpack.c.b16 %v3182, %v3166
    %v3311 = vpack.c.b16 %v3183, %v3167
    %3440 = vmatpush.bf16.msra.mxu0 %v3296
    %3441 = vmatpush.bf16.msra.mxu0 %v3280
    %3442 = vmatpush.bf16.msra.mxu0 %v3264
    %3443 = vmatpush.bf16.msra.mxu0 %v3248
    %3444 = vmatpush.bf16.msra.mxu0 %v3232
    %3445 = vmatpush.bf16.msra.mxu0 %v3216
    %3446 = vmatpush.bf16.msra.mxu0 %v3200
    %3447 = vmatpush.bf16.msra.mxu0 %v3184
    %3448 = vmatmul.bf16.gmra.mxu0 %v2798
    %v3449 = vpop.f32.mrf.mxu0
    %v3450 = vadd.f32 %v2743, %v3449
    %v3451 = vpop.f32.mrf.mxu0
    %3452 = vdwg.mxu0
    %3453 = vmatpush.bf16.msra.mxu0 %v3297
    %3454 = vmatpush.bf16.msra.mxu0 %v3281
    %3455 = vmatpush.bf16.msra.mxu0 %v3265
    %3456 = vmatpush.bf16.msra.mxu0 %v3249
    %3457 = vmatpush.bf16.msra.mxu0 %v3233
    %3458 = vmatpush.bf16.msra.mxu0 %v3217
    %3459 = vmatpush.bf16.msra.mxu0 %v3201
    %3460 = vmatpush.bf16.msra.mxu0 %v3185
    %3461 = vmatmul.bf16.gmra.mxu0 %v2798
    %v3462 = vpop.f32.mrf.mxu0
    %v3463 = vadd.f32 %v2744, %v3462
    %v3464 = vpop.f32.mrf.mxu0
    %3465 = vdwg.mxu0
    %3466 = vmatpush.bf16.msra.mxu0 %v3298
    %3467 = vmatpush.bf16.msra.mxu0 %v3282
    %3468 = vmatpush.bf16.msra.mxu0 %v3266
    %3469 = vmatpush.bf16.msra.mxu0 %v3250
    %3470 = vmatpush.bf16.msra.mxu0 %v3234
    %3471 = vmatpush.bf16.msra.mxu0 %v3218
    %3472 = vmatpush.bf16.msra.mxu0 %v3202
    %3473 = vmatpush.bf16.msra.mxu0 %v3186
    %3474 = vmatmul.bf16.gmra.mxu0 %v2798
    %v3475 = vpop.f32.mrf.mxu0
    %v3476 = vadd.f32 %v2745, %v3475
    %v3477 = vpop.f32.mrf.mxu0
    %3478 = vdwg.mxu0
    %3479 = vmatpush.bf16.msra.mxu0 %v3299
    %3480 = vmatpush.bf16.msra.mxu0 %v3283
    %3481 = vmatpush.bf16.msra.mxu0 %v3267
    %3482 = vmatpush.bf16.msra.mxu0 %v3251
    %3483 = vmatpush.bf16.msra.mxu0 %v3235
    %3484 = vmatpush.bf16.msra.mxu0 %v3219
    %3485 = vmatpush.bf16.msra.mxu0 %v3203
    %3486 = vmatpush.bf16.msra.mxu0 %v3187
    %3487 = vmatmul.bf16.gmra.mxu0 %v2798
    %v3488 = vpop.f32.mrf.mxu0
    %v3489 = vadd.f32 %v2746, %v3488
    %v3490 = vpop.f32.mrf.mxu0
    %3491 = vdwg.mxu0
    %3492 = vmatpush.bf16.msra.mxu0 %v3300
    %3493 = vmatpush.bf16.msra.mxu0 %v3284
    %3494 = vmatpush.bf16.msra.mxu0 %v3268
    %3495 = vmatpush.bf16.msra.mxu0 %v3252
    %3496 = vmatpush.bf16.msra.mxu0 %v3236
    %3497 = vmatpush.bf16.msra.mxu0 %v3220
    %3498 = vmatpush.bf16.msra.mxu0 %v3204
    %3499 = vmatpush.bf16.msra.mxu0 %v3188
    %3500 = vmatmul.bf16.gmra.mxu0 %v2798
    %v3501 = vpop.f32.mrf.mxu0
    %v3502 = vadd.f32 %v2747, %v3501
    %v3503 = vpop.f32.mrf.mxu0
    %3504 = vdwg.mxu0
    %3505 = vmatpush.bf16.msra.mxu0 %v3301
    %3506 = vmatpush.bf16.msra.mxu0 %v3285
    %3507 = vmatpush.bf16.msra.mxu0 %v3269
    %3508 = vmatpush.bf16.msra.mxu0 %v3253
    %3509 = vmatpush.bf16.msra.mxu0 %v3237
    %3510 = vmatpush.bf16.msra.mxu0 %v3221
    %3511 = vmatpush.bf16.msra.mxu0 %v3205
    %3512 = vmatpush.bf16.msra.mxu0 %v3189
    %3513 = vmatmul.bf16.gmra.mxu0 %v2798
    %v3514 = vpop.f32.mrf.mxu0
    %v3515 = vadd.f32 %v2748, %v3514
    %v3516 = vpop.f32.mrf.mxu0
    %3517 = vdwg.mxu0
    %3518 = vmatpush.bf16.msra.mxu0 %v3302
    %3519 = vmatpush.bf16.msra.mxu0 %v3286
    %3520 = vmatpush.bf16.msra.mxu0 %v3270
    %3521 = vmatpush.bf16.msra.mxu0 %v3254
    %3522 = vmatpush.bf16.msra.mxu0 %v3238
    %3523 = vmatpush.bf16.msra.mxu0 %v3222
    %3524 = vmatpush.bf16.msra.mxu0 %v3206
    %3525 = vmatpush.bf16.msra.mxu0 %v3190
    %3526 = vmatmul.bf16.gmra.mxu0 %v2798
    %v3527 = vpop.f32.mrf.mxu0
    %v3528 = vadd.f32 %v2749, %v3527
    %v3529 = vpop.f32.mrf.mxu0
    %3530 = vdwg.mxu0
    %3531 = vmatpush.bf16.msra.mxu0 %v3303
    %3532 = vmatpush.bf16.msra.mxu0 %v3287
    %3533 = vmatpush.bf16.msra.mxu0 %v3271
    %3534 = vmatpush.bf16.msra.mxu0 %v3255
    %3535 = vmatpush.bf16.msra.mxu0 %v3239
    %3536 = vmatpush.bf16.msra.mxu0 %v3223
    %3537 = vmatpush.bf16.msra.mxu0 %v3207
    %3538 = vmatpush.bf16.msra.mxu0 %v3191
    %3539 = vmatmul.bf16.gmra.mxu0 %v2798
    %v3540 = vpop.f32.mrf.mxu0
    %v3541 = vadd.f32 %v2750, %v3540
    %v3542 = vpop.f32.mrf.mxu0
    %3543 = vdwg.mxu0
    %3544 = vmatpush.bf16.msra.mxu0 %v3304
    %3545 = vmatpush.bf16.msra.mxu0 %v3288
    %3546 = vmatpush.bf16.msra.mxu0 %v3272
    %3547 = vmatpush.bf16.msra.mxu0 %v3256
    %3548 = vmatpush.bf16.msra.mxu0 %v3240
    %3549 = vmatpush.bf16.msra.mxu0 %v3224
    %3550 = vmatpush.bf16.msra.mxu0 %v3208
    %3551 = vmatpush.bf16.msra.mxu0 %v3192
    %3552 = vmatmul.bf16.gmra.mxu0 %v2798
    %v3553 = vpop.f32.mrf.mxu0
    %v3554 = vadd.f32 %v2751, %v3553
    %v3555 = vpop.f32.mrf.mxu0
    %3556 = vdwg.mxu0
    %3557 = vmatpush.bf16.msra.mxu0 %v3305
    %3558 = vmatpush.bf16.msra.mxu0 %v3289
    %3559 = vmatpush.bf16.msra.mxu0 %v3273
    %3560 = vmatpush.bf16.msra.mxu0 %v3257
    %3561 = vmatpush.bf16.msra.mxu0 %v3241
    %3562 = vmatpush.bf16.msra.mxu0 %v3225
    %3563 = vmatpush.bf16.msra.mxu0 %v3209
    %3564 = vmatpush.bf16.msra.mxu0 %v3193
    %3565 = vmatmul.bf16.gmra.mxu0 %v2798
    %v3566 = vpop.f32.mrf.mxu0
    %v3567 = vadd.f32 %v2752, %v3566
    %v3568 = vpop.f32.mrf.mxu0
    %3569 = vdwg.mxu0
    %3570 = vmatpush.bf16.msra.mxu0 %v3306
    %3571 = vmatpush.bf16.msra.mxu0 %v3290
    %3572 = vmatpush.bf16.msra.mxu0 %v3274
    %3573 = vmatpush.bf16.msra.mxu0 %v3258
    %3574 = vmatpush.bf16.msra.mxu0 %v3242
    %3575 = vmatpush.bf16.msra.mxu0 %v3226
    %3576 = vmatpush.bf16.msra.mxu0 %v3210
    %3577 = vmatpush.bf16.msra.mxu0 %v3194
    %3578 = vmatmul.bf16.gmra.mxu0 %v2798
    %v3579 = vpop.f32.mrf.mxu0
    %v3580 = vadd.f32 %v2753, %v3579
    %v3581 = vpop.f32.mrf.mxu0
    %3582 = vdwg.mxu0
    %3583 = vmatpush.bf16.msra.mxu0 %v3307
    %3584 = vmatpush.bf16.msra.mxu0 %v3291
    %3585 = vmatpush.bf16.msra.mxu0 %v3275
    %3586 = vmatpush.bf16.msra.mxu0 %v3259
    %3587 = vmatpush.bf16.msra.mxu0 %v3243
    %3588 = vmatpush.bf16.msra.mxu0 %v3227
    %3589 = vmatpush.bf16.msra.mxu0 %v3211
    %3590 = vmatpush.bf16.msra.mxu0 %v3195
    %3591 = vmatmul.bf16.gmra.mxu0 %v2798
    %v3592 = vpop.f32.mrf.mxu0
    %v3593 = vadd.f32 %v2754, %v3592
    %v3594 = vpop.f32.mrf.mxu0
    %3595 = vdwg.mxu0
    %3596 = vmatpush.bf16.msra.mxu0 %v3308
    %3597 = vmatpush.bf16.msra.mxu0 %v3292
    %3598 = vmatpush.bf16.msra.mxu0 %v3276
    %3599 = vmatpush.bf16.msra.mxu0 %v3260
    %3600 = vmatpush.bf16.msra.mxu0 %v3244
    %3601 = vmatpush.bf16.msra.mxu0 %v3228
    %3602 = vmatpush.bf16.msra.mxu0 %v3212
    %3603 = vmatpush.bf16.msra.mxu0 %v3196
    %3604 = vmatmul.bf16.gmra.mxu0 %v2798
    %v3605 = vpop.f32.mrf.mxu0
    %v3606 = vadd.f32 %v2755, %v3605
    %v3607 = vpop.f32.mrf.mxu0
    %3608 = vdwg.mxu0
    %3609 = vmatpush.bf16.msra.mxu0 %v3309
    %3610 = vmatpush.bf16.msra.mxu0 %v3293
    %3611 = vmatpush.bf16.msra.mxu0 %v3277
    %3612 = vmatpush.bf16.msra.mxu0 %v3261
    %3613 = vmatpush.bf16.msra.mxu0 %v3245
    %3614 = vmatpush.bf16.msra.mxu0 %v3229
    %3615 = vmatpush.bf16.msra.mxu0 %v3213
    %3616 = vmatpush.bf16.msra.mxu0 %v3197
    %3617 = vmatmul.bf16.gmra.mxu0 %v2798
    %v3618 = vpop.f32.mrf.mxu0
    %v3619 = vadd.f32 %v2756, %v3618
    %v3620 = vpop.f32.mrf.mxu0
    %3621 = vdwg.mxu0
    %3622 = vmatpush.bf16.msra.mxu0 %v3310
    %3623 = vmatpush.bf16.msra.mxu0 %v3294
    %3624 = vmatpush.bf16.msra.mxu0 %v3278
    %3625 = vmatpush.bf16.msra.mxu0 %v3262
    %3626 = vmatpush.bf16.msra.mxu0 %v3246
    %3627 = vmatpush.bf16.msra.mxu0 %v3230
    %3628 = vmatpush.bf16.msra.mxu0 %v3214
    %3629 = vmatpush.bf16.msra.mxu0 %v3198
    %3630 = vmatmul.bf16.gmra.mxu0 %v2798
    %v3631 = vpop.f32.mrf.mxu0
    %v3632 = vadd.f32 %v2757, %v3631
    %v3633 = vpop.f32.mrf.mxu0
    %3634 = vdwg.mxu0
    %3635 = vmatpush.bf16.msra.mxu0 %v3311
    %3636 = vmatpush.bf16.msra.mxu0 %v3295
    %3637 = vmatpush.bf16.msra.mxu0 %v3279
    %3638 = vmatpush.bf16.msra.mxu0 %v3263
    %3639 = vmatpush.bf16.msra.mxu0 %v3247
    %3640 = vmatpush.bf16.msra.mxu0 %v3231
    %3641 = vmatpush.bf16.msra.mxu0 %v3215
    %3642 = vmatpush.bf16.msra.mxu0 %v3199
    %3643 = vmatmul.bf16.gmra.mxu0 %v2798
    %v3644 = vpop.f32.mrf.mxu0
    %v3645 = vadd.f32 %v2758, %v3644
    %v3646 = vpop.f32.mrf.mxu0
    %3647 = vdwg.mxu0
    %v3648 = vmax.f32 %v3450, 0.0
    %v3649 = vmax.f32 %v3463, 0.0
    %v3650 = vmax.f32 %v3476, 0.0
    %v3651 = vmax.f32 %v3489, 0.0
    %v3652 = vmax.f32 %v3502, 0.0
    %v3653 = vmax.f32 %v3515, 0.0
    %v3654 = vmax.f32 %v3528, 0.0
    %v3655 = vmax.f32 %v3541, 0.0
    %v3656 = vmax.f32 %v3554, 0.0
    %v3657 = vmax.f32 %v3567, 0.0
    %v3658 = vmax.f32 %v3580, 0.0
    %v3659 = vmax.f32 %v3593, 0.0
    %v3660 = vmax.f32 %v3606, 0.0
    %v3661 = vmax.f32 %v3619, 0.0
    %v3662 = vmax.f32 %v3632, 0.0
    %v3663 = vmax.f32 %v3645, 0.0
    %v3664 = vpack.c.bf16 %v3648, %v3648
    %v3665 = vpack.c.bf16 %v3649, %v3649
    %v3666 = vpack.c.bf16 %v3650, %v3650
    %v3667 = vpack.c.bf16 %v3651, %v3651
    %v3668 = vpack.c.bf16 %v3652, %v3652
    %v3669 = vpack.c.bf16 %v3653, %v3653
    %v3670 = vpack.c.bf16 %v3654, %v3654
    %v3671 = vpack.c.bf16 %v3655, %v3655
    %v3672 = vpack.c.bf16 %v3656, %v3656
    %v3673 = vpack.c.bf16 %v3657, %v3657
    %v3674 = vpack.c.bf16 %v3658, %v3658
    %v3675 = vpack.c.bf16 %v3659, %v3659
    %v3676 = vpack.c.bf16 %v3660, %v3660
    %v3677 = vpack.c.bf16 %v3661, %v3661
    %v3678 = vpack.c.bf16 %v3662, %v3662
    %v3679 = vpack.c.bf16 %v3663, %v3663
    %v3680 = vld [vmem:[#allocation7] sm:$0xff]
    %v3681 = vld [vmem:[#allocation7 + $0x8] sm:$0xff]
    %v3682 = vld [vmem:[#allocation7 + $0x10] sm:$0xff]
    %v3683 = vld [vmem:[#allocation7 + $0x18] sm:$0xff]
    %v3684 = vld [vmem:[#allocation7 + $0x20] sm:$0xff]
    %v3685 = vld [vmem:[#allocation7 + $0x28] sm:$0xff]
    %v3686 = vld [vmem:[#allocation7 + $0x30] sm:$0xff]
    %v3687 = vld [vmem:[#allocation7 + $0x38] sm:$0xff]
    %v3688 = vld [vmem:[#allocation7 + $0x40] sm:$0xff]
    %v3689 = vld [vmem:[#allocation7 + $0x48] sm:$0xff]
    %v3690 = vld [vmem:[#allocation7 + $0x50] sm:$0xff]
    %v3691 = vld [vmem:[#allocation7 + $0x58] sm:$0xff]
    %v3692 = vld [vmem:[#allocation7 + $0x60] sm:$0xff]
    %v3693 = vld [vmem:[#allocation7 + $0x68] sm:$0xff]
    %v3694 = vld [vmem:[#allocation7 + $0x70] sm:$0xff]
    %v3695 = vld [vmem:[#allocation7 + $0x78] sm:$0xff]
    %v3696 = vld [vmem:[#allocation7 + $0x80] sm:$0xff]
    %v3697 = vld [vmem:[#allocation7 + $0x88] sm:$0xff]
    %v3698 = vld [vmem:[#allocation7 + $0x90] sm:$0xff]
    %v3699 = vld [vmem:[#allocation7 + $0x98] sm:$0xff]
    %v3700 = vld [vmem:[#allocation7 + $0xa0] sm:$0xff]
    %v3701 = vld [vmem:[#allocation7 + $0xa8] sm:$0xff]
    %v3702 = vld [vmem:[#allocation7 + $0xb0] sm:$0xff]
    %v3703 = vld [vmem:[#allocation7 + $0xb8] sm:$0xff]
    %v3704 = vld [vmem:[#allocation7 + $0xc0] sm:$0xff]
    %v3705 = vld [vmem:[#allocation7 + $0xc8] sm:$0xff]
    %v3706 = vld [vmem:[#allocation7 + $0xd0] sm:$0xff]
    %v3707 = vld [vmem:[#allocation7 + $0xd8] sm:$0xff]
    %v3708 = vld [vmem:[#allocation7 + $0xe0] sm:$0xff]
    %v3709 = vld [vmem:[#allocation7 + $0xe8] sm:$0xff]
    %v3710 = vld [vmem:[#allocation7 + $0xf0] sm:$0xff]
    %v3711 = vld [vmem:[#allocation7 + $0xf8] sm:$0xff]
    %v3712 = vld [vmem:[#allocation7 + $0x100] sm:$0xff]
    %v3713 = vld [vmem:[#allocation7 + $0x108] sm:$0xff]
    %v3714 = vld [vmem:[#allocation7 + $0x110] sm:$0xff]
    %v3715 = vld [vmem:[#allocation7 + $0x118] sm:$0xff]
    %v3716 = vld [vmem:[#allocation7 + $0x120] sm:$0xff]
    %v3717 = vld [vmem:[#allocation7 + $0x128] sm:$0xff]
    %v3718 = vld [vmem:[#allocation7 + $0x130] sm:$0xff]
    %v3719 = vld [vmem:[#allocation7 + $0x138] sm:$0xff]
    %v3720 = vld [vmem:[#allocation7 + $0x140] sm:$0xff]
    %v3721 = vld [vmem:[#allocation7 + $0x148] sm:$0xff]
    %v3722 = vld [vmem:[#allocation7 + $0x150] sm:$0xff]
    %v3723 = vld [vmem:[#allocation7 + $0x158] sm:$0xff]
    %v3724 = vld [vmem:[#allocation7 + $0x160] sm:$0xff]
    %v3725 = vld [vmem:[#allocation7 + $0x168] sm:$0xff]
    %v3726 = vld [vmem:[#allocation7 + $0x170] sm:$0xff]
    %v3727 = vld [vmem:[#allocation7 + $0x178] sm:$0xff]
    %v3728 = vld [vmem:[#allocation7 + $0x180] sm:$0xff]
    %v3729 = vld [vmem:[#allocation7 + $0x188] sm:$0xff]
    %v3730 = vld [vmem:[#allocation7 + $0x190] sm:$0xff]
    %v3731 = vld [vmem:[#allocation7 + $0x198] sm:$0xff]
    %v3732 = vld [vmem:[#allocation7 + $0x1a0] sm:$0xff]
    %v3733 = vld [vmem:[#allocation7 + $0x1a8] sm:$0xff]
    %v3734 = vld [vmem:[#allocation7 + $0x1b0] sm:$0xff]
    %v3735 = vld [vmem:[#allocation7 + $0x1b8] sm:$0xff]
    %v3736 = vld [vmem:[#allocation7 + $0x1c0] sm:$0xff]
    %v3737 = vld [vmem:[#allocation7 + $0x1c8] sm:$0xff]
    %v3738 = vld [vmem:[#allocation7 + $0x1d0] sm:$0xff]
    %v3739 = vld [vmem:[#allocation7 + $0x1d8] sm:$0xff]
    %v3740 = vld [vmem:[#allocation7 + $0x1e0] sm:$0xff]
    %v3741 = vld [vmem:[#allocation7 + $0x1e8] sm:$0xff]
    %v3742 = vld [vmem:[#allocation7 + $0x1f0] sm:$0xff]
    %v3743 = vld [vmem:[#allocation7 + $0x1f8] sm:$0xff]
    %v3744 = vld [vmem:[#allocation7 + $0x200] sm:$0xff]
    %v3745 = vld [vmem:[#allocation7 + $0x208] sm:$0xff]
    %v3746 = vld [vmem:[#allocation7 + $0x210] sm:$0xff]
    %v3747 = vld [vmem:[#allocation7 + $0x218] sm:$0xff]
    %v3748 = vld [vmem:[#allocation7 + $0x220] sm:$0xff]
    %v3749 = vld [vmem:[#allocation7 + $0x228] sm:$0xff]
    %v3750 = vld [vmem:[#allocation7 + $0x230] sm:$0xff]
    %v3751 = vld [vmem:[#allocation7 + $0x238] sm:$0xff]
    %v3752 = vld [vmem:[#allocation7 + $0x240] sm:$0xff]
    %v3753 = vld [vmem:[#allocation7 + $0x248] sm:$0xff]
    %v3754 = vld [vmem:[#allocation7 + $0x250] sm:$0xff]
    %v3755 = vld [vmem:[#allocation7 + $0x258] sm:$0xff]
    %v3756 = vld [vmem:[#allocation7 + $0x260] sm:$0xff]
    %v3757 = vld [vmem:[#allocation7 + $0x268] sm:$0xff]
    %v3758 = vld [vmem:[#allocation7 + $0x270] sm:$0xff]
    %v3759 = vld [vmem:[#allocation7 + $0x278] sm:$0xff]
    %v3760 = vld [vmem:[#allocation7 + $0x280] sm:$0xff]
    %v3761 = vld [vmem:[#allocation7 + $0x288] sm:$0xff]
    %v3762 = vld [vmem:[#allocation7 + $0x290] sm:$0xff]
    %v3763 = vld [vmem:[#allocation7 + $0x298] sm:$0xff]
    %v3764 = vld [vmem:[#allocation7 + $0x2a0] sm:$0xff]
    %v3765 = vld [vmem:[#allocation7 + $0x2a8] sm:$0xff]
    %v3766 = vld [vmem:[#allocation7 + $0x2b0] sm:$0xff]
    %v3767 = vld [vmem:[#allocation7 + $0x2b8] sm:$0xff]
    %v3768 = vld [vmem:[#allocation7 + $0x2c0] sm:$0xff]
    %v3769 = vld [vmem:[#allocation7 + $0x2c8] sm:$0xff]
    %v3770 = vld [vmem:[#allocation7 + $0x2d0] sm:$0xff]
    %v3771 = vld [vmem:[#allocation7 + $0x2d8] sm:$0xff]
    %v3772 = vld [vmem:[#allocation7 + $0x2e0] sm:$0xff]
    %v3773 = vld [vmem:[#allocation7 + $0x2e8] sm:$0xff]
    %v3774 = vld [vmem:[#allocation7 + $0x2f0] sm:$0xff]
    %v3775 = vld [vmem:[#allocation7 + $0x2f8] sm:$0xff]
    %v3776 = vld [vmem:[#allocation7 + $0x300] sm:$0xff]
    %v3777 = vld [vmem:[#allocation7 + $0x308] sm:$0xff]
    %v3778 = vld [vmem:[#allocation7 + $0x310] sm:$0xff]
    %v3779 = vld [vmem:[#allocation7 + $0x318] sm:$0xff]
    %v3780 = vld [vmem:[#allocation7 + $0x320] sm:$0xff]
    %v3781 = vld [vmem:[#allocation7 + $0x328] sm:$0xff]
    %v3782 = vld [vmem:[#allocation7 + $0x330] sm:$0xff]
    %v3783 = vld [vmem:[#allocation7 + $0x338] sm:$0xff]
    %v3784 = vld [vmem:[#allocation7 + $0x340] sm:$0xff]
    %v3785 = vld [vmem:[#allocation7 + $0x348] sm:$0xff]
    %v3786 = vld [vmem:[#allocation7 + $0x350] sm:$0xff]
    %v3787 = vld [vmem:[#allocation7 + $0x358] sm:$0xff]
    %v3788 = vld [vmem:[#allocation7 + $0x360] sm:$0xff]
    %v3789 = vld [vmem:[#allocation7 + $0x368] sm:$0xff]
    %v3790 = vld [vmem:[#allocation7 + $0x370] sm:$0xff]
    %v3791 = vld [vmem:[#allocation7 + $0x378] sm:$0xff]
    %v3792 = vld [vmem:[#allocation7 + $0x380] sm:$0xff]
    %v3793 = vld [vmem:[#allocation7 + $0x388] sm:$0xff]
    %v3794 = vld [vmem:[#allocation7 + $0x390] sm:$0xff]
    %v3795 = vld [vmem:[#allocation7 + $0x398] sm:$0xff]
    %v3796 = vld [vmem:[#allocation7 + $0x3a0] sm:$0xff]
    %v3797 = vld [vmem:[#allocation7 + $0x3a8] sm:$0xff]
    %v3798 = vld [vmem:[#allocation7 + $0x3b0] sm:$0xff]
    %v3799 = vld [vmem:[#allocation7 + $0x3b8] sm:$0xff]
    %v3800 = vld [vmem:[#allocation7 + $0x3c0] sm:$0xff]
    %v3801 = vld [vmem:[#allocation7 + $0x3c8] sm:$0xff]
    %v3802 = vld [vmem:[#allocation7 + $0x3d0] sm:$0xff]
    %v3803 = vld [vmem:[#allocation7 + $0x3d8] sm:$0xff]
    %v3804 = vld [vmem:[#allocation7 + $0x3e0] sm:$0xff]
    %v3805 = vld [vmem:[#allocation7 + $0x3e8] sm:$0xff]
    %v3806 = vld [vmem:[#allocation7 + $0x3f0] sm:$0xff]
    %v3807 = vld [vmem:[#allocation7 + $0x3f8] sm:$0xff]
    %v3808 = vld [vmem:[#allocation7 + $0x400] sm:$0xff]
    %v3809 = vld [vmem:[#allocation7 + $0x408] sm:$0xff]
    %v3810 = vld [vmem:[#allocation7 + $0x410] sm:$0xff]
    %v3811 = vld [vmem:[#allocation7 + $0x418] sm:$0xff]
    %v3812 = vld [vmem:[#allocation7 + $0x420] sm:$0xff]
    %v3813 = vld [vmem:[#allocation7 + $0x428] sm:$0xff]
    %v3814 = vld [vmem:[#allocation7 + $0x430] sm:$0xff]
    %v3815 = vld [vmem:[#allocation7 + $0x438] sm:$0xff]
    %v3816 = vld [vmem:[#allocation7 + $0x440] sm:$0xff]
    %v3817 = vld [vmem:[#allocation7 + $0x448] sm:$0xff]
    %v3818 = vld [vmem:[#allocation7 + $0x450] sm:$0xff]
    %v3819 = vld [vmem:[#allocation7 + $0x458] sm:$0xff]
    %v3820 = vld [vmem:[#allocation7 + $0x460] sm:$0xff]
    %v3821 = vld [vmem:[#allocation7 + $0x468] sm:$0xff]
    %v3822 = vld [vmem:[#allocation7 + $0x470] sm:$0xff]
    %v3823 = vld [vmem:[#allocation7 + $0x478] sm:$0xff]
    %v3824 = vld [vmem:[#allocation7 + $0x480] sm:$0xff]
    %v3825 = vld [vmem:[#allocation7 + $0x488] sm:$0xff]
    %v3826 = vld [vmem:[#allocation7 + $0x490] sm:$0xff]
    %v3827 = vld [vmem:[#allocation7 + $0x498] sm:$0xff]
    %v3828 = vld [vmem:[#allocation7 + $0x4a0] sm:$0xff]
    %v3829 = vld [vmem:[#allocation7 + $0x4a8] sm:$0xff]
    %v3830 = vld [vmem:[#allocation7 + $0x4b0] sm:$0xff]
    %v3831 = vld [vmem:[#allocation7 + $0x4b8] sm:$0xff]
    %v3832 = vld [vmem:[#allocation7 + $0x4c0] sm:$0xff]
    %v3833 = vld [vmem:[#allocation7 + $0x4c8] sm:$0xff]
    %v3834 = vld [vmem:[#allocation7 + $0x4d0] sm:$0xff]
    %v3835 = vld [vmem:[#allocation7 + $0x4d8] sm:$0xff]
    %v3836 = vld [vmem:[#allocation7 + $0x4e0] sm:$0xff]
    %v3837 = vld [vmem:[#allocation7 + $0x4e8] sm:$0xff]
    %v3838 = vld [vmem:[#allocation7 + $0x4f0] sm:$0xff]
    %v3839 = vld [vmem:[#allocation7 + $0x4f8] sm:$0xff]
    %v3840 = vld [vmem:[#allocation7 + $0x500] sm:$0xff]
    %v3841 = vld [vmem:[#allocation7 + $0x508] sm:$0xff]
    %v3842 = vld [vmem:[#allocation7 + $0x510] sm:$0xff]
    %v3843 = vld [vmem:[#allocation7 + $0x518] sm:$0xff]
    %v3844 = vld [vmem:[#allocation7 + $0x520] sm:$0xff]
    %v3845 = vld [vmem:[#allocation7 + $0x528] sm:$0xff]
    %v3846 = vld [vmem:[#allocation7 + $0x530] sm:$0xff]
    %v3847 = vld [vmem:[#allocation7 + $0x538] sm:$0xff]
    %v3848 = vld [vmem:[#allocation7 + $0x540] sm:$0xff]
    %v3849 = vld [vmem:[#allocation7 + $0x548] sm:$0xff]
    %v3850 = vld [vmem:[#allocation7 + $0x550] sm:$0xff]
    %v3851 = vld [vmem:[#allocation7 + $0x558] sm:$0xff]
    %v3852 = vld [vmem:[#allocation7 + $0x560] sm:$0xff]
    %v3853 = vld [vmem:[#allocation7 + $0x568] sm:$0xff]
    %v3854 = vld [vmem:[#allocation7 + $0x570] sm:$0xff]
    %v3855 = vld [vmem:[#allocation7 + $0x578] sm:$0xff]
    %v3856 = vld [vmem:[#allocation7 + $0x580] sm:$0xff]
    %v3857 = vld [vmem:[#allocation7 + $0x588] sm:$0xff]
    %v3858 = vld [vmem:[#allocation7 + $0x590] sm:$0xff]
    %v3859 = vld [vmem:[#allocation7 + $0x598] sm:$0xff]
    %v3860 = vld [vmem:[#allocation7 + $0x5a0] sm:$0xff]
    %v3861 = vld [vmem:[#allocation7 + $0x5a8] sm:$0xff]
    %v3862 = vld [vmem:[#allocation7 + $0x5b0] sm:$0xff]
    %v3863 = vld [vmem:[#allocation7 + $0x5b8] sm:$0xff]
    %v3864 = vld [vmem:[#allocation7 + $0x5c0] sm:$0xff]
    %v3865 = vld [vmem:[#allocation7 + $0x5c8] sm:$0xff]
    %v3866 = vld [vmem:[#allocation7 + $0x5d0] sm:$0xff]
    %v3867 = vld [vmem:[#allocation7 + $0x5d8] sm:$0xff]
    %v3868 = vld [vmem:[#allocation7 + $0x5e0] sm:$0xff]
    %v3869 = vld [vmem:[#allocation7 + $0x5e8] sm:$0xff]
    %v3870 = vld [vmem:[#allocation7 + $0x5f0] sm:$0xff]
    %v3871 = vld [vmem:[#allocation7 + $0x5f8] sm:$0xff]
    %v3872 = vld [vmem:[#allocation7 + $0x600] sm:$0xff]
    %v3873 = vld [vmem:[#allocation7 + $0x608] sm:$0xff]
    %v3874 = vld [vmem:[#allocation7 + $0x610] sm:$0xff]
    %v3875 = vld [vmem:[#allocation7 + $0x618] sm:$0xff]
    %v3876 = vld [vmem:[#allocation7 + $0x620] sm:$0xff]
    %v3877 = vld [vmem:[#allocation7 + $0x628] sm:$0xff]
    %v3878 = vld [vmem:[#allocation7 + $0x630] sm:$0xff]
    %v3879 = vld [vmem:[#allocation7 + $0x638] sm:$0xff]
    %v3880 = vld [vmem:[#allocation7 + $0x640] sm:$0xff]
    %v3881 = vld [vmem:[#allocation7 + $0x648] sm:$0xff]
    %v3882 = vld [vmem:[#allocation7 + $0x650] sm:$0xff]
    %v3883 = vld [vmem:[#allocation7 + $0x658] sm:$0xff]
    %v3884 = vld [vmem:[#allocation7 + $0x660] sm:$0xff]
    %v3885 = vld [vmem:[#allocation7 + $0x668] sm:$0xff]
    %v3886 = vld [vmem:[#allocation7 + $0x670] sm:$0xff]
    %v3887 = vld [vmem:[#allocation7 + $0x678] sm:$0xff]
    %v3888 = vld [vmem:[#allocation7 + $0x680] sm:$0xff]
    %v3889 = vld [vmem:[#allocation7 + $0x688] sm:$0xff]
    %v3890 = vld [vmem:[#allocation7 + $0x690] sm:$0xff]
    %v3891 = vld [vmem:[#allocation7 + $0x698] sm:$0xff]
    %v3892 = vld [vmem:[#allocation7 + $0x6a0] sm:$0xff]
    %v3893 = vld [vmem:[#allocation7 + $0x6a8] sm:$0xff]
    %v3894 = vld [vmem:[#allocation7 + $0x6b0] sm:$0xff]
    %v3895 = vld [vmem:[#allocation7 + $0x6b8] sm:$0xff]
    %v3896 = vld [vmem:[#allocation7 + $0x6c0] sm:$0xff]
    %v3897 = vld [vmem:[#allocation7 + $0x6c8] sm:$0xff]
    %v3898 = vld [vmem:[#allocation7 + $0x6d0] sm:$0xff]
    %v3899 = vld [vmem:[#allocation7 + $0x6d8] sm:$0xff]
    %v3900 = vld [vmem:[#allocation7 + $0x6e0] sm:$0xff]
    %v3901 = vld [vmem:[#allocation7 + $0x6e8] sm:$0xff]
    %v3902 = vld [vmem:[#allocation7 + $0x6f0] sm:$0xff]
    %v3903 = vld [vmem:[#allocation7 + $0x6f8] sm:$0xff]
    %v3904 = vld [vmem:[#allocation7 + $0x700] sm:$0xff]
    %v3905 = vld [vmem:[#allocation7 + $0x708] sm:$0xff]
    %v3906 = vld [vmem:[#allocation7 + $0x710] sm:$0xff]
    %v3907 = vld [vmem:[#allocation7 + $0x718] sm:$0xff]
    %v3908 = vld [vmem:[#allocation7 + $0x720] sm:$0xff]
    %v3909 = vld [vmem:[#allocation7 + $0x728] sm:$0xff]
    %v3910 = vld [vmem:[#allocation7 + $0x730] sm:$0xff]
    %v3911 = vld [vmem:[#allocation7 + $0x738] sm:$0xff]
    %v3912 = vld [vmem:[#allocation7 + $0x740] sm:$0xff]
    %v3913 = vld [vmem:[#allocation7 + $0x748] sm:$0xff]
    %v3914 = vld [vmem:[#allocation7 + $0x750] sm:$0xff]
    %v3915 = vld [vmem:[#allocation7 + $0x758] sm:$0xff]
    %v3916 = vld [vmem:[#allocation7 + $0x760] sm:$0xff]
    %v3917 = vld [vmem:[#allocation7 + $0x768] sm:$0xff]
    %v3918 = vld [vmem:[#allocation7 + $0x770] sm:$0xff]
    %v3919 = vld [vmem:[#allocation7 + $0x778] sm:$0xff]
    %v3920 = vld [vmem:[#allocation7 + $0x780] sm:$0xff]
    %v3921 = vld [vmem:[#allocation7 + $0x788] sm:$0xff]
    %v3922 = vld [vmem:[#allocation7 + $0x790] sm:$0xff]
    %v3923 = vld [vmem:[#allocation7 + $0x798] sm:$0xff]
    %v3924 = vld [vmem:[#allocation7 + $0x7a0] sm:$0xff]
    %v3925 = vld [vmem:[#allocation7 + $0x7a8] sm:$0xff]
    %v3926 = vld [vmem:[#allocation7 + $0x7b0] sm:$0xff]
    %v3927 = vld [vmem:[#allocation7 + $0x7b8] sm:$0xff]
    %v3928 = vld [vmem:[#allocation7 + $0x7c0] sm:$0xff]
    %v3929 = vld [vmem:[#allocation7 + $0x7c8] sm:$0xff]
    %v3930 = vld [vmem:[#allocation7 + $0x7d0] sm:$0xff]
    %v3931 = vld [vmem:[#allocation7 + $0x7d8] sm:$0xff]
    %v3932 = vld [vmem:[#allocation7 + $0x7e0] sm:$0xff]
    %v3933 = vld [vmem:[#allocation7 + $0x7e8] sm:$0xff]
    %v3934 = vld [vmem:[#allocation7 + $0x7f0] sm:$0xff]
    %v3935 = vld [vmem:[#allocation7 + $0x7f8] sm:$0xff]
    %v3936 = vld [vmem:[#allocation7 + $0x800] sm:$0xff]
    %v3937 = vld [vmem:[#allocation7 + $0x808] sm:$0xff]
    %v3938 = vld [vmem:[#allocation7 + $0x810] sm:$0xff]
    %v3939 = vld [vmem:[#allocation7 + $0x818] sm:$0xff]
    %v3940 = vld [vmem:[#allocation7 + $0x820] sm:$0xff]
    %v3941 = vld [vmem:[#allocation7 + $0x828] sm:$0xff]
    %v3942 = vld [vmem:[#allocation7 + $0x830] sm:$0xff]
    %v3943 = vld [vmem:[#allocation7 + $0x838] sm:$0xff]
    %v3944 = vld [vmem:[#allocation7 + $0x840] sm:$0xff]
    %v3945 = vld [vmem:[#allocation7 + $0x848] sm:$0xff]
    %v3946 = vld [vmem:[#allocation7 + $0x850] sm:$0xff]
    %v3947 = vld [vmem:[#allocation7 + $0x858] sm:$0xff]
    %v3948 = vld [vmem:[#allocation7 + $0x860] sm:$0xff]
    %v3949 = vld [vmem:[#allocation7 + $0x868] sm:$0xff]
    %v3950 = vld [vmem:[#allocation7 + $0x870] sm:$0xff]
    %v3951 = vld [vmem:[#allocation7 + $0x878] sm:$0xff]
    %v3952 = vld [vmem:[#allocation7 + $0x880] sm:$0xff]
    %v3953 = vld [vmem:[#allocation7 + $0x888] sm:$0xff]
    %v3954 = vld [vmem:[#allocation7 + $0x890] sm:$0xff]
    %v3955 = vld [vmem:[#allocation7 + $0x898] sm:$0xff]
    %v3956 = vld [vmem:[#allocation7 + $0x8a0] sm:$0xff]
    %v3957 = vld [vmem:[#allocation7 + $0x8a8] sm:$0xff]
    %v3958 = vld [vmem:[#allocation7 + $0x8b0] sm:$0xff]
    %v3959 = vld [vmem:[#allocation7 + $0x8b8] sm:$0xff]
    %v3960 = vld [vmem:[#allocation7 + $0x8c0] sm:$0xff]
    %v3961 = vld [vmem:[#allocation7 + $0x8c8] sm:$0xff]
    %v3962 = vld [vmem:[#allocation7 + $0x8d0] sm:$0xff]
    %v3963 = vld [vmem:[#allocation7 + $0x8d8] sm:$0xff]
    %v3964 = vld [vmem:[#allocation7 + $0x8e0] sm:$0xff]
    %v3965 = vld [vmem:[#allocation7 + $0x8e8] sm:$0xff]
    %v3966 = vld [vmem:[#allocation7 + $0x8f0] sm:$0xff]
    %v3967 = vld [vmem:[#allocation7 + $0x8f8] sm:$0xff]
    %v3968 = vld [vmem:[#allocation7 + $0x900] sm:$0xff]
    %v3969 = vld [vmem:[#allocation7 + $0x908] sm:$0xff]
    %v3970 = vld [vmem:[#allocation7 + $0x910] sm:$0xff]
    %v3971 = vld [vmem:[#allocation7 + $0x918] sm:$0xff]
    %v3972 = vld [vmem:[#allocation7 + $0x920] sm:$0xff]
    %v3973 = vld [vmem:[#allocation7 + $0x928] sm:$0xff]
    %v3974 = vld [vmem:[#allocation7 + $0x930] sm:$0xff]
    %v3975 = vld [vmem:[#allocation7 + $0x938] sm:$0xff]
    %v3976 = vld [vmem:[#allocation7 + $0x940] sm:$0xff]
    %v3977 = vld [vmem:[#allocation7 + $0x948] sm:$0xff]
    %v3978 = vld [vmem:[#allocation7 + $0x950] sm:$0xff]
    %v3979 = vld [vmem:[#allocation7 + $0x958] sm:$0xff]
    %v3980 = vld [vmem:[#allocation7 + $0x960] sm:$0xff]
    %v3981 = vld [vmem:[#allocation7 + $0x968] sm:$0xff]
    %v3982 = vld [vmem:[#allocation7 + $0x970] sm:$0xff]
    %v3983 = vld [vmem:[#allocation7 + $0x978] sm:$0xff]
    %v3984 = vld [vmem:[#allocation7 + $0x980] sm:$0xff]
    %v3985 = vld [vmem:[#allocation7 + $0x988] sm:$0xff]
    %v3986 = vld [vmem:[#allocation7 + $0x990] sm:$0xff]
    %v3987 = vld [vmem:[#allocation7 + $0x998] sm:$0xff]
    %v3988 = vld [vmem:[#allocation7 + $0x9a0] sm:$0xff]
    %v3989 = vld [vmem:[#allocation7 + $0x9a8] sm:$0xff]
    %v3990 = vld [vmem:[#allocation7 + $0x9b0] sm:$0xff]
    %v3991 = vld [vmem:[#allocation7 + $0x9b8] sm:$0xff]
    %v3992 = vld [vmem:[#allocation7 + $0x9c0] sm:$0xff]
    %v3993 = vld [vmem:[#allocation7 + $0x9c8] sm:$0xff]
    %v3994 = vld [vmem:[#allocation7 + $0x9d0] sm:$0xff]
    %v3995 = vld [vmem:[#allocation7 + $0x9d8] sm:$0xff]
    %v3996 = vld [vmem:[#allocation7 + $0x9e0] sm:$0xff]
    %v3997 = vld [vmem:[#allocation7 + $0x9e8] sm:$0xff]
    %v3998 = vld [vmem:[#allocation7 + $0x9f0] sm:$0xff]
    %v3999 = vld [vmem:[#allocation7 + $0x9f8] sm:$0xff]
    %v4000 = vld [vmem:[#allocation7 + $0xa00] sm:$0xff]
    %v4001 = vld [vmem:[#allocation7 + $0xa08] sm:$0xff]
    %v4002 = vld [vmem:[#allocation7 + $0xa10] sm:$0xff]
    %v4003 = vld [vmem:[#allocation7 + $0xa18] sm:$0xff]
    %v4004 = vld [vmem:[#allocation7 + $0xa20] sm:$0xff]
    %v4005 = vld [vmem:[#allocation7 + $0xa28] sm:$0xff]
    %v4006 = vld [vmem:[#allocation7 + $0xa30] sm:$0xff]
    %v4007 = vld [vmem:[#allocation7 + $0xa38] sm:$0xff]
    %v4008 = vld [vmem:[#allocation7 + $0xa40] sm:$0xff]
    %v4009 = vld [vmem:[#allocation7 + $0xa48] sm:$0xff]
    %v4010 = vld [vmem:[#allocation7 + $0xa50] sm:$0xff]
    %v4011 = vld [vmem:[#allocation7 + $0xa58] sm:$0xff]
    %v4012 = vld [vmem:[#allocation7 + $0xa60] sm:$0xff]
    %v4013 = vld [vmem:[#allocation7 + $0xa68] sm:$0xff]
    %v4014 = vld [vmem:[#allocation7 + $0xa70] sm:$0xff]
    %v4015 = vld [vmem:[#allocation7 + $0xa78] sm:$0xff]
    %v4016 = vld [vmem:[#allocation7 + $0xa80] sm:$0xff]
    %v4017 = vld [vmem:[#allocation7 + $0xa88] sm:$0xff]
    %v4018 = vld [vmem:[#allocation7 + $0xa90] sm:$0xff]
    %v4019 = vld [vmem:[#allocation7 + $0xa98] sm:$0xff]
    %v4020 = vld [vmem:[#allocation7 + $0xaa0] sm:$0xff]
    %v4021 = vld [vmem:[#allocation7 + $0xaa8] sm:$0xff]
    %v4022 = vld [vmem:[#allocation7 + $0xab0] sm:$0xff]
    %v4023 = vld [vmem:[#allocation7 + $0xab8] sm:$0xff]
    %v4024 = vld [vmem:[#allocation7 + $0xac0] sm:$0xff]
    %v4025 = vld [vmem:[#allocation7 + $0xac8] sm:$0xff]
    %v4026 = vld [vmem:[#allocation7 + $0xad0] sm:$0xff]
    %v4027 = vld [vmem:[#allocation7 + $0xad8] sm:$0xff]
    %v4028 = vld [vmem:[#allocation7 + $0xae0] sm:$0xff]
    %v4029 = vld [vmem:[#allocation7 + $0xae8] sm:$0xff]
    %v4030 = vld [vmem:[#allocation7 + $0xaf0] sm:$0xff]
    %v4031 = vld [vmem:[#allocation7 + $0xaf8] sm:$0xff]
    %v4032 = vld [vmem:[#allocation7 + $0xb00] sm:$0xff]
    %v4033 = vld [vmem:[#allocation7 + $0xb08] sm:$0xff]
    %v4034 = vld [vmem:[#allocation7 + $0xb10] sm:$0xff]
    %v4035 = vld [vmem:[#allocation7 + $0xb18] sm:$0xff]
    %v4036 = vld [vmem:[#allocation7 + $0xb20] sm:$0xff]
    %v4037 = vld [vmem:[#allocation7 + $0xb28] sm:$0xff]
    %v4038 = vld [vmem:[#allocation7 + $0xb30] sm:$0xff]
    %v4039 = vld [vmem:[#allocation7 + $0xb38] sm:$0xff]
    %v4040 = vld [vmem:[#allocation7 + $0xb40] sm:$0xff]
    %v4041 = vld [vmem:[#allocation7 + $0xb48] sm:$0xff]
    %v4042 = vld [vmem:[#allocation7 + $0xb50] sm:$0xff]
    %v4043 = vld [vmem:[#allocation7 + $0xb58] sm:$0xff]
    %v4044 = vld [vmem:[#allocation7 + $0xb60] sm:$0xff]
    %v4045 = vld [vmem:[#allocation7 + $0xb68] sm:$0xff]
    %v4046 = vld [vmem:[#allocation7 + $0xb70] sm:$0xff]
    %v4047 = vld [vmem:[#allocation7 + $0xb78] sm:$0xff]
    %v4048 = vld [vmem:[#allocation7 + $0xb80] sm:$0xff]
    %v4049 = vld [vmem:[#allocation7 + $0xb88] sm:$0xff]
    %v4050 = vld [vmem:[#allocation7 + $0xb90] sm:$0xff]
    %v4051 = vld [vmem:[#allocation7 + $0xb98] sm:$0xff]
    %v4052 = vld [vmem:[#allocation7 + $0xba0] sm:$0xff]
    %v4053 = vld [vmem:[#allocation7 + $0xba8] sm:$0xff]
    %v4054 = vld [vmem:[#allocation7 + $0xbb0] sm:$0xff]
    %v4055 = vld [vmem:[#allocation7 + $0xbb8] sm:$0xff]
    %v4056 = vld [vmem:[#allocation7 + $0xbc0] sm:$0xff]
    %v4057 = vld [vmem:[#allocation7 + $0xbc8] sm:$0xff]
    %v4058 = vld [vmem:[#allocation7 + $0xbd0] sm:$0xff]
    %v4059 = vld [vmem:[#allocation7 + $0xbd8] sm:$0xff]
    %v4060 = vld [vmem:[#allocation7 + $0xbe0] sm:$0xff]
    %v4061 = vld [vmem:[#allocation7 + $0xbe8] sm:$0xff]
    %v4062 = vld [vmem:[#allocation7 + $0xbf0] sm:$0xff]
    %v4063 = vld [vmem:[#allocation7 + $0xbf8] sm:$0xff]
    %v4064 = vld [vmem:[#allocation7 + $0xc00] sm:$0xff]
    %v4065 = vld [vmem:[#allocation7 + $0xc08] sm:$0xff]
    %v4066 = vld [vmem:[#allocation7 + $0xc10] sm:$0xff]
    %v4067 = vld [vmem:[#allocation7 + $0xc18] sm:$0xff]
    %v4068 = vld [vmem:[#allocation7 + $0xc20] sm:$0xff]
    %v4069 = vld [vmem:[#allocation7 + $0xc28] sm:$0xff]
    %v4070 = vld [vmem:[#allocation7 + $0xc30] sm:$0xff]
    %v4071 = vld [vmem:[#allocation7 + $0xc38] sm:$0xff]
    %v4072 = vld [vmem:[#allocation7 + $0xc40] sm:$0xff]
    %v4073 = vld [vmem:[#allocation7 + $0xc48] sm:$0xff]
    %v4074 = vld [vmem:[#allocation7 + $0xc50] sm:$0xff]
    %v4075 = vld [vmem:[#allocation7 + $0xc58] sm:$0xff]
    %v4076 = vld [vmem:[#allocation7 + $0xc60] sm:$0xff]
    %v4077 = vld [vmem:[#allocation7 + $0xc68] sm:$0xff]
    %v4078 = vld [vmem:[#allocation7 + $0xc70] sm:$0xff]
    %v4079 = vld [vmem:[#allocation7 + $0xc78] sm:$0xff]
    %v4080 = vld [vmem:[#allocation7 + $0xc80] sm:$0xff]
    %v4081 = vld [vmem:[#allocation7 + $0xc88] sm:$0xff]
    %v4082 = vld [vmem:[#allocation7 + $0xc90] sm:$0xff]
    %v4083 = vld [vmem:[#allocation7 + $0xc98] sm:$0xff]
    %v4084 = vld [vmem:[#allocation7 + $0xca0] sm:$0xff]
    %v4085 = vld [vmem:[#allocation7 + $0xca8] sm:$0xff]
    %v4086 = vld [vmem:[#allocation7 + $0xcb0] sm:$0xff]
    %v4087 = vld [vmem:[#allocation7 + $0xcb8] sm:$0xff]
    %v4088 = vld [vmem:[#allocation7 + $0xcc0] sm:$0xff]
    %v4089 = vld [vmem:[#allocation7 + $0xcc8] sm:$0xff]
    %v4090 = vld [vmem:[#allocation7 + $0xcd0] sm:$0xff]
    %v4091 = vld [vmem:[#allocation7 + $0xcd8] sm:$0xff]
    %v4092 = vld [vmem:[#allocation7 + $0xce0] sm:$0xff]
    %v4093 = vld [vmem:[#allocation7 + $0xce8] sm:$0xff]
    %v4094 = vld [vmem:[#allocation7 + $0xcf0] sm:$0xff]
    %v4095 = vld [vmem:[#allocation7 + $0xcf8] sm:$0xff]
    %v4096 = vld [vmem:[#allocation7 + $0xd00] sm:$0xff]
    %v4097 = vld [vmem:[#allocation7 + $0xd08] sm:$0xff]
    %v4098 = vld [vmem:[#allocation7 + $0xd10] sm:$0xff]
    %v4099 = vld [vmem:[#allocation7 + $0xd18] sm:$0xff]
    %v4100 = vld [vmem:[#allocation7 + $0xd20] sm:$0xff]
    %v4101 = vld [vmem:[#allocation7 + $0xd28] sm:$0xff]
    %v4102 = vld [vmem:[#allocation7 + $0xd30] sm:$0xff]
    %v4103 = vld [vmem:[#allocation7 + $0xd38] sm:$0xff]
    %v4104 = vld [vmem:[#allocation7 + $0xd40] sm:$0xff]
    %v4105 = vld [vmem:[#allocation7 + $0xd48] sm:$0xff]
    %v4106 = vld [vmem:[#allocation7 + $0xd50] sm:$0xff]
    %v4107 = vld [vmem:[#allocation7 + $0xd58] sm:$0xff]
    %v4108 = vld [vmem:[#allocation7 + $0xd60] sm:$0xff]
    %v4109 = vld [vmem:[#allocation7 + $0xd68] sm:$0xff]
    %v4110 = vld [vmem:[#allocation7 + $0xd70] sm:$0xff]
    %v4111 = vld [vmem:[#allocation7 + $0xd78] sm:$0xff]
    %v4112 = vld [vmem:[#allocation7 + $0xd80] sm:$0xff]
    %v4113 = vld [vmem:[#allocation7 + $0xd88] sm:$0xff]
    %v4114 = vld [vmem:[#allocation7 + $0xd90] sm:$0xff]
    %v4115 = vld [vmem:[#allocation7 + $0xd98] sm:$0xff]
    %v4116 = vld [vmem:[#allocation7 + $0xda0] sm:$0xff]
    %v4117 = vld [vmem:[#allocation7 + $0xda8] sm:$0xff]
    %v4118 = vld [vmem:[#allocation7 + $0xdb0] sm:$0xff]
    %v4119 = vld [vmem:[#allocation7 + $0xdb8] sm:$0xff]
    %v4120 = vld [vmem:[#allocation7 + $0xdc0] sm:$0xff]
    %v4121 = vld [vmem:[#allocation7 + $0xdc8] sm:$0xff]
    %v4122 = vld [vmem:[#allocation7 + $0xdd0] sm:$0xff]
    %v4123 = vld [vmem:[#allocation7 + $0xdd8] sm:$0xff]
    %v4124 = vld [vmem:[#allocation7 + $0xde0] sm:$0xff]
    %v4125 = vld [vmem:[#allocation7 + $0xde8] sm:$0xff]
    %v4126 = vld [vmem:[#allocation7 + $0xdf0] sm:$0xff]
    %v4127 = vld [vmem:[#allocation7 + $0xdf8] sm:$0xff]
    %v4128 = vld [vmem:[#allocation7 + $0xe00] sm:$0xff]
    %v4129 = vld [vmem:[#allocation7 + $0xe08] sm:$0xff]
    %v4130 = vld [vmem:[#allocation7 + $0xe10] sm:$0xff]
    %v4131 = vld [vmem:[#allocation7 + $0xe18] sm:$0xff]
    %v4132 = vld [vmem:[#allocation7 + $0xe20] sm:$0xff]
    %v4133 = vld [vmem:[#allocation7 + $0xe28] sm:$0xff]
    %v4134 = vld [vmem:[#allocation7 + $0xe30] sm:$0xff]
    %v4135 = vld [vmem:[#allocation7 + $0xe38] sm:$0xff]
    %v4136 = vld [vmem:[#allocation7 + $0xe40] sm:$0xff]
    %v4137 = vld [vmem:[#allocation7 + $0xe48] sm:$0xff]
    %v4138 = vld [vmem:[#allocation7 + $0xe50] sm:$0xff]
    %v4139 = vld [vmem:[#allocation7 + $0xe58] sm:$0xff]
    %v4140 = vld [vmem:[#allocation7 + $0xe60] sm:$0xff]
    %v4141 = vld [vmem:[#allocation7 + $0xe68] sm:$0xff]
    %v4142 = vld [vmem:[#allocation7 + $0xe70] sm:$0xff]
    %v4143 = vld [vmem:[#allocation7 + $0xe78] sm:$0xff]
    %v4144 = vld [vmem:[#allocation7 + $0xe80] sm:$0xff]
    %v4145 = vld [vmem:[#allocation7 + $0xe88] sm:$0xff]
    %v4146 = vld [vmem:[#allocation7 + $0xe90] sm:$0xff]
    %v4147 = vld [vmem:[#allocation7 + $0xe98] sm:$0xff]
    %v4148 = vld [vmem:[#allocation7 + $0xea0] sm:$0xff]
    %v4149 = vld [vmem:[#allocation7 + $0xea8] sm:$0xff]
    %v4150 = vld [vmem:[#allocation7 + $0xeb0] sm:$0xff]
    %v4151 = vld [vmem:[#allocation7 + $0xeb8] sm:$0xff]
    %v4152 = vld [vmem:[#allocation7 + $0xec0] sm:$0xff]
    %v4153 = vld [vmem:[#allocation7 + $0xec8] sm:$0xff]
    %v4154 = vld [vmem:[#allocation7 + $0xed0] sm:$0xff]
    %v4155 = vld [vmem:[#allocation7 + $0xed8] sm:$0xff]
    %v4156 = vld [vmem:[#allocation7 + $0xee0] sm:$0xff]
    %v4157 = vld [vmem:[#allocation7 + $0xee8] sm:$0xff]
    %v4158 = vld [vmem:[#allocation7 + $0xef0] sm:$0xff]
    %v4159 = vld [vmem:[#allocation7 + $0xef8] sm:$0xff]
    %v4160 = vld [vmem:[#allocation7 + $0xf00] sm:$0xff]
    %v4161 = vld [vmem:[#allocation7 + $0xf08] sm:$0xff]
    %v4162 = vld [vmem:[#allocation7 + $0xf10] sm:$0xff]
    %v4163 = vld [vmem:[#allocation7 + $0xf18] sm:$0xff]
    %v4164 = vld [vmem:[#allocation7 + $0xf20] sm:$0xff]
    %v4165 = vld [vmem:[#allocation7 + $0xf28] sm:$0xff]
    %v4166 = vld [vmem:[#allocation7 + $0xf30] sm:$0xff]
    %v4167 = vld [vmem:[#allocation7 + $0xf38] sm:$0xff]
    %v4168 = vld [vmem:[#allocation7 + $0xf40] sm:$0xff]
    %v4169 = vld [vmem:[#allocation7 + $0xf48] sm:$0xff]
    %v4170 = vld [vmem:[#allocation7 + $0xf50] sm:$0xff]
    %v4171 = vld [vmem:[#allocation7 + $0xf58] sm:$0xff]
    %v4172 = vld [vmem:[#allocation7 + $0xf60] sm:$0xff]
    %v4173 = vld [vmem:[#allocation7 + $0xf68] sm:$0xff]
    %v4174 = vld [vmem:[#allocation7 + $0xf70] sm:$0xff]
    %v4175 = vld [vmem:[#allocation7 + $0xf78] sm:$0xff]
    %v4176 = vld [vmem:[#allocation7 + $0xf80] sm:$0xff]
    %v4177 = vld [vmem:[#allocation7 + $0xf88] sm:$0xff]
    %v4178 = vld [vmem:[#allocation7 + $0xf90] sm:$0xff]
    %v4179 = vld [vmem:[#allocation7 + $0xf98] sm:$0xff]
    %v4180 = vld [vmem:[#allocation7 + $0xfa0] sm:$0xff]
    %v4181 = vld [vmem:[#allocation7 + $0xfa8] sm:$0xff]
    %v4182 = vld [vmem:[#allocation7 + $0xfb0] sm:$0xff]
    %v4183 = vld [vmem:[#allocation7 + $0xfb8] sm:$0xff]
    %v4184 = vld [vmem:[#allocation7 + $0xfc0] sm:$0xff]
    %v4185 = vld [vmem:[#allocation7 + $0xfc8] sm:$0xff]
    %v4186 = vld [vmem:[#allocation7 + $0xfd0] sm:$0xff]
    %v4187 = vld [vmem:[#allocation7 + $0xfd8] sm:$0xff]
    %v4188 = vld [vmem:[#allocation7 + $0xfe0] sm:$0xff]
    %v4189 = vld [vmem:[#allocation7 + $0xfe8] sm:$0xff]
    %v4190 = vld [vmem:[#allocation7 + $0xff0] sm:$0xff]
    %v4191 = vld [vmem:[#allocation7 + $0xff8] sm:$0xff]
    %v4192 = vld [vmem:[#allocation9] sm:$0xff]
    %v4194 = vperm.slane %v4192, 0
    %v4195 = vperm.slane %v4192, 1
    %v4196 = vperm.slane %v4192, 2
    %v4197 = vperm.slane %v4192, 3
    %v4198 = vperm.slane %v4192, 4
    %v4199 = vperm.slane %v4192, 5
    %v4200 = vperm.slane %v4192, 6
    %v4201 = vperm.slane %v4192, 7
    %v4722 = vunpack.c.l.b16 %v3680
    %v4723 = vunpack.c.h.b16 %v3680
    %v4724 = vunpack.c.l.b16 %v3681
    %v4725 = vunpack.c.h.b16 %v3681
    %v4726 = vunpack.c.l.b16 %v3682
    %v4727 = vunpack.c.h.b16 %v3682
    %v4728 = vunpack.c.l.b16 %v3683
    %v4729 = vunpack.c.h.b16 %v3683
    %v4730 = vunpack.c.l.b16 %v3684
    %v4731 = vunpack.c.h.b16 %v3684
    %v4732 = vunpack.c.l.b16 %v3685
    %v4733 = vunpack.c.h.b16 %v3685
    %v4734 = vunpack.c.l.b16 %v3686
    %v4735 = vunpack.c.h.b16 %v3686
    %v4736 = vunpack.c.l.b16 %v3687
    %v4737 = vunpack.c.h.b16 %v3687
    %v4738 = vunpack.c.l.b16 %v3688
    %v4739 = vunpack.c.h.b16 %v3688
    %v4740 = vunpack.c.l.b16 %v3689
    %v4741 = vunpack.c.h.b16 %v3689
    %v4742 = vunpack.c.l.b16 %v3690
    %v4743 = vunpack.c.h.b16 %v3690
    %v4744 = vunpack.c.l.b16 %v3691
    %v4745 = vunpack.c.h.b16 %v3691
    %v4746 = vunpack.c.l.b16 %v3692
    %v4747 = vunpack.c.h.b16 %v3692
    %v4748 = vunpack.c.l.b16 %v3693
    %v4749 = vunpack.c.h.b16 %v3693
    %v4750 = vunpack.c.l.b16 %v3694
    %v4751 = vunpack.c.h.b16 %v3694
    %v4752 = vunpack.c.l.b16 %v3695
    %v4753 = vunpack.c.h.b16 %v3695
    %v4754 = vunpack.c.l.b16 %v3696
    %v4755 = vunpack.c.h.b16 %v3696
    %v4756 = vunpack.c.l.b16 %v3697
    %v4757 = vunpack.c.h.b16 %v3697
    %v4758 = vunpack.c.l.b16 %v3698
    %v4759 = vunpack.c.h.b16 %v3698
    %v4760 = vunpack.c.l.b16 %v3699
    %v4761 = vunpack.c.h.b16 %v3699
    %v4762 = vunpack.c.l.b16 %v3700
    %v4763 = vunpack.c.h.b16 %v3700
    %v4764 = vunpack.c.l.b16 %v3701
    %v4765 = vunpack.c.h.b16 %v3701
    %v4766 = vunpack.c.l.b16 %v3702
    %v4767 = vunpack.c.h.b16 %v3702
    %v4768 = vunpack.c.l.b16 %v3703
    %v4769 = vunpack.c.h.b16 %v3703
    %v4770 = vunpack.c.l.b16 %v3704
    %v4771 = vunpack.c.h.b16 %v3704
    %v4772 = vunpack.c.l.b16 %v3705
    %v4773 = vunpack.c.h.b16 %v3705
    %v4774 = vunpack.c.l.b16 %v3706
    %v4775 = vunpack.c.h.b16 %v3706
    %v4776 = vunpack.c.l.b16 %v3707
    %v4777 = vunpack.c.h.b16 %v3707
    %v4778 = vunpack.c.l.b16 %v3708
    %v4779 = vunpack.c.h.b16 %v3708
    %v4780 = vunpack.c.l.b16 %v3709
    %v4781 = vunpack.c.h.b16 %v3709
    %v4782 = vunpack.c.l.b16 %v3710
    %v4783 = vunpack.c.h.b16 %v3710
    %v4784 = vunpack.c.l.b16 %v3711
    %v4785 = vunpack.c.h.b16 %v3711
    %v4786 = vunpack.c.l.b16 %v3712
    %v4787 = vunpack.c.h.b16 %v3712
    %v4788 = vunpack.c.l.b16 %v3713
    %v4789 = vunpack.c.h.b16 %v3713
    %v4790 = vunpack.c.l.b16 %v3714
    %v4791 = vunpack.c.h.b16 %v3714
    %v4792 = vunpack.c.l.b16 %v3715
    %v4793 = vunpack.c.h.b16 %v3715
    %v4794 = vunpack.c.l.b16 %v3716
    %v4795 = vunpack.c.h.b16 %v3716
    %v4796 = vunpack.c.l.b16 %v3717
    %v4797 = vunpack.c.h.b16 %v3717
    %v4798 = vunpack.c.l.b16 %v3718
    %v4799 = vunpack.c.h.b16 %v3718
    %v4800 = vunpack.c.l.b16 %v3719
    %v4801 = vunpack.c.h.b16 %v3719
    %v4802 = vunpack.c.l.b16 %v3720
    %v4803 = vunpack.c.h.b16 %v3720
    %v4804 = vunpack.c.l.b16 %v3721
    %v4805 = vunpack.c.h.b16 %v3721
    %v4806 = vunpack.c.l.b16 %v3722
    %v4807 = vunpack.c.h.b16 %v3722
    %v4808 = vunpack.c.l.b16 %v3723
    %v4809 = vunpack.c.h.b16 %v3723
    %v4810 = vunpack.c.l.b16 %v3724
    %v4811 = vunpack.c.h.b16 %v3724
    %v4812 = vunpack.c.l.b16 %v3725
    %v4813 = vunpack.c.h.b16 %v3725
    %v4814 = vunpack.c.l.b16 %v3726
    %v4815 = vunpack.c.h.b16 %v3726
    %v4816 = vunpack.c.l.b16 %v3727
    %v4817 = vunpack.c.h.b16 %v3727
    %v4818 = vunpack.c.l.b16 %v3728
    %v4819 = vunpack.c.h.b16 %v3728
    %v4820 = vunpack.c.l.b16 %v3729
    %v4821 = vunpack.c.h.b16 %v3729
    %v4822 = vunpack.c.l.b16 %v3730
    %v4823 = vunpack.c.h.b16 %v3730
    %v4824 = vunpack.c.l.b16 %v3731
    %v4825 = vunpack.c.h.b16 %v3731
    %v4826 = vunpack.c.l.b16 %v3732
    %v4827 = vunpack.c.h.b16 %v3732
    %v4828 = vunpack.c.l.b16 %v3733
    %v4829 = vunpack.c.h.b16 %v3733
    %v4830 = vunpack.c.l.b16 %v3734
    %v4831 = vunpack.c.h.b16 %v3734
    %v4832 = vunpack.c.l.b16 %v3735
    %v4833 = vunpack.c.h.b16 %v3735
    %v4834 = vunpack.c.l.b16 %v3736
    %v4835 = vunpack.c.h.b16 %v3736
    %v4836 = vunpack.c.l.b16 %v3737
    %v4837 = vunpack.c.h.b16 %v3737
    %v4838 = vunpack.c.l.b16 %v3738
    %v4839 = vunpack.c.h.b16 %v3738
    %v4840 = vunpack.c.l.b16 %v3739
    %v4841 = vunpack.c.h.b16 %v3739
    %v4842 = vunpack.c.l.b16 %v3740
    %v4843 = vunpack.c.h.b16 %v3740
    %v4844 = vunpack.c.l.b16 %v3741
    %v4845 = vunpack.c.h.b16 %v3741
    %v4846 = vunpack.c.l.b16 %v3742
    %v4847 = vunpack.c.h.b16 %v3742
    %v4848 = vunpack.c.l.b16 %v3743
    %v4849 = vunpack.c.h.b16 %v3743
    %v4850 = vunpack.c.l.b16 %v3744
    %v4851 = vunpack.c.h.b16 %v3744
    %v4852 = vunpack.c.l.b16 %v3745
    %v4853 = vunpack.c.h.b16 %v3745
    %v4854 = vunpack.c.l.b16 %v3746
    %v4855 = vunpack.c.h.b16 %v3746
    %v4856 = vunpack.c.l.b16 %v3747
    %v4857 = vunpack.c.h.b16 %v3747
    %v4858 = vunpack.c.l.b16 %v3748
    %v4859 = vunpack.c.h.b16 %v3748
    %v4860 = vunpack.c.l.b16 %v3749
    %v4861 = vunpack.c.h.b16 %v3749
    %v4862 = vunpack.c.l.b16 %v3750
    %v4863 = vunpack.c.h.b16 %v3750
    %v4864 = vunpack.c.l.b16 %v3751
    %v4865 = vunpack.c.h.b16 %v3751
    %v4866 = vunpack.c.l.b16 %v3752
    %v4867 = vunpack.c.h.b16 %v3752
    %v4868 = vunpack.c.l.b16 %v3753
    %v4869 = vunpack.c.h.b16 %v3753
    %v4870 = vunpack.c.l.b16 %v3754
    %v4871 = vunpack.c.h.b16 %v3754
    %v4872 = vunpack.c.l.b16 %v3755
    %v4873 = vunpack.c.h.b16 %v3755
    %v4874 = vunpack.c.l.b16 %v3756
    %v4875 = vunpack.c.h.b16 %v3756
    %v4876 = vunpack.c.l.b16 %v3757
    %v4877 = vunpack.c.h.b16 %v3757
    %v4878 = vunpack.c.l.b16 %v3758
    %v4879 = vunpack.c.h.b16 %v3758
    %v4880 = vunpack.c.l.b16 %v3759
    %v4881 = vunpack.c.h.b16 %v3759
    %v4882 = vunpack.c.l.b16 %v3760
    %v4883 = vunpack.c.h.b16 %v3760
    %v4884 = vunpack.c.l.b16 %v3761
    %v4885 = vunpack.c.h.b16 %v3761
    %v4886 = vunpack.c.l.b16 %v3762
    %v4887 = vunpack.c.h.b16 %v3762
    %v4888 = vunpack.c.l.b16 %v3763
    %v4889 = vunpack.c.h.b16 %v3763
    %v4890 = vunpack.c.l.b16 %v3764
    %v4891 = vunpack.c.h.b16 %v3764
    %v4892 = vunpack.c.l.b16 %v3765
    %v4893 = vunpack.c.h.b16 %v3765
    %v4894 = vunpack.c.l.b16 %v3766
    %v4895 = vunpack.c.h.b16 %v3766
    %v4896 = vunpack.c.l.b16 %v3767
    %v4897 = vunpack.c.h.b16 %v3767
    %v4898 = vunpack.c.l.b16 %v3768
    %v4899 = vunpack.c.h.b16 %v3768
    %v4900 = vunpack.c.l.b16 %v3769
    %v4901 = vunpack.c.h.b16 %v3769
    %v4902 = vunpack.c.l.b16 %v3770
    %v4903 = vunpack.c.h.b16 %v3770
    %v4904 = vunpack.c.l.b16 %v3771
    %v4905 = vunpack.c.h.b16 %v3771
    %v4906 = vunpack.c.l.b16 %v3772
    %v4907 = vunpack.c.h.b16 %v3772
    %v4908 = vunpack.c.l.b16 %v3773
    %v4909 = vunpack.c.h.b16 %v3773
    %v4910 = vunpack.c.l.b16 %v3774
    %v4911 = vunpack.c.h.b16 %v3774
    %v4912 = vunpack.c.l.b16 %v3775
    %v4913 = vunpack.c.h.b16 %v3775
    %v4914 = vunpack.c.l.b16 %v3776
    %v4915 = vunpack.c.h.b16 %v3776
    %v4916 = vunpack.c.l.b16 %v3777
    %v4917 = vunpack.c.h.b16 %v3777
    %v4918 = vunpack.c.l.b16 %v3778
    %v4919 = vunpack.c.h.b16 %v3778
    %v4920 = vunpack.c.l.b16 %v3779
    %v4921 = vunpack.c.h.b16 %v3779
    %v4922 = vunpack.c.l.b16 %v3780
    %v4923 = vunpack.c.h.b16 %v3780
    %v4924 = vunpack.c.l.b16 %v3781
    %v4925 = vunpack.c.h.b16 %v3781
    %v4926 = vunpack.c.l.b16 %v3782
    %v4927 = vunpack.c.h.b16 %v3782
    %v4928 = vunpack.c.l.b16 %v3783
    %v4929 = vunpack.c.h.b16 %v3783
    %v4930 = vunpack.c.l.b16 %v3784
    %v4931 = vunpack.c.h.b16 %v3784
    %v4932 = vunpack.c.l.b16 %v3785
    %v4933 = vunpack.c.h.b16 %v3785
    %v4934 = vunpack.c.l.b16 %v3786
    %v4935 = vunpack.c.h.b16 %v3786
    %v4936 = vunpack.c.l.b16 %v3787
    %v4937 = vunpack.c.h.b16 %v3787
    %v4938 = vunpack.c.l.b16 %v3788
    %v4939 = vunpack.c.h.b16 %v3788
    %v4940 = vunpack.c.l.b16 %v3789
    %v4941 = vunpack.c.h.b16 %v3789
    %v4942 = vunpack.c.l.b16 %v3790
    %v4943 = vunpack.c.h.b16 %v3790
    %v4944 = vunpack.c.l.b16 %v3791
    %v4945 = vunpack.c.h.b16 %v3791
    %v4946 = vunpack.c.l.b16 %v3792
    %v4947 = vunpack.c.h.b16 %v3792
    %v4948 = vunpack.c.l.b16 %v3793
    %v4949 = vunpack.c.h.b16 %v3793
    %v4950 = vunpack.c.l.b16 %v3794
    %v4951 = vunpack.c.h.b16 %v3794
    %v4952 = vunpack.c.l.b16 %v3795
    %v4953 = vunpack.c.h.b16 %v3795
    %v4954 = vunpack.c.l.b16 %v3796
    %v4955 = vunpack.c.h.b16 %v3796
    %v4956 = vunpack.c.l.b16 %v3797
    %v4957 = vunpack.c.h.b16 %v3797
    %v4958 = vunpack.c.l.b16 %v3798
    %v4959 = vunpack.c.h.b16 %v3798
    %v4960 = vunpack.c.l.b16 %v3799
    %v4961 = vunpack.c.h.b16 %v3799
    %v4962 = vunpack.c.l.b16 %v3800
    %v4963 = vunpack.c.h.b16 %v3800
    %v4964 = vunpack.c.l.b16 %v3801
    %v4965 = vunpack.c.h.b16 %v3801
    %v4966 = vunpack.c.l.b16 %v3802
    %v4967 = vunpack.c.h.b16 %v3802
    %v4968 = vunpack.c.l.b16 %v3803
    %v4969 = vunpack.c.h.b16 %v3803
    %v4970 = vunpack.c.l.b16 %v3804
    %v4971 = vunpack.c.h.b16 %v3804
    %v4972 = vunpack.c.l.b16 %v3805
    %v4973 = vunpack.c.h.b16 %v3805
    %v4974 = vunpack.c.l.b16 %v3806
    %v4975 = vunpack.c.h.b16 %v3806
    %v4976 = vunpack.c.l.b16 %v3807
    %v4977 = vunpack.c.h.b16 %v3807
    %v4978 = vunpack.c.l.b16 %v3808
    %v4979 = vunpack.c.h.b16 %v3808
    %v4980 = vunpack.c.l.b16 %v3809
    %v4981 = vunpack.c.h.b16 %v3809
    %v4982 = vunpack.c.l.b16 %v3810
    %v4983 = vunpack.c.h.b16 %v3810
    %v4984 = vunpack.c.l.b16 %v3811
    %v4985 = vunpack.c.h.b16 %v3811
    %v4986 = vunpack.c.l.b16 %v3812
    %v4987 = vunpack.c.h.b16 %v3812
    %v4988 = vunpack.c.l.b16 %v3813
    %v4989 = vunpack.c.h.b16 %v3813
    %v4990 = vunpack.c.l.b16 %v3814
    %v4991 = vunpack.c.h.b16 %v3814
    %v4992 = vunpack.c.l.b16 %v3815
    %v4993 = vunpack.c.h.b16 %v3815
    %v4994 = vunpack.c.l.b16 %v3816
    %v4995 = vunpack.c.h.b16 %v3816
    %v4996 = vunpack.c.l.b16 %v3817
    %v4997 = vunpack.c.h.b16 %v3817
    %v4998 = vunpack.c.l.b16 %v3818
    %v4999 = vunpack.c.h.b16 %v3818
    %v5000 = vunpack.c.l.b16 %v3819
    %v5001 = vunpack.c.h.b16 %v3819
    %v5002 = vunpack.c.l.b16 %v3820
    %v5003 = vunpack.c.h.b16 %v3820
    %v5004 = vunpack.c.l.b16 %v3821
    %v5005 = vunpack.c.h.b16 %v3821
    %v5006 = vunpack.c.l.b16 %v3822
    %v5007 = vunpack.c.h.b16 %v3822
    %v5008 = vunpack.c.l.b16 %v3823
    %v5009 = vunpack.c.h.b16 %v3823
    %v5010 = vunpack.c.l.b16 %v3824
    %v5011 = vunpack.c.h.b16 %v3824
    %v5012 = vunpack.c.l.b16 %v3825
    %v5013 = vunpack.c.h.b16 %v3825
    %v5014 = vunpack.c.l.b16 %v3826
    %v5015 = vunpack.c.h.b16 %v3826
    %v5016 = vunpack.c.l.b16 %v3827
    %v5017 = vunpack.c.h.b16 %v3827
    %v5018 = vunpack.c.l.b16 %v3828
    %v5019 = vunpack.c.h.b16 %v3828
    %v5020 = vunpack.c.l.b16 %v3829
    %v5021 = vunpack.c.h.b16 %v3829
    %v5022 = vunpack.c.l.b16 %v3830
    %v5023 = vunpack.c.h.b16 %v3830
    %v5024 = vunpack.c.l.b16 %v3831
    %v5025 = vunpack.c.h.b16 %v3831
    %v5026 = vunpack.c.l.b16 %v3832
    %v5027 = vunpack.c.h.b16 %v3832
    %v5028 = vunpack.c.l.b16 %v3833
    %v5029 = vunpack.c.h.b16 %v3833
    %v5030 = vunpack.c.l.b16 %v3834
    %v5031 = vunpack.c.h.b16 %v3834
    %v5032 = vunpack.c.l.b16 %v3835
    %v5033 = vunpack.c.h.b16 %v3835
    %v5034 = vunpack.c.l.b16 %v3836
    %v5035 = vunpack.c.h.b16 %v3836
    %v5036 = vunpack.c.l.b16 %v3837
    %v5037 = vunpack.c.h.b16 %v3837
    %v5038 = vunpack.c.l.b16 %v3838
    %v5039 = vunpack.c.h.b16 %v3838
    %v5040 = vunpack.c.l.b16 %v3839
    %v5041 = vunpack.c.h.b16 %v3839
    %v5042 = vunpack.c.l.b16 %v3840
    %v5043 = vunpack.c.h.b16 %v3840
    %v5044 = vunpack.c.l.b16 %v3841
    %v5045 = vunpack.c.h.b16 %v3841
    %v5046 = vunpack.c.l.b16 %v3842
    %v5047 = vunpack.c.h.b16 %v3842
    %v5048 = vunpack.c.l.b16 %v3843
    %v5049 = vunpack.c.h.b16 %v3843
    %v5050 = vunpack.c.l.b16 %v3844
    %v5051 = vunpack.c.h.b16 %v3844
    %v5052 = vunpack.c.l.b16 %v3845
    %v5053 = vunpack.c.h.b16 %v3845
    %v5054 = vunpack.c.l.b16 %v3846
    %v5055 = vunpack.c.h.b16 %v3846
    %v5056 = vunpack.c.l.b16 %v3847
    %v5057 = vunpack.c.h.b16 %v3847
    %v5058 = vunpack.c.l.b16 %v3848
    %v5059 = vunpack.c.h.b16 %v3848
    %v5060 = vunpack.c.l.b16 %v3849
    %v5061 = vunpack.c.h.b16 %v3849
    %v5062 = vunpack.c.l.b16 %v3850
    %v5063 = vunpack.c.h.b16 %v3850
    %v5064 = vunpack.c.l.b16 %v3851
    %v5065 = vunpack.c.h.b16 %v3851
    %v5066 = vunpack.c.l.b16 %v3852
    %v5067 = vunpack.c.h.b16 %v3852
    %v5068 = vunpack.c.l.b16 %v3853
    %v5069 = vunpack.c.h.b16 %v3853
    %v5070 = vunpack.c.l.b16 %v3854
    %v5071 = vunpack.c.h.b16 %v3854
    %v5072 = vunpack.c.l.b16 %v3855
    %v5073 = vunpack.c.h.b16 %v3855
    %v5074 = vunpack.c.l.b16 %v3856
    %v5075 = vunpack.c.h.b16 %v3856
    %v5076 = vunpack.c.l.b16 %v3857
    %v5077 = vunpack.c.h.b16 %v3857
    %v5078 = vunpack.c.l.b16 %v3858
    %v5079 = vunpack.c.h.b16 %v3858
    %v5080 = vunpack.c.l.b16 %v3859
    %v5081 = vunpack.c.h.b16 %v3859
    %v5082 = vunpack.c.l.b16 %v3860
    %v5083 = vunpack.c.h.b16 %v3860
    %v5084 = vunpack.c.l.b16 %v3861
    %v5085 = vunpack.c.h.b16 %v3861
    %v5086 = vunpack.c.l.b16 %v3862
    %v5087 = vunpack.c.h.b16 %v3862
    %v5088 = vunpack.c.l.b16 %v3863
    %v5089 = vunpack.c.h.b16 %v3863
    %v5090 = vunpack.c.l.b16 %v3864
    %v5091 = vunpack.c.h.b16 %v3864
    %v5092 = vunpack.c.l.b16 %v3865
    %v5093 = vunpack.c.h.b16 %v3865
    %v5094 = vunpack.c.l.b16 %v3866
    %v5095 = vunpack.c.h.b16 %v3866
    %v5096 = vunpack.c.l.b16 %v3867
    %v5097 = vunpack.c.h.b16 %v3867
    %v5098 = vunpack.c.l.b16 %v3868
    %v5099 = vunpack.c.h.b16 %v3868
    %v5100 = vunpack.c.l.b16 %v3869
    %v5101 = vunpack.c.h.b16 %v3869
    %v5102 = vunpack.c.l.b16 %v3870
    %v5103 = vunpack.c.h.b16 %v3870
    %v5104 = vunpack.c.l.b16 %v3871
    %v5105 = vunpack.c.h.b16 %v3871
    %v5106 = vunpack.c.l.b16 %v3872
    %v5107 = vunpack.c.h.b16 %v3872
    %v5108 = vunpack.c.l.b16 %v3873
    %v5109 = vunpack.c.h.b16 %v3873
    %v5110 = vunpack.c.l.b16 %v3874
    %v5111 = vunpack.c.h.b16 %v3874
    %v5112 = vunpack.c.l.b16 %v3875
    %v5113 = vunpack.c.h.b16 %v3875
    %v5114 = vunpack.c.l.b16 %v3876
    %v5115 = vunpack.c.h.b16 %v3876
    %v5116 = vunpack.c.l.b16 %v3877
    %v5117 = vunpack.c.h.b16 %v3877
    %v5118 = vunpack.c.l.b16 %v3878
    %v5119 = vunpack.c.h.b16 %v3878
    %v5120 = vunpack.c.l.b16 %v3879
    %v5121 = vunpack.c.h.b16 %v3879
    %v5122 = vunpack.c.l.b16 %v3880
    %v5123 = vunpack.c.h.b16 %v3880
    %v5124 = vunpack.c.l.b16 %v3881
    %v5125 = vunpack.c.h.b16 %v3881
    %v5126 = vunpack.c.l.b16 %v3882
    %v5127 = vunpack.c.h.b16 %v3882
    %v5128 = vunpack.c.l.b16 %v3883
    %v5129 = vunpack.c.h.b16 %v3883
    %v5130 = vunpack.c.l.b16 %v3884
    %v5131 = vunpack.c.h.b16 %v3884
    %v5132 = vunpack.c.l.b16 %v3885
    %v5133 = vunpack.c.h.b16 %v3885
    %v5134 = vunpack.c.l.b16 %v3886
    %v5135 = vunpack.c.h.b16 %v3886
    %v5136 = vunpack.c.l.b16 %v3887
    %v5137 = vunpack.c.h.b16 %v3887
    %v5138 = vunpack.c.l.b16 %v3888
    %v5139 = vunpack.c.h.b16 %v3888
    %v5140 = vunpack.c.l.b16 %v3889
    %v5141 = vunpack.c.h.b16 %v3889
    %v5142 = vunpack.c.l.b16 %v3890
    %v5143 = vunpack.c.h.b16 %v3890
    %v5144 = vunpack.c.l.b16 %v3891
    %v5145 = vunpack.c.h.b16 %v3891
    %v5146 = vunpack.c.l.b16 %v3892
    %v5147 = vunpack.c.h.b16 %v3892
    %v5148 = vunpack.c.l.b16 %v3893
    %v5149 = vunpack.c.h.b16 %v3893
    %v5150 = vunpack.c.l.b16 %v3894
    %v5151 = vunpack.c.h.b16 %v3894
    %v5152 = vunpack.c.l.b16 %v3895
    %v5153 = vunpack.c.h.b16 %v3895
    %v5154 = vunpack.c.l.b16 %v3896
    %v5155 = vunpack.c.h.b16 %v3896
    %v5156 = vunpack.c.l.b16 %v3897
    %v5157 = vunpack.c.h.b16 %v3897
    %v5158 = vunpack.c.l.b16 %v3898
    %v5159 = vunpack.c.h.b16 %v3898
    %v5160 = vunpack.c.l.b16 %v3899
    %v5161 = vunpack.c.h.b16 %v3899
    %v5162 = vunpack.c.l.b16 %v3900
    %v5163 = vunpack.c.h.b16 %v3900
    %v5164 = vunpack.c.l.b16 %v3901
    %v5165 = vunpack.c.h.b16 %v3901
    %v5166 = vunpack.c.l.b16 %v3902
    %v5167 = vunpack.c.h.b16 %v3902
    %v5168 = vunpack.c.l.b16 %v3903
    %v5169 = vunpack.c.h.b16 %v3903
    %v5170 = vunpack.c.l.b16 %v3904
    %v5171 = vunpack.c.h.b16 %v3904
    %v5172 = vunpack.c.l.b16 %v3905
    %v5173 = vunpack.c.h.b16 %v3905
    %v5174 = vunpack.c.l.b16 %v3906
    %v5175 = vunpack.c.h.b16 %v3906
    %v5176 = vunpack.c.l.b16 %v3907
    %v5177 = vunpack.c.h.b16 %v3907
    %v5178 = vunpack.c.l.b16 %v3908
    %v5179 = vunpack.c.h.b16 %v3908
    %v5180 = vunpack.c.l.b16 %v3909
    %v5181 = vunpack.c.h.b16 %v3909
    %v5182 = vunpack.c.l.b16 %v3910
    %v5183 = vunpack.c.h.b16 %v3910
    %v5184 = vunpack.c.l.b16 %v3911
    %v5185 = vunpack.c.h.b16 %v3911
    %v5186 = vunpack.c.l.b16 %v3912
    %v5187 = vunpack.c.h.b16 %v3912
    %v5188 = vunpack.c.l.b16 %v3913
    %v5189 = vunpack.c.h.b16 %v3913
    %v5190 = vunpack.c.l.b16 %v3914
    %v5191 = vunpack.c.h.b16 %v3914
    %v5192 = vunpack.c.l.b16 %v3915
    %v5193 = vunpack.c.h.b16 %v3915
    %v5194 = vunpack.c.l.b16 %v3916
    %v5195 = vunpack.c.h.b16 %v3916
    %v5196 = vunpack.c.l.b16 %v3917
    %v5197 = vunpack.c.h.b16 %v3917
    %v5198 = vunpack.c.l.b16 %v3918
    %v5199 = vunpack.c.h.b16 %v3918
    %v5200 = vunpack.c.l.b16 %v3919
    %v5201 = vunpack.c.h.b16 %v3919
    %v5202 = vunpack.c.l.b16 %v3920
    %v5203 = vunpack.c.h.b16 %v3920
    %v5204 = vunpack.c.l.b16 %v3921
    %v5205 = vunpack.c.h.b16 %v3921
    %v5206 = vunpack.c.l.b16 %v3922
    %v5207 = vunpack.c.h.b16 %v3922
    %v5208 = vunpack.c.l.b16 %v3923
    %v5209 = vunpack.c.h.b16 %v3923
    %v5210 = vunpack.c.l.b16 %v3924
    %v5211 = vunpack.c.h.b16 %v3924
    %v5212 = vunpack.c.l.b16 %v3925
    %v5213 = vunpack.c.h.b16 %v3925
    %v5214 = vunpack.c.l.b16 %v3926
    %v5215 = vunpack.c.h.b16 %v3926
    %v5216 = vunpack.c.l.b16 %v3927
    %v5217 = vunpack.c.h.b16 %v3927
    %v5218 = vunpack.c.l.b16 %v3928
    %v5219 = vunpack.c.h.b16 %v3928
    %v5220 = vunpack.c.l.b16 %v3929
    %v5221 = vunpack.c.h.b16 %v3929
    %v5222 = vunpack.c.l.b16 %v3930
    %v5223 = vunpack.c.h.b16 %v3930
    %v5224 = vunpack.c.l.b16 %v3931
    %v5225 = vunpack.c.h.b16 %v3931
    %v5226 = vunpack.c.l.b16 %v3932
    %v5227 = vunpack.c.h.b16 %v3932
    %v5228 = vunpack.c.l.b16 %v3933
    %v5229 = vunpack.c.h.b16 %v3933
    %v5230 = vunpack.c.l.b16 %v3934
    %v5231 = vunpack.c.h.b16 %v3934
    %v5232 = vunpack.c.l.b16 %v3935
    %v5233 = vunpack.c.h.b16 %v3935
    %v5234 = vunpack.c.l.b16 %v3936
    %v5235 = vunpack.c.h.b16 %v3936
    %v5236 = vunpack.c.l.b16 %v3937
    %v5237 = vunpack.c.h.b16 %v3937
    %v5238 = vunpack.c.l.b16 %v3938
    %v5239 = vunpack.c.h.b16 %v3938
    %v5240 = vunpack.c.l.b16 %v3939
    %v5241 = vunpack.c.h.b16 %v3939
    %v5242 = vunpack.c.l.b16 %v3940
    %v5243 = vunpack.c.h.b16 %v3940
    %v5244 = vunpack.c.l.b16 %v3941
    %v5245 = vunpack.c.h.b16 %v3941
    %v5246 = vunpack.c.l.b16 %v3942
    %v5247 = vunpack.c.h.b16 %v3942
    %v5248 = vunpack.c.l.b16 %v3943
    %v5249 = vunpack.c.h.b16 %v3943
    %v5250 = vunpack.c.l.b16 %v3944
    %v5251 = vunpack.c.h.b16 %v3944
    %v5252 = vunpack.c.l.b16 %v3945
    %v5253 = vunpack.c.h.b16 %v3945
    %v5254 = vunpack.c.l.b16 %v3946
    %v5255 = vunpack.c.h.b16 %v3946
    %v5256 = vunpack.c.l.b16 %v3947
    %v5257 = vunpack.c.h.b16 %v3947
    %v5258 = vunpack.c.l.b16 %v3948
    %v5259 = vunpack.c.h.b16 %v3948
    %v5260 = vunpack.c.l.b16 %v3949
    %v5261 = vunpack.c.h.b16 %v3949
    %v5262 = vunpack.c.l.b16 %v3950
    %v5263 = vunpack.c.h.b16 %v3950
    %v5264 = vunpack.c.l.b16 %v3951
    %v5265 = vunpack.c.h.b16 %v3951
    %v5266 = vunpack.c.l.b16 %v3952
    %v5267 = vunpack.c.h.b16 %v3952
    %v5268 = vunpack.c.l.b16 %v3953
    %v5269 = vunpack.c.h.b16 %v3953
    %v5270 = vunpack.c.l.b16 %v3954
    %v5271 = vunpack.c.h.b16 %v3954
    %v5272 = vunpack.c.l.b16 %v3955
    %v5273 = vunpack.c.h.b16 %v3955
    %v5274 = vunpack.c.l.b16 %v3956
    %v5275 = vunpack.c.h.b16 %v3956
    %v5276 = vunpack.c.l.b16 %v3957
    %v5277 = vunpack.c.h.b16 %v3957
    %v5278 = vunpack.c.l.b16 %v3958
    %v5279 = vunpack.c.h.b16 %v3958
    %v5280 = vunpack.c.l.b16 %v3959
    %v5281 = vunpack.c.h.b16 %v3959
    %v5282 = vunpack.c.l.b16 %v3960
    %v5283 = vunpack.c.h.b16 %v3960
    %v5284 = vunpack.c.l.b16 %v3961
    %v5285 = vunpack.c.h.b16 %v3961
    %v5286 = vunpack.c.l.b16 %v3962
    %v5287 = vunpack.c.h.b16 %v3962
    %v5288 = vunpack.c.l.b16 %v3963
    %v5289 = vunpack.c.h.b16 %v3963
    %v5290 = vunpack.c.l.b16 %v3964
    %v5291 = vunpack.c.h.b16 %v3964
    %v5292 = vunpack.c.l.b16 %v3965
    %v5293 = vunpack.c.h.b16 %v3965
    %v5294 = vunpack.c.l.b16 %v3966
    %v5295 = vunpack.c.h.b16 %v3966
    %v5296 = vunpack.c.l.b16 %v3967
    %v5297 = vunpack.c.h.b16 %v3967
    %v5298 = vunpack.c.l.b16 %v3968
    %v5299 = vunpack.c.h.b16 %v3968
    %v5300 = vunpack.c.l.b16 %v3969
    %v5301 = vunpack.c.h.b16 %v3969
    %v5302 = vunpack.c.l.b16 %v3970
    %v5303 = vunpack.c.h.b16 %v3970
    %v5304 = vunpack.c.l.b16 %v3971
    %v5305 = vunpack.c.h.b16 %v3971
    %v5306 = vunpack.c.l.b16 %v3972
    %v5307 = vunpack.c.h.b16 %v3972
    %v5308 = vunpack.c.l.b16 %v3973
    %v5309 = vunpack.c.h.b16 %v3973
    %v5310 = vunpack.c.l.b16 %v3974
    %v5311 = vunpack.c.h.b16 %v3974
    %v5312 = vunpack.c.l.b16 %v3975
    %v5313 = vunpack.c.h.b16 %v3975
    %v5314 = vunpack.c.l.b16 %v3976
    %v5315 = vunpack.c.h.b16 %v3976
    %v5316 = vunpack.c.l.b16 %v3977
    %v5317 = vunpack.c.h.b16 %v3977
    %v5318 = vunpack.c.l.b16 %v3978
    %v5319 = vunpack.c.h.b16 %v3978
    %v5320 = vunpack.c.l.b16 %v3979
    %v5321 = vunpack.c.h.b16 %v3979
    %v5322 = vunpack.c.l.b16 %v3980
    %v5323 = vunpack.c.h.b16 %v3980
    %v5324 = vunpack.c.l.b16 %v3981
    %v5325 = vunpack.c.h.b16 %v3981
    %v5326 = vunpack.c.l.b16 %v3982
    %v5327 = vunpack.c.h.b16 %v3982
    %v5328 = vunpack.c.l.b16 %v3983
    %v5329 = vunpack.c.h.b16 %v3983
    %v5330 = vunpack.c.l.b16 %v3984
    %v5331 = vunpack.c.h.b16 %v3984
    %v5332 = vunpack.c.l.b16 %v3985
    %v5333 = vunpack.c.h.b16 %v3985
    %v5334 = vunpack.c.l.b16 %v3986
    %v5335 = vunpack.c.h.b16 %v3986
    %v5336 = vunpack.c.l.b16 %v3987
    %v5337 = vunpack.c.h.b16 %v3987
    %v5338 = vunpack.c.l.b16 %v3988
    %v5339 = vunpack.c.h.b16 %v3988
    %v5340 = vunpack.c.l.b16 %v3989
    %v5341 = vunpack.c.h.b16 %v3989
    %v5342 = vunpack.c.l.b16 %v3990
    %v5343 = vunpack.c.h.b16 %v3990
    %v5344 = vunpack.c.l.b16 %v3991
    %v5345 = vunpack.c.h.b16 %v3991
    %v5346 = vunpack.c.l.b16 %v3992
    %v5347 = vunpack.c.h.b16 %v3992
    %v5348 = vunpack.c.l.b16 %v3993
    %v5349 = vunpack.c.h.b16 %v3993
    %v5350 = vunpack.c.l.b16 %v3994
    %v5351 = vunpack.c.h.b16 %v3994
    %v5352 = vunpack.c.l.b16 %v3995
    %v5353 = vunpack.c.h.b16 %v3995
    %v5354 = vunpack.c.l.b16 %v3996
    %v5355 = vunpack.c.h.b16 %v3996
    %v5356 = vunpack.c.l.b16 %v3997
    %v5357 = vunpack.c.h.b16 %v3997
    %v5358 = vunpack.c.l.b16 %v3998
    %v5359 = vunpack.c.h.b16 %v3998
    %v5360 = vunpack.c.l.b16 %v3999
    %v5361 = vunpack.c.h.b16 %v3999
    %v5362 = vunpack.c.l.b16 %v4000
    %v5363 = vunpack.c.h.b16 %v4000
    %v5364 = vunpack.c.l.b16 %v4001
    %v5365 = vunpack.c.h.b16 %v4001
    %v5366 = vunpack.c.l.b16 %v4002
    %v5367 = vunpack.c.h.b16 %v4002
    %v5368 = vunpack.c.l.b16 %v4003
    %v5369 = vunpack.c.h.b16 %v4003
    %v5370 = vunpack.c.l.b16 %v4004
    %v5371 = vunpack.c.h.b16 %v4004
    %v5372 = vunpack.c.l.b16 %v4005
    %v5373 = vunpack.c.h.b16 %v4005
    %v5374 = vunpack.c.l.b16 %v4006
    %v5375 = vunpack.c.h.b16 %v4006
    %v5376 = vunpack.c.l.b16 %v4007
    %v5377 = vunpack.c.h.b16 %v4007
    %v5378 = vunpack.c.l.b16 %v4008
    %v5379 = vunpack.c.h.b16 %v4008
    %v5380 = vunpack.c.l.b16 %v4009
    %v5381 = vunpack.c.h.b16 %v4009
    %v5382 = vunpack.c.l.b16 %v4010
    %v5383 = vunpack.c.h.b16 %v4010
    %v5384 = vunpack.c.l.b16 %v4011
    %v5385 = vunpack.c.h.b16 %v4011
    %v5386 = vunpack.c.l.b16 %v4012
    %v5387 = vunpack.c.h.b16 %v4012
    %v5388 = vunpack.c.l.b16 %v4013
    %v5389 = vunpack.c.h.b16 %v4013
    %v5390 = vunpack.c.l.b16 %v4014
    %v5391 = vunpack.c.h.b16 %v4014
    %v5392 = vunpack.c.l.b16 %v4015
    %v5393 = vunpack.c.h.b16 %v4015
    %v5394 = vunpack.c.l.b16 %v4016
    %v5395 = vunpack.c.h.b16 %v4016
    %v5396 = vunpack.c.l.b16 %v4017
    %v5397 = vunpack.c.h.b16 %v4017
    %v5398 = vunpack.c.l.b16 %v4018
    %v5399 = vunpack.c.h.b16 %v4018
    %v5400 = vunpack.c.l.b16 %v4019
    %v5401 = vunpack.c.h.b16 %v4019
    %v5402 = vunpack.c.l.b16 %v4020
    %v5403 = vunpack.c.h.b16 %v4020
    %v5404 = vunpack.c.l.b16 %v4021
    %v5405 = vunpack.c.h.b16 %v4021
    %v5406 = vunpack.c.l.b16 %v4022
    %v5407 = vunpack.c.h.b16 %v4022
    %v5408 = vunpack.c.l.b16 %v4023
    %v5409 = vunpack.c.h.b16 %v4023
    %v5410 = vunpack.c.l.b16 %v4024
    %v5411 = vunpack.c.h.b16 %v4024
    %v5412 = vunpack.c.l.b16 %v4025
    %v5413 = vunpack.c.h.b16 %v4025
    %v5414 = vunpack.c.l.b16 %v4026
    %v5415 = vunpack.c.h.b16 %v4026
    %v5416 = vunpack.c.l.b16 %v4027
    %v5417 = vunpack.c.h.b16 %v4027
    %v5418 = vunpack.c.l.b16 %v4028
    %v5419 = vunpack.c.h.b16 %v4028
    %v5420 = vunpack.c.l.b16 %v4029
    %v5421 = vunpack.c.h.b16 %v4029
    %v5422 = vunpack.c.l.b16 %v4030
    %v5423 = vunpack.c.h.b16 %v4030
    %v5424 = vunpack.c.l.b16 %v4031
    %v5425 = vunpack.c.h.b16 %v4031
    %v5426 = vunpack.c.l.b16 %v4032
    %v5427 = vunpack.c.h.b16 %v4032
    %v5428 = vunpack.c.l.b16 %v4033
    %v5429 = vunpack.c.h.b16 %v4033
    %v5430 = vunpack.c.l.b16 %v4034
    %v5431 = vunpack.c.h.b16 %v4034
    %v5432 = vunpack.c.l.b16 %v4035
    %v5433 = vunpack.c.h.b16 %v4035
    %v5434 = vunpack.c.l.b16 %v4036
    %v5435 = vunpack.c.h.b16 %v4036
    %v5436 = vunpack.c.l.b16 %v4037
    %v5437 = vunpack.c.h.b16 %v4037
    %v5438 = vunpack.c.l.b16 %v4038
    %v5439 = vunpack.c.h.b16 %v4038
    %v5440 = vunpack.c.l.b16 %v4039
    %v5441 = vunpack.c.h.b16 %v4039
    %v5442 = vunpack.c.l.b16 %v4040
    %v5443 = vunpack.c.h.b16 %v4040
    %v5444 = vunpack.c.l.b16 %v4041
    %v5445 = vunpack.c.h.b16 %v4041
    %v5446 = vunpack.c.l.b16 %v4042
    %v5447 = vunpack.c.h.b16 %v4042
    %v5448 = vunpack.c.l.b16 %v4043
    %v5449 = vunpack.c.h.b16 %v4043
    %v5450 = vunpack.c.l.b16 %v4044
    %v5451 = vunpack.c.h.b16 %v4044
    %v5452 = vunpack.c.l.b16 %v4045
    %v5453 = vunpack.c.h.b16 %v4045
    %v5454 = vunpack.c.l.b16 %v4046
    %v5455 = vunpack.c.h.b16 %v4046
    %v5456 = vunpack.c.l.b16 %v4047
    %v5457 = vunpack.c.h.b16 %v4047
    %v5458 = vunpack.c.l.b16 %v4048
    %v5459 = vunpack.c.h.b16 %v4048
    %v5460 = vunpack.c.l.b16 %v4049
    %v5461 = vunpack.c.h.b16 %v4049
    %v5462 = vunpack.c.l.b16 %v4050
    %v5463 = vunpack.c.h.b16 %v4050
    %v5464 = vunpack.c.l.b16 %v4051
    %v5465 = vunpack.c.h.b16 %v4051
    %v5466 = vunpack.c.l.b16 %v4052
    %v5467 = vunpack.c.h.b16 %v4052
    %v5468 = vunpack.c.l.b16 %v4053
    %v5469 = vunpack.c.h.b16 %v4053
    %v5470 = vunpack.c.l.b16 %v4054
    %v5471 = vunpack.c.h.b16 %v4054
    %v5472 = vunpack.c.l.b16 %v4055
    %v5473 = vunpack.c.h.b16 %v4055
    %v5474 = vunpack.c.l.b16 %v4056
    %v5475 = vunpack.c.h.b16 %v4056
    %v5476 = vunpack.c.l.b16 %v4057
    %v5477 = vunpack.c.h.b16 %v4057
    %v5478 = vunpack.c.l.b16 %v4058
    %v5479 = vunpack.c.h.b16 %v4058
    %v5480 = vunpack.c.l.b16 %v4059
    %v5481 = vunpack.c.h.b16 %v4059
    %v5482 = vunpack.c.l.b16 %v4060
    %v5483 = vunpack.c.h.b16 %v4060
    %v5484 = vunpack.c.l.b16 %v4061
    %v5485 = vunpack.c.h.b16 %v4061
    %v5486 = vunpack.c.l.b16 %v4062
    %v5487 = vunpack.c.h.b16 %v4062
    %v5488 = vunpack.c.l.b16 %v4063
    %v5489 = vunpack.c.h.b16 %v4063
    %v5490 = vunpack.c.l.b16 %v4064
    %v5491 = vunpack.c.h.b16 %v4064
    %v5492 = vunpack.c.l.b16 %v4065
    %v5493 = vunpack.c.h.b16 %v4065
    %v5494 = vunpack.c.l.b16 %v4066
    %v5495 = vunpack.c.h.b16 %v4066
    %v5496 = vunpack.c.l.b16 %v4067
    %v5497 = vunpack.c.h.b16 %v4067
    %v5498 = vunpack.c.l.b16 %v4068
    %v5499 = vunpack.c.h.b16 %v4068
    %v5500 = vunpack.c.l.b16 %v4069
    %v5501 = vunpack.c.h.b16 %v4069
    %v5502 = vunpack.c.l.b16 %v4070
    %v5503 = vunpack.c.h.b16 %v4070
    %v5504 = vunpack.c.l.b16 %v4071
    %v5505 = vunpack.c.h.b16 %v4071
    %v5506 = vunpack.c.l.b16 %v4072
    %v5507 = vunpack.c.h.b16 %v4072
    %v5508 = vunpack.c.l.b16 %v4073
    %v5509 = vunpack.c.h.b16 %v4073
    %v5510 = vunpack.c.l.b16 %v4074
    %v5511 = vunpack.c.h.b16 %v4074
    %v5512 = vunpack.c.l.b16 %v4075
    %v5513 = vunpack.c.h.b16 %v4075
    %v5514 = vunpack.c.l.b16 %v4076
    %v5515 = vunpack.c.h.b16 %v4076
    %v5516 = vunpack.c.l.b16 %v4077
    %v5517 = vunpack.c.h.b16 %v4077
    %v5518 = vunpack.c.l.b16 %v4078
    %v5519 = vunpack.c.h.b16 %v4078
    %v5520 = vunpack.c.l.b16 %v4079
    %v5521 = vunpack.c.h.b16 %v4079
    %v5522 = vunpack.c.l.b16 %v4080
    %v5523 = vunpack.c.h.b16 %v4080
    %v5524 = vunpack.c.l.b16 %v4081
    %v5525 = vunpack.c.h.b16 %v4081
    %v5526 = vunpack.c.l.b16 %v4082
    %v5527 = vunpack.c.h.b16 %v4082
    %v5528 = vunpack.c.l.b16 %v4083
    %v5529 = vunpack.c.h.b16 %v4083
    %v5530 = vunpack.c.l.b16 %v4084
    %v5531 = vunpack.c.h.b16 %v4084
    %v5532 = vunpack.c.l.b16 %v4085
    %v5533 = vunpack.c.h.b16 %v4085
    %v5534 = vunpack.c.l.b16 %v4086
    %v5535 = vunpack.c.h.b16 %v4086
    %v5536 = vunpack.c.l.b16 %v4087
    %v5537 = vunpack.c.h.b16 %v4087
    %v5538 = vunpack.c.l.b16 %v4088
    %v5539 = vunpack.c.h.b16 %v4088
    %v5540 = vunpack.c.l.b16 %v4089
    %v5541 = vunpack.c.h.b16 %v4089
    %v5542 = vunpack.c.l.b16 %v4090
    %v5543 = vunpack.c.h.b16 %v4090
    %v5544 = vunpack.c.l.b16 %v4091
    %v5545 = vunpack.c.h.b16 %v4091
    %v5546 = vunpack.c.l.b16 %v4092
    %v5547 = vunpack.c.h.b16 %v4092
    %v5548 = vunpack.c.l.b16 %v4093
    %v5549 = vunpack.c.h.b16 %v4093
    %v5550 = vunpack.c.l.b16 %v4094
    %v5551 = vunpack.c.h.b16 %v4094
    %v5552 = vunpack.c.l.b16 %v4095
    %v5553 = vunpack.c.h.b16 %v4095
    %v5554 = vunpack.c.l.b16 %v4096
    %v5555 = vunpack.c.h.b16 %v4096
    %v5556 = vunpack.c.l.b16 %v4097
    %v5557 = vunpack.c.h.b16 %v4097
    %v5558 = vunpack.c.l.b16 %v4098
    %v5559 = vunpack.c.h.b16 %v4098
    %v5560 = vunpack.c.l.b16 %v4099
    %v5561 = vunpack.c.h.b16 %v4099
    %v5562 = vunpack.c.l.b16 %v4100
    %v5563 = vunpack.c.h.b16 %v4100
    %v5564 = vunpack.c.l.b16 %v4101
    %v5565 = vunpack.c.h.b16 %v4101
    %v5566 = vunpack.c.l.b16 %v4102
    %v5567 = vunpack.c.h.b16 %v4102
    %v5568 = vunpack.c.l.b16 %v4103
    %v5569 = vunpack.c.h.b16 %v4103
    %v5570 = vunpack.c.l.b16 %v4104
    %v5571 = vunpack.c.h.b16 %v4104
    %v5572 = vunpack.c.l.b16 %v4105
    %v5573 = vunpack.c.h.b16 %v4105
    %v5574 = vunpack.c.l.b16 %v4106
    %v5575 = vunpack.c.h.b16 %v4106
    %v5576 = vunpack.c.l.b16 %v4107
    %v5577 = vunpack.c.h.b16 %v4107
    %v5578 = vunpack.c.l.b16 %v4108
    %v5579 = vunpack.c.h.b16 %v4108
    %v5580 = vunpack.c.l.b16 %v4109
    %v5581 = vunpack.c.h.b16 %v4109
    %v5582 = vunpack.c.l.b16 %v4110
    %v5583 = vunpack.c.h.b16 %v4110
    %v5584 = vunpack.c.l.b16 %v4111
    %v5585 = vunpack.c.h.b16 %v4111
    %v5586 = vunpack.c.l.b16 %v4112
    %v5587 = vunpack.c.h.b16 %v4112
    %v5588 = vunpack.c.l.b16 %v4113
    %v5589 = vunpack.c.h.b16 %v4113
    %v5590 = vunpack.c.l.b16 %v4114
    %v5591 = vunpack.c.h.b16 %v4114
    %v5592 = vunpack.c.l.b16 %v4115
    %v5593 = vunpack.c.h.b16 %v4115
    %v5594 = vunpack.c.l.b16 %v4116
    %v5595 = vunpack.c.h.b16 %v4116
    %v5596 = vunpack.c.l.b16 %v4117
    %v5597 = vunpack.c.h.b16 %v4117
    %v5598 = vunpack.c.l.b16 %v4118
    %v5599 = vunpack.c.h.b16 %v4118
    %v5600 = vunpack.c.l.b16 %v4119
    %v5601 = vunpack.c.h.b16 %v4119
    %v5602 = vunpack.c.l.b16 %v4120
    %v5603 = vunpack.c.h.b16 %v4120
    %v5604 = vunpack.c.l.b16 %v4121
    %v5605 = vunpack.c.h.b16 %v4121
    %v5606 = vunpack.c.l.b16 %v4122
    %v5607 = vunpack.c.h.b16 %v4122
    %v5608 = vunpack.c.l.b16 %v4123
    %v5609 = vunpack.c.h.b16 %v4123
    %v5610 = vunpack.c.l.b16 %v4124
    %v5611 = vunpack.c.h.b16 %v4124
    %v5612 = vunpack.c.l.b16 %v4125
    %v5613 = vunpack.c.h.b16 %v4125
    %v5614 = vunpack.c.l.b16 %v4126
    %v5615 = vunpack.c.h.b16 %v4126
    %v5616 = vunpack.c.l.b16 %v4127
    %v5617 = vunpack.c.h.b16 %v4127
    %v5618 = vunpack.c.l.b16 %v4128
    %v5619 = vunpack.c.h.b16 %v4128
    %v5620 = vunpack.c.l.b16 %v4129
    %v5621 = vunpack.c.h.b16 %v4129
    %v5622 = vunpack.c.l.b16 %v4130
    %v5623 = vunpack.c.h.b16 %v4130
    %v5624 = vunpack.c.l.b16 %v4131
    %v5625 = vunpack.c.h.b16 %v4131
    %v5626 = vunpack.c.l.b16 %v4132
    %v5627 = vunpack.c.h.b16 %v4132
    %v5628 = vunpack.c.l.b16 %v4133
    %v5629 = vunpack.c.h.b16 %v4133
    %v5630 = vunpack.c.l.b16 %v4134
    %v5631 = vunpack.c.h.b16 %v4134
    %v5632 = vunpack.c.l.b16 %v4135
    %v5633 = vunpack.c.h.b16 %v4135
    %v5634 = vunpack.c.l.b16 %v4136
    %v5635 = vunpack.c.h.b16 %v4136
    %v5636 = vunpack.c.l.b16 %v4137
    %v5637 = vunpack.c.h.b16 %v4137
    %v5638 = vunpack.c.l.b16 %v4138
    %v5639 = vunpack.c.h.b16 %v4138
    %v5640 = vunpack.c.l.b16 %v4139
    %v5641 = vunpack.c.h.b16 %v4139
    %v5642 = vunpack.c.l.b16 %v4140
    %v5643 = vunpack.c.h.b16 %v4140
    %v5644 = vunpack.c.l.b16 %v4141
    %v5645 = vunpack.c.h.b16 %v4141
    %v5646 = vunpack.c.l.b16 %v4142
    %v5647 = vunpack.c.h.b16 %v4142
    %v5648 = vunpack.c.l.b16 %v4143
    %v5649 = vunpack.c.h.b16 %v4143
    %v5650 = vunpack.c.l.b16 %v4144
    %v5651 = vunpack.c.h.b16 %v4144
    %v5652 = vunpack.c.l.b16 %v4145
    %v5653 = vunpack.c.h.b16 %v4145
    %v5654 = vunpack.c.l.b16 %v4146
    %v5655 = vunpack.c.h.b16 %v4146
    %v5656 = vunpack.c.l.b16 %v4147
    %v5657 = vunpack.c.h.b16 %v4147
    %v5658 = vunpack.c.l.b16 %v4148
    %v5659 = vunpack.c.h.b16 %v4148
    %v5660 = vunpack.c.l.b16 %v4149
    %v5661 = vunpack.c.h.b16 %v4149
    %v5662 = vunpack.c.l.b16 %v4150
    %v5663 = vunpack.c.h.b16 %v4150
    %v5664 = vunpack.c.l.b16 %v4151
    %v5665 = vunpack.c.h.b16 %v4151
    %v5666 = vunpack.c.l.b16 %v4152
    %v5667 = vunpack.c.h.b16 %v4152
    %v5668 = vunpack.c.l.b16 %v4153
    %v5669 = vunpack.c.h.b16 %v4153
    %v5670 = vunpack.c.l.b16 %v4154
    %v5671 = vunpack.c.h.b16 %v4154
    %v5672 = vunpack.c.l.b16 %v4155
    %v5673 = vunpack.c.h.b16 %v4155
    %v5674 = vunpack.c.l.b16 %v4156
    %v5675 = vunpack.c.h.b16 %v4156
    %v5676 = vunpack.c.l.b16 %v4157
    %v5677 = vunpack.c.h.b16 %v4157
    %v5678 = vunpack.c.l.b16 %v4158
    %v5679 = vunpack.c.h.b16 %v4158
    %v5680 = vunpack.c.l.b16 %v4159
    %v5681 = vunpack.c.h.b16 %v4159
    %v5682 = vunpack.c.l.b16 %v4160
    %v5683 = vunpack.c.h.b16 %v4160
    %v5684 = vunpack.c.l.b16 %v4161
    %v5685 = vunpack.c.h.b16 %v4161
    %v5686 = vunpack.c.l.b16 %v4162
    %v5687 = vunpack.c.h.b16 %v4162
    %v5688 = vunpack.c.l.b16 %v4163
    %v5689 = vunpack.c.h.b16 %v4163
    %v5690 = vunpack.c.l.b16 %v4164
    %v5691 = vunpack.c.h.b16 %v4164
    %v5692 = vunpack.c.l.b16 %v4165
    %v5693 = vunpack.c.h.b16 %v4165
    %v5694 = vunpack.c.l.b16 %v4166
    %v5695 = vunpack.c.h.b16 %v4166
    %v5696 = vunpack.c.l.b16 %v4167
    %v5697 = vunpack.c.h.b16 %v4167
    %v5698 = vunpack.c.l.b16 %v4168
    %v5699 = vunpack.c.h.b16 %v4168
    %v5700 = vunpack.c.l.b16 %v4169
    %v5701 = vunpack.c.h.b16 %v4169
    %v5702 = vunpack.c.l.b16 %v4170
    %v5703 = vunpack.c.h.b16 %v4170
    %v5704 = vunpack.c.l.b16 %v4171
    %v5705 = vunpack.c.h.b16 %v4171
    %v5706 = vunpack.c.l.b16 %v4172
    %v5707 = vunpack.c.h.b16 %v4172
    %v5708 = vunpack.c.l.b16 %v4173
    %v5709 = vunpack.c.h.b16 %v4173
    %v5710 = vunpack.c.l.b16 %v4174
    %v5711 = vunpack.c.h.b16 %v4174
    %v5712 = vunpack.c.l.b16 %v4175
    %v5713 = vunpack.c.h.b16 %v4175
    %v5714 = vunpack.c.l.b16 %v4176
    %v5715 = vunpack.c.h.b16 %v4176
    %v5716 = vunpack.c.l.b16 %v4177
    %v5717 = vunpack.c.h.b16 %v4177
    %v5718 = vunpack.c.l.b16 %v4178
    %v5719 = vunpack.c.h.b16 %v4178
    %v5720 = vunpack.c.l.b16 %v4179
    %v5721 = vunpack.c.h.b16 %v4179
    %v5722 = vunpack.c.l.b16 %v4180
    %v5723 = vunpack.c.h.b16 %v4180
    %v5724 = vunpack.c.l.b16 %v4181
    %v5725 = vunpack.c.h.b16 %v4181
    %v5726 = vunpack.c.l.b16 %v4182
    %v5727 = vunpack.c.h.b16 %v4182
    %v5728 = vunpack.c.l.b16 %v4183
    %v5729 = vunpack.c.h.b16 %v4183
    %v5730 = vunpack.c.l.b16 %v4184
    %v5731 = vunpack.c.h.b16 %v4184
    %v5732 = vunpack.c.l.b16 %v4185
    %v5733 = vunpack.c.h.b16 %v4185
    %v5734 = vunpack.c.l.b16 %v4186
    %v5735 = vunpack.c.h.b16 %v4186
    %v5736 = vunpack.c.l.b16 %v4187
    %v5737 = vunpack.c.h.b16 %v4187
    %v5738 = vunpack.c.l.b16 %v4188
    %v5739 = vunpack.c.h.b16 %v4188
    %v5740 = vunpack.c.l.b16 %v4189
    %v5741 = vunpack.c.h.b16 %v4189
    %v5742 = vunpack.c.l.b16 %v4190
    %v5743 = vunpack.c.h.b16 %v4190
    %v5744 = vunpack.c.l.b16 %v4191
    %v5745 = vunpack.c.h.b16 %v4191
    %v5746 = vpack.c.b16 %v4730, %v4722
    %v5747 = vpack.c.b16 %v4731, %v4723
    %v5748 = vpack.c.b16 %v4732, %v4724
    %v5749 = vpack.c.b16 %v4733, %v4725
    %v5750 = vpack.c.b16 %v4734, %v4726
    %v5751 = vpack.c.b16 %v4735, %v4727
    %v5752 = vpack.c.b16 %v4736, %v4728
    %v5753 = vpack.c.b16 %v4737, %v4729
    %v5754 = vpack.c.b16 %v4746, %v4738
    %v5755 = vpack.c.b16 %v4747, %v4739
    %v5756 = vpack.c.b16 %v4748, %v4740
    %v5757 = vpack.c.b16 %v4749, %v4741
    %v5758 = vpack.c.b16 %v4750, %v4742
    %v5759 = vpack.c.b16 %v4751, %v4743
    %v5760 = vpack.c.b16 %v4752, %v4744
    %v5761 = vpack.c.b16 %v4753, %v4745
    %v5762 = vpack.c.b16 %v4762, %v4754
    %v5763 = vpack.c.b16 %v4763, %v4755
    %v5764 = vpack.c.b16 %v4764, %v4756
    %v5765 = vpack.c.b16 %v4765, %v4757
    %v5766 = vpack.c.b16 %v4766, %v4758
    %v5767 = vpack.c.b16 %v4767, %v4759
    %v5768 = vpack.c.b16 %v4768, %v4760
    %v5769 = vpack.c.b16 %v4769, %v4761
    %v5770 = vpack.c.b16 %v4778, %v4770
    %v5771 = vpack.c.b16 %v4779, %v4771
    %v5772 = vpack.c.b16 %v4780, %v4772
    %v5773 = vpack.c.b16 %v4781, %v4773
    %v5774 = vpack.c.b16 %v4782, %v4774
    %v5775 = vpack.c.b16 %v4783, %v4775
    %v5776 = vpack.c.b16 %v4784, %v4776
    %v5777 = vpack.c.b16 %v4785, %v4777
    %v5778 = vpack.c.b16 %v4794, %v4786
    %v5779 = vpack.c.b16 %v4795, %v4787
    %v5780 = vpack.c.b16 %v4796, %v4788
    %v5781 = vpack.c.b16 %v4797, %v4789
    %v5782 = vpack.c.b16 %v4798, %v4790
    %v5783 = vpack.c.b16 %v4799, %v4791
    %v5784 = vpack.c.b16 %v4800, %v4792
    %v5785 = vpack.c.b16 %v4801, %v4793
    %v5786 = vpack.c.b16 %v4810, %v4802
    %v5787 = vpack.c.b16 %v4811, %v4803
    %v5788 = vpack.c.b16 %v4812, %v4804
    %v5789 = vpack.c.b16 %v4813, %v4805
    %v5790 = vpack.c.b16 %v4814, %v4806
    %v5791 = vpack.c.b16 %v4815, %v4807
    %v5792 = vpack.c.b16 %v4816, %v4808
    %v5793 = vpack.c.b16 %v4817, %v4809
    %v5794 = vpack.c.b16 %v4826, %v4818
    %v5795 = vpack.c.b16 %v4827, %v4819
    %v5796 = vpack.c.b16 %v4828, %v4820
    %v5797 = vpack.c.b16 %v4829, %v4821
    %v5798 = vpack.c.b16 %v4830, %v4822
    %v5799 = vpack.c.b16 %v4831, %v4823
    %v5800 = vpack.c.b16 %v4832, %v4824
    %v5801 = vpack.c.b16 %v4833, %v4825
    %v5802 = vpack.c.b16 %v4842, %v4834
    %v5803 = vpack.c.b16 %v4843, %v4835
    %v5804 = vpack.c.b16 %v4844, %v4836
    %v5805 = vpack.c.b16 %v4845, %v4837
    %v5806 = vpack.c.b16 %v4846, %v4838
    %v5807 = vpack.c.b16 %v4847, %v4839
    %v5808 = vpack.c.b16 %v4848, %v4840
    %v5809 = vpack.c.b16 %v4849, %v4841
    %v5810 = vpack.c.b16 %v4858, %v4850
    %v5811 = vpack.c.b16 %v4859, %v4851
    %v5812 = vpack.c.b16 %v4860, %v4852
    %v5813 = vpack.c.b16 %v4861, %v4853
    %v5814 = vpack.c.b16 %v4862, %v4854
    %v5815 = vpack.c.b16 %v4863, %v4855
    %v5816 = vpack.c.b16 %v4864, %v4856
    %v5817 = vpack.c.b16 %v4865, %v4857
    %v5818 = vpack.c.b16 %v4874, %v4866
    %v5819 = vpack.c.b16 %v4875, %v4867
    %v5820 = vpack.c.b16 %v4876, %v4868
    %v5821 = vpack.c.b16 %v4877, %v4869
    %v5822 = vpack.c.b16 %v4878, %v4870
    %v5823 = vpack.c.b16 %v4879, %v4871
    %v5824 = vpack.c.b16 %v4880, %v4872
    %v5825 = vpack.c.b16 %v4881, %v4873
    %v5826 = vpack.c.b16 %v4890, %v4882
    %v5827 = vpack.c.b16 %v4891, %v4883
    %v5828 = vpack.c.b16 %v4892, %v4884
    %v5829 = vpack.c.b16 %v4893, %v4885
    %v5830 = vpack.c.b16 %v4894, %v4886
    %v5831 = vpack.c.b16 %v4895, %v4887
    %v5832 = vpack.c.b16 %v4896, %v4888
    %v5833 = vpack.c.b16 %v4897, %v4889
    %v5834 = vpack.c.b16 %v4906, %v4898
    %v5835 = vpack.c.b16 %v4907, %v4899
    %v5836 = vpack.c.b16 %v4908, %v4900
    %v5837 = vpack.c.b16 %v4909, %v4901
    %v5838 = vpack.c.b16 %v4910, %v4902
    %v5839 = vpack.c.b16 %v4911, %v4903
    %v5840 = vpack.c.b16 %v4912, %v4904
    %v5841 = vpack.c.b16 %v4913, %v4905
    %v5842 = vpack.c.b16 %v4922, %v4914
    %v5843 = vpack.c.b16 %v4923, %v4915
    %v5844 = vpack.c.b16 %v4924, %v4916
    %v5845 = vpack.c.b16 %v4925, %v4917
    %v5846 = vpack.c.b16 %v4926, %v4918
    %v5847 = vpack.c.b16 %v4927, %v4919
    %v5848 = vpack.c.b16 %v4928, %v4920
    %v5849 = vpack.c.b16 %v4929, %v4921
    %v5850 = vpack.c.b16 %v4938, %v4930
    %v5851 = vpack.c.b16 %v4939, %v4931
    %v5852 = vpack.c.b16 %v4940, %v4932
    %v5853 = vpack.c.b16 %v4941, %v4933
    %v5854 = vpack.c.b16 %v4942, %v4934
    %v5855 = vpack.c.b16 %v4943, %v4935
    %v5856 = vpack.c.b16 %v4944, %v4936
    %v5857 = vpack.c.b16 %v4945, %v4937
    %v5858 = vpack.c.b16 %v4954, %v4946
    %v5859 = vpack.c.b16 %v4955, %v4947
    %v5860 = vpack.c.b16 %v4956, %v4948
    %v5861 = vpack.c.b16 %v4957, %v4949
    %v5862 = vpack.c.b16 %v4958, %v4950
    %v5863 = vpack.c.b16 %v4959, %v4951
    %v5864 = vpack.c.b16 %v4960, %v4952
    %v5865 = vpack.c.b16 %v4961, %v4953
    %v5866 = vpack.c.b16 %v4970, %v4962
    %v5867 = vpack.c.b16 %v4971, %v4963
    %v5868 = vpack.c.b16 %v4972, %v4964
    %v5869 = vpack.c.b16 %v4973, %v4965
    %v5870 = vpack.c.b16 %v4974, %v4966
    %v5871 = vpack.c.b16 %v4975, %v4967
    %v5872 = vpack.c.b16 %v4976, %v4968
    %v5873 = vpack.c.b16 %v4977, %v4969
    %v5874 = vpack.c.b16 %v4986, %v4978
    %v5875 = vpack.c.b16 %v4987, %v4979
    %v5876 = vpack.c.b16 %v4988, %v4980
    %v5877 = vpack.c.b16 %v4989, %v4981
    %v5878 = vpack.c.b16 %v4990, %v4982
    %v5879 = vpack.c.b16 %v4991, %v4983
    %v5880 = vpack.c.b16 %v4992, %v4984
    %v5881 = vpack.c.b16 %v4993, %v4985
    %v5882 = vpack.c.b16 %v5002, %v4994
    %v5883 = vpack.c.b16 %v5003, %v4995
    %v5884 = vpack.c.b16 %v5004, %v4996
    %v5885 = vpack.c.b16 %v5005, %v4997
    %v5886 = vpack.c.b16 %v5006, %v4998
    %v5887 = vpack.c.b16 %v5007, %v4999
    %v5888 = vpack.c.b16 %v5008, %v5000
    %v5889 = vpack.c.b16 %v5009, %v5001
    %v5890 = vpack.c.b16 %v5018, %v5010
    %v5891 = vpack.c.b16 %v5019, %v5011
    %v5892 = vpack.c.b16 %v5020, %v5012
    %v5893 = vpack.c.b16 %v5021, %v5013
    %v5894 = vpack.c.b16 %v5022, %v5014
    %v5895 = vpack.c.b16 %v5023, %v5015
    %v5896 = vpack.c.b16 %v5024, %v5016
    %v5897 = vpack.c.b16 %v5025, %v5017
    %v5898 = vpack.c.b16 %v5034, %v5026
    %v5899 = vpack.c.b16 %v5035, %v5027
    %v5900 = vpack.c.b16 %v5036, %v5028
    %v5901 = vpack.c.b16 %v5037, %v5029
    %v5902 = vpack.c.b16 %v5038, %v5030
    %v5903 = vpack.c.b16 %v5039, %v5031
    %v5904 = vpack.c.b16 %v5040, %v5032
    %v5905 = vpack.c.b16 %v5041, %v5033
    %v5906 = vpack.c.b16 %v5050, %v5042
    %v5907 = vpack.c.b16 %v5051, %v5043
    %v5908 = vpack.c.b16 %v5052, %v5044
    %v5909 = vpack.c.b16 %v5053, %v5045
    %v5910 = vpack.c.b16 %v5054, %v5046
    %v5911 = vpack.c.b16 %v5055, %v5047
    %v5912 = vpack.c.b16 %v5056, %v5048
    %v5913 = vpack.c.b16 %v5057, %v5049
    %v5914 = vpack.c.b16 %v5066, %v5058
    %v5915 = vpack.c.b16 %v5067, %v5059
    %v5916 = vpack.c.b16 %v5068, %v5060
    %v5917 = vpack.c.b16 %v5069, %v5061
    %v5918 = vpack.c.b16 %v5070, %v5062
    %v5919 = vpack.c.b16 %v5071, %v5063
    %v5920 = vpack.c.b16 %v5072, %v5064
    %v5921 = vpack.c.b16 %v5073, %v5065
    %v5922 = vpack.c.b16 %v5082, %v5074
    %v5923 = vpack.c.b16 %v5083, %v5075
    %v5924 = vpack.c.b16 %v5084, %v5076
    %v5925 = vpack.c.b16 %v5085, %v5077
    %v5926 = vpack.c.b16 %v5086, %v5078
    %v5927 = vpack.c.b16 %v5087, %v5079
    %v5928 = vpack.c.b16 %v5088, %v5080
    %v5929 = vpack.c.b16 %v5089, %v5081
    %v5930 = vpack.c.b16 %v5098, %v5090
    %v5931 = vpack.c.b16 %v5099, %v5091
    %v5932 = vpack.c.b16 %v5100, %v5092
    %v5933 = vpack.c.b16 %v5101, %v5093
    %v5934 = vpack.c.b16 %v5102, %v5094
    %v5935 = vpack.c.b16 %v5103, %v5095
    %v5936 = vpack.c.b16 %v5104, %v5096
    %v5937 = vpack.c.b16 %v5105, %v5097
    %v5938 = vpack.c.b16 %v5114, %v5106
    %v5939 = vpack.c.b16 %v5115, %v5107
    %v5940 = vpack.c.b16 %v5116, %v5108
    %v5941 = vpack.c.b16 %v5117, %v5109
    %v5942 = vpack.c.b16 %v5118, %v5110
    %v5943 = vpack.c.b16 %v5119, %v5111
    %v5944 = vpack.c.b16 %v5120, %v5112
    %v5945 = vpack.c.b16 %v5121, %v5113
    %v5946 = vpack.c.b16 %v5130, %v5122
    %v5947 = vpack.c.b16 %v5131, %v5123
    %v5948 = vpack.c.b16 %v5132, %v5124
    %v5949 = vpack.c.b16 %v5133, %v5125
    %v5950 = vpack.c.b16 %v5134, %v5126
    %v5951 = vpack.c.b16 %v5135, %v5127
    %v5952 = vpack.c.b16 %v5136, %v5128
    %v5953 = vpack.c.b16 %v5137, %v5129
    %v5954 = vpack.c.b16 %v5146, %v5138
    %v5955 = vpack.c.b16 %v5147, %v5139
    %v5956 = vpack.c.b16 %v5148, %v5140
    %v5957 = vpack.c.b16 %v5149, %v5141
    %v5958 = vpack.c.b16 %v5150, %v5142
    %v5959 = vpack.c.b16 %v5151, %v5143
    %v5960 = vpack.c.b16 %v5152, %v5144
    %v5961 = vpack.c.b16 %v5153, %v5145
    %v5962 = vpack.c.b16 %v5162, %v5154
    %v5963 = vpack.c.b16 %v5163, %v5155
    %v5964 = vpack.c.b16 %v5164, %v5156
    %v5965 = vpack.c.b16 %v5165, %v5157
    %v5966 = vpack.c.b16 %v5166, %v5158
    %v5967 = vpack.c.b16 %v5167, %v5159
    %v5968 = vpack.c.b16 %v5168, %v5160
    %v5969 = vpack.c.b16 %v5169, %v5161
    %v5970 = vpack.c.b16 %v5178, %v5170
    %v5971 = vpack.c.b16 %v5179, %v5171
    %v5972 = vpack.c.b16 %v5180, %v5172
    %v5973 = vpack.c.b16 %v5181, %v5173
    %v5974 = vpack.c.b16 %v5182, %v5174
    %v5975 = vpack.c.b16 %v5183, %v5175
    %v5976 = vpack.c.b16 %v5184, %v5176
    %v5977 = vpack.c.b16 %v5185, %v5177
    %v5978 = vpack.c.b16 %v5194, %v5186
    %v5979 = vpack.c.b16 %v5195, %v5187
    %v5980 = vpack.c.b16 %v5196, %v5188
    %v5981 = vpack.c.b16 %v5197, %v5189
    %v5982 = vpack.c.b16 %v5198, %v5190
    %v5983 = vpack.c.b16 %v5199, %v5191
    %v5984 = vpack.c.b16 %v5200, %v5192
    %v5985 = vpack.c.b16 %v5201, %v5193
    %v5986 = vpack.c.b16 %v5210, %v5202
    %v5987 = vpack.c.b16 %v5211, %v5203
    %v5988 = vpack.c.b16 %v5212, %v5204
    %v5989 = vpack.c.b16 %v5213, %v5205
    %v5990 = vpack.c.b16 %v5214, %v5206
    %v5991 = vpack.c.b16 %v5215, %v5207
    %v5992 = vpack.c.b16 %v5216, %v5208
    %v5993 = vpack.c.b16 %v5217, %v5209
    %v5994 = vpack.c.b16 %v5226, %v5218
    %v5995 = vpack.c.b16 %v5227, %v5219
    %v5996 = vpack.c.b16 %v5228, %v5220
    %v5997 = vpack.c.b16 %v5229, %v5221
    %v5998 = vpack.c.b16 %v5230, %v5222
    %v5999 = vpack.c.b16 %v5231, %v5223
    %v6000 = vpack.c.b16 %v5232, %v5224
    %v6001 = vpack.c.b16 %v5233, %v5225
    %v6002 = vpack.c.b16 %v5242, %v5234
    %v6003 = vpack.c.b16 %v5243, %v5235
    %v6004 = vpack.c.b16 %v5244, %v5236
    %v6005 = vpack.c.b16 %v5245, %v5237
    %v6006 = vpack.c.b16 %v5246, %v5238
    %v6007 = vpack.c.b16 %v5247, %v5239
    %v6008 = vpack.c.b16 %v5248, %v5240
    %v6009 = vpack.c.b16 %v5249, %v5241
    %v6010 = vpack.c.b16 %v5258, %v5250
    %v6011 = vpack.c.b16 %v5259, %v5251
    %v6012 = vpack.c.b16 %v5260, %v5252
    %v6013 = vpack.c.b16 %v5261, %v5253
    %v6014 = vpack.c.b16 %v5262, %v5254
    %v6015 = vpack.c.b16 %v5263, %v5255
    %v6016 = vpack.c.b16 %v5264, %v5256
    %v6017 = vpack.c.b16 %v5265, %v5257
    %v6018 = vpack.c.b16 %v5274, %v5266
    %v6019 = vpack.c.b16 %v5275, %v5267
    %v6020 = vpack.c.b16 %v5276, %v5268
    %v6021 = vpack.c.b16 %v5277, %v5269
    %v6022 = vpack.c.b16 %v5278, %v5270
    %v6023 = vpack.c.b16 %v5279, %v5271
    %v6024 = vpack.c.b16 %v5280, %v5272
    %v6025 = vpack.c.b16 %v5281, %v5273
    %v6026 = vpack.c.b16 %v5290, %v5282
    %v6027 = vpack.c.b16 %v5291, %v5283
    %v6028 = vpack.c.b16 %v5292, %v5284
    %v6029 = vpack.c.b16 %v5293, %v5285
    %v6030 = vpack.c.b16 %v5294, %v5286
    %v6031 = vpack.c.b16 %v5295, %v5287
    %v6032 = vpack.c.b16 %v5296, %v5288
    %v6033 = vpack.c.b16 %v5297, %v5289
    %v6034 = vpack.c.b16 %v5306, %v5298
    %v6035 = vpack.c.b16 %v5307, %v5299
    %v6036 = vpack.c.b16 %v5308, %v5300
    %v6037 = vpack.c.b16 %v5309, %v5301
    %v6038 = vpack.c.b16 %v5310, %v5302
    %v6039 = vpack.c.b16 %v5311, %v5303
    %v6040 = vpack.c.b16 %v5312, %v5304
    %v6041 = vpack.c.b16 %v5313, %v5305
    %v6042 = vpack.c.b16 %v5322, %v5314
    %v6043 = vpack.c.b16 %v5323, %v5315
    %v6044 = vpack.c.b16 %v5324, %v5316
    %v6045 = vpack.c.b16 %v5325, %v5317
    %v6046 = vpack.c.b16 %v5326, %v5318
    %v6047 = vpack.c.b16 %v5327, %v5319
    %v6048 = vpack.c.b16 %v5328, %v5320
    %v6049 = vpack.c.b16 %v5329, %v5321
    %v6050 = vpack.c.b16 %v5338, %v5330
    %v6051 = vpack.c.b16 %v5339, %v5331
    %v6052 = vpack.c.b16 %v5340, %v5332
    %v6053 = vpack.c.b16 %v5341, %v5333
    %v6054 = vpack.c.b16 %v5342, %v5334
    %v6055 = vpack.c.b16 %v5343, %v5335
    %v6056 = vpack.c.b16 %v5344, %v5336
    %v6057 = vpack.c.b16 %v5345, %v5337
    %v6058 = vpack.c.b16 %v5354, %v5346
    %v6059 = vpack.c.b16 %v5355, %v5347
    %v6060 = vpack.c.b16 %v5356, %v5348
    %v6061 = vpack.c.b16 %v5357, %v5349
    %v6062 = vpack.c.b16 %v5358, %v5350
    %v6063 = vpack.c.b16 %v5359, %v5351
    %v6064 = vpack.c.b16 %v5360, %v5352
    %v6065 = vpack.c.b16 %v5361, %v5353
    %v6066 = vpack.c.b16 %v5370, %v5362
    %v6067 = vpack.c.b16 %v5371, %v5363
    %v6068 = vpack.c.b16 %v5372, %v5364
    %v6069 = vpack.c.b16 %v5373, %v5365
    %v6070 = vpack.c.b16 %v5374, %v5366
    %v6071 = vpack.c.b16 %v5375, %v5367
    %v6072 = vpack.c.b16 %v5376, %v5368
    %v6073 = vpack.c.b16 %v5377, %v5369
    %v6074 = vpack.c.b16 %v5386, %v5378
    %v6075 = vpack.c.b16 %v5387, %v5379
    %v6076 = vpack.c.b16 %v5388, %v5380
    %v6077 = vpack.c.b16 %v5389, %v5381
    %v6078 = vpack.c.b16 %v5390, %v5382
    %v6079 = vpack.c.b16 %v5391, %v5383
    %v6080 = vpack.c.b16 %v5392, %v5384
    %v6081 = vpack.c.b16 %v5393, %v5385
    %v6082 = vpack.c.b16 %v5402, %v5394
    %v6083 = vpack.c.b16 %v5403, %v5395
    %v6084 = vpack.c.b16 %v5404, %v5396
    %v6085 = vpack.c.b16 %v5405, %v5397
    %v6086 = vpack.c.b16 %v5406, %v5398
    %v6087 = vpack.c.b16 %v5407, %v5399
    %v6088 = vpack.c.b16 %v5408, %v5400
    %v6089 = vpack.c.b16 %v5409, %v5401
    %v6090 = vpack.c.b16 %v5418, %v5410
    %v6091 = vpack.c.b16 %v5419, %v5411
    %v6092 = vpack.c.b16 %v5420, %v5412
    %v6093 = vpack.c.b16 %v5421, %v5413
    %v6094 = vpack.c.b16 %v5422, %v5414
    %v6095 = vpack.c.b16 %v5423, %v5415
    %v6096 = vpack.c.b16 %v5424, %v5416
    %v6097 = vpack.c.b16 %v5425, %v5417
    %v6098 = vpack.c.b16 %v5434, %v5426
    %v6099 = vpack.c.b16 %v5435, %v5427
    %v6100 = vpack.c.b16 %v5436, %v5428
    %v6101 = vpack.c.b16 %v5437, %v5429
    %v6102 = vpack.c.b16 %v5438, %v5430
    %v6103 = vpack.c.b16 %v5439, %v5431
    %v6104 = vpack.c.b16 %v5440, %v5432
    %v6105 = vpack.c.b16 %v5441, %v5433
    %v6106 = vpack.c.b16 %v5450, %v5442
    %v6107 = vpack.c.b16 %v5451, %v5443
    %v6108 = vpack.c.b16 %v5452, %v5444
    %v6109 = vpack.c.b16 %v5453, %v5445
    %v6110 = vpack.c.b16 %v5454, %v5446
    %v6111 = vpack.c.b16 %v5455, %v5447
    %v6112 = vpack.c.b16 %v5456, %v5448
    %v6113 = vpack.c.b16 %v5457, %v5449
    %v6114 = vpack.c.b16 %v5466, %v5458
    %v6115 = vpack.c.b16 %v5467, %v5459
    %v6116 = vpack.c.b16 %v5468, %v5460
    %v6117 = vpack.c.b16 %v5469, %v5461
    %v6118 = vpack.c.b16 %v5470, %v5462
    %v6119 = vpack.c.b16 %v5471, %v5463
    %v6120 = vpack.c.b16 %v5472, %v5464
    %v6121 = vpack.c.b16 %v5473, %v5465
    %v6122 = vpack.c.b16 %v5482, %v5474
    %v6123 = vpack.c.b16 %v5483, %v5475
    %v6124 = vpack.c.b16 %v5484, %v5476
    %v6125 = vpack.c.b16 %v5485, %v5477
    %v6126 = vpack.c.b16 %v5486, %v5478
    %v6127 = vpack.c.b16 %v5487, %v5479
    %v6128 = vpack.c.b16 %v5488, %v5480
    %v6129 = vpack.c.b16 %v5489, %v5481
    %v6130 = vpack.c.b16 %v5498, %v5490
    %v6131 = vpack.c.b16 %v5499, %v5491
    %v6132 = vpack.c.b16 %v5500, %v5492
    %v6133 = vpack.c.b16 %v5501, %v5493
    %v6134 = vpack.c.b16 %v5502, %v5494
    %v6135 = vpack.c.b16 %v5503, %v5495
    %v6136 = vpack.c.b16 %v5504, %v5496
    %v6137 = vpack.c.b16 %v5505, %v5497
    %v6138 = vpack.c.b16 %v5514, %v5506
    %v6139 = vpack.c.b16 %v5515, %v5507
    %v6140 = vpack.c.b16 %v5516, %v5508
    %v6141 = vpack.c.b16 %v5517, %v5509
    %v6142 = vpack.c.b16 %v5518, %v5510
    %v6143 = vpack.c.b16 %v5519, %v5511
    %v6144 = vpack.c.b16 %v5520, %v5512
    %v6145 = vpack.c.b16 %v5521, %v5513
    %v6146 = vpack.c.b16 %v5530, %v5522
    %v6147 = vpack.c.b16 %v5531, %v5523
    %v6148 = vpack.c.b16 %v5532, %v5524
    %v6149 = vpack.c.b16 %v5533, %v5525
    %v6150 = vpack.c.b16 %v5534, %v5526
    %v6151 = vpack.c.b16 %v5535, %v5527
    %v6152 = vpack.c.b16 %v5536, %v5528
    %v6153 = vpack.c.b16 %v5537, %v5529
    %v6154 = vpack.c.b16 %v5546, %v5538
    %v6155 = vpack.c.b16 %v5547, %v5539
    %v6156 = vpack.c.b16 %v5548, %v5540
    %v6157 = vpack.c.b16 %v5549, %v5541
    %v6158 = vpack.c.b16 %v5550, %v5542
    %v6159 = vpack.c.b16 %v5551, %v5543
    %v6160 = vpack.c.b16 %v5552, %v5544
    %v6161 = vpack.c.b16 %v5553, %v5545
    %v6162 = vpack.c.b16 %v5562, %v5554
    %v6163 = vpack.c.b16 %v5563, %v5555
    %v6164 = vpack.c.b16 %v5564, %v5556
    %v6165 = vpack.c.b16 %v5565, %v5557
    %v6166 = vpack.c.b16 %v5566, %v5558
    %v6167 = vpack.c.b16 %v5567, %v5559
    %v6168 = vpack.c.b16 %v5568, %v5560
    %v6169 = vpack.c.b16 %v5569, %v5561
    %v6170 = vpack.c.b16 %v5578, %v5570
    %v6171 = vpack.c.b16 %v5579, %v5571
    %v6172 = vpack.c.b16 %v5580, %v5572
    %v6173 = vpack.c.b16 %v5581, %v5573
    %v6174 = vpack.c.b16 %v5582, %v5574
    %v6175 = vpack.c.b16 %v5583, %v5575
    %v6176 = vpack.c.b16 %v5584, %v5576
    %v6177 = vpack.c.b16 %v5585, %v5577
    %v6178 = vpack.c.b16 %v5594, %v5586
    %v6179 = vpack.c.b16 %v5595, %v5587
    %v6180 = vpack.c.b16 %v5596, %v5588
    %v6181 = vpack.c.b16 %v5597, %v5589
    %v6182 = vpack.c.b16 %v5598, %v5590
    %v6183 = vpack.c.b16 %v5599, %v5591
    %v6184 = vpack.c.b16 %v5600, %v5592
    %v6185 = vpack.c.b16 %v5601, %v5593
    %v6186 = vpack.c.b16 %v5610, %v5602
    %v6187 = vpack.c.b16 %v5611, %v5603
    %v6188 = vpack.c.b16 %v5612, %v5604
    %v6189 = vpack.c.b16 %v5613, %v5605
    %v6190 = vpack.c.b16 %v5614, %v5606
    %v6191 = vpack.c.b16 %v5615, %v5607
    %v6192 = vpack.c.b16 %v5616, %v5608
    %v6193 = vpack.c.b16 %v5617, %v5609
    %v6194 = vpack.c.b16 %v5626, %v5618
    %v6195 = vpack.c.b16 %v5627, %v5619
    %v6196 = vpack.c.b16 %v5628, %v5620
    %v6197 = vpack.c.b16 %v5629, %v5621
    %v6198 = vpack.c.b16 %v5630, %v5622
    %v6199 = vpack.c.b16 %v5631, %v5623
    %v6200 = vpack.c.b16 %v5632, %v5624
    %v6201 = vpack.c.b16 %v5633, %v5625
    %v6202 = vpack.c.b16 %v5642, %v5634
    %v6203 = vpack.c.b16 %v5643, %v5635
    %v6204 = vpack.c.b16 %v5644, %v5636
    %v6205 = vpack.c.b16 %v5645, %v5637
    %v6206 = vpack.c.b16 %v5646, %v5638
    %v6207 = vpack.c.b16 %v5647, %v5639
    %v6208 = vpack.c.b16 %v5648, %v5640
    %v6209 = vpack.c.b16 %v5649, %v5641
    %v6210 = vpack.c.b16 %v5658, %v5650
    %v6211 = vpack.c.b16 %v5659, %v5651
    %v6212 = vpack.c.b16 %v5660, %v5652
    %v6213 = vpack.c.b16 %v5661, %v5653
    %v6214 = vpack.c.b16 %v5662, %v5654
    %v6215 = vpack.c.b16 %v5663, %v5655
    %v6216 = vpack.c.b16 %v5664, %v5656
    %v6217 = vpack.c.b16 %v5665, %v5657
    %v6218 = vpack.c.b16 %v5674, %v5666
    %v6219 = vpack.c.b16 %v5675, %v5667
    %v6220 = vpack.c.b16 %v5676, %v5668
    %v6221 = vpack.c.b16 %v5677, %v5669
    %v6222 = vpack.c.b16 %v5678, %v5670
    %v6223 = vpack.c.b16 %v5679, %v5671
    %v6224 = vpack.c.b16 %v5680, %v5672
    %v6225 = vpack.c.b16 %v5681, %v5673
    %v6226 = vpack.c.b16 %v5690, %v5682
    %v6227 = vpack.c.b16 %v5691, %v5683
    %v6228 = vpack.c.b16 %v5692, %v5684
    %v6229 = vpack.c.b16 %v5693, %v5685
    %v6230 = vpack.c.b16 %v5694, %v5686
    %v6231 = vpack.c.b16 %v5695, %v5687
    %v6232 = vpack.c.b16 %v5696, %v5688
    %v6233 = vpack.c.b16 %v5697, %v5689
    %v6234 = vpack.c.b16 %v5706, %v5698
    %v6235 = vpack.c.b16 %v5707, %v5699
    %v6236 = vpack.c.b16 %v5708, %v5700
    %v6237 = vpack.c.b16 %v5709, %v5701
    %v6238 = vpack.c.b16 %v5710, %v5702
    %v6239 = vpack.c.b16 %v5711, %v5703
    %v6240 = vpack.c.b16 %v5712, %v5704
    %v6241 = vpack.c.b16 %v5713, %v5705
    %v6242 = vpack.c.b16 %v5722, %v5714
    %v6243 = vpack.c.b16 %v5723, %v5715
    %v6244 = vpack.c.b16 %v5724, %v5716
    %v6245 = vpack.c.b16 %v5725, %v5717
    %v6246 = vpack.c.b16 %v5726, %v5718
    %v6247 = vpack.c.b16 %v5727, %v5719
    %v6248 = vpack.c.b16 %v5728, %v5720
    %v6249 = vpack.c.b16 %v5729, %v5721
    %v6250 = vpack.c.b16 %v5738, %v5730
    %v6251 = vpack.c.b16 %v5739, %v5731
    %v6252 = vpack.c.b16 %v5740, %v5732
    %v6253 = vpack.c.b16 %v5741, %v5733
    %v6254 = vpack.c.b16 %v5742, %v5734
    %v6255 = vpack.c.b16 %v5743, %v5735
    %v6256 = vpack.c.b16 %v5744, %v5736
    %v6257 = vpack.c.b16 %v5745, %v5737
    %6770 = vmatpush.bf16.msra.mxu0 %v5802
    %6771 = vmatpush.bf16.msra.mxu0 %v5794
    %6772 = vmatpush.bf16.msra.mxu0 %v5786
    %6773 = vmatpush.bf16.msra.mxu0 %v5778
    %6774 = vmatpush.bf16.msra.mxu0 %v5770
    %6775 = vmatpush.bf16.msra.mxu0 %v5762
    %6776 = vmatpush.bf16.msra.mxu0 %v5754
    %6777 = vmatpush.bf16.msra.mxu0 %v5746
    %6778 = vmatmul.bf16.gmra.mxu0 %v3664
    %v6779 = vpop.f32.mrf.mxu0
    %v6780 = vadd.f32 %v4194, %v6779
    %v6781 = vpop.f32.mrf.mxu0
    %6782 = vdwg.mxu0
    %6783 = vmatpush.bf16.msra.mxu0 %v5866
    %6784 = vmatpush.bf16.msra.mxu0 %v5858
    %6785 = vmatpush.bf16.msra.mxu0 %v5850
    %6786 = vmatpush.bf16.msra.mxu0 %v5842
    %6787 = vmatpush.bf16.msra.mxu0 %v5834
    %6788 = vmatpush.bf16.msra.mxu0 %v5826
    %6789 = vmatpush.bf16.msra.mxu0 %v5818
    %6790 = vmatpush.bf16.msra.mxu0 %v5810
    %6791 = vmatmul.bf16.gmra.mxu0 %v3665
    %v6792 = vpop.f32.mrf.mxu0
    %v6793 = vadd.f32 %v6780, %v6792
    %v6794 = vpop.f32.mrf.mxu0
    %6795 = vdwg.mxu0
    %6796 = vmatpush.bf16.msra.mxu0 %v5930
    %6797 = vmatpush.bf16.msra.mxu0 %v5922
    %6798 = vmatpush.bf16.msra.mxu0 %v5914
    %6799 = vmatpush.bf16.msra.mxu0 %v5906
    %6800 = vmatpush.bf16.msra.mxu0 %v5898
    %6801 = vmatpush.bf16.msra.mxu0 %v5890
    %6802 = vmatpush.bf16.msra.mxu0 %v5882
    %6803 = vmatpush.bf16.msra.mxu0 %v5874
    %6804 = vmatmul.bf16.gmra.mxu0 %v3666
    %v6805 = vpop.f32.mrf.mxu0
    %v6806 = vadd.f32 %v6793, %v6805
    %v6807 = vpop.f32.mrf.mxu0
    %6808 = vdwg.mxu0
    %6809 = vmatpush.bf16.msra.mxu0 %v5994
    %6810 = vmatpush.bf16.msra.mxu0 %v5986
    %6811 = vmatpush.bf16.msra.mxu0 %v5978
    %6812 = vmatpush.bf16.msra.mxu0 %v5970
    %6813 = vmatpush.bf16.msra.mxu0 %v5962
    %6814 = vmatpush.bf16.msra.mxu0 %v5954
    %6815 = vmatpush.bf16.msra.mxu0 %v5946
    %6816 = vmatpush.bf16.msra.mxu0 %v5938
    %6817 = vmatmul.bf16.gmra.mxu0 %v3667
    %v6818 = vpop.f32.mrf.mxu0
    %v6819 = vadd.f32 %v6806, %v6818
    %v6820 = vpop.f32.mrf.mxu0
    %6821 = vdwg.mxu0
    %6822 = vmatpush.bf16.msra.mxu0 %v6058
    %6823 = vmatpush.bf16.msra.mxu0 %v6050
    %6824 = vmatpush.bf16.msra.mxu0 %v6042
    %6825 = vmatpush.bf16.msra.mxu0 %v6034
    %6826 = vmatpush.bf16.msra.mxu0 %v6026
    %6827 = vmatpush.bf16.msra.mxu0 %v6018
    %6828 = vmatpush.bf16.msra.mxu0 %v6010
    %6829 = vmatpush.bf16.msra.mxu0 %v6002
    %6830 = vmatmul.bf16.gmra.mxu0 %v3668
    %v6831 = vpop.f32.mrf.mxu0
    %v6832 = vadd.f32 %v6819, %v6831
    %v6833 = vpop.f32.mrf.mxu0
    %6834 = vdwg.mxu0
    %6835 = vmatpush.bf16.msra.mxu0 %v6122
    %6836 = vmatpush.bf16.msra.mxu0 %v6114
    %6837 = vmatpush.bf16.msra.mxu0 %v6106
    %6838 = vmatpush.bf16.msra.mxu0 %v6098
    %6839 = vmatpush.bf16.msra.mxu0 %v6090
    %6840 = vmatpush.bf16.msra.mxu0 %v6082
    %6841 = vmatpush.bf16.msra.mxu0 %v6074
    %6842 = vmatpush.bf16.msra.mxu0 %v6066
    %6843 = vmatmul.bf16.gmra.mxu0 %v3669
    %v6844 = vpop.f32.mrf.mxu0
    %v6845 = vadd.f32 %v6832, %v6844
    %v6846 = vpop.f32.mrf.mxu0
    %6847 = vdwg.mxu0
    %6848 = vmatpush.bf16.msra.mxu0 %v6186
    %6849 = vmatpush.bf16.msra.mxu0 %v6178
    %6850 = vmatpush.bf16.msra.mxu0 %v6170
    %6851 = vmatpush.bf16.msra.mxu0 %v6162
    %6852 = vmatpush.bf16.msra.mxu0 %v6154
    %6853 = vmatpush.bf16.msra.mxu0 %v6146
    %6854 = vmatpush.bf16.msra.mxu0 %v6138
    %6855 = vmatpush.bf16.msra.mxu0 %v6130
    %6856 = vmatmul.bf16.gmra.mxu0 %v3670
    %v6857 = vpop.f32.mrf.mxu0
    %v6858 = vadd.f32 %v6845, %v6857
    %v6859 = vpop.f32.mrf.mxu0
    %6860 = vdwg.mxu0
    %6861 = vmatpush.bf16.msra.mxu0 %v6250
    %6862 = vmatpush.bf16.msra.mxu0 %v6242
    %6863 = vmatpush.bf16.msra.mxu0 %v6234
    %6864 = vmatpush.bf16.msra.mxu0 %v6226
    %6865 = vmatpush.bf16.msra.mxu0 %v6218
    %6866 = vmatpush.bf16.msra.mxu0 %v6210
    %6867 = vmatpush.bf16.msra.mxu0 %v6202
    %6868 = vmatpush.bf16.msra.mxu0 %v6194
    %6869 = vmatmul.bf16.gmra.mxu0 %v3671
    %v6870 = vpop.f32.mrf.mxu0
    %v6871 = vadd.f32 %v6858, %v6870
    %v6872 = vpop.f32.mrf.mxu0
    %6873 = vdwg.mxu0
    %6874 = vmatpush.bf16.msra.mxu0 %v5803
    %6875 = vmatpush.bf16.msra.mxu0 %v5795
    %6876 = vmatpush.bf16.msra.mxu0 %v5787
    %6877 = vmatpush.bf16.msra.mxu0 %v5779
    %6878 = vmatpush.bf16.msra.mxu0 %v5771
    %6879 = vmatpush.bf16.msra.mxu0 %v5763
    %6880 = vmatpush.bf16.msra.mxu0 %v5755
    %6881 = vmatpush.bf16.msra.mxu0 %v5747
    %6882 = vmatmul.bf16.gmra.mxu0 %v3664
    %v6883 = vpop.f32.mrf.mxu0
    %v6884 = vadd.f32 %v4195, %v6883
    %v6885 = vpop.f32.mrf.mxu0
    %6886 = vdwg.mxu0
    %6887 = vmatpush.bf16.msra.mxu0 %v5867
    %6888 = vmatpush.bf16.msra.mxu0 %v5859
    %6889 = vmatpush.bf16.msra.mxu0 %v5851
    %6890 = vmatpush.bf16.msra.mxu0 %v5843
    %6891 = vmatpush.bf16.msra.mxu0 %v5835
    %6892 = vmatpush.bf16.msra.mxu0 %v5827
    %6893 = vmatpush.bf16.msra.mxu0 %v5819
    %6894 = vmatpush.bf16.msra.mxu0 %v5811
    %6895 = vmatmul.bf16.gmra.mxu0 %v3665
    %v6896 = vpop.f32.mrf.mxu0
    %v6897 = vadd.f32 %v6884, %v6896
    %v6898 = vpop.f32.mrf.mxu0
    %6899 = vdwg.mxu0
    %6900 = vmatpush.bf16.msra.mxu0 %v5931
    %6901 = vmatpush.bf16.msra.mxu0 %v5923
    %6902 = vmatpush.bf16.msra.mxu0 %v5915
    %6903 = vmatpush.bf16.msra.mxu0 %v5907
    %6904 = vmatpush.bf16.msra.mxu0 %v5899
    %6905 = vmatpush.bf16.msra.mxu0 %v5891
    %6906 = vmatpush.bf16.msra.mxu0 %v5883
    %6907 = vmatpush.bf16.msra.mxu0 %v5875
    %6908 = vmatmul.bf16.gmra.mxu0 %v3666
    %v6909 = vpop.f32.mrf.mxu0
    %v6910 = vadd.f32 %v6897, %v6909
    %v6911 = vpop.f32.mrf.mxu0
    %6912 = vdwg.mxu0
    %6913 = vmatpush.bf16.msra.mxu0 %v5995
    %6914 = vmatpush.bf16.msra.mxu0 %v5987
    %6915 = vmatpush.bf16.msra.mxu0 %v5979
    %6916 = vmatpush.bf16.msra.mxu0 %v5971
    %6917 = vmatpush.bf16.msra.mxu0 %v5963
    %6918 = vmatpush.bf16.msra.mxu0 %v5955
    %6919 = vmatpush.bf16.msra.mxu0 %v5947
    %6920 = vmatpush.bf16.msra.mxu0 %v5939
    %6921 = vmatmul.bf16.gmra.mxu0 %v3667
    %v6922 = vpop.f32.mrf.mxu0
    %v6923 = vadd.f32 %v6910, %v6922
    %v6924 = vpop.f32.mrf.mxu0
    %6925 = vdwg.mxu0
    %6926 = vmatpush.bf16.msra.mxu0 %v6059
    %6927 = vmatpush.bf16.msra.mxu0 %v6051
    %6928 = vmatpush.bf16.msra.mxu0 %v6043
    %6929 = vmatpush.bf16.msra.mxu0 %v6035
    %6930 = vmatpush.bf16.msra.mxu0 %v6027
    %6931 = vmatpush.bf16.msra.mxu0 %v6019
    %6932 = vmatpush.bf16.msra.mxu0 %v6011
    %6933 = vmatpush.bf16.msra.mxu0 %v6003
    %6934 = vmatmul.bf16.gmra.mxu0 %v3668
    %v6935 = vpop.f32.mrf.mxu0
    %v6936 = vadd.f32 %v6923, %v6935
    %v6937 = vpop.f32.mrf.mxu0
    %6938 = vdwg.mxu0
    %6939 = vmatpush.bf16.msra.mxu0 %v6123
    %6940 = vmatpush.bf16.msra.mxu0 %v6115
    %6941 = vmatpush.bf16.msra.mxu0 %v6107
    %6942 = vmatpush.bf16.msra.mxu0 %v6099
    %6943 = vmatpush.bf16.msra.mxu0 %v6091
    %6944 = vmatpush.bf16.msra.mxu0 %v6083
    %6945 = vmatpush.bf16.msra.mxu0 %v6075
    %6946 = vmatpush.bf16.msra.mxu0 %v6067
    %6947 = vmatmul.bf16.gmra.mxu0 %v3669
    %v6948 = vpop.f32.mrf.mxu0
    %v6949 = vadd.f32 %v6936, %v6948
    %v6950 = vpop.f32.mrf.mxu0
    %6951 = vdwg.mxu0
    %6952 = vmatpush.bf16.msra.mxu0 %v6187
    %6953 = vmatpush.bf16.msra.mxu0 %v6179
    %6954 = vmatpush.bf16.msra.mxu0 %v6171
    %6955 = vmatpush.bf16.msra.mxu0 %v6163
    %6956 = vmatpush.bf16.msra.mxu0 %v6155
    %6957 = vmatpush.bf16.msra.mxu0 %v6147
    %6958 = vmatpush.bf16.msra.mxu0 %v6139
    %6959 = vmatpush.bf16.msra.mxu0 %v6131
    %6960 = vmatmul.bf16.gmra.mxu0 %v3670
    %v6961 = vpop.f32.mrf.mxu0
    %v6962 = vadd.f32 %v6949, %v6961
    %v6963 = vpop.f32.mrf.mxu0
    %6964 = vdwg.mxu0
    %6965 = vmatpush.bf16.msra.mxu0 %v6251
    %6966 = vmatpush.bf16.msra.mxu0 %v6243
    %6967 = vmatpush.bf16.msra.mxu0 %v6235
    %6968 = vmatpush.bf16.msra.mxu0 %v6227
    %6969 = vmatpush.bf16.msra.mxu0 %v6219
    %6970 = vmatpush.bf16.msra.mxu0 %v6211
    %6971 = vmatpush.bf16.msra.mxu0 %v6203
    %6972 = vmatpush.bf16.msra.mxu0 %v6195
    %6973 = vmatmul.bf16.gmra.mxu0 %v3671
    %v6974 = vpop.f32.mrf.mxu0
    %v6975 = vadd.f32 %v6962, %v6974
    %v6976 = vpop.f32.mrf.mxu0
    %6977 = vdwg.mxu0
    %6978 = vmatpush.bf16.msra.mxu0 %v5804
    %6979 = vmatpush.bf16.msra.mxu0 %v5796
    %6980 = vmatpush.bf16.msra.mxu0 %v5788
    %6981 = vmatpush.bf16.msra.mxu0 %v5780
    %6982 = vmatpush.bf16.msra.mxu0 %v5772
    %6983 = vmatpush.bf16.msra.mxu0 %v5764
    %6984 = vmatpush.bf16.msra.mxu0 %v5756
    %6985 = vmatpush.bf16.msra.mxu0 %v5748
    %6986 = vmatmul.bf16.gmra.mxu0 %v3664
    %v6987 = vpop.f32.mrf.mxu0
    %v6988 = vadd.f32 %v4196, %v6987
    %v6989 = vpop.f32.mrf.mxu0
    %6990 = vdwg.mxu0
    %6991 = vmatpush.bf16.msra.mxu0 %v5868
    %6992 = vmatpush.bf16.msra.mxu0 %v5860
    %6993 = vmatpush.bf16.msra.mxu0 %v5852
    %6994 = vmatpush.bf16.msra.mxu0 %v5844
    %6995 = vmatpush.bf16.msra.mxu0 %v5836
    %6996 = vmatpush.bf16.msra.mxu0 %v5828
    %6997 = vmatpush.bf16.msra.mxu0 %v5820
    %6998 = vmatpush.bf16.msra.mxu0 %v5812
    %6999 = vmatmul.bf16.gmra.mxu0 %v3665
    %v7000 = vpop.f32.mrf.mxu0
    %v7001 = vadd.f32 %v6988, %v7000
    %v7002 = vpop.f32.mrf.mxu0
    %7003 = vdwg.mxu0
    %7004 = vmatpush.bf16.msra.mxu0 %v5932
    %7005 = vmatpush.bf16.msra.mxu0 %v5924
    %7006 = vmatpush.bf16.msra.mxu0 %v5916
    %7007 = vmatpush.bf16.msra.mxu0 %v5908
    %7008 = vmatpush.bf16.msra.mxu0 %v5900
    %7009 = vmatpush.bf16.msra.mxu0 %v5892
    %7010 = vmatpush.bf16.msra.mxu0 %v5884
    %7011 = vmatpush.bf16.msra.mxu0 %v5876
    %7012 = vmatmul.bf16.gmra.mxu0 %v3666
    %v7013 = vpop.f32.mrf.mxu0
    %v7014 = vadd.f32 %v7001, %v7013
    %v7015 = vpop.f32.mrf.mxu0
    %7016 = vdwg.mxu0
    %7017 = vmatpush.bf16.msra.mxu0 %v5996
    %7018 = vmatpush.bf16.msra.mxu0 %v5988
    %7019 = vmatpush.bf16.msra.mxu0 %v5980
    %7020 = vmatpush.bf16.msra.mxu0 %v5972
    %7021 = vmatpush.bf16.msra.mxu0 %v5964
    %7022 = vmatpush.bf16.msra.mxu0 %v5956
    %7023 = vmatpush.bf16.msra.mxu0 %v5948
    %7024 = vmatpush.bf16.msra.mxu0 %v5940
    %7025 = vmatmul.bf16.gmra.mxu0 %v3667
    %v7026 = vpop.f32.mrf.mxu0
    %v7027 = vadd.f32 %v7014, %v7026
    %v7028 = vpop.f32.mrf.mxu0
    %7029 = vdwg.mxu0
    %7030 = vmatpush.bf16.msra.mxu0 %v6060
    %7031 = vmatpush.bf16.msra.mxu0 %v6052
    %7032 = vmatpush.bf16.msra.mxu0 %v6044
    %7033 = vmatpush.bf16.msra.mxu0 %v6036
    %7034 = vmatpush.bf16.msra.mxu0 %v6028
    %7035 = vmatpush.bf16.msra.mxu0 %v6020
    %7036 = vmatpush.bf16.msra.mxu0 %v6012
    %7037 = vmatpush.bf16.msra.mxu0 %v6004
    %7038 = vmatmul.bf16.gmra.mxu0 %v3668
    %v7039 = vpop.f32.mrf.mxu0
    %v7040 = vadd.f32 %v7027, %v7039
    %v7041 = vpop.f32.mrf.mxu0
    %7042 = vdwg.mxu0
    %7043 = vmatpush.bf16.msra.mxu0 %v6124
    %7044 = vmatpush.bf16.msra.mxu0 %v6116
    %7045 = vmatpush.bf16.msra.mxu0 %v6108
    %7046 = vmatpush.bf16.msra.mxu0 %v6100
    %7047 = vmatpush.bf16.msra.mxu0 %v6092
    %7048 = vmatpush.bf16.msra.mxu0 %v6084
    %7049 = vmatpush.bf16.msra.mxu0 %v6076
    %7050 = vmatpush.bf16.msra.mxu0 %v6068
    %7051 = vmatmul.bf16.gmra.mxu0 %v3669
    %v7052 = vpop.f32.mrf.mxu0
    %v7053 = vadd.f32 %v7040, %v7052
    %v7054 = vpop.f32.mrf.mxu0
    %7055 = vdwg.mxu0
    %7056 = vmatpush.bf16.msra.mxu0 %v6188
    %7057 = vmatpush.bf16.msra.mxu0 %v6180
    %7058 = vmatpush.bf16.msra.mxu0 %v6172
    %7059 = vmatpush.bf16.msra.mxu0 %v6164
    %7060 = vmatpush.bf16.msra.mxu0 %v6156
    %7061 = vmatpush.bf16.msra.mxu0 %v6148
    %7062 = vmatpush.bf16.msra.mxu0 %v6140
    %7063 = vmatpush.bf16.msra.mxu0 %v6132
    %7064 = vmatmul.bf16.gmra.mxu0 %v3670
    %v7065 = vpop.f32.mrf.mxu0
    %v7066 = vadd.f32 %v7053, %v7065
    %v7067 = vpop.f32.mrf.mxu0
    %7068 = vdwg.mxu0
    %7069 = vmatpush.bf16.msra.mxu0 %v6252
    %7070 = vmatpush.bf16.msra.mxu0 %v6244
    %7071 = vmatpush.bf16.msra.mxu0 %v6236
    %7072 = vmatpush.bf16.msra.mxu0 %v6228
    %7073 = vmatpush.bf16.msra.mxu0 %v6220
    %7074 = vmatpush.bf16.msra.mxu0 %v6212
    %7075 = vmatpush.bf16.msra.mxu0 %v6204
    %7076 = vmatpush.bf16.msra.mxu0 %v6196
    %7077 = vmatmul.bf16.gmra.mxu0 %v3671
    %v7078 = vpop.f32.mrf.mxu0
    %v7079 = vadd.f32 %v7066, %v7078
    %v7080 = vpop.f32.mrf.mxu0
    %7081 = vdwg.mxu0
    %7082 = vmatpush.bf16.msra.mxu0 %v5805
    %7083 = vmatpush.bf16.msra.mxu0 %v5797
    %7084 = vmatpush.bf16.msra.mxu0 %v5789
    %7085 = vmatpush.bf16.msra.mxu0 %v5781
    %7086 = vmatpush.bf16.msra.mxu0 %v5773
    %7087 = vmatpush.bf16.msra.mxu0 %v5765
    %7088 = vmatpush.bf16.msra.mxu0 %v5757
    %7089 = vmatpush.bf16.msra.mxu0 %v5749
    %7090 = vmatmul.bf16.gmra.mxu0 %v3664
    %v7091 = vpop.f32.mrf.mxu0
    %v7092 = vadd.f32 %v4197, %v7091
    %v7093 = vpop.f32.mrf.mxu0
    %7094 = vdwg.mxu0
    %7095 = vmatpush.bf16.msra.mxu0 %v5869
    %7096 = vmatpush.bf16.msra.mxu0 %v5861
    %7097 = vmatpush.bf16.msra.mxu0 %v5853
    %7098 = vmatpush.bf16.msra.mxu0 %v5845
    %7099 = vmatpush.bf16.msra.mxu0 %v5837
    %7100 = vmatpush.bf16.msra.mxu0 %v5829
    %7101 = vmatpush.bf16.msra.mxu0 %v5821
    %7102 = vmatpush.bf16.msra.mxu0 %v5813
    %7103 = vmatmul.bf16.gmra.mxu0 %v3665
    %v7104 = vpop.f32.mrf.mxu0
    %v7105 = vadd.f32 %v7092, %v7104
    %v7106 = vpop.f32.mrf.mxu0
    %7107 = vdwg.mxu0
    %7108 = vmatpush.bf16.msra.mxu0 %v5933
    %7109 = vmatpush.bf16.msra.mxu0 %v5925
    %7110 = vmatpush.bf16.msra.mxu0 %v5917
    %7111 = vmatpush.bf16.msra.mxu0 %v5909
    %7112 = vmatpush.bf16.msra.mxu0 %v5901
    %7113 = vmatpush.bf16.msra.mxu0 %v5893
    %7114 = vmatpush.bf16.msra.mxu0 %v5885
    %7115 = vmatpush.bf16.msra.mxu0 %v5877
    %7116 = vmatmul.bf16.gmra.mxu0 %v3666
    %v7117 = vpop.f32.mrf.mxu0
    %v7118 = vadd.f32 %v7105, %v7117
    %v7119 = vpop.f32.mrf.mxu0
    %7120 = vdwg.mxu0
    %7121 = vmatpush.bf16.msra.mxu0 %v5997
    %7122 = vmatpush.bf16.msra.mxu0 %v5989
    %7123 = vmatpush.bf16.msra.mxu0 %v5981
    %7124 = vmatpush.bf16.msra.mxu0 %v5973
    %7125 = vmatpush.bf16.msra.mxu0 %v5965
    %7126 = vmatpush.bf16.msra.mxu0 %v5957
    %7127 = vmatpush.bf16.msra.mxu0 %v5949
    %7128 = vmatpush.bf16.msra.mxu0 %v5941
    %7129 = vmatmul.bf16.gmra.mxu0 %v3667
    %v7130 = vpop.f32.mrf.mxu0
    %v7131 = vadd.f32 %v7118, %v7130
    %v7132 = vpop.f32.mrf.mxu0
    %7133 = vdwg.mxu0
    %7134 = vmatpush.bf16.msra.mxu0 %v6061
    %7135 = vmatpush.bf16.msra.mxu0 %v6053
    %7136 = vmatpush.bf16.msra.mxu0 %v6045
    %7137 = vmatpush.bf16.msra.mxu0 %v6037
    %7138 = vmatpush.bf16.msra.mxu0 %v6029
    %7139 = vmatpush.bf16.msra.mxu0 %v6021
    %7140 = vmatpush.bf16.msra.mxu0 %v6013
    %7141 = vmatpush.bf16.msra.mxu0 %v6005
    %7142 = vmatmul.bf16.gmra.mxu0 %v3668
    %v7143 = vpop.f32.mrf.mxu0
    %v7144 = vadd.f32 %v7131, %v7143
    %v7145 = vpop.f32.mrf.mxu0
    %7146 = vdwg.mxu0
    %7147 = vmatpush.bf16.msra.mxu0 %v6125
    %7148 = vmatpush.bf16.msra.mxu0 %v6117
    %7149 = vmatpush.bf16.msra.mxu0 %v6109
    %7150 = vmatpush.bf16.msra.mxu0 %v6101
    %7151 = vmatpush.bf16.msra.mxu0 %v6093
    %7152 = vmatpush.bf16.msra.mxu0 %v6085
    %7153 = vmatpush.bf16.msra.mxu0 %v6077
    %7154 = vmatpush.bf16.msra.mxu0 %v6069
    %7155 = vmatmul.bf16.gmra.mxu0 %v3669
    %v7156 = vpop.f32.mrf.mxu0
    %v7157 = vadd.f32 %v7144, %v7156
    %v7158 = vpop.f32.mrf.mxu0
    %7159 = vdwg.mxu0
    %7160 = vmatpush.bf16.msra.mxu0 %v6189
    %7161 = vmatpush.bf16.msra.mxu0 %v6181
    %7162 = vmatpush.bf16.msra.mxu0 %v6173
    %7163 = vmatpush.bf16.msra.mxu0 %v6165
    %7164 = vmatpush.bf16.msra.mxu0 %v6157
    %7165 = vmatpush.bf16.msra.mxu0 %v6149
    %7166 = vmatpush.bf16.msra.mxu0 %v6141
    %7167 = vmatpush.bf16.msra.mxu0 %v6133
    %7168 = vmatmul.bf16.gmra.mxu0 %v3670
    %v7169 = vpop.f32.mrf.mxu0
    %v7170 = vadd.f32 %v7157, %v7169
    %v7171 = vpop.f32.mrf.mxu0
    %7172 = vdwg.mxu0
    %7173 = vmatpush.bf16.msra.mxu0 %v6253
    %7174 = vmatpush.bf16.msra.mxu0 %v6245
    %7175 = vmatpush.bf16.msra.mxu0 %v6237
    %7176 = vmatpush.bf16.msra.mxu0 %v6229
    %7177 = vmatpush.bf16.msra.mxu0 %v6221
    %7178 = vmatpush.bf16.msra.mxu0 %v6213
    %7179 = vmatpush.bf16.msra.mxu0 %v6205
    %7180 = vmatpush.bf16.msra.mxu0 %v6197
    %7181 = vmatmul.bf16.gmra.mxu0 %v3671
    %v7182 = vpop.f32.mrf.mxu0
    %v7183 = vadd.f32 %v7170, %v7182
    %v7184 = vpop.f32.mrf.mxu0
    %7185 = vdwg.mxu0
    %7186 = vmatpush.bf16.msra.mxu0 %v5806
    %7187 = vmatpush.bf16.msra.mxu0 %v5798
    %7188 = vmatpush.bf16.msra.mxu0 %v5790
    %7189 = vmatpush.bf16.msra.mxu0 %v5782
    %7190 = vmatpush.bf16.msra.mxu0 %v5774
    %7191 = vmatpush.bf16.msra.mxu0 %v5766
    %7192 = vmatpush.bf16.msra.mxu0 %v5758
    %7193 = vmatpush.bf16.msra.mxu0 %v5750
    %7194 = vmatmul.bf16.gmra.mxu0 %v3664
    %v7195 = vpop.f32.mrf.mxu0
    %v7196 = vadd.f32 %v4198, %v7195
    %v7197 = vpop.f32.mrf.mxu0
    %7198 = vdwg.mxu0
    %7199 = vmatpush.bf16.msra.mxu0 %v5870
    %7200 = vmatpush.bf16.msra.mxu0 %v5862
    %7201 = vmatpush.bf16.msra.mxu0 %v5854
    %7202 = vmatpush.bf16.msra.mxu0 %v5846
    %7203 = vmatpush.bf16.msra.mxu0 %v5838
    %7204 = vmatpush.bf16.msra.mxu0 %v5830
    %7205 = vmatpush.bf16.msra.mxu0 %v5822
    %7206 = vmatpush.bf16.msra.mxu0 %v5814
    %7207 = vmatmul.bf16.gmra.mxu0 %v3665
    %v7208 = vpop.f32.mrf.mxu0
    %v7209 = vadd.f32 %v7196, %v7208
    %v7210 = vpop.f32.mrf.mxu0
    %7211 = vdwg.mxu0
    %7212 = vmatpush.bf16.msra.mxu0 %v5934
    %7213 = vmatpush.bf16.msra.mxu0 %v5926
    %7214 = vmatpush.bf16.msra.mxu0 %v5918
    %7215 = vmatpush.bf16.msra.mxu0 %v5910
    %7216 = vmatpush.bf16.msra.mxu0 %v5902
    %7217 = vmatpush.bf16.msra.mxu0 %v5894
    %7218 = vmatpush.bf16.msra.mxu0 %v5886
    %7219 = vmatpush.bf16.msra.mxu0 %v5878
    %7220 = vmatmul.bf16.gmra.mxu0 %v3666
    %v7221 = vpop.f32.mrf.mxu0
    %v7222 = vadd.f32 %v7209, %v7221
    %v7223 = vpop.f32.mrf.mxu0
    %7224 = vdwg.mxu0
    %7225 = vmatpush.bf16.msra.mxu0 %v5998
    %7226 = vmatpush.bf16.msra.mxu0 %v5990
    %7227 = vmatpush.bf16.msra.mxu0 %v5982
    %7228 = vmatpush.bf16.msra.mxu0 %v5974
    %7229 = vmatpush.bf16.msra.mxu0 %v5966
    %7230 = vmatpush.bf16.msra.mxu0 %v5958
    %7231 = vmatpush.bf16.msra.mxu0 %v5950
    %7232 = vmatpush.bf16.msra.mxu0 %v5942
    %7233 = vmatmul.bf16.gmra.mxu0 %v3667
    %v7234 = vpop.f32.mrf.mxu0
    %v7235 = vadd.f32 %v7222, %v7234
    %v7236 = vpop.f32.mrf.mxu0
    %7237 = vdwg.mxu0
    %7238 = vmatpush.bf16.msra.mxu0 %v6062
    %7239 = vmatpush.bf16.msra.mxu0 %v6054
    %7240 = vmatpush.bf16.msra.mxu0 %v6046
    %7241 = vmatpush.bf16.msra.mxu0 %v6038
    %7242 = vmatpush.bf16.msra.mxu0 %v6030
    %7243 = vmatpush.bf16.msra.mxu0 %v6022
    %7244 = vmatpush.bf16.msra.mxu0 %v6014
    %7245 = vmatpush.bf16.msra.mxu0 %v6006
    %7246 = vmatmul.bf16.gmra.mxu0 %v3668
    %v7247 = vpop.f32.mrf.mxu0
    %v7248 = vadd.f32 %v7235, %v7247
    %v7249 = vpop.f32.mrf.mxu0
    %7250 = vdwg.mxu0
    %7251 = vmatpush.bf16.msra.mxu0 %v6126
    %7252 = vmatpush.bf16.msra.mxu0 %v6118
    %7253 = vmatpush.bf16.msra.mxu0 %v6110
    %7254 = vmatpush.bf16.msra.mxu0 %v6102
    %7255 = vmatpush.bf16.msra.mxu0 %v6094
    %7256 = vmatpush.bf16.msra.mxu0 %v6086
    %7257 = vmatpush.bf16.msra.mxu0 %v6078
    %7258 = vmatpush.bf16.msra.mxu0 %v6070
    %7259 = vmatmul.bf16.gmra.mxu0 %v3669
    %v7260 = vpop.f32.mrf.mxu0
    %v7261 = vadd.f32 %v7248, %v7260
    %v7262 = vpop.f32.mrf.mxu0
    %7263 = vdwg.mxu0
    %7264 = vmatpush.bf16.msra.mxu0 %v6190
    %7265 = vmatpush.bf16.msra.mxu0 %v6182
    %7266 = vmatpush.bf16.msra.mxu0 %v6174
    %7267 = vmatpush.bf16.msra.mxu0 %v6166
    %7268 = vmatpush.bf16.msra.mxu0 %v6158
    %7269 = vmatpush.bf16.msra.mxu0 %v6150
    %7270 = vmatpush.bf16.msra.mxu0 %v6142
    %7271 = vmatpush.bf16.msra.mxu0 %v6134
    %7272 = vmatmul.bf16.gmra.mxu0 %v3670
    %v7273 = vpop.f32.mrf.mxu0
    %v7274 = vadd.f32 %v7261, %v7273
    %v7275 = vpop.f32.mrf.mxu0
    %7276 = vdwg.mxu0
    %7277 = vmatpush.bf16.msra.mxu0 %v6254
    %7278 = vmatpush.bf16.msra.mxu0 %v6246
    %7279 = vmatpush.bf16.msra.mxu0 %v6238
    %7280 = vmatpush.bf16.msra.mxu0 %v6230
    %7281 = vmatpush.bf16.msra.mxu0 %v6222
    %7282 = vmatpush.bf16.msra.mxu0 %v6214
    %7283 = vmatpush.bf16.msra.mxu0 %v6206
    %7284 = vmatpush.bf16.msra.mxu0 %v6198
    %7285 = vmatmul.bf16.gmra.mxu0 %v3671
    %v7286 = vpop.f32.mrf.mxu0
    %v7287 = vadd.f32 %v7274, %v7286
    %v7288 = vpop.f32.mrf.mxu0
    %7289 = vdwg.mxu0
    %7290 = vmatpush.bf16.msra.mxu0 %v5807
    %7291 = vmatpush.bf16.msra.mxu0 %v5799
    %7292 = vmatpush.bf16.msra.mxu0 %v5791
    %7293 = vmatpush.bf16.msra.mxu0 %v5783
    %7294 = vmatpush.bf16.msra.mxu0 %v5775
    %7295 = vmatpush.bf16.msra.mxu0 %v5767
    %7296 = vmatpush.bf16.msra.mxu0 %v5759
    %7297 = vmatpush.bf16.msra.mxu0 %v5751
    %7298 = vmatmul.bf16.gmra.mxu0 %v3664
    %v7299 = vpop.f32.mrf.mxu0
    %v7300 = vadd.f32 %v4199, %v7299
    %v7301 = vpop.f32.mrf.mxu0
    %7302 = vdwg.mxu0
    %7303 = vmatpush.bf16.msra.mxu0 %v5871
    %7304 = vmatpush.bf16.msra.mxu0 %v5863
    %7305 = vmatpush.bf16.msra.mxu0 %v5855
    %7306 = vmatpush.bf16.msra.mxu0 %v5847
    %7307 = vmatpush.bf16.msra.mxu0 %v5839
    %7308 = vmatpush.bf16.msra.mxu0 %v5831
    %7309 = vmatpush.bf16.msra.mxu0 %v5823
    %7310 = vmatpush.bf16.msra.mxu0 %v5815
    %7311 = vmatmul.bf16.gmra.mxu0 %v3665
    %v7312 = vpop.f32.mrf.mxu0
    %v7313 = vadd.f32 %v7300, %v7312
    %v7314 = vpop.f32.mrf.mxu0
    %7315 = vdwg.mxu0
    %7316 = vmatpush.bf16.msra.mxu0 %v5935
    %7317 = vmatpush.bf16.msra.mxu0 %v5927
    %7318 = vmatpush.bf16.msra.mxu0 %v5919
    %7319 = vmatpush.bf16.msra.mxu0 %v5911
    %7320 = vmatpush.bf16.msra.mxu0 %v5903
    %7321 = vmatpush.bf16.msra.mxu0 %v5895
    %7322 = vmatpush.bf16.msra.mxu0 %v5887
    %7323 = vmatpush.bf16.msra.mxu0 %v5879
    %7324 = vmatmul.bf16.gmra.mxu0 %v3666
    %v7325 = vpop.f32.mrf.mxu0
    %v7326 = vadd.f32 %v7313, %v7325
    %v7327 = vpop.f32.mrf.mxu0
    %7328 = vdwg.mxu0
    %7329 = vmatpush.bf16.msra.mxu0 %v5999
    %7330 = vmatpush.bf16.msra.mxu0 %v5991
    %7331 = vmatpush.bf16.msra.mxu0 %v5983
    %7332 = vmatpush.bf16.msra.mxu0 %v5975
    %7333 = vmatpush.bf16.msra.mxu0 %v5967
    %7334 = vmatpush.bf16.msra.mxu0 %v5959
    %7335 = vmatpush.bf16.msra.mxu0 %v5951
    %7336 = vmatpush.bf16.msra.mxu0 %v5943
    %7337 = vmatmul.bf16.gmra.mxu0 %v3667
    %v7338 = vpop.f32.mrf.mxu0
    %v7339 = vadd.f32 %v7326, %v7338
    %v7340 = vpop.f32.mrf.mxu0
    %7341 = vdwg.mxu0
    %7342 = vmatpush.bf16.msra.mxu0 %v6063
    %7343 = vmatpush.bf16.msra.mxu0 %v6055
    %7344 = vmatpush.bf16.msra.mxu0 %v6047
    %7345 = vmatpush.bf16.msra.mxu0 %v6039
    %7346 = vmatpush.bf16.msra.mxu0 %v6031
    %7347 = vmatpush.bf16.msra.mxu0 %v6023
    %7348 = vmatpush.bf16.msra.mxu0 %v6015
    %7349 = vmatpush.bf16.msra.mxu0 %v6007
    %7350 = vmatmul.bf16.gmra.mxu0 %v3668
    %v7351 = vpop.f32.mrf.mxu0
    %v7352 = vadd.f32 %v7339, %v7351
    %v7353 = vpop.f32.mrf.mxu0
    %7354 = vdwg.mxu0
    %7355 = vmatpush.bf16.msra.mxu0 %v6127
    %7356 = vmatpush.bf16.msra.mxu0 %v6119
    %7357 = vmatpush.bf16.msra.mxu0 %v6111
    %7358 = vmatpush.bf16.msra.mxu0 %v6103
    %7359 = vmatpush.bf16.msra.mxu0 %v6095
    %7360 = vmatpush.bf16.msra.mxu0 %v6087
    %7361 = vmatpush.bf16.msra.mxu0 %v6079
    %7362 = vmatpush.bf16.msra.mxu0 %v6071
    %7363 = vmatmul.bf16.gmra.mxu0 %v3669
    %v7364 = vpop.f32.mrf.mxu0
    %v7365 = vadd.f32 %v7352, %v7364
    %v7366 = vpop.f32.mrf.mxu0
    %7367 = vdwg.mxu0
    %7368 = vmatpush.bf16.msra.mxu0 %v6191
    %7369 = vmatpush.bf16.msra.mxu0 %v6183
    %7370 = vmatpush.bf16.msra.mxu0 %v6175
    %7371 = vmatpush.bf16.msra.mxu0 %v6167
    %7372 = vmatpush.bf16.msra.mxu0 %v6159
    %7373 = vmatpush.bf16.msra.mxu0 %v6151
    %7374 = vmatpush.bf16.msra.mxu0 %v6143
    %7375 = vmatpush.bf16.msra.mxu0 %v6135
    %7376 = vmatmul.bf16.gmra.mxu0 %v3670
    %v7377 = vpop.f32.mrf.mxu0
    %v7378 = vadd.f32 %v7365, %v7377
    %v7379 = vpop.f32.mrf.mxu0
    %7380 = vdwg.mxu0
    %7381 = vmatpush.bf16.msra.mxu0 %v6255
    %7382 = vmatpush.bf16.msra.mxu0 %v6247
    %7383 = vmatpush.bf16.msra.mxu0 %v6239
    %7384 = vmatpush.bf16.msra.mxu0 %v6231
    %7385 = vmatpush.bf16.msra.mxu0 %v6223
    %7386 = vmatpush.bf16.msra.mxu0 %v6215
    %7387 = vmatpush.bf16.msra.mxu0 %v6207
    %7388 = vmatpush.bf16.msra.mxu0 %v6199
    %7389 = vmatmul.bf16.gmra.mxu0 %v3671
    %v7390 = vpop.f32.mrf.mxu0
    %v7391 = vadd.f32 %v7378, %v7390
    %v7392 = vpop.f32.mrf.mxu0
    %7393 = vdwg.mxu0
    %7394 = vmatpush.bf16.msra.mxu0 %v5808
    %7395 = vmatpush.bf16.msra.mxu0 %v5800
    %7396 = vmatpush.bf16.msra.mxu0 %v5792
    %7397 = vmatpush.bf16.msra.mxu0 %v5784
    %7398 = vmatpush.bf16.msra.mxu0 %v5776
    %7399 = vmatpush.bf16.msra.mxu0 %v5768
    %7400 = vmatpush.bf16.msra.mxu0 %v5760
    %7401 = vmatpush.bf16.msra.mxu0 %v5752
    %7402 = vmatmul.bf16.gmra.mxu0 %v3664
    %v7403 = vpop.f32.mrf.mxu0
    %v7404 = vadd.f32 %v4200, %v7403
    %v7405 = vpop.f32.mrf.mxu0
    %7406 = vdwg.mxu0
    %7407 = vmatpush.bf16.msra.mxu0 %v5872
    %7408 = vmatpush.bf16.msra.mxu0 %v5864
    %7409 = vmatpush.bf16.msra.mxu0 %v5856
    %7410 = vmatpush.bf16.msra.mxu0 %v5848
    %7411 = vmatpush.bf16.msra.mxu0 %v5840
    %7412 = vmatpush.bf16.msra.mxu0 %v5832
    %7413 = vmatpush.bf16.msra.mxu0 %v5824
    %7414 = vmatpush.bf16.msra.mxu0 %v5816
    %7415 = vmatmul.bf16.gmra.mxu0 %v3665
    %v7416 = vpop.f32.mrf.mxu0
    %v7417 = vadd.f32 %v7404, %v7416
    %v7418 = vpop.f32.mrf.mxu0
    %7419 = vdwg.mxu0
    %7420 = vmatpush.bf16.msra.mxu0 %v5936
    %7421 = vmatpush.bf16.msra.mxu0 %v5928
    %7422 = vmatpush.bf16.msra.mxu0 %v5920
    %7423 = vmatpush.bf16.msra.mxu0 %v5912
    %7424 = vmatpush.bf16.msra.mxu0 %v5904
    %7425 = vmatpush.bf16.msra.mxu0 %v5896
    %7426 = vmatpush.bf16.msra.mxu0 %v5888
    %7427 = vmatpush.bf16.msra.mxu0 %v5880
    %7428 = vmatmul.bf16.gmra.mxu0 %v3666
    %v7429 = vpop.f32.mrf.mxu0
    %v7430 = vadd.f32 %v7417, %v7429
    %v7431 = vpop.f32.mrf.mxu0
    %7432 = vdwg.mxu0
    %7433 = vmatpush.bf16.msra.mxu0 %v6000
    %7434 = vmatpush.bf16.msra.mxu0 %v5992
    %7435 = vmatpush.bf16.msra.mxu0 %v5984
    %7436 = vmatpush.bf16.msra.mxu0 %v5976
    %7437 = vmatpush.bf16.msra.mxu0 %v5968
    %7438 = vmatpush.bf16.msra.mxu0 %v5960
    %7439 = vmatpush.bf16.msra.mxu0 %v5952
    %7440 = vmatpush.bf16.msra.mxu0 %v5944
    %7441 = vmatmul.bf16.gmra.mxu0 %v3667
    %v7442 = vpop.f32.mrf.mxu0
    %v7443 = vadd.f32 %v7430, %v7442
    %v7444 = vpop.f32.mrf.mxu0
    %7445 = vdwg.mxu0
    %7446 = vmatpush.bf16.msra.mxu0 %v6064
    %7447 = vmatpush.bf16.msra.mxu0 %v6056
    %7448 = vmatpush.bf16.msra.mxu0 %v6048
    %7449 = vmatpush.bf16.msra.mxu0 %v6040
    %7450 = vmatpush.bf16.msra.mxu0 %v6032
    %7451 = vmatpush.bf16.msra.mxu0 %v6024
    %7452 = vmatpush.bf16.msra.mxu0 %v6016
    %7453 = vmatpush.bf16.msra.mxu0 %v6008
    %7454 = vmatmul.bf16.gmra.mxu0 %v3668
    %v7455 = vpop.f32.mrf.mxu0
    %v7456 = vadd.f32 %v7443, %v7455
    %v7457 = vpop.f32.mrf.mxu0
    %7458 = vdwg.mxu0
    %7459 = vmatpush.bf16.msra.mxu0 %v6128
    %7460 = vmatpush.bf16.msra.mxu0 %v6120
    %7461 = vmatpush.bf16.msra.mxu0 %v6112
    %7462 = vmatpush.bf16.msra.mxu0 %v6104
    %7463 = vmatpush.bf16.msra.mxu0 %v6096
    %7464 = vmatpush.bf16.msra.mxu0 %v6088
    %7465 = vmatpush.bf16.msra.mxu0 %v6080
    %7466 = vmatpush.bf16.msra.mxu0 %v6072
    %7467 = vmatmul.bf16.gmra.mxu0 %v3669
    %v7468 = vpop.f32.mrf.mxu0
    %v7469 = vadd.f32 %v7456, %v7468
    %v7470 = vpop.f32.mrf.mxu0
    %7471 = vdwg.mxu0
    %7472 = vmatpush.bf16.msra.mxu0 %v6192
    %7473 = vmatpush.bf16.msra.mxu0 %v6184
    %7474 = vmatpush.bf16.msra.mxu0 %v6176
    %7475 = vmatpush.bf16.msra.mxu0 %v6168
    %7476 = vmatpush.bf16.msra.mxu0 %v6160
    %7477 = vmatpush.bf16.msra.mxu0 %v6152
    %7478 = vmatpush.bf16.msra.mxu0 %v6144
    %7479 = vmatpush.bf16.msra.mxu0 %v6136
    %7480 = vmatmul.bf16.gmra.mxu0 %v3670
    %v7481 = vpop.f32.mrf.mxu0
    %v7482 = vadd.f32 %v7469, %v7481
    %v7483 = vpop.f32.mrf.mxu0
    %7484 = vdwg.mxu0
    %7485 = vmatpush.bf16.msra.mxu0 %v6256
    %7486 = vmatpush.bf16.msra.mxu0 %v6248
    %7487 = vmatpush.bf16.msra.mxu0 %v6240
    %7488 = vmatpush.bf16.msra.mxu0 %v6232
    %7489 = vmatpush.bf16.msra.mxu0 %v6224
    %7490 = vmatpush.bf16.msra.mxu0 %v6216
    %7491 = vmatpush.bf16.msra.mxu0 %v6208
    %7492 = vmatpush.bf16.msra.mxu0 %v6200
    %7493 = vmatmul.bf16.gmra.mxu0 %v3671
    %v7494 = vpop.f32.mrf.mxu0
    %v7495 = vadd.f32 %v7482, %v7494
    %v7496 = vpop.f32.mrf.mxu0
    %7497 = vdwg.mxu0
    %7498 = vmatpush.bf16.msra.mxu0 %v5809
    %7499 = vmatpush.bf16.msra.mxu0 %v5801
    %7500 = vmatpush.bf16.msra.mxu0 %v5793
    %7501 = vmatpush.bf16.msra.mxu0 %v5785
    %7502 = vmatpush.bf16.msra.mxu0 %v5777
    %7503 = vmatpush.bf16.msra.mxu0 %v5769
    %7504 = vmatpush.bf16.msra.mxu0 %v5761
    %7505 = vmatpush.bf16.msra.mxu0 %v5753
    %7506 = vmatmul.bf16.gmra.mxu0 %v3664
    %v7507 = vpop.f32.mrf.mxu0
    %v7508 = vadd.f32 %v4201, %v7507
    %v7509 = vpop.f32.mrf.mxu0
    %7510 = vdwg.mxu0
    %7511 = vmatpush.bf16.msra.mxu0 %v5873
    %7512 = vmatpush.bf16.msra.mxu0 %v5865
    %7513 = vmatpush.bf16.msra.mxu0 %v5857
    %7514 = vmatpush.bf16.msra.mxu0 %v5849
    %7515 = vmatpush.bf16.msra.mxu0 %v5841
    %7516 = vmatpush.bf16.msra.mxu0 %v5833
    %7517 = vmatpush.bf16.msra.mxu0 %v5825
    %7518 = vmatpush.bf16.msra.mxu0 %v5817
    %7519 = vmatmul.bf16.gmra.mxu0 %v3665
    %v7520 = vpop.f32.mrf.mxu0
    %v7521 = vadd.f32 %v7508, %v7520
    %v7522 = vpop.f32.mrf.mxu0
    %7523 = vdwg.mxu0
    %7524 = vmatpush.bf16.msra.mxu0 %v5937
    %7525 = vmatpush.bf16.msra.mxu0 %v5929
    %7526 = vmatpush.bf16.msra.mxu0 %v5921
    %7527 = vmatpush.bf16.msra.mxu0 %v5913
    %7528 = vmatpush.bf16.msra.mxu0 %v5905
    %7529 = vmatpush.bf16.msra.mxu0 %v5897
    %7530 = vmatpush.bf16.msra.mxu0 %v5889
    %7531 = vmatpush.bf16.msra.mxu0 %v5881
    %7532 = vmatmul.bf16.gmra.mxu0 %v3666
    %v7533 = vpop.f32.mrf.mxu0
    %v7534 = vadd.f32 %v7521, %v7533
    %v7535 = vpop.f32.mrf.mxu0
    %7536 = vdwg.mxu0
    %7537 = vmatpush.bf16.msra.mxu0 %v6001
    %7538 = vmatpush.bf16.msra.mxu0 %v5993
    %7539 = vmatpush.bf16.msra.mxu0 %v5985
    %7540 = vmatpush.bf16.msra.mxu0 %v5977
    %7541 = vmatpush.bf16.msra.mxu0 %v5969
    %7542 = vmatpush.bf16.msra.mxu0 %v5961
    %7543 = vmatpush.bf16.msra.mxu0 %v5953
    %7544 = vmatpush.bf16.msra.mxu0 %v5945
    %7545 = vmatmul.bf16.gmra.mxu0 %v3667
    %v7546 = vpop.f32.mrf.mxu0
    %v7547 = vadd.f32 %v7534, %v7546
    %v7548 = vpop.f32.mrf.mxu0
    %7549 = vdwg.mxu0
    %7550 = vmatpush.bf16.msra.mxu0 %v6065
    %7551 = vmatpush.bf16.msra.mxu0 %v6057
    %7552 = vmatpush.bf16.msra.mxu0 %v6049
    %7553 = vmatpush.bf16.msra.mxu0 %v6041
    %7554 = vmatpush.bf16.msra.mxu0 %v6033
    %7555 = vmatpush.bf16.msra.mxu0 %v6025
    %7556 = vmatpush.bf16.msra.mxu0 %v6017
    %7557 = vmatpush.bf16.msra.mxu0 %v6009
    %7558 = vmatmul.bf16.gmra.mxu0 %v3668
    %v7559 = vpop.f32.mrf.mxu0
    %v7560 = vadd.f32 %v7547, %v7559
    %v7561 = vpop.f32.mrf.mxu0
    %7562 = vdwg.mxu0
    %7563 = vmatpush.bf16.msra.mxu0 %v6129
    %7564 = vmatpush.bf16.msra.mxu0 %v6121
    %7565 = vmatpush.bf16.msra.mxu0 %v6113
    %7566 = vmatpush.bf16.msra.mxu0 %v6105
    %7567 = vmatpush.bf16.msra.mxu0 %v6097
    %7568 = vmatpush.bf16.msra.mxu0 %v6089
    %7569 = vmatpush.bf16.msra.mxu0 %v6081
    %7570 = vmatpush.bf16.msra.mxu0 %v6073
    %7571 = vmatmul.bf16.gmra.mxu0 %v3669
    %v7572 = vpop.f32.mrf.mxu0
    %v7573 = vadd.f32 %v7560, %v7572
    %v7574 = vpop.f32.mrf.mxu0
    %7575 = vdwg.mxu0
    %7576 = vmatpush.bf16.msra.mxu0 %v6193
    %7577 = vmatpush.bf16.msra.mxu0 %v6185
    %7578 = vmatpush.bf16.msra.mxu0 %v6177
    %7579 = vmatpush.bf16.msra.mxu0 %v6169
    %7580 = vmatpush.bf16.msra.mxu0 %v6161
    %7581 = vmatpush.bf16.msra.mxu0 %v6153
    %7582 = vmatpush.bf16.msra.mxu0 %v6145
    %7583 = vmatpush.bf16.msra.mxu0 %v6137
    %7584 = vmatmul.bf16.gmra.mxu0 %v3670
    %v7585 = vpop.f32.mrf.mxu0
    %v7586 = vadd.f32 %v7573, %v7585
    %v7587 = vpop.f32.mrf.mxu0
    %7588 = vdwg.mxu0
    %7589 = vmatpush.bf16.msra.mxu0 %v6257
    %7590 = vmatpush.bf16.msra.mxu0 %v6249
    %7591 = vmatpush.bf16.msra.mxu0 %v6241
    %7592 = vmatpush.bf16.msra.mxu0 %v6233
    %7593 = vmatpush.bf16.msra.mxu0 %v6225
    %7594 = vmatpush.bf16.msra.mxu0 %v6217
    %7595 = vmatpush.bf16.msra.mxu0 %v6209
    %7596 = vmatpush.bf16.msra.mxu0 %v6201
    %7597 = vmatmul.bf16.gmra.mxu0 %v3671
    %v7598 = vpop.f32.mrf.mxu0
    %v7599 = vadd.f32 %v7586, %v7598
    %v7600 = vpop.f32.mrf.mxu0
    %7601 = vdwg.mxu0
    %v7602 = vmax.f32 %v6871, 0.0
    %v7603 = vmax.f32 %v6975, 0.0
    %v7604 = vmax.f32 %v7079, 0.0
    %v7605 = vmax.f32 %v7183, 0.0
    %v7606 = vmax.f32 %v7287, 0.0
    %v7607 = vmax.f32 %v7391, 0.0
    %v7608 = vmax.f32 %v7495, 0.0
    %v7609 = vmax.f32 %v7599, 0.0
    %v7610 = vpack.c.bf16 %v7602, %v7602
    %v7611 = vpack.c.bf16 %v7603, %v7603
    %v7612 = vpack.c.bf16 %v7604, %v7604
    %v7613 = vpack.c.bf16 %v7605, %v7605
    %v7614 = vpack.c.bf16 %v7606, %v7606
    %v7615 = vpack.c.bf16 %v7607, %v7607
    %v7616 = vpack.c.bf16 %v7608, %v7608
    %v7617 = vpack.c.bf16 %v7609, %v7609
    %v7618 = vld [vmem:[#allocation13] sm:$0xf]
    %v7619 = vld [vmem:[#allocation13 + $0x4] sm:$0xf]
    %v7620 = vld [vmem:[#allocation13 + $0x8] sm:$0xf]
    %v7621 = vld [vmem:[#allocation13 + $0xc] sm:$0xf]
    %v7622 = vld [vmem:[#allocation13 + $0x10] sm:$0xf]
    %v7623 = vld [vmem:[#allocation13 + $0x14] sm:$0xf]
    %v7624 = vld [vmem:[#allocation13 + $0x18] sm:$0xf]
    %v7625 = vld [vmem:[#allocation13 + $0x1c] sm:$0xf]
    %v7626 = vld [vmem:[#allocation13 + $0x20] sm:$0xf]
    %v7627 = vld [vmem:[#allocation13 + $0x24] sm:$0xf]
    %v7628 = vld [vmem:[#allocation13 + $0x28] sm:$0xf]
    %v7629 = vld [vmem:[#allocation13 + $0x2c] sm:$0xf]
    %v7630 = vld [vmem:[#allocation13 + $0x30] sm:$0xf]
    %v7631 = vld [vmem:[#allocation13 + $0x34] sm:$0xf]
    %v7632 = vld [vmem:[#allocation13 + $0x38] sm:$0xf]
    %v7633 = vld [vmem:[#allocation13 + $0x3c] sm:$0xf]
    %v7634 = vld [vmem:[#allocation13 + $0x40] sm:$0xf]
    %v7635 = vld [vmem:[#allocation13 + $0x44] sm:$0xf]
    %v7636 = vld [vmem:[#allocation13 + $0x48] sm:$0xf]
    %v7637 = vld [vmem:[#allocation13 + $0x4c] sm:$0xf]
    %v7638 = vld [vmem:[#allocation13 + $0x50] sm:$0xf]
    %v7639 = vld [vmem:[#allocation13 + $0x54] sm:$0xf]
    %v7640 = vld [vmem:[#allocation13 + $0x58] sm:$0xf]
    %v7641 = vld [vmem:[#allocation13 + $0x5c] sm:$0xf]
    %v7642 = vld [vmem:[#allocation13 + $0x60] sm:$0xf]
    %v7643 = vld [vmem:[#allocation13 + $0x64] sm:$0xf]
    %v7644 = vld [vmem:[#allocation13 + $0x68] sm:$0xf]
    %v7645 = vld [vmem:[#allocation13 + $0x6c] sm:$0xf]
    %v7646 = vld [vmem:[#allocation13 + $0x70] sm:$0xf]
    %v7647 = vld [vmem:[#allocation13 + $0x74] sm:$0xf]
    %v7648 = vld [vmem:[#allocation13 + $0x78] sm:$0xf]
    %v7649 = vld [vmem:[#allocation13 + $0x7c] sm:$0xf]
    %v7650 = vld [vmem:[#allocation13 + $0x80] sm:$0xf]
    %v7651 = vld [vmem:[#allocation13 + $0x84] sm:$0xf]
    %v7652 = vld [vmem:[#allocation13 + $0x88] sm:$0xf]
    %v7653 = vld [vmem:[#allocation13 + $0x8c] sm:$0xf]
    %v7654 = vld [vmem:[#allocation13 + $0x90] sm:$0xf]
    %v7655 = vld [vmem:[#allocation13 + $0x94] sm:$0xf]
    %v7656 = vld [vmem:[#allocation13 + $0x98] sm:$0xf]
    %v7657 = vld [vmem:[#allocation13 + $0x9c] sm:$0xf]
    %v7658 = vld [vmem:[#allocation13 + $0xa0] sm:$0xf]
    %v7659 = vld [vmem:[#allocation13 + $0xa4] sm:$0xf]
    %v7660 = vld [vmem:[#allocation13 + $0xa8] sm:$0xf]
    %v7661 = vld [vmem:[#allocation13 + $0xac] sm:$0xf]
    %v7662 = vld [vmem:[#allocation13 + $0xb0] sm:$0xf]
    %v7663 = vld [vmem:[#allocation13 + $0xb4] sm:$0xf]
    %v7664 = vld [vmem:[#allocation13 + $0xb8] sm:$0xf]
    %v7665 = vld [vmem:[#allocation13 + $0xbc] sm:$0xf]
    %v7666 = vld [vmem:[#allocation13 + $0xc0] sm:$0xf]
    %v7667 = vld [vmem:[#allocation13 + $0xc4] sm:$0xf]
    %v7668 = vld [vmem:[#allocation13 + $0xc8] sm:$0xf]
    %v7669 = vld [vmem:[#allocation13 + $0xcc] sm:$0xf]
    %v7670 = vld [vmem:[#allocation13 + $0xd0] sm:$0xf]
    %v7671 = vld [vmem:[#allocation13 + $0xd4] sm:$0xf]
    %v7672 = vld [vmem:[#allocation13 + $0xd8] sm:$0xf]
    %v7673 = vld [vmem:[#allocation13 + $0xdc] sm:$0xf]
    %v7674 = vld [vmem:[#allocation13 + $0xe0] sm:$0xf]
    %v7675 = vld [vmem:[#allocation13 + $0xe4] sm:$0xf]
    %v7676 = vld [vmem:[#allocation13 + $0xe8] sm:$0xf]
    %v7677 = vld [vmem:[#allocation13 + $0xec] sm:$0xf]
    %v7678 = vld [vmem:[#allocation13 + $0xf0] sm:$0xf]
    %v7679 = vld [vmem:[#allocation13 + $0xf4] sm:$0xf]
    %v7680 = vld [vmem:[#allocation13 + $0xf8] sm:$0xf]
    %v7681 = vld [vmem:[#allocation13 + $0xfc] sm:$0xf]
    %v7682 = vld [vmem:[#allocation13 + $0x100] sm:$0xf]
    %v7683 = vld [vmem:[#allocation13 + $0x104] sm:$0xf]
    %v7684 = vld [vmem:[#allocation13 + $0x108] sm:$0xf]
    %v7685 = vld [vmem:[#allocation13 + $0x10c] sm:$0xf]
    %v7686 = vld [vmem:[#allocation13 + $0x110] sm:$0xf]
    %v7687 = vld [vmem:[#allocation13 + $0x114] sm:$0xf]
    %v7688 = vld [vmem:[#allocation13 + $0x118] sm:$0xf]
    %v7689 = vld [vmem:[#allocation13 + $0x11c] sm:$0xf]
    %v7690 = vld [vmem:[#allocation13 + $0x120] sm:$0xf]
    %v7691 = vld [vmem:[#allocation13 + $0x124] sm:$0xf]
    %v7692 = vld [vmem:[#allocation13 + $0x128] sm:$0xf]
    %v7693 = vld [vmem:[#allocation13 + $0x12c] sm:$0xf]
    %v7694 = vld [vmem:[#allocation13 + $0x130] sm:$0xf]
    %v7695 = vld [vmem:[#allocation13 + $0x134] sm:$0xf]
    %v7696 = vld [vmem:[#allocation13 + $0x138] sm:$0xf]
    %v7697 = vld [vmem:[#allocation13 + $0x13c] sm:$0xf]
    %v7698 = vld [vmem:[#allocation13 + $0x140] sm:$0xf]
    %v7699 = vld [vmem:[#allocation13 + $0x144] sm:$0xf]
    %v7700 = vld [vmem:[#allocation13 + $0x148] sm:$0xf]
    %v7701 = vld [vmem:[#allocation13 + $0x14c] sm:$0xf]
    %v7702 = vld [vmem:[#allocation13 + $0x150] sm:$0xf]
    %v7703 = vld [vmem:[#allocation13 + $0x154] sm:$0xf]
    %v7704 = vld [vmem:[#allocation13 + $0x158] sm:$0xf]
    %v7705 = vld [vmem:[#allocation13 + $0x15c] sm:$0xf]
    %v7706 = vld [vmem:[#allocation13 + $0x160] sm:$0xf]
    %v7707 = vld [vmem:[#allocation13 + $0x164] sm:$0xf]
    %v7708 = vld [vmem:[#allocation13 + $0x168] sm:$0xf]
    %v7709 = vld [vmem:[#allocation13 + $0x16c] sm:$0xf]
    %v7710 = vld [vmem:[#allocation13 + $0x170] sm:$0xf]
    %v7711 = vld [vmem:[#allocation13 + $0x174] sm:$0xf]
    %v7712 = vld [vmem:[#allocation13 + $0x178] sm:$0xf]
    %v7713 = vld [vmem:[#allocation13 + $0x17c] sm:$0xf]
    %v7714 = vld [vmem:[#allocation13 + $0x180] sm:$0xf]
    %v7715 = vld [vmem:[#allocation13 + $0x184] sm:$0xf]
    %v7716 = vld [vmem:[#allocation13 + $0x188] sm:$0xf]
    %v7717 = vld [vmem:[#allocation13 + $0x18c] sm:$0xf]
    %v7718 = vld [vmem:[#allocation13 + $0x190] sm:$0xf]
    %v7719 = vld [vmem:[#allocation13 + $0x194] sm:$0xf]
    %v7720 = vld [vmem:[#allocation13 + $0x198] sm:$0xf]
    %v7721 = vld [vmem:[#allocation13 + $0x19c] sm:$0xf]
    %v7722 = vld [vmem:[#allocation13 + $0x1a0] sm:$0xf]
    %v7723 = vld [vmem:[#allocation13 + $0x1a4] sm:$0xf]
    %v7724 = vld [vmem:[#allocation13 + $0x1a8] sm:$0xf]
    %v7725 = vld [vmem:[#allocation13 + $0x1ac] sm:$0xf]
    %v7726 = vld [vmem:[#allocation13 + $0x1b0] sm:$0xf]
    %v7727 = vld [vmem:[#allocation13 + $0x1b4] sm:$0xf]
    %v7728 = vld [vmem:[#allocation13 + $0x1b8] sm:$0xf]
    %v7729 = vld [vmem:[#allocation13 + $0x1bc] sm:$0xf]
    %v7730 = vld [vmem:[#allocation13 + $0x1c0] sm:$0xf]
    %v7731 = vld [vmem:[#allocation13 + $0x1c4] sm:$0xf]
    %v7732 = vld [vmem:[#allocation13 + $0x1c8] sm:$0xf]
    %v7733 = vld [vmem:[#allocation13 + $0x1cc] sm:$0xf]
    %v7734 = vld [vmem:[#allocation13 + $0x1d0] sm:$0xf]
    %v7735 = vld [vmem:[#allocation13 + $0x1d4] sm:$0xf]
    %v7736 = vld [vmem:[#allocation13 + $0x1d8] sm:$0xf]
    %v7737 = vld [vmem:[#allocation13 + $0x1dc] sm:$0xf]
    %v7738 = vld [vmem:[#allocation13 + $0x1e0] sm:$0xf]
    %v7739 = vld [vmem:[#allocation13 + $0x1e4] sm:$0xf]
    %v7740 = vld [vmem:[#allocation13 + $0x1e8] sm:$0xf]
    %v7741 = vld [vmem:[#allocation13 + $0x1ec] sm:$0xf]
    %v7742 = vld [vmem:[#allocation13 + $0x1f0] sm:$0xf]
    %v7743 = vld [vmem:[#allocation13 + $0x1f4] sm:$0xf]
    %v7744 = vld [vmem:[#allocation13 + $0x1f8] sm:$0xf]
    %v7745 = vld [vmem:[#allocation13 + $0x1fc] sm:$0xf]
    %v7746 = vld [vmem:[#allocation15] sm:$0x1]
    %v7748 = vperm.slane %v7746, 0
    %v7878 = vunpack.c.l.b16 %v7618
    %v7879 = vunpack.c.l.b16 %v7619
    %v7880 = vunpack.c.l.b16 %v7620
    %v7881 = vunpack.c.l.b16 %v7621
    %v7882 = vunpack.c.l.b16 %v7622
    %v7883 = vunpack.c.l.b16 %v7623
    %v7884 = vunpack.c.l.b16 %v7624
    %v7885 = vunpack.c.l.b16 %v7625
    %v7886 = vunpack.c.l.b16 %v7626
    %v7887 = vunpack.c.l.b16 %v7627
    %v7888 = vunpack.c.l.b16 %v7628
    %v7889 = vunpack.c.l.b16 %v7629
    %v7890 = vunpack.c.l.b16 %v7630
    %v7891 = vunpack.c.l.b16 %v7631
    %v7892 = vunpack.c.l.b16 %v7632
    %v7893 = vunpack.c.l.b16 %v7633
    %v7894 = vunpack.c.l.b16 %v7634
    %v7895 = vunpack.c.l.b16 %v7635
    %v7896 = vunpack.c.l.b16 %v7636
    %v7897 = vunpack.c.l.b16 %v7637
    %v7898 = vunpack.c.l.b16 %v7638
    %v7899 = vunpack.c.l.b16 %v7639
    %v7900 = vunpack.c.l.b16 %v7640
    %v7901 = vunpack.c.l.b16 %v7641
    %v7902 = vunpack.c.l.b16 %v7642
    %v7903 = vunpack.c.l.b16 %v7643
    %v7904 = vunpack.c.l.b16 %v7644
    %v7905 = vunpack.c.l.b16 %v7645
    %v7906 = vunpack.c.l.b16 %v7646
    %v7907 = vunpack.c.l.b16 %v7647
    %v7908 = vunpack.c.l.b16 %v7648
    %v7909 = vunpack.c.l.b16 %v7649
    %v7910 = vunpack.c.l.b16 %v7650
    %v7911 = vunpack.c.l.b16 %v7651
    %v7912 = vunpack.c.l.b16 %v7652
    %v7913 = vunpack.c.l.b16 %v7653
    %v7914 = vunpack.c.l.b16 %v7654
    %v7915 = vunpack.c.l.b16 %v7655
    %v7916 = vunpack.c.l.b16 %v7656
    %v7917 = vunpack.c.l.b16 %v7657
    %v7918 = vunpack.c.l.b16 %v7658
    %v7919 = vunpack.c.l.b16 %v7659
    %v7920 = vunpack.c.l.b16 %v7660
    %v7921 = vunpack.c.l.b16 %v7661
    %v7922 = vunpack.c.l.b16 %v7662
    %v7923 = vunpack.c.l.b16 %v7663
    %v7924 = vunpack.c.l.b16 %v7664
    %v7925 = vunpack.c.l.b16 %v7665
    %v7926 = vunpack.c.l.b16 %v7666
    %v7927 = vunpack.c.l.b16 %v7667
    %v7928 = vunpack.c.l.b16 %v7668
    %v7929 = vunpack.c.l.b16 %v7669
    %v7930 = vunpack.c.l.b16 %v7670
    %v7931 = vunpack.c.l.b16 %v7671
    %v7932 = vunpack.c.l.b16 %v7672
    %v7933 = vunpack.c.l.b16 %v7673
    %v7934 = vunpack.c.l.b16 %v7674
    %v7935 = vunpack.c.l.b16 %v7675
    %v7936 = vunpack.c.l.b16 %v7676
    %v7937 = vunpack.c.l.b16 %v7677
    %v7938 = vunpack.c.l.b16 %v7678
    %v7939 = vunpack.c.l.b16 %v7679
    %v7940 = vunpack.c.l.b16 %v7680
    %v7941 = vunpack.c.l.b16 %v7681
    %v7942 = vunpack.c.l.b16 %v7682
    %v7943 = vunpack.c.l.b16 %v7683
    %v7944 = vunpack.c.l.b16 %v7684
    %v7945 = vunpack.c.l.b16 %v7685
    %v7946 = vunpack.c.l.b16 %v7686
    %v7947 = vunpack.c.l.b16 %v7687
    %v7948 = vunpack.c.l.b16 %v7688
    %v7949 = vunpack.c.l.b16 %v7689
    %v7950 = vunpack.c.l.b16 %v7690
    %v7951 = vunpack.c.l.b16 %v7691
    %v7952 = vunpack.c.l.b16 %v7692
    %v7953 = vunpack.c.l.b16 %v7693
    %v7954 = vunpack.c.l.b16 %v7694
    %v7955 = vunpack.c.l.b16 %v7695
    %v7956 = vunpack.c.l.b16 %v7696
    %v7957 = vunpack.c.l.b16 %v7697
    %v7958 = vunpack.c.l.b16 %v7698
    %v7959 = vunpack.c.l.b16 %v7699
    %v7960 = vunpack.c.l.b16 %v7700
    %v7961 = vunpack.c.l.b16 %v7701
    %v7962 = vunpack.c.l.b16 %v7702
    %v7963 = vunpack.c.l.b16 %v7703
    %v7964 = vunpack.c.l.b16 %v7704
    %v7965 = vunpack.c.l.b16 %v7705
    %v7966 = vunpack.c.l.b16 %v7706
    %v7967 = vunpack.c.l.b16 %v7707
    %v7968 = vunpack.c.l.b16 %v7708
    %v7969 = vunpack.c.l.b16 %v7709
    %v7970 = vunpack.c.l.b16 %v7710
    %v7971 = vunpack.c.l.b16 %v7711
    %v7972 = vunpack.c.l.b16 %v7712
    %v7973 = vunpack.c.l.b16 %v7713
    %v7974 = vunpack.c.l.b16 %v7714
    %v7975 = vunpack.c.l.b16 %v7715
    %v7976 = vunpack.c.l.b16 %v7716
    %v7977 = vunpack.c.l.b16 %v7717
    %v7978 = vunpack.c.l.b16 %v7718
    %v7979 = vunpack.c.l.b16 %v7719
    %v7980 = vunpack.c.l.b16 %v7720
    %v7981 = vunpack.c.l.b16 %v7721
    %v7982 = vunpack.c.l.b16 %v7722
    %v7983 = vunpack.c.l.b16 %v7723
    %v7984 = vunpack.c.l.b16 %v7724
    %v7985 = vunpack.c.l.b16 %v7725
    %v7986 = vunpack.c.l.b16 %v7726
    %v7987 = vunpack.c.l.b16 %v7727
    %v7988 = vunpack.c.l.b16 %v7728
    %v7989 = vunpack.c.l.b16 %v7729
    %v7990 = vunpack.c.l.b16 %v7730
    %v7991 = vunpack.c.l.b16 %v7731
    %v7992 = vunpack.c.l.b16 %v7732
    %v7993 = vunpack.c.l.b16 %v7733
    %v7994 = vunpack.c.l.b16 %v7734
    %v7995 = vunpack.c.l.b16 %v7735
    %v7996 = vunpack.c.l.b16 %v7736
    %v7997 = vunpack.c.l.b16 %v7737
    %v7998 = vunpack.c.l.b16 %v7738
    %v7999 = vunpack.c.l.b16 %v7739
    %v8000 = vunpack.c.l.b16 %v7740
    %v8001 = vunpack.c.l.b16 %v7741
    %v8002 = vunpack.c.l.b16 %v7742
    %v8003 = vunpack.c.l.b16 %v7743
    %v8004 = vunpack.c.l.b16 %v7744
    %v8005 = vunpack.c.l.b16 %v7745
    %v8006 = vpack.c.b16 %v7879, %v7878
    %v8007 = vpack.c.b16 %v7881, %v7880
    %v8008 = vpack.c.b16 %v7883, %v7882
    %v8009 = vpack.c.b16 %v7885, %v7884
    %v8010 = vpack.c.b16 %v7887, %v7886
    %v8011 = vpack.c.b16 %v7889, %v7888
    %v8012 = vpack.c.b16 %v7891, %v7890
    %v8013 = vpack.c.b16 %v7893, %v7892
    %v8014 = vpack.c.b16 %v7895, %v7894
    %v8015 = vpack.c.b16 %v7897, %v7896
    %v8016 = vpack.c.b16 %v7899, %v7898
    %v8017 = vpack.c.b16 %v7901, %v7900
    %v8018 = vpack.c.b16 %v7903, %v7902
    %v8019 = vpack.c.b16 %v7905, %v7904
    %v8020 = vpack.c.b16 %v7907, %v7906
    %v8021 = vpack.c.b16 %v7909, %v7908
    %v8022 = vpack.c.b16 %v7911, %v7910
    %v8023 = vpack.c.b16 %v7913, %v7912
    %v8024 = vpack.c.b16 %v7915, %v7914
    %v8025 = vpack.c.b16 %v7917, %v7916
    %v8026 = vpack.c.b16 %v7919, %v7918
    %v8027 = vpack.c.b16 %v7921, %v7920
    %v8028 = vpack.c.b16 %v7923, %v7922
    %v8029 = vpack.c.b16 %v7925, %v7924
    %v8030 = vpack.c.b16 %v7927, %v7926
    %v8031 = vpack.c.b16 %v7929, %v7928
    %v8032 = vpack.c.b16 %v7931, %v7930
    %v8033 = vpack.c.b16 %v7933, %v7932
    %v8034 = vpack.c.b16 %v7935, %v7934
    %v8035 = vpack.c.b16 %v7937, %v7936
    %v8036 = vpack.c.b16 %v7939, %v7938
    %v8037 = vpack.c.b16 %v7941, %v7940
    %v8038 = vpack.c.b16 %v7943, %v7942
    %v8039 = vpack.c.b16 %v7945, %v7944
    %v8040 = vpack.c.b16 %v7947, %v7946
    %v8041 = vpack.c.b16 %v7949, %v7948
    %v8042 = vpack.c.b16 %v7951, %v7950
    %v8043 = vpack.c.b16 %v7953, %v7952
    %v8044 = vpack.c.b16 %v7955, %v7954
    %v8045 = vpack.c.b16 %v7957, %v7956
    %v8046 = vpack.c.b16 %v7959, %v7958
    %v8047 = vpack.c.b16 %v7961, %v7960
    %v8048 = vpack.c.b16 %v7963, %v7962
    %v8049 = vpack.c.b16 %v7965, %v7964
    %v8050 = vpack.c.b16 %v7967, %v7966
    %v8051 = vpack.c.b16 %v7969, %v7968
    %v8052 = vpack.c.b16 %v7971, %v7970
    %v8053 = vpack.c.b16 %v7973, %v7972
    %v8054 = vpack.c.b16 %v7975, %v7974
    %v8055 = vpack.c.b16 %v7977, %v7976
    %v8056 = vpack.c.b16 %v7979, %v7978
    %v8057 = vpack.c.b16 %v7981, %v7980
    %v8058 = vpack.c.b16 %v7983, %v7982
    %v8059 = vpack.c.b16 %v7985, %v7984
    %v8060 = vpack.c.b16 %v7987, %v7986
    %v8061 = vpack.c.b16 %v7989, %v7988
    %v8062 = vpack.c.b16 %v7991, %v7990
    %v8063 = vpack.c.b16 %v7993, %v7992
    %v8064 = vpack.c.b16 %v7995, %v7994
    %v8065 = vpack.c.b16 %v7997, %v7996
    %v8066 = vpack.c.b16 %v7999, %v7998
    %v8067 = vpack.c.b16 %v8001, %v8000
    %v8068 = vpack.c.b16 %v8003, %v8002
    %v8069 = vpack.c.b16 %v8005, %v8004
    %8134 = vmatpush.bf16.msra.mxu0 %v8013
    %8135 = vmatpush.bf16.msra.mxu0 %v8012
    %8136 = vmatpush.bf16.msra.mxu0 %v8011
    %8137 = vmatpush.bf16.msra.mxu0 %v8010
    %8138 = vmatpush.bf16.msra.mxu0 %v8009
    %8139 = vmatpush.bf16.msra.mxu0 %v8008
    %8140 = vmatpush.bf16.msra.mxu0 %v8007
    %8141 = vmatpush.bf16.msra.mxu0 %v8006
    %8142 = vmatmul.bf16.gmra.mxu0 %v7610
    %v8143 = vpop.f32.mrf.mxu0
    %v8144 = vadd.f32 %v7748, %v8143
    %v8145 = vpop.f32.mrf.mxu0
    %8146 = vdwg.mxu0
    %8147 = vmatpush.bf16.msra.mxu0 %v8021
    %8148 = vmatpush.bf16.msra.mxu0 %v8020
    %8149 = vmatpush.bf16.msra.mxu0 %v8019
    %8150 = vmatpush.bf16.msra.mxu0 %v8018
    %8151 = vmatpush.bf16.msra.mxu0 %v8017
    %8152 = vmatpush.bf16.msra.mxu0 %v8016
    %8153 = vmatpush.bf16.msra.mxu0 %v8015
    %8154 = vmatpush.bf16.msra.mxu0 %v8014
    %8155 = vmatmul.bf16.gmra.mxu0 %v7611
    %v8156 = vpop.f32.mrf.mxu0
    %v8157 = vadd.f32 %v8144, %v8156
    %v8158 = vpop.f32.mrf.mxu0
    %8159 = vdwg.mxu0
    %8160 = vmatpush.bf16.msra.mxu0 %v8029
    %8161 = vmatpush.bf16.msra.mxu0 %v8028
    %8162 = vmatpush.bf16.msra.mxu0 %v8027
    %8163 = vmatpush.bf16.msra.mxu0 %v8026
    %8164 = vmatpush.bf16.msra.mxu0 %v8025
    %8165 = vmatpush.bf16.msra.mxu0 %v8024
    %8166 = vmatpush.bf16.msra.mxu0 %v8023
    %8167 = vmatpush.bf16.msra.mxu0 %v8022
    %8168 = vmatmul.bf16.gmra.mxu0 %v7612
    %v8169 = vpop.f32.mrf.mxu0
    %v8170 = vadd.f32 %v8157, %v8169
    %v8171 = vpop.f32.mrf.mxu0
    %8172 = vdwg.mxu0
    %8173 = vmatpush.bf16.msra.mxu0 %v8037
    %8174 = vmatpush.bf16.msra.mxu0 %v8036
    %8175 = vmatpush.bf16.msra.mxu0 %v8035
    %8176 = vmatpush.bf16.msra.mxu0 %v8034
    %8177 = vmatpush.bf16.msra.mxu0 %v8033
    %8178 = vmatpush.bf16.msra.mxu0 %v8032
    %8179 = vmatpush.bf16.msra.mxu0 %v8031
    %8180 = vmatpush.bf16.msra.mxu0 %v8030
    %8181 = vmatmul.bf16.gmra.mxu0 %v7613
    %v8182 = vpop.f32.mrf.mxu0
    %v8183 = vadd.f32 %v8170, %v8182
    %v8184 = vpop.f32.mrf.mxu0
    %8185 = vdwg.mxu0
    %8186 = vmatpush.bf16.msra.mxu0 %v8045
    %8187 = vmatpush.bf16.msra.mxu0 %v8044
    %8188 = vmatpush.bf16.msra.mxu0 %v8043
    %8189 = vmatpush.bf16.msra.mxu0 %v8042
    %8190 = vmatpush.bf16.msra.mxu0 %v8041
    %8191 = vmatpush.bf16.msra.mxu0 %v8040
    %8192 = vmatpush.bf16.msra.mxu0 %v8039
    %8193 = vmatpush.bf16.msra.mxu0 %v8038
    %8194 = vmatmul.bf16.gmra.mxu0 %v7614
    %v8195 = vpop.f32.mrf.mxu0
    %v8196 = vadd.f32 %v8183, %v8195
    %v8197 = vpop.f32.mrf.mxu0
    %8198 = vdwg.mxu0
    %8199 = vmatpush.bf16.msra.mxu0 %v8053
    %8200 = vmatpush.bf16.msra.mxu0 %v8052
    %8201 = vmatpush.bf16.msra.mxu0 %v8051
    %8202 = vmatpush.bf16.msra.mxu0 %v8050
    %8203 = vmatpush.bf16.msra.mxu0 %v8049
    %8204 = vmatpush.bf16.msra.mxu0 %v8048
    %8205 = vmatpush.bf16.msra.mxu0 %v8047
    %8206 = vmatpush.bf16.msra.mxu0 %v8046
    %8207 = vmatmul.bf16.gmra.mxu0 %v7615
    %v8208 = vpop.f32.mrf.mxu0
    %v8209 = vadd.f32 %v8196, %v8208
    %v8210 = vpop.f32.mrf.mxu0
    %8211 = vdwg.mxu0
    %8212 = vmatpush.bf16.msra.mxu0 %v8061
    %8213 = vmatpush.bf16.msra.mxu0 %v8060
    %8214 = vmatpush.bf16.msra.mxu0 %v8059
    %8215 = vmatpush.bf16.msra.mxu0 %v8058
    %8216 = vmatpush.bf16.msra.mxu0 %v8057
    %8217 = vmatpush.bf16.msra.mxu0 %v8056
    %8218 = vmatpush.bf16.msra.mxu0 %v8055
    %8219 = vmatpush.bf16.msra.mxu0 %v8054
    %8220 = vmatmul.bf16.gmra.mxu0 %v7616
    %v8221 = vpop.f32.mrf.mxu0
    %v8222 = vadd.f32 %v8209, %v8221
    %v8223 = vpop.f32.mrf.mxu0
    %8224 = vdwg.mxu0
    %8225 = vmatpush.bf16.msra.mxu0 %v8069
    %8226 = vmatpush.bf16.msra.mxu0 %v8068
    %8227 = vmatpush.bf16.msra.mxu0 %v8067
    %8228 = vmatpush.bf16.msra.mxu0 %v8066
    %8229 = vmatpush.bf16.msra.mxu0 %v8065
    %8230 = vmatpush.bf16.msra.mxu0 %v8064
    %8231 = vmatpush.bf16.msra.mxu0 %v8063
    %8232 = vmatpush.bf16.msra.mxu0 %v8062
    %8233 = vmatmul.bf16.gmra.mxu0 %v7617
    %v8234 = vpop.f32.mrf.mxu0
    %v8235 = vadd.f32 %v8222, %v8234
    %v8236 = vpop.f32.mrf.mxu0
    %8237 = vdwg.mxu0
    %8238 = vst [vmem:[%s13] sm:$0xff] %v8235
    %v8239 = vld [vmem:[#allocation10] sm:$0xff]
    %v8240 = vld [vmem:[#allocation10 + $0x8] sm:$0xff]
    %v8241 = vld [vmem:[#allocation10 + $0x10] sm:$0xff]
    %v8242 = vld [vmem:[#allocation10 + $0x18] sm:$0xff]
    %v8243 = vld [vmem:[#allocation10 + $0x20] sm:$0xff]
    %v8244 = vld [vmem:[#allocation10 + $0x28] sm:$0xff]
    %v8245 = vld [vmem:[#allocation10 + $0x30] sm:$0xff]
    %v8246 = vld [vmem:[#allocation10 + $0x38] sm:$0xff]
    %v8247 = vld [vmem:[#allocation10 + $0x40] sm:$0xff]
    %v8248 = vld [vmem:[#allocation10 + $0x48] sm:$0xff]
    %v8249 = vld [vmem:[#allocation10 + $0x50] sm:$0xff]
    %v8250 = vld [vmem:[#allocation10 + $0x58] sm:$0xff]
    %v8251 = vld [vmem:[#allocation10 + $0x60] sm:$0xff]
    %v8252 = vld [vmem:[#allocation10 + $0x68] sm:$0xff]
    %v8253 = vld [vmem:[#allocation10 + $0x70] sm:$0xff]
    %v8254 = vld [vmem:[#allocation10 + $0x78] sm:$0xff]
    %v8255 = vld [vmem:[#allocation10 + $0x80] sm:$0xff]
    %v8256 = vld [vmem:[#allocation10 + $0x88] sm:$0xff]
    %v8257 = vld [vmem:[#allocation10 + $0x90] sm:$0xff]
    %v8258 = vld [vmem:[#allocation10 + $0x98] sm:$0xff]
    %v8259 = vld [vmem:[#allocation10 + $0xa0] sm:$0xff]
    %v8260 = vld [vmem:[#allocation10 + $0xa8] sm:$0xff]
    %v8261 = vld [vmem:[#allocation10 + $0xb0] sm:$0xff]
    %v8262 = vld [vmem:[#allocation10 + $0xb8] sm:$0xff]
    %v8263 = vld [vmem:[#allocation10 + $0xc0] sm:$0xff]
    %v8264 = vld [vmem:[#allocation10 + $0xc8] sm:$0xff]
    %v8265 = vld [vmem:[#allocation10 + $0xd0] sm:$0xff]
    %v8266 = vld [vmem:[#allocation10 + $0xd8] sm:$0xff]
    %v8267 = vld [vmem:[#allocation10 + $0xe0] sm:$0xff]
    %v8268 = vld [vmem:[#allocation10 + $0xe8] sm:$0xff]
    %v8269 = vld [vmem:[#allocation10 + $0xf0] sm:$0xff]
    %v8270 = vld [vmem:[#allocation10 + $0xf8] sm:$0xff]
    %v8271 = vld [vmem:[#allocation10 + $0x100] sm:$0xff]
    %v8272 = vld [vmem:[#allocation10 + $0x108] sm:$0xff]
    %v8273 = vld [vmem:[#allocation10 + $0x110] sm:$0xff]
    %v8274 = vld [vmem:[#allocation10 + $0x118] sm:$0xff]
    %v8275 = vld [vmem:[#allocation10 + $0x120] sm:$0xff]
    %v8276 = vld [vmem:[#allocation10 + $0x128] sm:$0xff]
    %v8277 = vld [vmem:[#allocation10 + $0x130] sm:$0xff]
    %v8278 = vld [vmem:[#allocation10 + $0x138] sm:$0xff]
    %v8279 = vld [vmem:[#allocation10 + $0x140] sm:$0xff]
    %v8280 = vld [vmem:[#allocation10 + $0x148] sm:$0xff]
    %v8281 = vld [vmem:[#allocation10 + $0x150] sm:$0xff]
    %v8282 = vld [vmem:[#allocation10 + $0x158] sm:$0xff]
    %v8283 = vld [vmem:[#allocation10 + $0x160] sm:$0xff]
    %v8284 = vld [vmem:[#allocation10 + $0x168] sm:$0xff]
    %v8285 = vld [vmem:[#allocation10 + $0x170] sm:$0xff]
    %v8286 = vld [vmem:[#allocation10 + $0x178] sm:$0xff]
    %v8287 = vld [vmem:[#allocation10 + $0x180] sm:$0xff]
    %v8288 = vld [vmem:[#allocation10 + $0x188] sm:$0xff]
    %v8289 = vld [vmem:[#allocation10 + $0x190] sm:$0xff]
    %v8290 = vld [vmem:[#allocation10 + $0x198] sm:$0xff]
    %v8291 = vld [vmem:[#allocation10 + $0x1a0] sm:$0xff]
    %v8292 = vld [vmem:[#allocation10 + $0x1a8] sm:$0xff]
    %v8293 = vld [vmem:[#allocation10 + $0x1b0] sm:$0xff]
    %v8294 = vld [vmem:[#allocation10 + $0x1b8] sm:$0xff]
    %v8295 = vld [vmem:[#allocation10 + $0x1c0] sm:$0xff]
    %v8296 = vld [vmem:[#allocation10 + $0x1c8] sm:$0xff]
    %v8297 = vld [vmem:[#allocation10 + $0x1d0] sm:$0xff]
    %v8298 = vld [vmem:[#allocation10 + $0x1d8] sm:$0xff]
    %v8299 = vld [vmem:[#allocation10 + $0x1e0] sm:$0xff]
    %v8300 = vld [vmem:[#allocation10 + $0x1e8] sm:$0xff]
    %v8301 = vld [vmem:[#allocation10 + $0x1f0] sm:$0xff]
    %v8302 = vld [vmem:[#allocation10 + $0x1f8] sm:$0xff]
    %v8303 = vld [vmem:[#allocation10 + $0x200] sm:$0xff]
    %v8304 = vld [vmem:[#allocation10 + $0x208] sm:$0xff]
    %v8305 = vld [vmem:[#allocation10 + $0x210] sm:$0xff]
    %v8306 = vld [vmem:[#allocation10 + $0x218] sm:$0xff]
    %v8307 = vld [vmem:[#allocation10 + $0x220] sm:$0xff]
    %v8308 = vld [vmem:[#allocation10 + $0x228] sm:$0xff]
    %v8309 = vld [vmem:[#allocation10 + $0x230] sm:$0xff]
    %v8310 = vld [vmem:[#allocation10 + $0x238] sm:$0xff]
    %v8311 = vld [vmem:[#allocation10 + $0x240] sm:$0xff]
    %v8312 = vld [vmem:[#allocation10 + $0x248] sm:$0xff]
    %v8313 = vld [vmem:[#allocation10 + $0x250] sm:$0xff]
    %v8314 = vld [vmem:[#allocation10 + $0x258] sm:$0xff]
    %v8315 = vld [vmem:[#allocation10 + $0x260] sm:$0xff]
    %v8316 = vld [vmem:[#allocation10 + $0x268] sm:$0xff]
    %v8317 = vld [vmem:[#allocation10 + $0x270] sm:$0xff]
    %v8318 = vld [vmem:[#allocation10 + $0x278] sm:$0xff]
    %v8319 = vld [vmem:[#allocation10 + $0x280] sm:$0xff]
    %v8320 = vld [vmem:[#allocation10 + $0x288] sm:$0xff]
    %v8321 = vld [vmem:[#allocation10 + $0x290] sm:$0xff]
    %v8322 = vld [vmem:[#allocation10 + $0x298] sm:$0xff]
    %v8323 = vld [vmem:[#allocation10 + $0x2a0] sm:$0xff]
    %v8324 = vld [vmem:[#allocation10 + $0x2a8] sm:$0xff]
    %v8325 = vld [vmem:[#allocation10 + $0x2b0] sm:$0xff]
    %v8326 = vld [vmem:[#allocation10 + $0x2b8] sm:$0xff]
    %v8327 = vld [vmem:[#allocation10 + $0x2c0] sm:$0xff]
    %v8328 = vld [vmem:[#allocation10 + $0x2c8] sm:$0xff]
    %v8329 = vld [vmem:[#allocation10 + $0x2d0] sm:$0xff]
    %v8330 = vld [vmem:[#allocation10 + $0x2d8] sm:$0xff]
    %v8331 = vld [vmem:[#allocation10 + $0x2e0] sm:$0xff]
    %v8332 = vld [vmem:[#allocation10 + $0x2e8] sm:$0xff]
    %v8333 = vld [vmem:[#allocation10 + $0x2f0] sm:$0xff]
    %v8334 = vld [vmem:[#allocation10 + $0x2f8] sm:$0xff]
    %v8335 = vld [vmem:[#allocation10 + $0x300] sm:$0xff]
    %v8336 = vld [vmem:[#allocation10 + $0x308] sm:$0xff]
    %v8337 = vld [vmem:[#allocation10 + $0x310] sm:$0xff]
    %v8338 = vld [vmem:[#allocation10 + $0x318] sm:$0xff]
    %v8339 = vld [vmem:[#allocation10 + $0x320] sm:$0xff]
    %v8340 = vld [vmem:[#allocation10 + $0x328] sm:$0xff]
    %v8341 = vld [vmem:[#allocation10 + $0x330] sm:$0xff]
    %v8342 = vld [vmem:[#allocation10 + $0x338] sm:$0xff]
    %v8343 = vld [vmem:[#allocation10 + $0x340] sm:$0xff]
    %v8344 = vld [vmem:[#allocation10 + $0x348] sm:$0xff]
    %v8345 = vld [vmem:[#allocation10 + $0x350] sm:$0xff]
    %v8346 = vld [vmem:[#allocation10 + $0x358] sm:$0xff]
    %v8347 = vld [vmem:[#allocation10 + $0x360] sm:$0xff]
    %v8348 = vld [vmem:[#allocation10 + $0x368] sm:$0xff]
    %v8349 = vld [vmem:[#allocation10 + $0x370] sm:$0xff]
    %v8350 = vld [vmem:[#allocation10 + $0x378] sm:$0xff]
    %v8351 = vld [vmem:[#allocation10 + $0x380] sm:$0xff]
    %v8352 = vld [vmem:[#allocation10 + $0x388] sm:$0xff]
    %v8353 = vld [vmem:[#allocation10 + $0x390] sm:$0xff]
    %v8354 = vld [vmem:[#allocation10 + $0x398] sm:$0xff]
    %v8355 = vld [vmem:[#allocation10 + $0x3a0] sm:$0xff]
    %v8356 = vld [vmem:[#allocation10 + $0x3a8] sm:$0xff]
    %v8357 = vld [vmem:[#allocation10 + $0x3b0] sm:$0xff]
    %v8358 = vld [vmem:[#allocation10 + $0x3b8] sm:$0xff]
    %v8359 = vld [vmem:[#allocation10 + $0x3c0] sm:$0xff]
    %v8360 = vld [vmem:[#allocation10 + $0x3c8] sm:$0xff]
    %v8361 = vld [vmem:[#allocation10 + $0x3d0] sm:$0xff]
    %v8362 = vld [vmem:[#allocation10 + $0x3d8] sm:$0xff]
    %v8363 = vld [vmem:[#allocation10 + $0x3e0] sm:$0xff]
    %v8364 = vld [vmem:[#allocation10 + $0x3e8] sm:$0xff]
    %v8365 = vld [vmem:[#allocation10 + $0x3f0] sm:$0xff]
    %v8366 = vld [vmem:[#allocation10 + $0x3f8] sm:$0xff]
    %v8367 = vld [vmem:[#allocation10 + $0x400] sm:$0xff]
    %v8368 = vld [vmem:[#allocation10 + $0x408] sm:$0xff]
    %v8369 = vld [vmem:[#allocation10 + $0x410] sm:$0xff]
    %v8370 = vld [vmem:[#allocation10 + $0x418] sm:$0xff]
    %v8371 = vld [vmem:[#allocation10 + $0x420] sm:$0xff]
    %v8372 = vld [vmem:[#allocation10 + $0x428] sm:$0xff]
    %v8373 = vld [vmem:[#allocation10 + $0x430] sm:$0xff]
    %v8374 = vld [vmem:[#allocation10 + $0x438] sm:$0xff]
    %v8375 = vld [vmem:[#allocation10 + $0x440] sm:$0xff]
    %v8376 = vld [vmem:[#allocation10 + $0x448] sm:$0xff]
    %v8377 = vld [vmem:[#allocation10 + $0x450] sm:$0xff]
    %v8378 = vld [vmem:[#allocation10 + $0x458] sm:$0xff]
    %v8379 = vld [vmem:[#allocation10 + $0x460] sm:$0xff]
    %v8380 = vld [vmem:[#allocation10 + $0x468] sm:$0xff]
    %v8381 = vld [vmem:[#allocation10 + $0x470] sm:$0xff]
    %v8382 = vld [vmem:[#allocation10 + $0x478] sm:$0xff]
    %v8383 = vld [vmem:[#allocation10 + $0x480] sm:$0xff]
    %v8384 = vld [vmem:[#allocation10 + $0x488] sm:$0xff]
    %v8385 = vld [vmem:[#allocation10 + $0x490] sm:$0xff]
    %v8386 = vld [vmem:[#allocation10 + $0x498] sm:$0xff]
    %v8387 = vld [vmem:[#allocation10 + $0x4a0] sm:$0xff]
    %v8388 = vld [vmem:[#allocation10 + $0x4a8] sm:$0xff]
    %v8389 = vld [vmem:[#allocation10 + $0x4b0] sm:$0xff]
    %v8390 = vld [vmem:[#allocation10 + $0x4b8] sm:$0xff]
    %v8391 = vld [vmem:[#allocation10 + $0x4c0] sm:$0xff]
    %v8392 = vld [vmem:[#allocation10 + $0x4c8] sm:$0xff]
    %v8393 = vld [vmem:[#allocation10 + $0x4d0] sm:$0xff]
    %v8394 = vld [vmem:[#allocation10 + $0x4d8] sm:$0xff]
    %v8395 = vld [vmem:[#allocation10 + $0x4e0] sm:$0xff]
    %v8396 = vld [vmem:[#allocation10 + $0x4e8] sm:$0xff]
    %v8397 = vld [vmem:[#allocation10 + $0x4f0] sm:$0xff]
    %v8398 = vld [vmem:[#allocation10 + $0x4f8] sm:$0xff]
    %v8399 = vld [vmem:[#allocation10 + $0x500] sm:$0xff]
    %v8400 = vld [vmem:[#allocation10 + $0x508] sm:$0xff]
    %v8401 = vld [vmem:[#allocation10 + $0x510] sm:$0xff]
    %v8402 = vld [vmem:[#allocation10 + $0x518] sm:$0xff]
    %v8403 = vld [vmem:[#allocation10 + $0x520] sm:$0xff]
    %v8404 = vld [vmem:[#allocation10 + $0x528] sm:$0xff]
    %v8405 = vld [vmem:[#allocation10 + $0x530] sm:$0xff]
    %v8406 = vld [vmem:[#allocation10 + $0x538] sm:$0xff]
    %v8407 = vld [vmem:[#allocation10 + $0x540] sm:$0xff]
    %v8408 = vld [vmem:[#allocation10 + $0x548] sm:$0xff]
    %v8409 = vld [vmem:[#allocation10 + $0x550] sm:$0xff]
    %v8410 = vld [vmem:[#allocation10 + $0x558] sm:$0xff]
    %v8411 = vld [vmem:[#allocation10 + $0x560] sm:$0xff]
    %v8412 = vld [vmem:[#allocation10 + $0x568] sm:$0xff]
    %v8413 = vld [vmem:[#allocation10 + $0x570] sm:$0xff]
    %v8414 = vld [vmem:[#allocation10 + $0x578] sm:$0xff]
    %v8415 = vld [vmem:[#allocation10 + $0x580] sm:$0xff]
    %v8416 = vld [vmem:[#allocation10 + $0x588] sm:$0xff]
    %v8417 = vld [vmem:[#allocation10 + $0x590] sm:$0xff]
    %v8418 = vld [vmem:[#allocation10 + $0x598] sm:$0xff]
    %v8419 = vld [vmem:[#allocation10 + $0x5a0] sm:$0xff]
    %v8420 = vld [vmem:[#allocation10 + $0x5a8] sm:$0xff]
    %v8421 = vld [vmem:[#allocation10 + $0x5b0] sm:$0xff]
    %v8422 = vld [vmem:[#allocation10 + $0x5b8] sm:$0xff]
    %v8423 = vld [vmem:[#allocation10 + $0x5c0] sm:$0xff]
    %v8424 = vld [vmem:[#allocation10 + $0x5c8] sm:$0xff]
    %v8425 = vld [vmem:[#allocation10 + $0x5d0] sm:$0xff]
    %v8426 = vld [vmem:[#allocation10 + $0x5d8] sm:$0xff]
    %v8427 = vld [vmem:[#allocation10 + $0x5e0] sm:$0xff]
    %v8428 = vld [vmem:[#allocation10 + $0x5e8] sm:$0xff]
    %v8429 = vld [vmem:[#allocation10 + $0x5f0] sm:$0xff]
    %v8430 = vld [vmem:[#allocation10 + $0x5f8] sm:$0xff]
    %v8431 = vld [vmem:[#allocation10 + $0x600] sm:$0xff]
    %v8432 = vld [vmem:[#allocation10 + $0x608] sm:$0xff]
    %v8433 = vld [vmem:[#allocation10 + $0x610] sm:$0xff]
    %v8434 = vld [vmem:[#allocation10 + $0x618] sm:$0xff]
    %v8435 = vld [vmem:[#allocation10 + $0x620] sm:$0xff]
    %v8436 = vld [vmem:[#allocation10 + $0x628] sm:$0xff]
    %v8437 = vld [vmem:[#allocation10 + $0x630] sm:$0xff]
    %v8438 = vld [vmem:[#allocation10 + $0x638] sm:$0xff]
    %v8439 = vld [vmem:[#allocation10 + $0x640] sm:$0xff]
    %v8440 = vld [vmem:[#allocation10 + $0x648] sm:$0xff]
    %v8441 = vld [vmem:[#allocation10 + $0x650] sm:$0xff]
    %v8442 = vld [vmem:[#allocation10 + $0x658] sm:$0xff]
    %v8443 = vld [vmem:[#allocation10 + $0x660] sm:$0xff]
    %v8444 = vld [vmem:[#allocation10 + $0x668] sm:$0xff]
    %v8445 = vld [vmem:[#allocation10 + $0x670] sm:$0xff]
    %v8446 = vld [vmem:[#allocation10 + $0x678] sm:$0xff]
    %v8447 = vld [vmem:[#allocation10 + $0x680] sm:$0xff]
    %v8448 = vld [vmem:[#allocation10 + $0x688] sm:$0xff]
    %v8449 = vld [vmem:[#allocation10 + $0x690] sm:$0xff]
    %v8450 = vld [vmem:[#allocation10 + $0x698] sm:$0xff]
    %v8451 = vld [vmem:[#allocation10 + $0x6a0] sm:$0xff]
    %v8452 = vld [vmem:[#allocation10 + $0x6a8] sm:$0xff]
    %v8453 = vld [vmem:[#allocation10 + $0x6b0] sm:$0xff]
    %v8454 = vld [vmem:[#allocation10 + $0x6b8] sm:$0xff]
    %v8455 = vld [vmem:[#allocation10 + $0x6c0] sm:$0xff]
    %v8456 = vld [vmem:[#allocation10 + $0x6c8] sm:$0xff]
    %v8457 = vld [vmem:[#allocation10 + $0x6d0] sm:$0xff]
    %v8458 = vld [vmem:[#allocation10 + $0x6d8] sm:$0xff]
    %v8459 = vld [vmem:[#allocation10 + $0x6e0] sm:$0xff]
    %v8460 = vld [vmem:[#allocation10 + $0x6e8] sm:$0xff]
    %v8461 = vld [vmem:[#allocation10 + $0x6f0] sm:$0xff]
    %v8462 = vld [vmem:[#allocation10 + $0x6f8] sm:$0xff]
    %v8463 = vld [vmem:[#allocation10 + $0x700] sm:$0xff]
    %v8464 = vld [vmem:[#allocation10 + $0x708] sm:$0xff]
    %v8465 = vld [vmem:[#allocation10 + $0x710] sm:$0xff]
    %v8466 = vld [vmem:[#allocation10 + $0x718] sm:$0xff]
    %v8467 = vld [vmem:[#allocation10 + $0x720] sm:$0xff]
    %v8468 = vld [vmem:[#allocation10 + $0x728] sm:$0xff]
    %v8469 = vld [vmem:[#allocation10 + $0x730] sm:$0xff]
    %v8470 = vld [vmem:[#allocation10 + $0x738] sm:$0xff]
    %v8471 = vld [vmem:[#allocation10 + $0x740] sm:$0xff]
    %v8472 = vld [vmem:[#allocation10 + $0x748] sm:$0xff]
    %v8473 = vld [vmem:[#allocation10 + $0x750] sm:$0xff]
    %v8474 = vld [vmem:[#allocation10 + $0x758] sm:$0xff]
    %v8475 = vld [vmem:[#allocation10 + $0x760] sm:$0xff]
    %v8476 = vld [vmem:[#allocation10 + $0x768] sm:$0xff]
    %v8477 = vld [vmem:[#allocation10 + $0x770] sm:$0xff]
    %v8478 = vld [vmem:[#allocation10 + $0x778] sm:$0xff]
    %v8479 = vld [vmem:[#allocation10 + $0x780] sm:$0xff]
    %v8480 = vld [vmem:[#allocation10 + $0x788] sm:$0xff]
    %v8481 = vld [vmem:[#allocation10 + $0x790] sm:$0xff]
    %v8482 = vld [vmem:[#allocation10 + $0x798] sm:$0xff]
    %v8483 = vld [vmem:[#allocation10 + $0x7a0] sm:$0xff]
    %v8484 = vld [vmem:[#allocation10 + $0x7a8] sm:$0xff]
    %v8485 = vld [vmem:[#allocation10 + $0x7b0] sm:$0xff]
    %v8486 = vld [vmem:[#allocation10 + $0x7b8] sm:$0xff]
    %v8487 = vld [vmem:[#allocation10 + $0x7c0] sm:$0xff]
    %v8488 = vld [vmem:[#allocation10 + $0x7c8] sm:$0xff]
    %v8489 = vld [vmem:[#allocation10 + $0x7d0] sm:$0xff]
    %v8490 = vld [vmem:[#allocation10 + $0x7d8] sm:$0xff]
    %v8491 = vld [vmem:[#allocation10 + $0x7e0] sm:$0xff]
    %v8492 = vld [vmem:[#allocation10 + $0x7e8] sm:$0xff]
    %v8493 = vld [vmem:[#allocation10 + $0x7f0] sm:$0xff]
    %v8494 = vld [vmem:[#allocation10 + $0x7f8] sm:$0xff]
    %v8495 = vld [vmem:[#allocation10 + $0x800] sm:$0xff]
    %v8496 = vld [vmem:[#allocation10 + $0x808] sm:$0xff]
    %v8497 = vld [vmem:[#allocation10 + $0x810] sm:$0xff]
    %v8498 = vld [vmem:[#allocation10 + $0x818] sm:$0xff]
    %v8499 = vld [vmem:[#allocation10 + $0x820] sm:$0xff]
    %v8500 = vld [vmem:[#allocation10 + $0x828] sm:$0xff]
    %v8501 = vld [vmem:[#allocation10 + $0x830] sm:$0xff]
    %v8502 = vld [vmem:[#allocation10 + $0x838] sm:$0xff]
    %v8503 = vld [vmem:[#allocation10 + $0x840] sm:$0xff]
    %v8504 = vld [vmem:[#allocation10 + $0x848] sm:$0xff]
    %v8505 = vld [vmem:[#allocation10 + $0x850] sm:$0xff]
    %v8506 = vld [vmem:[#allocation10 + $0x858] sm:$0xff]
    %v8507 = vld [vmem:[#allocation10 + $0x860] sm:$0xff]
    %v8508 = vld [vmem:[#allocation10 + $0x868] sm:$0xff]
    %v8509 = vld [vmem:[#allocation10 + $0x870] sm:$0xff]
    %v8510 = vld [vmem:[#allocation10 + $0x878] sm:$0xff]
    %v8511 = vld [vmem:[#allocation10 + $0x880] sm:$0xff]
    %v8512 = vld [vmem:[#allocation10 + $0x888] sm:$0xff]
    %v8513 = vld [vmem:[#allocation10 + $0x890] sm:$0xff]
    %v8514 = vld [vmem:[#allocation10 + $0x898] sm:$0xff]
    %v8515 = vld [vmem:[#allocation10 + $0x8a0] sm:$0xff]
    %v8516 = vld [vmem:[#allocation10 + $0x8a8] sm:$0xff]
    %v8517 = vld [vmem:[#allocation10 + $0x8b0] sm:$0xff]
    %v8518 = vld [vmem:[#allocation10 + $0x8b8] sm:$0xff]
    %v8519 = vld [vmem:[#allocation10 + $0x8c0] sm:$0xff]
    %v8520 = vld [vmem:[#allocation10 + $0x8c8] sm:$0xff]
    %v8521 = vld [vmem:[#allocation10 + $0x8d0] sm:$0xff]
    %v8522 = vld [vmem:[#allocation10 + $0x8d8] sm:$0xff]
    %v8523 = vld [vmem:[#allocation10 + $0x8e0] sm:$0xff]
    %v8524 = vld [vmem:[#allocation10 + $0x8e8] sm:$0xff]
    %v8525 = vld [vmem:[#allocation10 + $0x8f0] sm:$0xff]
    %v8526 = vld [vmem:[#allocation10 + $0x8f8] sm:$0xff]
    %v8527 = vld [vmem:[#allocation10 + $0x900] sm:$0xff]
    %v8528 = vld [vmem:[#allocation10 + $0x908] sm:$0xff]
    %v8529 = vld [vmem:[#allocation10 + $0x910] sm:$0xff]
    %v8530 = vld [vmem:[#allocation10 + $0x918] sm:$0xff]
    %v8531 = vld [vmem:[#allocation10 + $0x920] sm:$0xff]
    %v8532 = vld [vmem:[#allocation10 + $0x928] sm:$0xff]
    %v8533 = vld [vmem:[#allocation10 + $0x930] sm:$0xff]
    %v8534 = vld [vmem:[#allocation10 + $0x938] sm:$0xff]
    %v8535 = vld [vmem:[#allocation10 + $0x940] sm:$0xff]
    %v8536 = vld [vmem:[#allocation10 + $0x948] sm:$0xff]
    %v8537 = vld [vmem:[#allocation10 + $0x950] sm:$0xff]
    %v8538 = vld [vmem:[#allocation10 + $0x958] sm:$0xff]
    %v8539 = vld [vmem:[#allocation10 + $0x960] sm:$0xff]
    %v8540 = vld [vmem:[#allocation10 + $0x968] sm:$0xff]
    %v8541 = vld [vmem:[#allocation10 + $0x970] sm:$0xff]
    %v8542 = vld [vmem:[#allocation10 + $0x978] sm:$0xff]
    %v8543 = vld [vmem:[#allocation10 + $0x980] sm:$0xff]
    %v8544 = vld [vmem:[#allocation10 + $0x988] sm:$0xff]
    %v8545 = vld [vmem:[#allocation10 + $0x990] sm:$0xff]
    %v8546 = vld [vmem:[#allocation10 + $0x998] sm:$0xff]
    %v8547 = vld [vmem:[#allocation10 + $0x9a0] sm:$0xff]
    %v8548 = vld [vmem:[#allocation10 + $0x9a8] sm:$0xff]
    %v8549 = vld [vmem:[#allocation10 + $0x9b0] sm:$0xff]
    %v8550 = vld [vmem:[#allocation10 + $0x9b8] sm:$0xff]
    %v8551 = vld [vmem:[#allocation10 + $0x9c0] sm:$0xff]
    %v8552 = vld [vmem:[#allocation10 + $0x9c8] sm:$0xff]
    %v8553 = vld [vmem:[#allocation10 + $0x9d0] sm:$0xff]
    %v8554 = vld [vmem:[#allocation10 + $0x9d8] sm:$0xff]
    %v8555 = vld [vmem:[#allocation10 + $0x9e0] sm:$0xff]
    %v8556 = vld [vmem:[#allocation10 + $0x9e8] sm:$0xff]
    %v8557 = vld [vmem:[#allocation10 + $0x9f0] sm:$0xff]
    %v8558 = vld [vmem:[#allocation10 + $0x9f8] sm:$0xff]
    %v8559 = vld [vmem:[#allocation10 + $0xa00] sm:$0xff]
    %v8560 = vld [vmem:[#allocation10 + $0xa08] sm:$0xff]
    %v8561 = vld [vmem:[#allocation10 + $0xa10] sm:$0xff]
    %v8562 = vld [vmem:[#allocation10 + $0xa18] sm:$0xff]
    %v8563 = vld [vmem:[#allocation10 + $0xa20] sm:$0xff]
    %v8564 = vld [vmem:[#allocation10 + $0xa28] sm:$0xff]
    %v8565 = vld [vmem:[#allocation10 + $0xa30] sm:$0xff]
    %v8566 = vld [vmem:[#allocation10 + $0xa38] sm:$0xff]
    %v8567 = vld [vmem:[#allocation10 + $0xa40] sm:$0xff]
    %v8568 = vld [vmem:[#allocation10 + $0xa48] sm:$0xff]
    %v8569 = vld [vmem:[#allocation10 + $0xa50] sm:$0xff]
    %v8570 = vld [vmem:[#allocation10 + $0xa58] sm:$0xff]
    %v8571 = vld [vmem:[#allocation10 + $0xa60] sm:$0xff]
    %v8572 = vld [vmem:[#allocation10 + $0xa68] sm:$0xff]
    %v8573 = vld [vmem:[#allocation10 + $0xa70] sm:$0xff]
    %v8574 = vld [vmem:[#allocation10 + $0xa78] sm:$0xff]
    %v8575 = vld [vmem:[#allocation10 + $0xa80] sm:$0xff]
    %v8576 = vld [vmem:[#allocation10 + $0xa88] sm:$0xff]
    %v8577 = vld [vmem:[#allocation10 + $0xa90] sm:$0xff]
    %v8578 = vld [vmem:[#allocation10 + $0xa98] sm:$0xff]
    %v8579 = vld [vmem:[#allocation10 + $0xaa0] sm:$0xff]
    %v8580 = vld [vmem:[#allocation10 + $0xaa8] sm:$0xff]
    %v8581 = vld [vmem:[#allocation10 + $0xab0] sm:$0xff]
    %v8582 = vld [vmem:[#allocation10 + $0xab8] sm:$0xff]
    %v8583 = vld [vmem:[#allocation10 + $0xac0] sm:$0xff]
    %v8584 = vld [vmem:[#allocation10 + $0xac8] sm:$0xff]
    %v8585 = vld [vmem:[#allocation10 + $0xad0] sm:$0xff]
    %v8586 = vld [vmem:[#allocation10 + $0xad8] sm:$0xff]
    %v8587 = vld [vmem:[#allocation10 + $0xae0] sm:$0xff]
    %v8588 = vld [vmem:[#allocation10 + $0xae8] sm:$0xff]
    %v8589 = vld [vmem:[#allocation10 + $0xaf0] sm:$0xff]
    %v8590 = vld [vmem:[#allocation10 + $0xaf8] sm:$0xff]
    %v8591 = vld [vmem:[#allocation10 + $0xb00] sm:$0xff]
    %v8592 = vld [vmem:[#allocation10 + $0xb08] sm:$0xff]
    %v8593 = vld [vmem:[#allocation10 + $0xb10] sm:$0xff]
    %v8594 = vld [vmem:[#allocation10 + $0xb18] sm:$0xff]
    %v8595 = vld [vmem:[#allocation10 + $0xb20] sm:$0xff]
    %v8596 = vld [vmem:[#allocation10 + $0xb28] sm:$0xff]
    %v8597 = vld [vmem:[#allocation10 + $0xb30] sm:$0xff]
    %v8598 = vld [vmem:[#allocation10 + $0xb38] sm:$0xff]
    %v8599 = vld [vmem:[#allocation10 + $0xb40] sm:$0xff]
    %v8600 = vld [vmem:[#allocation10 + $0xb48] sm:$0xff]
    %v8601 = vld [vmem:[#allocation10 + $0xb50] sm:$0xff]
    %v8602 = vld [vmem:[#allocation10 + $0xb58] sm:$0xff]
    %v8603 = vld [vmem:[#allocation10 + $0xb60] sm:$0xff]
    %v8604 = vld [vmem:[#allocation10 + $0xb68] sm:$0xff]
    %v8605 = vld [vmem:[#allocation10 + $0xb70] sm:$0xff]
    %v8606 = vld [vmem:[#allocation10 + $0xb78] sm:$0xff]
    %v8607 = vld [vmem:[#allocation10 + $0xb80] sm:$0xff]
    %v8608 = vld [vmem:[#allocation10 + $0xb88] sm:$0xff]
    %v8609 = vld [vmem:[#allocation10 + $0xb90] sm:$0xff]
    %v8610 = vld [vmem:[#allocation10 + $0xb98] sm:$0xff]
    %v8611 = vld [vmem:[#allocation10 + $0xba0] sm:$0xff]
    %v8612 = vld [vmem:[#allocation10 + $0xba8] sm:$0xff]
    %v8613 = vld [vmem:[#allocation10 + $0xbb0] sm:$0xff]
    %v8614 = vld [vmem:[#allocation10 + $0xbb8] sm:$0xff]
    %v8615 = vld [vmem:[#allocation10 + $0xbc0] sm:$0xff]
    %v8616 = vld [vmem:[#allocation10 + $0xbc8] sm:$0xff]
    %v8617 = vld [vmem:[#allocation10 + $0xbd0] sm:$0xff]
    %v8618 = vld [vmem:[#allocation10 + $0xbd8] sm:$0xff]
    %v8619 = vld [vmem:[#allocation10 + $0xbe0] sm:$0xff]
    %v8620 = vld [vmem:[#allocation10 + $0xbe8] sm:$0xff]
    %v8621 = vld [vmem:[#allocation10 + $0xbf0] sm:$0xff]
    %v8622 = vld [vmem:[#allocation10 + $0xbf8] sm:$0xff]
    %v8623 = vld [vmem:[#allocation10 + $0xc00] sm:$0xff]
    %v8624 = vld [vmem:[#allocation10 + $0xc08] sm:$0xff]
    %v8625 = vld [vmem:[#allocation10 + $0xc10] sm:$0xff]
    %v8626 = vld [vmem:[#allocation10 + $0xc18] sm:$0xff]
    %v8627 = vld [vmem:[#allocation10 + $0xc20] sm:$0xff]
    %v8628 = vld [vmem:[#allocation10 + $0xc28] sm:$0xff]
    %v8629 = vld [vmem:[#allocation10 + $0xc30] sm:$0xff]
    %v8630 = vld [vmem:[#allocation10 + $0xc38] sm:$0xff]
    %v8631 = vld [vmem:[#allocation10 + $0xc40] sm:$0xff]
    %v8632 = vld [vmem:[#allocation10 + $0xc48] sm:$0xff]
    %v8633 = vld [vmem:[#allocation10 + $0xc50] sm:$0xff]
    %v8634 = vld [vmem:[#allocation10 + $0xc58] sm:$0xff]
    %v8635 = vld [vmem:[#allocation10 + $0xc60] sm:$0xff]
    %v8636 = vld [vmem:[#allocation10 + $0xc68] sm:$0xff]
    %v8637 = vld [vmem:[#allocation10 + $0xc70] sm:$0xff]
    %v8638 = vld [vmem:[#allocation10 + $0xc78] sm:$0xff]
    %v8639 = vld [vmem:[#allocation10 + $0xc80] sm:$0xff]
    %v8640 = vld [vmem:[#allocation10 + $0xc88] sm:$0xff]
    %v8641 = vld [vmem:[#allocation10 + $0xc90] sm:$0xff]
    %v8642 = vld [vmem:[#allocation10 + $0xc98] sm:$0xff]
    %v8643 = vld [vmem:[#allocation10 + $0xca0] sm:$0xff]
    %v8644 = vld [vmem:[#allocation10 + $0xca8] sm:$0xff]
    %v8645 = vld [vmem:[#allocation10 + $0xcb0] sm:$0xff]
    %v8646 = vld [vmem:[#allocation10 + $0xcb8] sm:$0xff]
    %v8647 = vld [vmem:[#allocation10 + $0xcc0] sm:$0xff]
    %v8648 = vld [vmem:[#allocation10 + $0xcc8] sm:$0xff]
    %v8649 = vld [vmem:[#allocation10 + $0xcd0] sm:$0xff]
    %v8650 = vld [vmem:[#allocation10 + $0xcd8] sm:$0xff]
    %v8651 = vld [vmem:[#allocation10 + $0xce0] sm:$0xff]
    %v8652 = vld [vmem:[#allocation10 + $0xce8] sm:$0xff]
    %v8653 = vld [vmem:[#allocation10 + $0xcf0] sm:$0xff]
    %v8654 = vld [vmem:[#allocation10 + $0xcf8] sm:$0xff]
    %v8655 = vld [vmem:[#allocation10 + $0xd00] sm:$0xff]
    %v8656 = vld [vmem:[#allocation10 + $0xd08] sm:$0xff]
    %v8657 = vld [vmem:[#allocation10 + $0xd10] sm:$0xff]
    %v8658 = vld [vmem:[#allocation10 + $0xd18] sm:$0xff]
    %v8659 = vld [vmem:[#allocation10 + $0xd20] sm:$0xff]
    %v8660 = vld [vmem:[#allocation10 + $0xd28] sm:$0xff]
    %v8661 = vld [vmem:[#allocation10 + $0xd30] sm:$0xff]
    %v8662 = vld [vmem:[#allocation10 + $0xd38] sm:$0xff]
    %v8663 = vld [vmem:[#allocation10 + $0xd40] sm:$0xff]
    %v8664 = vld [vmem:[#allocation10 + $0xd48] sm:$0xff]
    %v8665 = vld [vmem:[#allocation10 + $0xd50] sm:$0xff]
    %v8666 = vld [vmem:[#allocation10 + $0xd58] sm:$0xff]
    %v8667 = vld [vmem:[#allocation10 + $0xd60] sm:$0xff]
    %v8668 = vld [vmem:[#allocation10 + $0xd68] sm:$0xff]
    %v8669 = vld [vmem:[#allocation10 + $0xd70] sm:$0xff]
    %v8670 = vld [vmem:[#allocation10 + $0xd78] sm:$0xff]
    %v8671 = vld [vmem:[#allocation10 + $0xd80] sm:$0xff]
    %v8672 = vld [vmem:[#allocation10 + $0xd88] sm:$0xff]
    %v8673 = vld [vmem:[#allocation10 + $0xd90] sm:$0xff]
    %v8674 = vld [vmem:[#allocation10 + $0xd98] sm:$0xff]
    %v8675 = vld [vmem:[#allocation10 + $0xda0] sm:$0xff]
    %v8676 = vld [vmem:[#allocation10 + $0xda8] sm:$0xff]
    %v8677 = vld [vmem:[#allocation10 + $0xdb0] sm:$0xff]
    %v8678 = vld [vmem:[#allocation10 + $0xdb8] sm:$0xff]
    %v8679 = vld [vmem:[#allocation10 + $0xdc0] sm:$0xff]
    %v8680 = vld [vmem:[#allocation10 + $0xdc8] sm:$0xff]
    %v8681 = vld [vmem:[#allocation10 + $0xdd0] sm:$0xff]
    %v8682 = vld [vmem:[#allocation10 + $0xdd8] sm:$0xff]
    %v8683 = vld [vmem:[#allocation10 + $0xde0] sm:$0xff]
    %v8684 = vld [vmem:[#allocation10 + $0xde8] sm:$0xff]
    %v8685 = vld [vmem:[#allocation10 + $0xdf0] sm:$0xff]
    %v8686 = vld [vmem:[#allocation10 + $0xdf8] sm:$0xff]
    %v8687 = vld [vmem:[#allocation10 + $0xe00] sm:$0xff]
    %v8688 = vld [vmem:[#allocation10 + $0xe08] sm:$0xff]
    %v8689 = vld [vmem:[#allocation10 + $0xe10] sm:$0xff]
    %v8690 = vld [vmem:[#allocation10 + $0xe18] sm:$0xff]
    %v8691 = vld [vmem:[#allocation10 + $0xe20] sm:$0xff]
    %v8692 = vld [vmem:[#allocation10 + $0xe28] sm:$0xff]
    %v8693 = vld [vmem:[#allocation10 + $0xe30] sm:$0xff]
    %v8694 = vld [vmem:[#allocation10 + $0xe38] sm:$0xff]
    %v8695 = vld [vmem:[#allocation10 + $0xe40] sm:$0xff]
    %v8696 = vld [vmem:[#allocation10 + $0xe48] sm:$0xff]
    %v8697 = vld [vmem:[#allocation10 + $0xe50] sm:$0xff]
    %v8698 = vld [vmem:[#allocation10 + $0xe58] sm:$0xff]
    %v8699 = vld [vmem:[#allocation10 + $0xe60] sm:$0xff]
    %v8700 = vld [vmem:[#allocation10 + $0xe68] sm:$0xff]
    %v8701 = vld [vmem:[#allocation10 + $0xe70] sm:$0xff]
    %v8702 = vld [vmem:[#allocation10 + $0xe78] sm:$0xff]
    %v8703 = vld [vmem:[#allocation10 + $0xe80] sm:$0xff]
    %v8704 = vld [vmem:[#allocation10 + $0xe88] sm:$0xff]
    %v8705 = vld [vmem:[#allocation10 + $0xe90] sm:$0xff]
    %v8706 = vld [vmem:[#allocation10 + $0xe98] sm:$0xff]
    %v8707 = vld [vmem:[#allocation10 + $0xea0] sm:$0xff]
    %v8708 = vld [vmem:[#allocation10 + $0xea8] sm:$0xff]
    %v8709 = vld [vmem:[#allocation10 + $0xeb0] sm:$0xff]
    %v8710 = vld [vmem:[#allocation10 + $0xeb8] sm:$0xff]
    %v8711 = vld [vmem:[#allocation10 + $0xec0] sm:$0xff]
    %v8712 = vld [vmem:[#allocation10 + $0xec8] sm:$0xff]
    %v8713 = vld [vmem:[#allocation10 + $0xed0] sm:$0xff]
    %v8714 = vld [vmem:[#allocation10 + $0xed8] sm:$0xff]
    %v8715 = vld [vmem:[#allocation10 + $0xee0] sm:$0xff]
    %v8716 = vld [vmem:[#allocation10 + $0xee8] sm:$0xff]
    %v8717 = vld [vmem:[#allocation10 + $0xef0] sm:$0xff]
    %v8718 = vld [vmem:[#allocation10 + $0xef8] sm:$0xff]
    %v8719 = vld [vmem:[#allocation10 + $0xf00] sm:$0xff]
    %v8720 = vld [vmem:[#allocation10 + $0xf08] sm:$0xff]
    %v8721 = vld [vmem:[#allocation10 + $0xf10] sm:$0xff]
    %v8722 = vld [vmem:[#allocation10 + $0xf18] sm:$0xff]
    %v8723 = vld [vmem:[#allocation10 + $0xf20] sm:$0xff]
    %v8724 = vld [vmem:[#allocation10 + $0xf28] sm:$0xff]
    %v8725 = vld [vmem:[#allocation10 + $0xf30] sm:$0xff]
    %v8726 = vld [vmem:[#allocation10 + $0xf38] sm:$0xff]
    %v8727 = vld [vmem:[#allocation10 + $0xf40] sm:$0xff]
    %v8728 = vld [vmem:[#allocation10 + $0xf48] sm:$0xff]
    %v8729 = vld [vmem:[#allocation10 + $0xf50] sm:$0xff]
    %v8730 = vld [vmem:[#allocation10 + $0xf58] sm:$0xff]
    %v8731 = vld [vmem:[#allocation10 + $0xf60] sm:$0xff]
    %v8732 = vld [vmem:[#allocation10 + $0xf68] sm:$0xff]
    %v8733 = vld [vmem:[#allocation10 + $0xf70] sm:$0xff]
    %v8734 = vld [vmem:[#allocation10 + $0xf78] sm:$0xff]
    %v8735 = vld [vmem:[#allocation10 + $0xf80] sm:$0xff]
    %v8736 = vld [vmem:[#allocation10 + $0xf88] sm:$0xff]
    %v8737 = vld [vmem:[#allocation10 + $0xf90] sm:$0xff]
    %v8738 = vld [vmem:[#allocation10 + $0xf98] sm:$0xff]
    %v8739 = vld [vmem:[#allocation10 + $0xfa0] sm:$0xff]
    %v8740 = vld [vmem:[#allocation10 + $0xfa8] sm:$0xff]
    %v8741 = vld [vmem:[#allocation10 + $0xfb0] sm:$0xff]
    %v8742 = vld [vmem:[#allocation10 + $0xfb8] sm:$0xff]
    %v8743 = vld [vmem:[#allocation10 + $0xfc0] sm:$0xff]
    %v8744 = vld [vmem:[#allocation10 + $0xfc8] sm:$0xff]
    %v8745 = vld [vmem:[#allocation10 + $0xfd0] sm:$0xff]
    %v8746 = vld [vmem:[#allocation10 + $0xfd8] sm:$0xff]
    %v8747 = vld [vmem:[#allocation10 + $0xfe0] sm:$0xff]
    %v8748 = vld [vmem:[#allocation10 + $0xfe8] sm:$0xff]
    %v8749 = vld [vmem:[#allocation10 + $0xff0] sm:$0xff]
    %v8750 = vld [vmem:[#allocation10 + $0xff8] sm:$0xff]
    %v8751 = vld [vmem:[#allocation12] sm:$0xff]
    %v8753 = vperm.slane %v8751, 0
    %v8754 = vperm.slane %v8751, 1
    %v8755 = vperm.slane %v8751, 2
    %v8756 = vperm.slane %v8751, 3
    %v8757 = vperm.slane %v8751, 4
    %v8758 = vperm.slane %v8751, 5
    %v8759 = vperm.slane %v8751, 6
    %v8760 = vperm.slane %v8751, 7
    %v9281 = vunpack.c.l.b16 %v8239
    %v9282 = vunpack.c.h.b16 %v8239
    %v9283 = vunpack.c.l.b16 %v8240
    %v9284 = vunpack.c.h.b16 %v8240
    %v9285 = vunpack.c.l.b16 %v8241
    %v9286 = vunpack.c.h.b16 %v8241
    %v9287 = vunpack.c.l.b16 %v8242
    %v9288 = vunpack.c.h.b16 %v8242
    %v9289 = vunpack.c.l.b16 %v8243
    %v9290 = vunpack.c.h.b16 %v8243
    %v9291 = vunpack.c.l.b16 %v8244
    %v9292 = vunpack.c.h.b16 %v8244
    %v9293 = vunpack.c.l.b16 %v8245
    %v9294 = vunpack.c.h.b16 %v8245
    %v9295 = vunpack.c.l.b16 %v8246
    %v9296 = vunpack.c.h.b16 %v8246
    %v9297 = vunpack.c.l.b16 %v8247
    %v9298 = vunpack.c.h.b16 %v8247
    %v9299 = vunpack.c.l.b16 %v8248
    %v9300 = vunpack.c.h.b16 %v8248
    %v9301 = vunpack.c.l.b16 %v8249
    %v9302 = vunpack.c.h.b16 %v8249
    %v9303 = vunpack.c.l.b16 %v8250
    %v9304 = vunpack.c.h.b16 %v8250
    %v9305 = vunpack.c.l.b16 %v8251
    %v9306 = vunpack.c.h.b16 %v8251
    %v9307 = vunpack.c.l.b16 %v8252
    %v9308 = vunpack.c.h.b16 %v8252
    %v9309 = vunpack.c.l.b16 %v8253
    %v9310 = vunpack.c.h.b16 %v8253
    %v9311 = vunpack.c.l.b16 %v8254
    %v9312 = vunpack.c.h.b16 %v8254
    %v9313 = vunpack.c.l.b16 %v8255
    %v9314 = vunpack.c.h.b16 %v8255
    %v9315 = vunpack.c.l.b16 %v8256
    %v9316 = vunpack.c.h.b16 %v8256
    %v9317 = vunpack.c.l.b16 %v8257
    %v9318 = vunpack.c.h.b16 %v8257
    %v9319 = vunpack.c.l.b16 %v8258
    %v9320 = vunpack.c.h.b16 %v8258
    %v9321 = vunpack.c.l.b16 %v8259
    %v9322 = vunpack.c.h.b16 %v8259
    %v9323 = vunpack.c.l.b16 %v8260
    %v9324 = vunpack.c.h.b16 %v8260
    %v9325 = vunpack.c.l.b16 %v8261
    %v9326 = vunpack.c.h.b16 %v8261
    %v9327 = vunpack.c.l.b16 %v8262
    %v9328 = vunpack.c.h.b16 %v8262
    %v9329 = vunpack.c.l.b16 %v8263
    %v9330 = vunpack.c.h.b16 %v8263
    %v9331 = vunpack.c.l.b16 %v8264
    %v9332 = vunpack.c.h.b16 %v8264
    %v9333 = vunpack.c.l.b16 %v8265
    %v9334 = vunpack.c.h.b16 %v8265
    %v9335 = vunpack.c.l.b16 %v8266
    %v9336 = vunpack.c.h.b16 %v8266
    %v9337 = vunpack.c.l.b16 %v8267
    %v9338 = vunpack.c.h.b16 %v8267
    %v9339 = vunpack.c.l.b16 %v8268
    %v9340 = vunpack.c.h.b16 %v8268
    %v9341 = vunpack.c.l.b16 %v8269
    %v9342 = vunpack.c.h.b16 %v8269
    %v9343 = vunpack.c.l.b16 %v8270
    %v9344 = vunpack.c.h.b16 %v8270
    %v9345 = vunpack.c.l.b16 %v8271
    %v9346 = vunpack.c.h.b16 %v8271
    %v9347 = vunpack.c.l.b16 %v8272
    %v9348 = vunpack.c.h.b16 %v8272
    %v9349 = vunpack.c.l.b16 %v8273
    %v9350 = vunpack.c.h.b16 %v8273
    %v9351 = vunpack.c.l.b16 %v8274
    %v9352 = vunpack.c.h.b16 %v8274
    %v9353 = vunpack.c.l.b16 %v8275
    %v9354 = vunpack.c.h.b16 %v8275
    %v9355 = vunpack.c.l.b16 %v8276
    %v9356 = vunpack.c.h.b16 %v8276
    %v9357 = vunpack.c.l.b16 %v8277
    %v9358 = vunpack.c.h.b16 %v8277
    %v9359 = vunpack.c.l.b16 %v8278
    %v9360 = vunpack.c.h.b16 %v8278
    %v9361 = vunpack.c.l.b16 %v8279
    %v9362 = vunpack.c.h.b16 %v8279
    %v9363 = vunpack.c.l.b16 %v8280
    %v9364 = vunpack.c.h.b16 %v8280
    %v9365 = vunpack.c.l.b16 %v8281
    %v9366 = vunpack.c.h.b16 %v8281
    %v9367 = vunpack.c.l.b16 %v8282
    %v9368 = vunpack.c.h.b16 %v8282
    %v9369 = vunpack.c.l.b16 %v8283
    %v9370 = vunpack.c.h.b16 %v8283
    %v9371 = vunpack.c.l.b16 %v8284
    %v9372 = vunpack.c.h.b16 %v8284
    %v9373 = vunpack.c.l.b16 %v8285
    %v9374 = vunpack.c.h.b16 %v8285
    %v9375 = vunpack.c.l.b16 %v8286
    %v9376 = vunpack.c.h.b16 %v8286
    %v9377 = vunpack.c.l.b16 %v8287
    %v9378 = vunpack.c.h.b16 %v8287
    %v9379 = vunpack.c.l.b16 %v8288
    %v9380 = vunpack.c.h.b16 %v8288
    %v9381 = vunpack.c.l.b16 %v8289
    %v9382 = vunpack.c.h.b16 %v8289
    %v9383 = vunpack.c.l.b16 %v8290
    %v9384 = vunpack.c.h.b16 %v8290
    %v9385 = vunpack.c.l.b16 %v8291
    %v9386 = vunpack.c.h.b16 %v8291
    %v9387 = vunpack.c.l.b16 %v8292
    %v9388 = vunpack.c.h.b16 %v8292
    %v9389 = vunpack.c.l.b16 %v8293
    %v9390 = vunpack.c.h.b16 %v8293
    %v9391 = vunpack.c.l.b16 %v8294
    %v9392 = vunpack.c.h.b16 %v8294
    %v9393 = vunpack.c.l.b16 %v8295
    %v9394 = vunpack.c.h.b16 %v8295
    %v9395 = vunpack.c.l.b16 %v8296
    %v9396 = vunpack.c.h.b16 %v8296
    %v9397 = vunpack.c.l.b16 %v8297
    %v9398 = vunpack.c.h.b16 %v8297
    %v9399 = vunpack.c.l.b16 %v8298
    %v9400 = vunpack.c.h.b16 %v8298
    %v9401 = vunpack.c.l.b16 %v8299
    %v9402 = vunpack.c.h.b16 %v8299
    %v9403 = vunpack.c.l.b16 %v8300
    %v9404 = vunpack.c.h.b16 %v8300
    %v9405 = vunpack.c.l.b16 %v8301
    %v9406 = vunpack.c.h.b16 %v8301
    %v9407 = vunpack.c.l.b16 %v8302
    %v9408 = vunpack.c.h.b16 %v8302
    %v9409 = vunpack.c.l.b16 %v8303
    %v9410 = vunpack.c.h.b16 %v8303
    %v9411 = vunpack.c.l.b16 %v8304
    %v9412 = vunpack.c.h.b16 %v8304
    %v9413 = vunpack.c.l.b16 %v8305
    %v9414 = vunpack.c.h.b16 %v8305
    %v9415 = vunpack.c.l.b16 %v8306
    %v9416 = vunpack.c.h.b16 %v8306
    %v9417 = vunpack.c.l.b16 %v8307
    %v9418 = vunpack.c.h.b16 %v8307
    %v9419 = vunpack.c.l.b16 %v8308
    %v9420 = vunpack.c.h.b16 %v8308
    %v9421 = vunpack.c.l.b16 %v8309
    %v9422 = vunpack.c.h.b16 %v8309
    %v9423 = vunpack.c.l.b16 %v8310
    %v9424 = vunpack.c.h.b16 %v8310
    %v9425 = vunpack.c.l.b16 %v8311
    %v9426 = vunpack.c.h.b16 %v8311
    %v9427 = vunpack.c.l.b16 %v8312
    %v9428 = vunpack.c.h.b16 %v8312
    %v9429 = vunpack.c.l.b16 %v8313
    %v9430 = vunpack.c.h.b16 %v8313
    %v9431 = vunpack.c.l.b16 %v8314
    %v9432 = vunpack.c.h.b16 %v8314
    %v9433 = vunpack.c.l.b16 %v8315
    %v9434 = vunpack.c.h.b16 %v8315
    %v9435 = vunpack.c.l.b16 %v8316
    %v9436 = vunpack.c.h.b16 %v8316
    %v9437 = vunpack.c.l.b16 %v8317
    %v9438 = vunpack.c.h.b16 %v8317
    %v9439 = vunpack.c.l.b16 %v8318
    %v9440 = vunpack.c.h.b16 %v8318
    %v9441 = vunpack.c.l.b16 %v8319
    %v9442 = vunpack.c.h.b16 %v8319
    %v9443 = vunpack.c.l.b16 %v8320
    %v9444 = vunpack.c.h.b16 %v8320
    %v9445 = vunpack.c.l.b16 %v8321
    %v9446 = vunpack.c.h.b16 %v8321
    %v9447 = vunpack.c.l.b16 %v8322
    %v9448 = vunpack.c.h.b16 %v8322
    %v9449 = vunpack.c.l.b16 %v8323
    %v9450 = vunpack.c.h.b16 %v8323
    %v9451 = vunpack.c.l.b16 %v8324
    %v9452 = vunpack.c.h.b16 %v8324
    %v9453 = vunpack.c.l.b16 %v8325
    %v9454 = vunpack.c.h.b16 %v8325
    %v9455 = vunpack.c.l.b16 %v8326
    %v9456 = vunpack.c.h.b16 %v8326
    %v9457 = vunpack.c.l.b16 %v8327
    %v9458 = vunpack.c.h.b16 %v8327
    %v9459 = vunpack.c.l.b16 %v8328
    %v9460 = vunpack.c.h.b16 %v8328
    %v9461 = vunpack.c.l.b16 %v8329
    %v9462 = vunpack.c.h.b16 %v8329
    %v9463 = vunpack.c.l.b16 %v8330
    %v9464 = vunpack.c.h.b16 %v8330
    %v9465 = vunpack.c.l.b16 %v8331
    %v9466 = vunpack.c.h.b16 %v8331
    %v9467 = vunpack.c.l.b16 %v8332
    %v9468 = vunpack.c.h.b16 %v8332
    %v9469 = vunpack.c.l.b16 %v8333
    %v9470 = vunpack.c.h.b16 %v8333
    %v9471 = vunpack.c.l.b16 %v8334
    %v9472 = vunpack.c.h.b16 %v8334
    %v9473 = vunpack.c.l.b16 %v8335
    %v9474 = vunpack.c.h.b16 %v8335
    %v9475 = vunpack.c.l.b16 %v8336
    %v9476 = vunpack.c.h.b16 %v8336
    %v9477 = vunpack.c.l.b16 %v8337
    %v9478 = vunpack.c.h.b16 %v8337
    %v9479 = vunpack.c.l.b16 %v8338
    %v9480 = vunpack.c.h.b16 %v8338
    %v9481 = vunpack.c.l.b16 %v8339
    %v9482 = vunpack.c.h.b16 %v8339
    %v9483 = vunpack.c.l.b16 %v8340
    %v9484 = vunpack.c.h.b16 %v8340
    %v9485 = vunpack.c.l.b16 %v8341
    %v9486 = vunpack.c.h.b16 %v8341
    %v9487 = vunpack.c.l.b16 %v8342
    %v9488 = vunpack.c.h.b16 %v8342
    %v9489 = vunpack.c.l.b16 %v8343
    %v9490 = vunpack.c.h.b16 %v8343
    %v9491 = vunpack.c.l.b16 %v8344
    %v9492 = vunpack.c.h.b16 %v8344
    %v9493 = vunpack.c.l.b16 %v8345
    %v9494 = vunpack.c.h.b16 %v8345
    %v9495 = vunpack.c.l.b16 %v8346
    %v9496 = vunpack.c.h.b16 %v8346
    %v9497 = vunpack.c.l.b16 %v8347
    %v9498 = vunpack.c.h.b16 %v8347
    %v9499 = vunpack.c.l.b16 %v8348
    %v9500 = vunpack.c.h.b16 %v8348
    %v9501 = vunpack.c.l.b16 %v8349
    %v9502 = vunpack.c.h.b16 %v8349
    %v9503 = vunpack.c.l.b16 %v8350
    %v9504 = vunpack.c.h.b16 %v8350
    %v9505 = vunpack.c.l.b16 %v8351
    %v9506 = vunpack.c.h.b16 %v8351
    %v9507 = vunpack.c.l.b16 %v8352
    %v9508 = vunpack.c.h.b16 %v8352
    %v9509 = vunpack.c.l.b16 %v8353
    %v9510 = vunpack.c.h.b16 %v8353
    %v9511 = vunpack.c.l.b16 %v8354
    %v9512 = vunpack.c.h.b16 %v8354
    %v9513 = vunpack.c.l.b16 %v8355
    %v9514 = vunpack.c.h.b16 %v8355
    %v9515 = vunpack.c.l.b16 %v8356
    %v9516 = vunpack.c.h.b16 %v8356
    %v9517 = vunpack.c.l.b16 %v8357
    %v9518 = vunpack.c.h.b16 %v8357
    %v9519 = vunpack.c.l.b16 %v8358
    %v9520 = vunpack.c.h.b16 %v8358
    %v9521 = vunpack.c.l.b16 %v8359
    %v9522 = vunpack.c.h.b16 %v8359
    %v9523 = vunpack.c.l.b16 %v8360
    %v9524 = vunpack.c.h.b16 %v8360
    %v9525 = vunpack.c.l.b16 %v8361
    %v9526 = vunpack.c.h.b16 %v8361
    %v9527 = vunpack.c.l.b16 %v8362
    %v9528 = vunpack.c.h.b16 %v8362
    %v9529 = vunpack.c.l.b16 %v8363
    %v9530 = vunpack.c.h.b16 %v8363
    %v9531 = vunpack.c.l.b16 %v8364
    %v9532 = vunpack.c.h.b16 %v8364
    %v9533 = vunpack.c.l.b16 %v8365
    %v9534 = vunpack.c.h.b16 %v8365
    %v9535 = vunpack.c.l.b16 %v8366
    %v9536 = vunpack.c.h.b16 %v8366
    %v9537 = vunpack.c.l.b16 %v8367
    %v9538 = vunpack.c.h.b16 %v8367
    %v9539 = vunpack.c.l.b16 %v8368
    %v9540 = vunpack.c.h.b16 %v8368
    %v9541 = vunpack.c.l.b16 %v8369
    %v9542 = vunpack.c.h.b16 %v8369
    %v9543 = vunpack.c.l.b16 %v8370
    %v9544 = vunpack.c.h.b16 %v8370
    %v9545 = vunpack.c.l.b16 %v8371
    %v9546 = vunpack.c.h.b16 %v8371
    %v9547 = vunpack.c.l.b16 %v8372
    %v9548 = vunpack.c.h.b16 %v8372
    %v9549 = vunpack.c.l.b16 %v8373
    %v9550 = vunpack.c.h.b16 %v8373
    %v9551 = vunpack.c.l.b16 %v8374
    %v9552 = vunpack.c.h.b16 %v8374
    %v9553 = vunpack.c.l.b16 %v8375
    %v9554 = vunpack.c.h.b16 %v8375
    %v9555 = vunpack.c.l.b16 %v8376
    %v9556 = vunpack.c.h.b16 %v8376
    %v9557 = vunpack.c.l.b16 %v8377
    %v9558 = vunpack.c.h.b16 %v8377
    %v9559 = vunpack.c.l.b16 %v8378
    %v9560 = vunpack.c.h.b16 %v8378
    %v9561 = vunpack.c.l.b16 %v8379
    %v9562 = vunpack.c.h.b16 %v8379
    %v9563 = vunpack.c.l.b16 %v8380
    %v9564 = vunpack.c.h.b16 %v8380
    %v9565 = vunpack.c.l.b16 %v8381
    %v9566 = vunpack.c.h.b16 %v8381
    %v9567 = vunpack.c.l.b16 %v8382
    %v9568 = vunpack.c.h.b16 %v8382
    %v9569 = vunpack.c.l.b16 %v8383
    %v9570 = vunpack.c.h.b16 %v8383
    %v9571 = vunpack.c.l.b16 %v8384
    %v9572 = vunpack.c.h.b16 %v8384
    %v9573 = vunpack.c.l.b16 %v8385
    %v9574 = vunpack.c.h.b16 %v8385
    %v9575 = vunpack.c.l.b16 %v8386
    %v9576 = vunpack.c.h.b16 %v8386
    %v9577 = vunpack.c.l.b16 %v8387
    %v9578 = vunpack.c.h.b16 %v8387
    %v9579 = vunpack.c.l.b16 %v8388
    %v9580 = vunpack.c.h.b16 %v8388
    %v9581 = vunpack.c.l.b16 %v8389
    %v9582 = vunpack.c.h.b16 %v8389
    %v9583 = vunpack.c.l.b16 %v8390
    %v9584 = vunpack.c.h.b16 %v8390
    %v9585 = vunpack.c.l.b16 %v8391
    %v9586 = vunpack.c.h.b16 %v8391
    %v9587 = vunpack.c.l.b16 %v8392
    %v9588 = vunpack.c.h.b16 %v8392
    %v9589 = vunpack.c.l.b16 %v8393
    %v9590 = vunpack.c.h.b16 %v8393
    %v9591 = vunpack.c.l.b16 %v8394
    %v9592 = vunpack.c.h.b16 %v8394
    %v9593 = vunpack.c.l.b16 %v8395
    %v9594 = vunpack.c.h.b16 %v8395
    %v9595 = vunpack.c.l.b16 %v8396
    %v9596 = vunpack.c.h.b16 %v8396
    %v9597 = vunpack.c.l.b16 %v8397
    %v9598 = vunpack.c.h.b16 %v8397
    %v9599 = vunpack.c.l.b16 %v8398
    %v9600 = vunpack.c.h.b16 %v8398
    %v9601 = vunpack.c.l.b16 %v8399
    %v9602 = vunpack.c.h.b16 %v8399
    %v9603 = vunpack.c.l.b16 %v8400
    %v9604 = vunpack.c.h.b16 %v8400
    %v9605 = vunpack.c.l.b16 %v8401
    %v9606 = vunpack.c.h.b16 %v8401
    %v9607 = vunpack.c.l.b16 %v8402
    %v9608 = vunpack.c.h.b16 %v8402
    %v9609 = vunpack.c.l.b16 %v8403
    %v9610 = vunpack.c.h.b16 %v8403
    %v9611 = vunpack.c.l.b16 %v8404
    %v9612 = vunpack.c.h.b16 %v8404
    %v9613 = vunpack.c.l.b16 %v8405
    %v9614 = vunpack.c.h.b16 %v8405
    %v9615 = vunpack.c.l.b16 %v8406
    %v9616 = vunpack.c.h.b16 %v8406
    %v9617 = vunpack.c.l.b16 %v8407
    %v9618 = vunpack.c.h.b16 %v8407
    %v9619 = vunpack.c.l.b16 %v8408
    %v9620 = vunpack.c.h.b16 %v8408
    %v9621 = vunpack.c.l.b16 %v8409
    %v9622 = vunpack.c.h.b16 %v8409
    %v9623 = vunpack.c.l.b16 %v8410
    %v9624 = vunpack.c.h.b16 %v8410
    %v9625 = vunpack.c.l.b16 %v8411
    %v9626 = vunpack.c.h.b16 %v8411
    %v9627 = vunpack.c.l.b16 %v8412
    %v9628 = vunpack.c.h.b16 %v8412
    %v9629 = vunpack.c.l.b16 %v8413
    %v9630 = vunpack.c.h.b16 %v8413
    %v9631 = vunpack.c.l.b16 %v8414
    %v9632 = vunpack.c.h.b16 %v8414
    %v9633 = vunpack.c.l.b16 %v8415
    %v9634 = vunpack.c.h.b16 %v8415
    %v9635 = vunpack.c.l.b16 %v8416
    %v9636 = vunpack.c.h.b16 %v8416
    %v9637 = vunpack.c.l.b16 %v8417
    %v9638 = vunpack.c.h.b16 %v8417
    %v9639 = vunpack.c.l.b16 %v8418
    %v9640 = vunpack.c.h.b16 %v8418
    %v9641 = vunpack.c.l.b16 %v8419
    %v9642 = vunpack.c.h.b16 %v8419
    %v9643 = vunpack.c.l.b16 %v8420
    %v9644 = vunpack.c.h.b16 %v8420
    %v9645 = vunpack.c.l.b16 %v8421
    %v9646 = vunpack.c.h.b16 %v8421
    %v9647 = vunpack.c.l.b16 %v8422
    %v9648 = vunpack.c.h.b16 %v8422
    %v9649 = vunpack.c.l.b16 %v8423
    %v9650 = vunpack.c.h.b16 %v8423
    %v9651 = vunpack.c.l.b16 %v8424
    %v9652 = vunpack.c.h.b16 %v8424
    %v9653 = vunpack.c.l.b16 %v8425
    %v9654 = vunpack.c.h.b16 %v8425
    %v9655 = vunpack.c.l.b16 %v8426
    %v9656 = vunpack.c.h.b16 %v8426
    %v9657 = vunpack.c.l.b16 %v8427
    %v9658 = vunpack.c.h.b16 %v8427
    %v9659 = vunpack.c.l.b16 %v8428
    %v9660 = vunpack.c.h.b16 %v8428
    %v9661 = vunpack.c.l.b16 %v8429
    %v9662 = vunpack.c.h.b16 %v8429
    %v9663 = vunpack.c.l.b16 %v8430
    %v9664 = vunpack.c.h.b16 %v8430
    %v9665 = vunpack.c.l.b16 %v8431
    %v9666 = vunpack.c.h.b16 %v8431
    %v9667 = vunpack.c.l.b16 %v8432
    %v9668 = vunpack.c.h.b16 %v8432
    %v9669 = vunpack.c.l.b16 %v8433
    %v9670 = vunpack.c.h.b16 %v8433
    %v9671 = vunpack.c.l.b16 %v8434
    %v9672 = vunpack.c.h.b16 %v8434
    %v9673 = vunpack.c.l.b16 %v8435
    %v9674 = vunpack.c.h.b16 %v8435
    %v9675 = vunpack.c.l.b16 %v8436
    %v9676 = vunpack.c.h.b16 %v8436
    %v9677 = vunpack.c.l.b16 %v8437
    %v9678 = vunpack.c.h.b16 %v8437
    %v9679 = vunpack.c.l.b16 %v8438
    %v9680 = vunpack.c.h.b16 %v8438
    %v9681 = vunpack.c.l.b16 %v8439
    %v9682 = vunpack.c.h.b16 %v8439
    %v9683 = vunpack.c.l.b16 %v8440
    %v9684 = vunpack.c.h.b16 %v8440
    %v9685 = vunpack.c.l.b16 %v8441
    %v9686 = vunpack.c.h.b16 %v8441
    %v9687 = vunpack.c.l.b16 %v8442
    %v9688 = vunpack.c.h.b16 %v8442
    %v9689 = vunpack.c.l.b16 %v8443
    %v9690 = vunpack.c.h.b16 %v8443
    %v9691 = vunpack.c.l.b16 %v8444
    %v9692 = vunpack.c.h.b16 %v8444
    %v9693 = vunpack.c.l.b16 %v8445
    %v9694 = vunpack.c.h.b16 %v8445
    %v9695 = vunpack.c.l.b16 %v8446
    %v9696 = vunpack.c.h.b16 %v8446
    %v9697 = vunpack.c.l.b16 %v8447
    %v9698 = vunpack.c.h.b16 %v8447
    %v9699 = vunpack.c.l.b16 %v8448
    %v9700 = vunpack.c.h.b16 %v8448
    %v9701 = vunpack.c.l.b16 %v8449
    %v9702 = vunpack.c.h.b16 %v8449
    %v9703 = vunpack.c.l.b16 %v8450
    %v9704 = vunpack.c.h.b16 %v8450
    %v9705 = vunpack.c.l.b16 %v8451
    %v9706 = vunpack.c.h.b16 %v8451
    %v9707 = vunpack.c.l.b16 %v8452
    %v9708 = vunpack.c.h.b16 %v8452
    %v9709 = vunpack.c.l.b16 %v8453
    %v9710 = vunpack.c.h.b16 %v8453
    %v9711 = vunpack.c.l.b16 %v8454
    %v9712 = vunpack.c.h.b16 %v8454
    %v9713 = vunpack.c.l.b16 %v8455
    %v9714 = vunpack.c.h.b16 %v8455
    %v9715 = vunpack.c.l.b16 %v8456
    %v9716 = vunpack.c.h.b16 %v8456
    %v9717 = vunpack.c.l.b16 %v8457
    %v9718 = vunpack.c.h.b16 %v8457
    %v9719 = vunpack.c.l.b16 %v8458
    %v9720 = vunpack.c.h.b16 %v8458
    %v9721 = vunpack.c.l.b16 %v8459
    %v9722 = vunpack.c.h.b16 %v8459
    %v9723 = vunpack.c.l.b16 %v8460
    %v9724 = vunpack.c.h.b16 %v8460
    %v9725 = vunpack.c.l.b16 %v8461
    %v9726 = vunpack.c.h.b16 %v8461
    %v9727 = vunpack.c.l.b16 %v8462
    %v9728 = vunpack.c.h.b16 %v8462
    %v9729 = vunpack.c.l.b16 %v8463
    %v9730 = vunpack.c.h.b16 %v8463
    %v9731 = vunpack.c.l.b16 %v8464
    %v9732 = vunpack.c.h.b16 %v8464
    %v9733 = vunpack.c.l.b16 %v8465
    %v9734 = vunpack.c.h.b16 %v8465
    %v9735 = vunpack.c.l.b16 %v8466
    %v9736 = vunpack.c.h.b16 %v8466
    %v9737 = vunpack.c.l.b16 %v8467
    %v9738 = vunpack.c.h.b16 %v8467
    %v9739 = vunpack.c.l.b16 %v8468
    %v9740 = vunpack.c.h.b16 %v8468
    %v9741 = vunpack.c.l.b16 %v8469
    %v9742 = vunpack.c.h.b16 %v8469
    %v9743 = vunpack.c.l.b16 %v8470
    %v9744 = vunpack.c.h.b16 %v8470
    %v9745 = vunpack.c.l.b16 %v8471
    %v9746 = vunpack.c.h.b16 %v8471
    %v9747 = vunpack.c.l.b16 %v8472
    %v9748 = vunpack.c.h.b16 %v8472
    %v9749 = vunpack.c.l.b16 %v8473
    %v9750 = vunpack.c.h.b16 %v8473
    %v9751 = vunpack.c.l.b16 %v8474
    %v9752 = vunpack.c.h.b16 %v8474
    %v9753 = vunpack.c.l.b16 %v8475
    %v9754 = vunpack.c.h.b16 %v8475
    %v9755 = vunpack.c.l.b16 %v8476
    %v9756 = vunpack.c.h.b16 %v8476
    %v9757 = vunpack.c.l.b16 %v8477
    %v9758 = vunpack.c.h.b16 %v8477
    %v9759 = vunpack.c.l.b16 %v8478
    %v9760 = vunpack.c.h.b16 %v8478
    %v9761 = vunpack.c.l.b16 %v8479
    %v9762 = vunpack.c.h.b16 %v8479
    %v9763 = vunpack.c.l.b16 %v8480
    %v9764 = vunpack.c.h.b16 %v8480
    %v9765 = vunpack.c.l.b16 %v8481
    %v9766 = vunpack.c.h.b16 %v8481
    %v9767 = vunpack.c.l.b16 %v8482
    %v9768 = vunpack.c.h.b16 %v8482
    %v9769 = vunpack.c.l.b16 %v8483
    %v9770 = vunpack.c.h.b16 %v8483
    %v9771 = vunpack.c.l.b16 %v8484
    %v9772 = vunpack.c.h.b16 %v8484
    %v9773 = vunpack.c.l.b16 %v8485
    %v9774 = vunpack.c.h.b16 %v8485
    %v9775 = vunpack.c.l.b16 %v8486
    %v9776 = vunpack.c.h.b16 %v8486
    %v9777 = vunpack.c.l.b16 %v8487
    %v9778 = vunpack.c.h.b16 %v8487
    %v9779 = vunpack.c.l.b16 %v8488
    %v9780 = vunpack.c.h.b16 %v8488
    %v9781 = vunpack.c.l.b16 %v8489
    %v9782 = vunpack.c.h.b16 %v8489
    %v9783 = vunpack.c.l.b16 %v8490
    %v9784 = vunpack.c.h.b16 %v8490
    %v9785 = vunpack.c.l.b16 %v8491
    %v9786 = vunpack.c.h.b16 %v8491
    %v9787 = vunpack.c.l.b16 %v8492
    %v9788 = vunpack.c.h.b16 %v8492
    %v9789 = vunpack.c.l.b16 %v8493
    %v9790 = vunpack.c.h.b16 %v8493
    %v9791 = vunpack.c.l.b16 %v8494
    %v9792 = vunpack.c.h.b16 %v8494
    %v9793 = vunpack.c.l.b16 %v8495
    %v9794 = vunpack.c.h.b16 %v8495
    %v9795 = vunpack.c.l.b16 %v8496
    %v9796 = vunpack.c.h.b16 %v8496
    %v9797 = vunpack.c.l.b16 %v8497
    %v9798 = vunpack.c.h.b16 %v8497
    %v9799 = vunpack.c.l.b16 %v8498
    %v9800 = vunpack.c.h.b16 %v8498
    %v9801 = vunpack.c.l.b16 %v8499
    %v9802 = vunpack.c.h.b16 %v8499
    %v9803 = vunpack.c.l.b16 %v8500
    %v9804 = vunpack.c.h.b16 %v8500
    %v9805 = vunpack.c.l.b16 %v8501
    %v9806 = vunpack.c.h.b16 %v8501
    %v9807 = vunpack.c.l.b16 %v8502
    %v9808 = vunpack.c.h.b16 %v8502
    %v9809 = vunpack.c.l.b16 %v8503
    %v9810 = vunpack.c.h.b16 %v8503
    %v9811 = vunpack.c.l.b16 %v8504
    %v9812 = vunpack.c.h.b16 %v8504
    %v9813 = vunpack.c.l.b16 %v8505
    %v9814 = vunpack.c.h.b16 %v8505
    %v9815 = vunpack.c.l.b16 %v8506
    %v9816 = vunpack.c.h.b16 %v8506
    %v9817 = vunpack.c.l.b16 %v8507
    %v9818 = vunpack.c.h.b16 %v8507
    %v9819 = vunpack.c.l.b16 %v8508
    %v9820 = vunpack.c.h.b16 %v8508
    %v9821 = vunpack.c.l.b16 %v8509
    %v9822 = vunpack.c.h.b16 %v8509
    %v9823 = vunpack.c.l.b16 %v8510
    %v9824 = vunpack.c.h.b16 %v8510
    %v9825 = vunpack.c.l.b16 %v8511
    %v9826 = vunpack.c.h.b16 %v8511
    %v9827 = vunpack.c.l.b16 %v8512
    %v9828 = vunpack.c.h.b16 %v8512
    %v9829 = vunpack.c.l.b16 %v8513
    %v9830 = vunpack.c.h.b16 %v8513
    %v9831 = vunpack.c.l.b16 %v8514
    %v9832 = vunpack.c.h.b16 %v8514
    %v9833 = vunpack.c.l.b16 %v8515
    %v9834 = vunpack.c.h.b16 %v8515
    %v9835 = vunpack.c.l.b16 %v8516
    %v9836 = vunpack.c.h.b16 %v8516
    %v9837 = vunpack.c.l.b16 %v8517
    %v9838 = vunpack.c.h.b16 %v8517
    %v9839 = vunpack.c.l.b16 %v8518
    %v9840 = vunpack.c.h.b16 %v8518
    %v9841 = vunpack.c.l.b16 %v8519
    %v9842 = vunpack.c.h.b16 %v8519
    %v9843 = vunpack.c.l.b16 %v8520
    %v9844 = vunpack.c.h.b16 %v8520
    %v9845 = vunpack.c.l.b16 %v8521
    %v9846 = vunpack.c.h.b16 %v8521
    %v9847 = vunpack.c.l.b16 %v8522
    %v9848 = vunpack.c.h.b16 %v8522
    %v9849 = vunpack.c.l.b16 %v8523
    %v9850 = vunpack.c.h.b16 %v8523
    %v9851 = vunpack.c.l.b16 %v8524
    %v9852 = vunpack.c.h.b16 %v8524
    %v9853 = vunpack.c.l.b16 %v8525
    %v9854 = vunpack.c.h.b16 %v8525
    %v9855 = vunpack.c.l.b16 %v8526
    %v9856 = vunpack.c.h.b16 %v8526
    %v9857 = vunpack.c.l.b16 %v8527
    %v9858 = vunpack.c.h.b16 %v8527
    %v9859 = vunpack.c.l.b16 %v8528
    %v9860 = vunpack.c.h.b16 %v8528
    %v9861 = vunpack.c.l.b16 %v8529
    %v9862 = vunpack.c.h.b16 %v8529
    %v9863 = vunpack.c.l.b16 %v8530
    %v9864 = vunpack.c.h.b16 %v8530
    %v9865 = vunpack.c.l.b16 %v8531
    %v9866 = vunpack.c.h.b16 %v8531
    %v9867 = vunpack.c.l.b16 %v8532
    %v9868 = vunpack.c.h.b16 %v8532
    %v9869 = vunpack.c.l.b16 %v8533
    %v9870 = vunpack.c.h.b16 %v8533
    %v9871 = vunpack.c.l.b16 %v8534
    %v9872 = vunpack.c.h.b16 %v8534
    %v9873 = vunpack.c.l.b16 %v8535
    %v9874 = vunpack.c.h.b16 %v8535
    %v9875 = vunpack.c.l.b16 %v8536
    %v9876 = vunpack.c.h.b16 %v8536
    %v9877 = vunpack.c.l.b16 %v8537
    %v9878 = vunpack.c.h.b16 %v8537
    %v9879 = vunpack.c.l.b16 %v8538
    %v9880 = vunpack.c.h.b16 %v8538
    %v9881 = vunpack.c.l.b16 %v8539
    %v9882 = vunpack.c.h.b16 %v8539
    %v9883 = vunpack.c.l.b16 %v8540
    %v9884 = vunpack.c.h.b16 %v8540
    %v9885 = vunpack.c.l.b16 %v8541
    %v9886 = vunpack.c.h.b16 %v8541
    %v9887 = vunpack.c.l.b16 %v8542
    %v9888 = vunpack.c.h.b16 %v8542
    %v9889 = vunpack.c.l.b16 %v8543
    %v9890 = vunpack.c.h.b16 %v8543
    %v9891 = vunpack.c.l.b16 %v8544
    %v9892 = vunpack.c.h.b16 %v8544
    %v9893 = vunpack.c.l.b16 %v8545
    %v9894 = vunpack.c.h.b16 %v8545
    %v9895 = vunpack.c.l.b16 %v8546
    %v9896 = vunpack.c.h.b16 %v8546
    %v9897 = vunpack.c.l.b16 %v8547
    %v9898 = vunpack.c.h.b16 %v8547
    %v9899 = vunpack.c.l.b16 %v8548
    %v9900 = vunpack.c.h.b16 %v8548
    %v9901 = vunpack.c.l.b16 %v8549
    %v9902 = vunpack.c.h.b16 %v8549
    %v9903 = vunpack.c.l.b16 %v8550
    %v9904 = vunpack.c.h.b16 %v8550
    %v9905 = vunpack.c.l.b16 %v8551
    %v9906 = vunpack.c.h.b16 %v8551
    %v9907 = vunpack.c.l.b16 %v8552
    %v9908 = vunpack.c.h.b16 %v8552
    %v9909 = vunpack.c.l.b16 %v8553
    %v9910 = vunpack.c.h.b16 %v8553
    %v9911 = vunpack.c.l.b16 %v8554
    %v9912 = vunpack.c.h.b16 %v8554
    %v9913 = vunpack.c.l.b16 %v8555
    %v9914 = vunpack.c.h.b16 %v8555
    %v9915 = vunpack.c.l.b16 %v8556
    %v9916 = vunpack.c.h.b16 %v8556
    %v9917 = vunpack.c.l.b16 %v8557
    %v9918 = vunpack.c.h.b16 %v8557
    %v9919 = vunpack.c.l.b16 %v8558
    %v9920 = vunpack.c.h.b16 %v8558
    %v9921 = vunpack.c.l.b16 %v8559
    %v9922 = vunpack.c.h.b16 %v8559
    %v9923 = vunpack.c.l.b16 %v8560
    %v9924 = vunpack.c.h.b16 %v8560
    %v9925 = vunpack.c.l.b16 %v8561
    %v9926 = vunpack.c.h.b16 %v8561
    %v9927 = vunpack.c.l.b16 %v8562
    %v9928 = vunpack.c.h.b16 %v8562
    %v9929 = vunpack.c.l.b16 %v8563
    %v9930 = vunpack.c.h.b16 %v8563
    %v9931 = vunpack.c.l.b16 %v8564
    %v9932 = vunpack.c.h.b16 %v8564
    %v9933 = vunpack.c.l.b16 %v8565
    %v9934 = vunpack.c.h.b16 %v8565
    %v9935 = vunpack.c.l.b16 %v8566
    %v9936 = vunpack.c.h.b16 %v8566
    %v9937 = vunpack.c.l.b16 %v8567
    %v9938 = vunpack.c.h.b16 %v8567
    %v9939 = vunpack.c.l.b16 %v8568
    %v9940 = vunpack.c.h.b16 %v8568
    %v9941 = vunpack.c.l.b16 %v8569
    %v9942 = vunpack.c.h.b16 %v8569
    %v9943 = vunpack.c.l.b16 %v8570
    %v9944 = vunpack.c.h.b16 %v8570
    %v9945 = vunpack.c.l.b16 %v8571
    %v9946 = vunpack.c.h.b16 %v8571
    %v9947 = vunpack.c.l.b16 %v8572
    %v9948 = vunpack.c.h.b16 %v8572
    %v9949 = vunpack.c.l.b16 %v8573
    %v9950 = vunpack.c.h.b16 %v8573
    %v9951 = vunpack.c.l.b16 %v8574
    %v9952 = vunpack.c.h.b16 %v8574
    %v9953 = vunpack.c.l.b16 %v8575
    %v9954 = vunpack.c.h.b16 %v8575
    %v9955 = vunpack.c.l.b16 %v8576
    %v9956 = vunpack.c.h.b16 %v8576
    %v9957 = vunpack.c.l.b16 %v8577
    %v9958 = vunpack.c.h.b16 %v8577
    %v9959 = vunpack.c.l.b16 %v8578
    %v9960 = vunpack.c.h.b16 %v8578
    %v9961 = vunpack.c.l.b16 %v8579
    %v9962 = vunpack.c.h.b16 %v8579
    %v9963 = vunpack.c.l.b16 %v8580
    %v9964 = vunpack.c.h.b16 %v8580
    %v9965 = vunpack.c.l.b16 %v8581
    %v9966 = vunpack.c.h.b16 %v8581
    %v9967 = vunpack.c.l.b16 %v8582
    %v9968 = vunpack.c.h.b16 %v8582
    %v9969 = vunpack.c.l.b16 %v8583
    %v9970 = vunpack.c.h.b16 %v8583
    %v9971 = vunpack.c.l.b16 %v8584
    %v9972 = vunpack.c.h.b16 %v8584
    %v9973 = vunpack.c.l.b16 %v8585
    %v9974 = vunpack.c.h.b16 %v8585
    %v9975 = vunpack.c.l.b16 %v8586
    %v9976 = vunpack.c.h.b16 %v8586
    %v9977 = vunpack.c.l.b16 %v8587
    %v9978 = vunpack.c.h.b16 %v8587
    %v9979 = vunpack.c.l.b16 %v8588
    %v9980 = vunpack.c.h.b16 %v8588
    %v9981 = vunpack.c.l.b16 %v8589
    %v9982 = vunpack.c.h.b16 %v8589
    %v9983 = vunpack.c.l.b16 %v8590
    %v9984 = vunpack.c.h.b16 %v8590
    %v9985 = vunpack.c.l.b16 %v8591
    %v9986 = vunpack.c.h.b16 %v8591
    %v9987 = vunpack.c.l.b16 %v8592
    %v9988 = vunpack.c.h.b16 %v8592
    %v9989 = vunpack.c.l.b16 %v8593
    %v9990 = vunpack.c.h.b16 %v8593
    %v9991 = vunpack.c.l.b16 %v8594
    %v9992 = vunpack.c.h.b16 %v8594
    %v9993 = vunpack.c.l.b16 %v8595
    %v9994 = vunpack.c.h.b16 %v8595
    %v9995 = vunpack.c.l.b16 %v8596
    %v9996 = vunpack.c.h.b16 %v8596
    %v9997 = vunpack.c.l.b16 %v8597
    %v9998 = vunpack.c.h.b16 %v8597
    %v9999 = vunpack.c.l.b16 %v8598
    %v10000 = vunpack.c.h.b16 %v8598
    %v10001 = vunpack.c.l.b16 %v8599
    %v10002 = vunpack.c.h.b16 %v8599
    %v10003 = vunpack.c.l.b16 %v8600
    %v10004 = vunpack.c.h.b16 %v8600
    %v10005 = vunpack.c.l.b16 %v8601
    %v10006 = vunpack.c.h.b16 %v8601
    %v10007 = vunpack.c.l.b16 %v8602
    %v10008 = vunpack.c.h.b16 %v8602
    %v10009 = vunpack.c.l.b16 %v8603
    %v10010 = vunpack.c.h.b16 %v8603
    %v10011 = vunpack.c.l.b16 %v8604
    %v10012 = vunpack.c.h.b16 %v8604
    %v10013 = vunpack.c.l.b16 %v8605
    %v10014 = vunpack.c.h.b16 %v8605
    %v10015 = vunpack.c.l.b16 %v8606
    %v10016 = vunpack.c.h.b16 %v8606
    %v10017 = vunpack.c.l.b16 %v8607
    %v10018 = vunpack.c.h.b16 %v8607
    %v10019 = vunpack.c.l.b16 %v8608
    %v10020 = vunpack.c.h.b16 %v8608
    %v10021 = vunpack.c.l.b16 %v8609
    %v10022 = vunpack.c.h.b16 %v8609
    %v10023 = vunpack.c.l.b16 %v8610
    %v10024 = vunpack.c.h.b16 %v8610
    %v10025 = vunpack.c.l.b16 %v8611
    %v10026 = vunpack.c.h.b16 %v8611
    %v10027 = vunpack.c.l.b16 %v8612
    %v10028 = vunpack.c.h.b16 %v8612
    %v10029 = vunpack.c.l.b16 %v8613
    %v10030 = vunpack.c.h.b16 %v8613
    %v10031 = vunpack.c.l.b16 %v8614
    %v10032 = vunpack.c.h.b16 %v8614
    %v10033 = vunpack.c.l.b16 %v8615
    %v10034 = vunpack.c.h.b16 %v8615
    %v10035 = vunpack.c.l.b16 %v8616
    %v10036 = vunpack.c.h.b16 %v8616
    %v10037 = vunpack.c.l.b16 %v8617
    %v10038 = vunpack.c.h.b16 %v8617
    %v10039 = vunpack.c.l.b16 %v8618
    %v10040 = vunpack.c.h.b16 %v8618
    %v10041 = vunpack.c.l.b16 %v8619
    %v10042 = vunpack.c.h.b16 %v8619
    %v10043 = vunpack.c.l.b16 %v8620
    %v10044 = vunpack.c.h.b16 %v8620
    %v10045 = vunpack.c.l.b16 %v8621
    %v10046 = vunpack.c.h.b16 %v8621
    %v10047 = vunpack.c.l.b16 %v8622
    %v10048 = vunpack.c.h.b16 %v8622
    %v10049 = vunpack.c.l.b16 %v8623
    %v10050 = vunpack.c.h.b16 %v8623
    %v10051 = vunpack.c.l.b16 %v8624
    %v10052 = vunpack.c.h.b16 %v8624
    %v10053 = vunpack.c.l.b16 %v8625
    %v10054 = vunpack.c.h.b16 %v8625
    %v10055 = vunpack.c.l.b16 %v8626
    %v10056 = vunpack.c.h.b16 %v8626
    %v10057 = vunpack.c.l.b16 %v8627
    %v10058 = vunpack.c.h.b16 %v8627
    %v10059 = vunpack.c.l.b16 %v8628
    %v10060 = vunpack.c.h.b16 %v8628
    %v10061 = vunpack.c.l.b16 %v8629
    %v10062 = vunpack.c.h.b16 %v8629
    %v10063 = vunpack.c.l.b16 %v8630
    %v10064 = vunpack.c.h.b16 %v8630
    %v10065 = vunpack.c.l.b16 %v8631
    %v10066 = vunpack.c.h.b16 %v8631
    %v10067 = vunpack.c.l.b16 %v8632
    %v10068 = vunpack.c.h.b16 %v8632
    %v10069 = vunpack.c.l.b16 %v8633
    %v10070 = vunpack.c.h.b16 %v8633
    %v10071 = vunpack.c.l.b16 %v8634
    %v10072 = vunpack.c.h.b16 %v8634
    %v10073 = vunpack.c.l.b16 %v8635
    %v10074 = vunpack.c.h.b16 %v8635
    %v10075 = vunpack.c.l.b16 %v8636
    %v10076 = vunpack.c.h.b16 %v8636
    %v10077 = vunpack.c.l.b16 %v8637
    %v10078 = vunpack.c.h.b16 %v8637
    %v10079 = vunpack.c.l.b16 %v8638
    %v10080 = vunpack.c.h.b16 %v8638
    %v10081 = vunpack.c.l.b16 %v8639
    %v10082 = vunpack.c.h.b16 %v8639
    %v10083 = vunpack.c.l.b16 %v8640
    %v10084 = vunpack.c.h.b16 %v8640
    %v10085 = vunpack.c.l.b16 %v8641
    %v10086 = vunpack.c.h.b16 %v8641
    %v10087 = vunpack.c.l.b16 %v8642
    %v10088 = vunpack.c.h.b16 %v8642
    %v10089 = vunpack.c.l.b16 %v8643
    %v10090 = vunpack.c.h.b16 %v8643
    %v10091 = vunpack.c.l.b16 %v8644
    %v10092 = vunpack.c.h.b16 %v8644
    %v10093 = vunpack.c.l.b16 %v8645
    %v10094 = vunpack.c.h.b16 %v8645
    %v10095 = vunpack.c.l.b16 %v8646
    %v10096 = vunpack.c.h.b16 %v8646
    %v10097 = vunpack.c.l.b16 %v8647
    %v10098 = vunpack.c.h.b16 %v8647
    %v10099 = vunpack.c.l.b16 %v8648
    %v10100 = vunpack.c.h.b16 %v8648
    %v10101 = vunpack.c.l.b16 %v8649
    %v10102 = vunpack.c.h.b16 %v8649
    %v10103 = vunpack.c.l.b16 %v8650
    %v10104 = vunpack.c.h.b16 %v8650
    %v10105 = vunpack.c.l.b16 %v8651
    %v10106 = vunpack.c.h.b16 %v8651
    %v10107 = vunpack.c.l.b16 %v8652
    %v10108 = vunpack.c.h.b16 %v8652
    %v10109 = vunpack.c.l.b16 %v8653
    %v10110 = vunpack.c.h.b16 %v8653
    %v10111 = vunpack.c.l.b16 %v8654
    %v10112 = vunpack.c.h.b16 %v8654
    %v10113 = vunpack.c.l.b16 %v8655
    %v10114 = vunpack.c.h.b16 %v8655
    %v10115 = vunpack.c.l.b16 %v8656
    %v10116 = vunpack.c.h.b16 %v8656
    %v10117 = vunpack.c.l.b16 %v8657
    %v10118 = vunpack.c.h.b16 %v8657
    %v10119 = vunpack.c.l.b16 %v8658
    %v10120 = vunpack.c.h.b16 %v8658
    %v10121 = vunpack.c.l.b16 %v8659
    %v10122 = vunpack.c.h.b16 %v8659
    %v10123 = vunpack.c.l.b16 %v8660
    %v10124 = vunpack.c.h.b16 %v8660
    %v10125 = vunpack.c.l.b16 %v8661
    %v10126 = vunpack.c.h.b16 %v8661
    %v10127 = vunpack.c.l.b16 %v8662
    %v10128 = vunpack.c.h.b16 %v8662
    %v10129 = vunpack.c.l.b16 %v8663
    %v10130 = vunpack.c.h.b16 %v8663
    %v10131 = vunpack.c.l.b16 %v8664
    %v10132 = vunpack.c.h.b16 %v8664
    %v10133 = vunpack.c.l.b16 %v8665
    %v10134 = vunpack.c.h.b16 %v8665
    %v10135 = vunpack.c.l.b16 %v8666
    %v10136 = vunpack.c.h.b16 %v8666
    %v10137 = vunpack.c.l.b16 %v8667
    %v10138 = vunpack.c.h.b16 %v8667
    %v10139 = vunpack.c.l.b16 %v8668
    %v10140 = vunpack.c.h.b16 %v8668
    %v10141 = vunpack.c.l.b16 %v8669
    %v10142 = vunpack.c.h.b16 %v8669
    %v10143 = vunpack.c.l.b16 %v8670
    %v10144 = vunpack.c.h.b16 %v8670
    %v10145 = vunpack.c.l.b16 %v8671
    %v10146 = vunpack.c.h.b16 %v8671
    %v10147 = vunpack.c.l.b16 %v8672
    %v10148 = vunpack.c.h.b16 %v8672
    %v10149 = vunpack.c.l.b16 %v8673
    %v10150 = vunpack.c.h.b16 %v8673
    %v10151 = vunpack.c.l.b16 %v8674
    %v10152 = vunpack.c.h.b16 %v8674
    %v10153 = vunpack.c.l.b16 %v8675
    %v10154 = vunpack.c.h.b16 %v8675
    %v10155 = vunpack.c.l.b16 %v8676
    %v10156 = vunpack.c.h.b16 %v8676
    %v10157 = vunpack.c.l.b16 %v8677
    %v10158 = vunpack.c.h.b16 %v8677
    %v10159 = vunpack.c.l.b16 %v8678
    %v10160 = vunpack.c.h.b16 %v8678
    %v10161 = vunpack.c.l.b16 %v8679
    %v10162 = vunpack.c.h.b16 %v8679
    %v10163 = vunpack.c.l.b16 %v8680
    %v10164 = vunpack.c.h.b16 %v8680
    %v10165 = vunpack.c.l.b16 %v8681
    %v10166 = vunpack.c.h.b16 %v8681
    %v10167 = vunpack.c.l.b16 %v8682
    %v10168 = vunpack.c.h.b16 %v8682
    %v10169 = vunpack.c.l.b16 %v8683
    %v10170 = vunpack.c.h.b16 %v8683
    %v10171 = vunpack.c.l.b16 %v8684
    %v10172 = vunpack.c.h.b16 %v8684
    %v10173 = vunpack.c.l.b16 %v8685
    %v10174 = vunpack.c.h.b16 %v8685
    %v10175 = vunpack.c.l.b16 %v8686
    %v10176 = vunpack.c.h.b16 %v8686
    %v10177 = vunpack.c.l.b16 %v8687
    %v10178 = vunpack.c.h.b16 %v8687
    %v10179 = vunpack.c.l.b16 %v8688
    %v10180 = vunpack.c.h.b16 %v8688
    %v10181 = vunpack.c.l.b16 %v8689
    %v10182 = vunpack.c.h.b16 %v8689
    %v10183 = vunpack.c.l.b16 %v8690
    %v10184 = vunpack.c.h.b16 %v8690
    %v10185 = vunpack.c.l.b16 %v8691
    %v10186 = vunpack.c.h.b16 %v8691
    %v10187 = vunpack.c.l.b16 %v8692
    %v10188 = vunpack.c.h.b16 %v8692
    %v10189 = vunpack.c.l.b16 %v8693
    %v10190 = vunpack.c.h.b16 %v8693
    %v10191 = vunpack.c.l.b16 %v8694
    %v10192 = vunpack.c.h.b16 %v8694
    %v10193 = vunpack.c.l.b16 %v8695
    %v10194 = vunpack.c.h.b16 %v8695
    %v10195 = vunpack.c.l.b16 %v8696
    %v10196 = vunpack.c.h.b16 %v8696
    %v10197 = vunpack.c.l.b16 %v8697
    %v10198 = vunpack.c.h.b16 %v8697
    %v10199 = vunpack.c.l.b16 %v8698
    %v10200 = vunpack.c.h.b16 %v8698
    %v10201 = vunpack.c.l.b16 %v8699
    %v10202 = vunpack.c.h.b16 %v8699
    %v10203 = vunpack.c.l.b16 %v8700
    %v10204 = vunpack.c.h.b16 %v8700
    %v10205 = vunpack.c.l.b16 %v8701
    %v10206 = vunpack.c.h.b16 %v8701
    %v10207 = vunpack.c.l.b16 %v8702
    %v10208 = vunpack.c.h.b16 %v8702
    %v10209 = vunpack.c.l.b16 %v8703
    %v10210 = vunpack.c.h.b16 %v8703
    %v10211 = vunpack.c.l.b16 %v8704
    %v10212 = vunpack.c.h.b16 %v8704
    %v10213 = vunpack.c.l.b16 %v8705
    %v10214 = vunpack.c.h.b16 %v8705
    %v10215 = vunpack.c.l.b16 %v8706
    %v10216 = vunpack.c.h.b16 %v8706
    %v10217 = vunpack.c.l.b16 %v8707
    %v10218 = vunpack.c.h.b16 %v8707
    %v10219 = vunpack.c.l.b16 %v8708
    %v10220 = vunpack.c.h.b16 %v8708
    %v10221 = vunpack.c.l.b16 %v8709
    %v10222 = vunpack.c.h.b16 %v8709
    %v10223 = vunpack.c.l.b16 %v8710
    %v10224 = vunpack.c.h.b16 %v8710
    %v10225 = vunpack.c.l.b16 %v8711
    %v10226 = vunpack.c.h.b16 %v8711
    %v10227 = vunpack.c.l.b16 %v8712
    %v10228 = vunpack.c.h.b16 %v8712
    %v10229 = vunpack.c.l.b16 %v8713
    %v10230 = vunpack.c.h.b16 %v8713
    %v10231 = vunpack.c.l.b16 %v8714
    %v10232 = vunpack.c.h.b16 %v8714
    %v10233 = vunpack.c.l.b16 %v8715
    %v10234 = vunpack.c.h.b16 %v8715
    %v10235 = vunpack.c.l.b16 %v8716
    %v10236 = vunpack.c.h.b16 %v8716
    %v10237 = vunpack.c.l.b16 %v8717
    %v10238 = vunpack.c.h.b16 %v8717
    %v10239 = vunpack.c.l.b16 %v8718
    %v10240 = vunpack.c.h.b16 %v8718
    %v10241 = vunpack.c.l.b16 %v8719
    %v10242 = vunpack.c.h.b16 %v8719
    %v10243 = vunpack.c.l.b16 %v8720
    %v10244 = vunpack.c.h.b16 %v8720
    %v10245 = vunpack.c.l.b16 %v8721
    %v10246 = vunpack.c.h.b16 %v8721
    %v10247 = vunpack.c.l.b16 %v8722
    %v10248 = vunpack.c.h.b16 %v8722
    %v10249 = vunpack.c.l.b16 %v8723
    %v10250 = vunpack.c.h.b16 %v8723
    %v10251 = vunpack.c.l.b16 %v8724
    %v10252 = vunpack.c.h.b16 %v8724
    %v10253 = vunpack.c.l.b16 %v8725
    %v10254 = vunpack.c.h.b16 %v8725
    %v10255 = vunpack.c.l.b16 %v8726
    %v10256 = vunpack.c.h.b16 %v8726
    %v10257 = vunpack.c.l.b16 %v8727
    %v10258 = vunpack.c.h.b16 %v8727
    %v10259 = vunpack.c.l.b16 %v8728
    %v10260 = vunpack.c.h.b16 %v8728
    %v10261 = vunpack.c.l.b16 %v8729
    %v10262 = vunpack.c.h.b16 %v8729
    %v10263 = vunpack.c.l.b16 %v8730
    %v10264 = vunpack.c.h.b16 %v8730
    %v10265 = vunpack.c.l.b16 %v8731
    %v10266 = vunpack.c.h.b16 %v8731
    %v10267 = vunpack.c.l.b16 %v8732
    %v10268 = vunpack.c.h.b16 %v8732
    %v10269 = vunpack.c.l.b16 %v8733
    %v10270 = vunpack.c.h.b16 %v8733
    %v10271 = vunpack.c.l.b16 %v8734
    %v10272 = vunpack.c.h.b16 %v8734
    %v10273 = vunpack.c.l.b16 %v8735
    %v10274 = vunpack.c.h.b16 %v8735
    %v10275 = vunpack.c.l.b16 %v8736
    %v10276 = vunpack.c.h.b16 %v8736
    %v10277 = vunpack.c.l.b16 %v8737
    %v10278 = vunpack.c.h.b16 %v8737
    %v10279 = vunpack.c.l.b16 %v8738
    %v10280 = vunpack.c.h.b16 %v8738
    %v10281 = vunpack.c.l.b16 %v8739
    %v10282 = vunpack.c.h.b16 %v8739
    %v10283 = vunpack.c.l.b16 %v8740
    %v10284 = vunpack.c.h.b16 %v8740
    %v10285 = vunpack.c.l.b16 %v8741
    %v10286 = vunpack.c.h.b16 %v8741
    %v10287 = vunpack.c.l.b16 %v8742
    %v10288 = vunpack.c.h.b16 %v8742
    %v10289 = vunpack.c.l.b16 %v8743
    %v10290 = vunpack.c.h.b16 %v8743
    %v10291 = vunpack.c.l.b16 %v8744
    %v10292 = vunpack.c.h.b16 %v8744
    %v10293 = vunpack.c.l.b16 %v8745
    %v10294 = vunpack.c.h.b16 %v8745
    %v10295 = vunpack.c.l.b16 %v8746
    %v10296 = vunpack.c.h.b16 %v8746
    %v10297 = vunpack.c.l.b16 %v8747
    %v10298 = vunpack.c.h.b16 %v8747
    %v10299 = vunpack.c.l.b16 %v8748
    %v10300 = vunpack.c.h.b16 %v8748
    %v10301 = vunpack.c.l.b16 %v8749
    %v10302 = vunpack.c.h.b16 %v8749
    %v10303 = vunpack.c.l.b16 %v8750
    %v10304 = vunpack.c.h.b16 %v8750
    %v10305 = vpack.c.b16 %v9289, %v9281
    %v10306 = vpack.c.b16 %v9290, %v9282
    %v10307 = vpack.c.b16 %v9291, %v9283
    %v10308 = vpack.c.b16 %v9292, %v9284
    %v10309 = vpack.c.b16 %v9293, %v9285
    %v10310 = vpack.c.b16 %v9294, %v9286
    %v10311 = vpack.c.b16 %v9295, %v9287
    %v10312 = vpack.c.b16 %v9296, %v9288
    %v10313 = vpack.c.b16 %v9305, %v9297
    %v10314 = vpack.c.b16 %v9306, %v9298
    %v10315 = vpack.c.b16 %v9307, %v9299
    %v10316 = vpack.c.b16 %v9308, %v9300
    %v10317 = vpack.c.b16 %v9309, %v9301
    %v10318 = vpack.c.b16 %v9310, %v9302
    %v10319 = vpack.c.b16 %v9311, %v9303
    %v10320 = vpack.c.b16 %v9312, %v9304
    %v10321 = vpack.c.b16 %v9321, %v9313
    %v10322 = vpack.c.b16 %v9322, %v9314
    %v10323 = vpack.c.b16 %v9323, %v9315
    %v10324 = vpack.c.b16 %v9324, %v9316
    %v10325 = vpack.c.b16 %v9325, %v9317
    %v10326 = vpack.c.b16 %v9326, %v9318
    %v10327 = vpack.c.b16 %v9327, %v9319
    %v10328 = vpack.c.b16 %v9328, %v9320
    %v10329 = vpack.c.b16 %v9337, %v9329
    %v10330 = vpack.c.b16 %v9338, %v9330
    %v10331 = vpack.c.b16 %v9339, %v9331
    %v10332 = vpack.c.b16 %v9340, %v9332
    %v10333 = vpack.c.b16 %v9341, %v9333
    %v10334 = vpack.c.b16 %v9342, %v9334
    %v10335 = vpack.c.b16 %v9343, %v9335
    %v10336 = vpack.c.b16 %v9344, %v9336
    %v10337 = vpack.c.b16 %v9353, %v9345
    %v10338 = vpack.c.b16 %v9354, %v9346
    %v10339 = vpack.c.b16 %v9355, %v9347
    %v10340 = vpack.c.b16 %v9356, %v9348
    %v10341 = vpack.c.b16 %v9357, %v9349
    %v10342 = vpack.c.b16 %v9358, %v9350
    %v10343 = vpack.c.b16 %v9359, %v9351
    %v10344 = vpack.c.b16 %v9360, %v9352
    %v10345 = vpack.c.b16 %v9369, %v9361
    %v10346 = vpack.c.b16 %v9370, %v9362
    %v10347 = vpack.c.b16 %v9371, %v9363
    %v10348 = vpack.c.b16 %v9372, %v9364
    %v10349 = vpack.c.b16 %v9373, %v9365
    %v10350 = vpack.c.b16 %v9374, %v9366
    %v10351 = vpack.c.b16 %v9375, %v9367
    %v10352 = vpack.c.b16 %v9376, %v9368
    %v10353 = vpack.c.b16 %v9385, %v9377
    %v10354 = vpack.c.b16 %v9386, %v9378
    %v10355 = vpack.c.b16 %v9387, %v9379
    %v10356 = vpack.c.b16 %v9388, %v9380
    %v10357 = vpack.c.b16 %v9389, %v9381
    %v10358 = vpack.c.b16 %v9390, %v9382
    %v10359 = vpack.c.b16 %v9391, %v9383
    %v10360 = vpack.c.b16 %v9392, %v9384
    %v10361 = vpack.c.b16 %v9401, %v9393
    %v10362 = vpack.c.b16 %v9402, %v9394
    %v10363 = vpack.c.b16 %v9403, %v9395
    %v10364 = vpack.c.b16 %v9404, %v9396
    %v10365 = vpack.c.b16 %v9405, %v9397
    %v10366 = vpack.c.b16 %v9406, %v9398
    %v10367 = vpack.c.b16 %v9407, %v9399
    %v10368 = vpack.c.b16 %v9408, %v9400
    %v10369 = vpack.c.b16 %v9417, %v9409
    %v10370 = vpack.c.b16 %v9418, %v9410
    %v10371 = vpack.c.b16 %v9419, %v9411
    %v10372 = vpack.c.b16 %v9420, %v9412
    %v10373 = vpack.c.b16 %v9421, %v9413
    %v10374 = vpack.c.b16 %v9422, %v9414
    %v10375 = vpack.c.b16 %v9423, %v9415
    %v10376 = vpack.c.b16 %v9424, %v9416
    %v10377 = vpack.c.b16 %v9433, %v9425
    %v10378 = vpack.c.b16 %v9434, %v9426
    %v10379 = vpack.c.b16 %v9435, %v9427
    %v10380 = vpack.c.b16 %v9436, %v9428
    %v10381 = vpack.c.b16 %v9437, %v9429
    %v10382 = vpack.c.b16 %v9438, %v9430
    %v10383 = vpack.c.b16 %v9439, %v9431
    %v10384 = vpack.c.b16 %v9440, %v9432
    %v10385 = vpack.c.b16 %v9449, %v9441
    %v10386 = vpack.c.b16 %v9450, %v9442
    %v10387 = vpack.c.b16 %v9451, %v9443
    %v10388 = vpack.c.b16 %v9452, %v9444
    %v10389 = vpack.c.b16 %v9453, %v9445
    %v10390 = vpack.c.b16 %v9454, %v9446
    %v10391 = vpack.c.b16 %v9455, %v9447
    %v10392 = vpack.c.b16 %v9456, %v9448
    %v10393 = vpack.c.b16 %v9465, %v9457
    %v10394 = vpack.c.b16 %v9466, %v9458
    %v10395 = vpack.c.b16 %v9467, %v9459
    %v10396 = vpack.c.b16 %v9468, %v9460
    %v10397 = vpack.c.b16 %v9469, %v9461
    %v10398 = vpack.c.b16 %v9470, %v9462
    %v10399 = vpack.c.b16 %v9471, %v9463
    %v10400 = vpack.c.b16 %v9472, %v9464
    %v10401 = vpack.c.b16 %v9481, %v9473
    %v10402 = vpack.c.b16 %v9482, %v9474
    %v10403 = vpack.c.b16 %v9483, %v9475
    %v10404 = vpack.c.b16 %v9484, %v9476
    %v10405 = vpack.c.b16 %v9485, %v9477
    %v10406 = vpack.c.b16 %v9486, %v9478
    %v10407 = vpack.c.b16 %v9487, %v9479
    %v10408 = vpack.c.b16 %v9488, %v9480
    %v10409 = vpack.c.b16 %v9497, %v9489
    %v10410 = vpack.c.b16 %v9498, %v9490
    %v10411 = vpack.c.b16 %v9499, %v9491
    %v10412 = vpack.c.b16 %v9500, %v9492
    %v10413 = vpack.c.b16 %v9501, %v9493
    %v10414 = vpack.c.b16 %v9502, %v9494
    %v10415 = vpack.c.b16 %v9503, %v9495
    %v10416 = vpack.c.b16 %v9504, %v9496
    %v10417 = vpack.c.b16 %v9513, %v9505
    %v10418 = vpack.c.b16 %v9514, %v9506
    %v10419 = vpack.c.b16 %v9515, %v9507
    %v10420 = vpack.c.b16 %v9516, %v9508
    %v10421 = vpack.c.b16 %v9517, %v9509
    %v10422 = vpack.c.b16 %v9518, %v9510
    %v10423 = vpack.c.b16 %v9519, %v9511
    %v10424 = vpack.c.b16 %v9520, %v9512
    %v10425 = vpack.c.b16 %v9529, %v9521
    %v10426 = vpack.c.b16 %v9530, %v9522
    %v10427 = vpack.c.b16 %v9531, %v9523
    %v10428 = vpack.c.b16 %v9532, %v9524
    %v10429 = vpack.c.b16 %v9533, %v9525
    %v10430 = vpack.c.b16 %v9534, %v9526
    %v10431 = vpack.c.b16 %v9535, %v9527
    %v10432 = vpack.c.b16 %v9536, %v9528
    %v10433 = vpack.c.b16 %v9545, %v9537
    %v10434 = vpack.c.b16 %v9546, %v9538
    %v10435 = vpack.c.b16 %v9547, %v9539
    %v10436 = vpack.c.b16 %v9548, %v9540
    %v10437 = vpack.c.b16 %v9549, %v9541
    %v10438 = vpack.c.b16 %v9550, %v9542
    %v10439 = vpack.c.b16 %v9551, %v9543
    %v10440 = vpack.c.b16 %v9552, %v9544
    %v10441 = vpack.c.b16 %v9561, %v9553
    %v10442 = vpack.c.b16 %v9562, %v9554
    %v10443 = vpack.c.b16 %v9563, %v9555
    %v10444 = vpack.c.b16 %v9564, %v9556
    %v10445 = vpack.c.b16 %v9565, %v9557
    %v10446 = vpack.c.b16 %v9566, %v9558
    %v10447 = vpack.c.b16 %v9567, %v9559
    %v10448 = vpack.c.b16 %v9568, %v9560
    %v10449 = vpack.c.b16 %v9577, %v9569
    %v10450 = vpack.c.b16 %v9578, %v9570
    %v10451 = vpack.c.b16 %v9579, %v9571
    %v10452 = vpack.c.b16 %v9580, %v9572
    %v10453 = vpack.c.b16 %v9581, %v9573
    %v10454 = vpack.c.b16 %v9582, %v9574
    %v10455 = vpack.c.b16 %v9583, %v9575
    %v10456 = vpack.c.b16 %v9584, %v9576
    %v10457 = vpack.c.b16 %v9593, %v9585
    %v10458 = vpack.c.b16 %v9594, %v9586
    %v10459 = vpack.c.b16 %v9595, %v9587
    %v10460 = vpack.c.b16 %v9596, %v9588
    %v10461 = vpack.c.b16 %v9597, %v9589
    %v10462 = vpack.c.b16 %v9598, %v9590
    %v10463 = vpack.c.b16 %v9599, %v9591
    %v10464 = vpack.c.b16 %v9600, %v9592
    %v10465 = vpack.c.b16 %v9609, %v9601
    %v10466 = vpack.c.b16 %v9610, %v9602
    %v10467 = vpack.c.b16 %v9611, %v9603
    %v10468 = vpack.c.b16 %v9612, %v9604
    %v10469 = vpack.c.b16 %v9613, %v9605
    %v10470 = vpack.c.b16 %v9614, %v9606
    %v10471 = vpack.c.b16 %v9615, %v9607
    %v10472 = vpack.c.b16 %v9616, %v9608
    %v10473 = vpack.c.b16 %v9625, %v9617
    %v10474 = vpack.c.b16 %v9626, %v9618
    %v10475 = vpack.c.b16 %v9627, %v9619
    %v10476 = vpack.c.b16 %v9628, %v9620
    %v10477 = vpack.c.b16 %v9629, %v9621
    %v10478 = vpack.c.b16 %v9630, %v9622
    %v10479 = vpack.c.b16 %v9631, %v9623
    %v10480 = vpack.c.b16 %v9632, %v9624
    %v10481 = vpack.c.b16 %v9641, %v9633
    %v10482 = vpack.c.b16 %v9642, %v9634
    %v10483 = vpack.c.b16 %v9643, %v9635
    %v10484 = vpack.c.b16 %v9644, %v9636
    %v10485 = vpack.c.b16 %v9645, %v9637
    %v10486 = vpack.c.b16 %v9646, %v9638
    %v10487 = vpack.c.b16 %v9647, %v9639
    %v10488 = vpack.c.b16 %v9648, %v9640
    %v10489 = vpack.c.b16 %v9657, %v9649
    %v10490 = vpack.c.b16 %v9658, %v9650
    %v10491 = vpack.c.b16 %v9659, %v9651
    %v10492 = vpack.c.b16 %v9660, %v9652
    %v10493 = vpack.c.b16 %v9661, %v9653
    %v10494 = vpack.c.b16 %v9662, %v9654
    %v10495 = vpack.c.b16 %v9663, %v9655
    %v10496 = vpack.c.b16 %v9664, %v9656
    %v10497 = vpack.c.b16 %v9673, %v9665
    %v10498 = vpack.c.b16 %v9674, %v9666
    %v10499 = vpack.c.b16 %v9675, %v9667
    %v10500 = vpack.c.b16 %v9676, %v9668
    %v10501 = vpack.c.b16 %v9677, %v9669
    %v10502 = vpack.c.b16 %v9678, %v9670
    %v10503 = vpack.c.b16 %v9679, %v9671
    %v10504 = vpack.c.b16 %v9680, %v9672
    %v10505 = vpack.c.b16 %v9689, %v9681
    %v10506 = vpack.c.b16 %v9690, %v9682
    %v10507 = vpack.c.b16 %v9691, %v9683
    %v10508 = vpack.c.b16 %v9692, %v9684
    %v10509 = vpack.c.b16 %v9693, %v9685
    %v10510 = vpack.c.b16 %v9694, %v9686
    %v10511 = vpack.c.b16 %v9695, %v9687
    %v10512 = vpack.c.b16 %v9696, %v9688
    %v10513 = vpack.c.b16 %v9705, %v9697
    %v10514 = vpack.c.b16 %v9706, %v9698
    %v10515 = vpack.c.b16 %v9707, %v9699
    %v10516 = vpack.c.b16 %v9708, %v9700
    %v10517 = vpack.c.b16 %v9709, %v9701
    %v10518 = vpack.c.b16 %v9710, %v9702
    %v10519 = vpack.c.b16 %v9711, %v9703
    %v10520 = vpack.c.b16 %v9712, %v9704
    %v10521 = vpack.c.b16 %v9721, %v9713
    %v10522 = vpack.c.b16 %v9722, %v9714
    %v10523 = vpack.c.b16 %v9723, %v9715
    %v10524 = vpack.c.b16 %v9724, %v9716
    %v10525 = vpack.c.b16 %v9725, %v9717
    %v10526 = vpack.c.b16 %v9726, %v9718
    %v10527 = vpack.c.b16 %v9727, %v9719
    %v10528 = vpack.c.b16 %v9728, %v9720
    %v10529 = vpack.c.b16 %v9737, %v9729
    %v10530 = vpack.c.b16 %v9738, %v9730
    %v10531 = vpack.c.b16 %v9739, %v9731
    %v10532 = vpack.c.b16 %v9740, %v9732
    %v10533 = vpack.c.b16 %v9741, %v9733
    %v10534 = vpack.c.b16 %v9742, %v9734
    %v10535 = vpack.c.b16 %v9743, %v9735
    %v10536 = vpack.c.b16 %v9744, %v9736
    %v10537 = vpack.c.b16 %v9753, %v9745
    %v10538 = vpack.c.b16 %v9754, %v9746
    %v10539 = vpack.c.b16 %v9755, %v9747
    %v10540 = vpack.c.b16 %v9756, %v9748
    %v10541 = vpack.c.b16 %v9757, %v9749
    %v10542 = vpack.c.b16 %v9758, %v9750
    %v10543 = vpack.c.b16 %v9759, %v9751
    %v10544 = vpack.c.b16 %v9760, %v9752
    %v10545 = vpack.c.b16 %v9769, %v9761
    %v10546 = vpack.c.b16 %v9770, %v9762
    %v10547 = vpack.c.b16 %v9771, %v9763
    %v10548 = vpack.c.b16 %v9772, %v9764
    %v10549 = vpack.c.b16 %v9773, %v9765
    %v10550 = vpack.c.b16 %v9774, %v9766
    %v10551 = vpack.c.b16 %v9775, %v9767
    %v10552 = vpack.c.b16 %v9776, %v9768
    %v10553 = vpack.c.b16 %v9785, %v9777
    %v10554 = vpack.c.b16 %v9786, %v9778
    %v10555 = vpack.c.b16 %v9787, %v9779
    %v10556 = vpack.c.b16 %v9788, %v9780
    %v10557 = vpack.c.b16 %v9789, %v9781
    %v10558 = vpack.c.b16 %v9790, %v9782
    %v10559 = vpack.c.b16 %v9791, %v9783
    %v10560 = vpack.c.b16 %v9792, %v9784
    %v10561 = vpack.c.b16 %v9801, %v9793
    %v10562 = vpack.c.b16 %v9802, %v9794
    %v10563 = vpack.c.b16 %v9803, %v9795
    %v10564 = vpack.c.b16 %v9804, %v9796
    %v10565 = vpack.c.b16 %v9805, %v9797
    %v10566 = vpack.c.b16 %v9806, %v9798
    %v10567 = vpack.c.b16 %v9807, %v9799
    %v10568 = vpack.c.b16 %v9808, %v9800
    %v10569 = vpack.c.b16 %v9817, %v9809
    %v10570 = vpack.c.b16 %v9818, %v9810
    %v10571 = vpack.c.b16 %v9819, %v9811
    %v10572 = vpack.c.b16 %v9820, %v9812
    %v10573 = vpack.c.b16 %v9821, %v9813
    %v10574 = vpack.c.b16 %v9822, %v9814
    %v10575 = vpack.c.b16 %v9823, %v9815
    %v10576 = vpack.c.b16 %v9824, %v9816
    %v10577 = vpack.c.b16 %v9833, %v9825
    %v10578 = vpack.c.b16 %v9834, %v9826
    %v10579 = vpack.c.b16 %v9835, %v9827
    %v10580 = vpack.c.b16 %v9836, %v9828
    %v10581 = vpack.c.b16 %v9837, %v9829
    %v10582 = vpack.c.b16 %v9838, %v9830
    %v10583 = vpack.c.b16 %v9839, %v9831
    %v10584 = vpack.c.b16 %v9840, %v9832
    %v10585 = vpack.c.b16 %v9849, %v9841
    %v10586 = vpack.c.b16 %v9850, %v9842
    %v10587 = vpack.c.b16 %v9851, %v9843
    %v10588 = vpack.c.b16 %v9852, %v9844
    %v10589 = vpack.c.b16 %v9853, %v9845
    %v10590 = vpack.c.b16 %v9854, %v9846
    %v10591 = vpack.c.b16 %v9855, %v9847
    %v10592 = vpack.c.b16 %v9856, %v9848
    %v10593 = vpack.c.b16 %v9865, %v9857
    %v10594 = vpack.c.b16 %v9866, %v9858
    %v10595 = vpack.c.b16 %v9867, %v9859
    %v10596 = vpack.c.b16 %v9868, %v9860
    %v10597 = vpack.c.b16 %v9869, %v9861
    %v10598 = vpack.c.b16 %v9870, %v9862
    %v10599 = vpack.c.b16 %v9871, %v9863
    %v10600 = vpack.c.b16 %v9872, %v9864
    %v10601 = vpack.c.b16 %v9881, %v9873
    %v10602 = vpack.c.b16 %v9882, %v9874
    %v10603 = vpack.c.b16 %v9883, %v9875
    %v10604 = vpack.c.b16 %v9884, %v9876
    %v10605 = vpack.c.b16 %v9885, %v9877
    %v10606 = vpack.c.b16 %v9886, %v9878
    %v10607 = vpack.c.b16 %v9887, %v9879
    %v10608 = vpack.c.b16 %v9888, %v9880
    %v10609 = vpack.c.b16 %v9897, %v9889
    %v10610 = vpack.c.b16 %v9898, %v9890
    %v10611 = vpack.c.b16 %v9899, %v9891
    %v10612 = vpack.c.b16 %v9900, %v9892
    %v10613 = vpack.c.b16 %v9901, %v9893
    %v10614 = vpack.c.b16 %v9902, %v9894
    %v10615 = vpack.c.b16 %v9903, %v9895
    %v10616 = vpack.c.b16 %v9904, %v9896
    %v10617 = vpack.c.b16 %v9913, %v9905
    %v10618 = vpack.c.b16 %v9914, %v9906
    %v10619 = vpack.c.b16 %v9915, %v9907
    %v10620 = vpack.c.b16 %v9916, %v9908
    %v10621 = vpack.c.b16 %v9917, %v9909
    %v10622 = vpack.c.b16 %v9918, %v9910
    %v10623 = vpack.c.b16 %v9919, %v9911
    %v10624 = vpack.c.b16 %v9920, %v9912
    %v10625 = vpack.c.b16 %v9929, %v9921
    %v10626 = vpack.c.b16 %v9930, %v9922
    %v10627 = vpack.c.b16 %v9931, %v9923
    %v10628 = vpack.c.b16 %v9932, %v9924
    %v10629 = vpack.c.b16 %v9933, %v9925
    %v10630 = vpack.c.b16 %v9934, %v9926
    %v10631 = vpack.c.b16 %v9935, %v9927
    %v10632 = vpack.c.b16 %v9936, %v9928
    %v10633 = vpack.c.b16 %v9945, %v9937
    %v10634 = vpack.c.b16 %v9946, %v9938
    %v10635 = vpack.c.b16 %v9947, %v9939
    %v10636 = vpack.c.b16 %v9948, %v9940
    %v10637 = vpack.c.b16 %v9949, %v9941
    %v10638 = vpack.c.b16 %v9950, %v9942
    %v10639 = vpack.c.b16 %v9951, %v9943
    %v10640 = vpack.c.b16 %v9952, %v9944
    %v10641 = vpack.c.b16 %v9961, %v9953
    %v10642 = vpack.c.b16 %v9962, %v9954
    %v10643 = vpack.c.b16 %v9963, %v9955
    %v10644 = vpack.c.b16 %v9964, %v9956
    %v10645 = vpack.c.b16 %v9965, %v9957
    %v10646 = vpack.c.b16 %v9966, %v9958
    %v10647 = vpack.c.b16 %v9967, %v9959
    %v10648 = vpack.c.b16 %v9968, %v9960
    %v10649 = vpack.c.b16 %v9977, %v9969
    %v10650 = vpack.c.b16 %v9978, %v9970
    %v10651 = vpack.c.b16 %v9979, %v9971
    %v10652 = vpack.c.b16 %v9980, %v9972
    %v10653 = vpack.c.b16 %v9981, %v9973
    %v10654 = vpack.c.b16 %v9982, %v9974
    %v10655 = vpack.c.b16 %v9983, %v9975
    %v10656 = vpack.c.b16 %v9984, %v9976
    %v10657 = vpack.c.b16 %v9993, %v9985
    %v10658 = vpack.c.b16 %v9994, %v9986
    %v10659 = vpack.c.b16 %v9995, %v9987
    %v10660 = vpack.c.b16 %v9996, %v9988
    %v10661 = vpack.c.b16 %v9997, %v9989
    %v10662 = vpack.c.b16 %v9998, %v9990
    %v10663 = vpack.c.b16 %v9999, %v9991
    %v10664 = vpack.c.b16 %v10000, %v9992
    %v10665 = vpack.c.b16 %v10009, %v10001
    %v10666 = vpack.c.b16 %v10010, %v10002
    %v10667 = vpack.c.b16 %v10011, %v10003
    %v10668 = vpack.c.b16 %v10012, %v10004
    %v10669 = vpack.c.b16 %v10013, %v10005
    %v10670 = vpack.c.b16 %v10014, %v10006
    %v10671 = vpack.c.b16 %v10015, %v10007
    %v10672 = vpack.c.b16 %v10016, %v10008
    %v10673 = vpack.c.b16 %v10025, %v10017
    %v10674 = vpack.c.b16 %v10026, %v10018
    %v10675 = vpack.c.b16 %v10027, %v10019
    %v10676 = vpack.c.b16 %v10028, %v10020
    %v10677 = vpack.c.b16 %v10029, %v10021
    %v10678 = vpack.c.b16 %v10030, %v10022
    %v10679 = vpack.c.b16 %v10031, %v10023
    %v10680 = vpack.c.b16 %v10032, %v10024
    %v10681 = vpack.c.b16 %v10041, %v10033
    %v10682 = vpack.c.b16 %v10042, %v10034
    %v10683 = vpack.c.b16 %v10043, %v10035
    %v10684 = vpack.c.b16 %v10044, %v10036
    %v10685 = vpack.c.b16 %v10045, %v10037
    %v10686 = vpack.c.b16 %v10046, %v10038
    %v10687 = vpack.c.b16 %v10047, %v10039
    %v10688 = vpack.c.b16 %v10048, %v10040
    %v10689 = vpack.c.b16 %v10057, %v10049
    %v10690 = vpack.c.b16 %v10058, %v10050
    %v10691 = vpack.c.b16 %v10059, %v10051
    %v10692 = vpack.c.b16 %v10060, %v10052
    %v10693 = vpack.c.b16 %v10061, %v10053
    %v10694 = vpack.c.b16 %v10062, %v10054
    %v10695 = vpack.c.b16 %v10063, %v10055
    %v10696 = vpack.c.b16 %v10064, %v10056
    %v10697 = vpack.c.b16 %v10073, %v10065
    %v10698 = vpack.c.b16 %v10074, %v10066
    %v10699 = vpack.c.b16 %v10075, %v10067
    %v10700 = vpack.c.b16 %v10076, %v10068
    %v10701 = vpack.c.b16 %v10077, %v10069
    %v10702 = vpack.c.b16 %v10078, %v10070
    %v10703 = vpack.c.b16 %v10079, %v10071
    %v10704 = vpack.c.b16 %v10080, %v10072
    %v10705 = vpack.c.b16 %v10089, %v10081
    %v10706 = vpack.c.b16 %v10090, %v10082
    %v10707 = vpack.c.b16 %v10091, %v10083
    %v10708 = vpack.c.b16 %v10092, %v10084
    %v10709 = vpack.c.b16 %v10093, %v10085
    %v10710 = vpack.c.b16 %v10094, %v10086
    %v10711 = vpack.c.b16 %v10095, %v10087
    %v10712 = vpack.c.b16 %v10096, %v10088
    %v10713 = vpack.c.b16 %v10105, %v10097
    %v10714 = vpack.c.b16 %v10106, %v10098
    %v10715 = vpack.c.b16 %v10107, %v10099
    %v10716 = vpack.c.b16 %v10108, %v10100
    %v10717 = vpack.c.b16 %v10109, %v10101
    %v10718 = vpack.c.b16 %v10110, %v10102
    %v10719 = vpack.c.b16 %v10111, %v10103
    %v10720 = vpack.c.b16 %v10112, %v10104
    %v10721 = vpack.c.b16 %v10121, %v10113
    %v10722 = vpack.c.b16 %v10122, %v10114
    %v10723 = vpack.c.b16 %v10123, %v10115
    %v10724 = vpack.c.b16 %v10124, %v10116
    %v10725 = vpack.c.b16 %v10125, %v10117
    %v10726 = vpack.c.b16 %v10126, %v10118
    %v10727 = vpack.c.b16 %v10127, %v10119
    %v10728 = vpack.c.b16 %v10128, %v10120
    %v10729 = vpack.c.b16 %v10137, %v10129
    %v10730 = vpack.c.b16 %v10138, %v10130
    %v10731 = vpack.c.b16 %v10139, %v10131
    %v10732 = vpack.c.b16 %v10140, %v10132
    %v10733 = vpack.c.b16 %v10141, %v10133
    %v10734 = vpack.c.b16 %v10142, %v10134
    %v10735 = vpack.c.b16 %v10143, %v10135
    %v10736 = vpack.c.b16 %v10144, %v10136
    %v10737 = vpack.c.b16 %v10153, %v10145
    %v10738 = vpack.c.b16 %v10154, %v10146
    %v10739 = vpack.c.b16 %v10155, %v10147
    %v10740 = vpack.c.b16 %v10156, %v10148
    %v10741 = vpack.c.b16 %v10157, %v10149
    %v10742 = vpack.c.b16 %v10158, %v10150
    %v10743 = vpack.c.b16 %v10159, %v10151
    %v10744 = vpack.c.b16 %v10160, %v10152
    %v10745 = vpack.c.b16 %v10169, %v10161
    %v10746 = vpack.c.b16 %v10170, %v10162
    %v10747 = vpack.c.b16 %v10171, %v10163
    %v10748 = vpack.c.b16 %v10172, %v10164
    %v10749 = vpack.c.b16 %v10173, %v10165
    %v10750 = vpack.c.b16 %v10174, %v10166
    %v10751 = vpack.c.b16 %v10175, %v10167
    %v10752 = vpack.c.b16 %v10176, %v10168
    %v10753 = vpack.c.b16 %v10185, %v10177
    %v10754 = vpack.c.b16 %v10186, %v10178
    %v10755 = vpack.c.b16 %v10187, %v10179
    %v10756 = vpack.c.b16 %v10188, %v10180
    %v10757 = vpack.c.b16 %v10189, %v10181
    %v10758 = vpack.c.b16 %v10190, %v10182
    %v10759 = vpack.c.b16 %v10191, %v10183
    %v10760 = vpack.c.b16 %v10192, %v10184
    %v10761 = vpack.c.b16 %v10201, %v10193
    %v10762 = vpack.c.b16 %v10202, %v10194
    %v10763 = vpack.c.b16 %v10203, %v10195
    %v10764 = vpack.c.b16 %v10204, %v10196
    %v10765 = vpack.c.b16 %v10205, %v10197
    %v10766 = vpack.c.b16 %v10206, %v10198
    %v10767 = vpack.c.b16 %v10207, %v10199
    %v10768 = vpack.c.b16 %v10208, %v10200
    %v10769 = vpack.c.b16 %v10217, %v10209
    %v10770 = vpack.c.b16 %v10218, %v10210
    %v10771 = vpack.c.b16 %v10219, %v10211
    %v10772 = vpack.c.b16 %v10220, %v10212
    %v10773 = vpack.c.b16 %v10221, %v10213
    %v10774 = vpack.c.b16 %v10222, %v10214
    %v10775 = vpack.c.b16 %v10223, %v10215
    %v10776 = vpack.c.b16 %v10224, %v10216
    %v10777 = vpack.c.b16 %v10233, %v10225
    %v10778 = vpack.c.b16 %v10234, %v10226
    %v10779 = vpack.c.b16 %v10235, %v10227
    %v10780 = vpack.c.b16 %v10236, %v10228
    %v10781 = vpack.c.b16 %v10237, %v10229
    %v10782 = vpack.c.b16 %v10238, %v10230
    %v10783 = vpack.c.b16 %v10239, %v10231
    %v10784 = vpack.c.b16 %v10240, %v10232
    %v10785 = vpack.c.b16 %v10249, %v10241
    %v10786 = vpack.c.b16 %v10250, %v10242
    %v10787 = vpack.c.b16 %v10251, %v10243
    %v10788 = vpack.c.b16 %v10252, %v10244
    %v10789 = vpack.c.b16 %v10253, %v10245
    %v10790 = vpack.c.b16 %v10254, %v10246
    %v10791 = vpack.c.b16 %v10255, %v10247
    %v10792 = vpack.c.b16 %v10256, %v10248
    %v10793 = vpack.c.b16 %v10265, %v10257
    %v10794 = vpack.c.b16 %v10266, %v10258
    %v10795 = vpack.c.b16 %v10267, %v10259
    %v10796 = vpack.c.b16 %v10268, %v10260
    %v10797 = vpack.c.b16 %v10269, %v10261
    %v10798 = vpack.c.b16 %v10270, %v10262
    %v10799 = vpack.c.b16 %v10271, %v10263
    %v10800 = vpack.c.b16 %v10272, %v10264
    %v10801 = vpack.c.b16 %v10281, %v10273
    %v10802 = vpack.c.b16 %v10282, %v10274
    %v10803 = vpack.c.b16 %v10283, %v10275
    %v10804 = vpack.c.b16 %v10284, %v10276
    %v10805 = vpack.c.b16 %v10285, %v10277
    %v10806 = vpack.c.b16 %v10286, %v10278
    %v10807 = vpack.c.b16 %v10287, %v10279
    %v10808 = vpack.c.b16 %v10288, %v10280
    %v10809 = vpack.c.b16 %v10297, %v10289
    %v10810 = vpack.c.b16 %v10298, %v10290
    %v10811 = vpack.c.b16 %v10299, %v10291
    %v10812 = vpack.c.b16 %v10300, %v10292
    %v10813 = vpack.c.b16 %v10301, %v10293
    %v10814 = vpack.c.b16 %v10302, %v10294
    %v10815 = vpack.c.b16 %v10303, %v10295
    %v10816 = vpack.c.b16 %v10304, %v10296
    %11329 = vmatpush.bf16.msra.mxu0 %v10361
    %11330 = vmatpush.bf16.msra.mxu0 %v10353
    %11331 = vmatpush.bf16.msra.mxu0 %v10345
    %11332 = vmatpush.bf16.msra.mxu0 %v10337
    %11333 = vmatpush.bf16.msra.mxu0 %v10329
    %11334 = vmatpush.bf16.msra.mxu0 %v10321
    %11335 = vmatpush.bf16.msra.mxu0 %v10313
    %11336 = vmatpush.bf16.msra.mxu0 %v10305
    %11337 = vmatmul.bf16.gmra.mxu0 %v3672
    %v11338 = vpop.f32.mrf.mxu0
    %v11339 = vadd.f32 %v8753, %v11338
    %v11340 = vpop.f32.mrf.mxu0
    %11341 = vdwg.mxu0
    %11342 = vmatpush.bf16.msra.mxu0 %v10425
    %11343 = vmatpush.bf16.msra.mxu0 %v10417
    %11344 = vmatpush.bf16.msra.mxu0 %v10409
    %11345 = vmatpush.bf16.msra.mxu0 %v10401
    %11346 = vmatpush.bf16.msra.mxu0 %v10393
    %11347 = vmatpush.bf16.msra.mxu0 %v10385
    %11348 = vmatpush.bf16.msra.mxu0 %v10377
    %11349 = vmatpush.bf16.msra.mxu0 %v10369
    %11350 = vmatmul.bf16.gmra.mxu0 %v3673
    %v11351 = vpop.f32.mrf.mxu0
    %v11352 = vadd.f32 %v11339, %v11351
    %v11353 = vpop.f32.mrf.mxu0
    %11354 = vdwg.mxu0
    %11355 = vmatpush.bf16.msra.mxu0 %v10489
    %11356 = vmatpush.bf16.msra.mxu0 %v10481
    %11357 = vmatpush.bf16.msra.mxu0 %v10473
    %11358 = vmatpush.bf16.msra.mxu0 %v10465
    %11359 = vmatpush.bf16.msra.mxu0 %v10457
    %11360 = vmatpush.bf16.msra.mxu0 %v10449
    %11361 = vmatpush.bf16.msra.mxu0 %v10441
    %11362 = vmatpush.bf16.msra.mxu0 %v10433
    %11363 = vmatmul.bf16.gmra.mxu0 %v3674
    %v11364 = vpop.f32.mrf.mxu0
    %v11365 = vadd.f32 %v11352, %v11364
    %v11366 = vpop.f32.mrf.mxu0
    %11367 = vdwg.mxu0
    %11368 = vmatpush.bf16.msra.mxu0 %v10553
    %11369 = vmatpush.bf16.msra.mxu0 %v10545
    %11370 = vmatpush.bf16.msra.mxu0 %v10537
    %11371 = vmatpush.bf16.msra.mxu0 %v10529
    %11372 = vmatpush.bf16.msra.mxu0 %v10521
    %11373 = vmatpush.bf16.msra.mxu0 %v10513
    %11374 = vmatpush.bf16.msra.mxu0 %v10505
    %11375 = vmatpush.bf16.msra.mxu0 %v10497
    %11376 = vmatmul.bf16.gmra.mxu0 %v3675
    %v11377 = vpop.f32.mrf.mxu0
    %v11378 = vadd.f32 %v11365, %v11377
    %v11379 = vpop.f32.mrf.mxu0
    %11380 = vdwg.mxu0
    %11381 = vmatpush.bf16.msra.mxu0 %v10617
    %11382 = vmatpush.bf16.msra.mxu0 %v10609
    %11383 = vmatpush.bf16.msra.mxu0 %v10601
    %11384 = vmatpush.bf16.msra.mxu0 %v10593
    %11385 = vmatpush.bf16.msra.mxu0 %v10585
    %11386 = vmatpush.bf16.msra.mxu0 %v10577
    %11387 = vmatpush.bf16.msra.mxu0 %v10569
    %11388 = vmatpush.bf16.msra.mxu0 %v10561
    %11389 = vmatmul.bf16.gmra.mxu0 %v3676
    %v11390 = vpop.f32.mrf.mxu0
    %v11391 = vadd.f32 %v11378, %v11390
    %v11392 = vpop.f32.mrf.mxu0
    %11393 = vdwg.mxu0
    %11394 = vmatpush.bf16.msra.mxu0 %v10681
    %11395 = vmatpush.bf16.msra.mxu0 %v10673
    %11396 = vmatpush.bf16.msra.mxu0 %v10665
    %11397 = vmatpush.bf16.msra.mxu0 %v10657
    %11398 = vmatpush.bf16.msra.mxu0 %v10649
    %11399 = vmatpush.bf16.msra.mxu0 %v10641
    %11400 = vmatpush.bf16.msra.mxu0 %v10633
    %11401 = vmatpush.bf16.msra.mxu0 %v10625
    %11402 = vmatmul.bf16.gmra.mxu0 %v3677
    %v11403 = vpop.f32.mrf.mxu0
    %v11404 = vadd.f32 %v11391, %v11403
    %v11405 = vpop.f32.mrf.mxu0
    %11406 = vdwg.mxu0
    %11407 = vmatpush.bf16.msra.mxu0 %v10745
    %11408 = vmatpush.bf16.msra.mxu0 %v10737
    %11409 = vmatpush.bf16.msra.mxu0 %v10729
    %11410 = vmatpush.bf16.msra.mxu0 %v10721
    %11411 = vmatpush.bf16.msra.mxu0 %v10713
    %11412 = vmatpush.bf16.msra.mxu0 %v10705
    %11413 = vmatpush.bf16.msra.mxu0 %v10697
    %11414 = vmatpush.bf16.msra.mxu0 %v10689
    %11415 = vmatmul.bf16.gmra.mxu0 %v3678
    %v11416 = vpop.f32.mrf.mxu0
    %v11417 = vadd.f32 %v11404, %v11416
    %v11418 = vpop.f32.mrf.mxu0
    %11419 = vdwg.mxu0
    %11420 = vmatpush.bf16.msra.mxu0 %v10809
    %11421 = vmatpush.bf16.msra.mxu0 %v10801
    %11422 = vmatpush.bf16.msra.mxu0 %v10793
    %11423 = vmatpush.bf16.msra.mxu0 %v10785
    %11424 = vmatpush.bf16.msra.mxu0 %v10777
    %11425 = vmatpush.bf16.msra.mxu0 %v10769
    %11426 = vmatpush.bf16.msra.mxu0 %v10761
    %11427 = vmatpush.bf16.msra.mxu0 %v10753
    %11428 = vmatmul.bf16.gmra.mxu0 %v3679
    %v11429 = vpop.f32.mrf.mxu0
    %v11430 = vadd.f32 %v11417, %v11429
    %v11431 = vpop.f32.mrf.mxu0
    %11432 = vdwg.mxu0
    %11433 = vmatpush.bf16.msra.mxu0 %v10362
    %11434 = vmatpush.bf16.msra.mxu0 %v10354
    %11435 = vmatpush.bf16.msra.mxu0 %v10346
    %11436 = vmatpush.bf16.msra.mxu0 %v10338
    %11437 = vmatpush.bf16.msra.mxu0 %v10330
    %11438 = vmatpush.bf16.msra.mxu0 %v10322
    %11439 = vmatpush.bf16.msra.mxu0 %v10314
    %11440 = vmatpush.bf16.msra.mxu0 %v10306
    %11441 = vmatmul.bf16.gmra.mxu0 %v3672
    %v11442 = vpop.f32.mrf.mxu0
    %v11443 = vadd.f32 %v8754, %v11442
    %v11444 = vpop.f32.mrf.mxu0
    %11445 = vdwg.mxu0
    %11446 = vmatpush.bf16.msra.mxu0 %v10426
    %11447 = vmatpush.bf16.msra.mxu0 %v10418
    %11448 = vmatpush.bf16.msra.mxu0 %v10410
    %11449 = vmatpush.bf16.msra.mxu0 %v10402
    %11450 = vmatpush.bf16.msra.mxu0 %v10394
    %11451 = vmatpush.bf16.msra.mxu0 %v10386
    %11452 = vmatpush.bf16.msra.mxu0 %v10378
    %11453 = vmatpush.bf16.msra.mxu0 %v10370
    %11454 = vmatmul.bf16.gmra.mxu0 %v3673
    %v11455 = vpop.f32.mrf.mxu0
    %v11456 = vadd.f32 %v11443, %v11455
    %v11457 = vpop.f32.mrf.mxu0
    %11458 = vdwg.mxu0
    %11459 = vmatpush.bf16.msra.mxu0 %v10490
    %11460 = vmatpush.bf16.msra.mxu0 %v10482
    %11461 = vmatpush.bf16.msra.mxu0 %v10474
    %11462 = vmatpush.bf16.msra.mxu0 %v10466
    %11463 = vmatpush.bf16.msra.mxu0 %v10458
    %11464 = vmatpush.bf16.msra.mxu0 %v10450
    %11465 = vmatpush.bf16.msra.mxu0 %v10442
    %11466 = vmatpush.bf16.msra.mxu0 %v10434
    %11467 = vmatmul.bf16.gmra.mxu0 %v3674
    %v11468 = vpop.f32.mrf.mxu0
    %v11469 = vadd.f32 %v11456, %v11468
    %v11470 = vpop.f32.mrf.mxu0
    %11471 = vdwg.mxu0
    %11472 = vmatpush.bf16.msra.mxu0 %v10554
    %11473 = vmatpush.bf16.msra.mxu0 %v10546
    %11474 = vmatpush.bf16.msra.mxu0 %v10538
    %11475 = vmatpush.bf16.msra.mxu0 %v10530
    %11476 = vmatpush.bf16.msra.mxu0 %v10522
    %11477 = vmatpush.bf16.msra.mxu0 %v10514
    %11478 = vmatpush.bf16.msra.mxu0 %v10506
    %11479 = vmatpush.bf16.msra.mxu0 %v10498
    %11480 = vmatmul.bf16.gmra.mxu0 %v3675
    %v11481 = vpop.f32.mrf.mxu0
    %v11482 = vadd.f32 %v11469, %v11481
    %v11483 = vpop.f32.mrf.mxu0
    %11484 = vdwg.mxu0
    %11485 = vmatpush.bf16.msra.mxu0 %v10618
    %11486 = vmatpush.bf16.msra.mxu0 %v10610
    %11487 = vmatpush.bf16.msra.mxu0 %v10602
    %11488 = vmatpush.bf16.msra.mxu0 %v10594
    %11489 = vmatpush.bf16.msra.mxu0 %v10586
    %11490 = vmatpush.bf16.msra.mxu0 %v10578
    %11491 = vmatpush.bf16.msra.mxu0 %v10570
    %11492 = vmatpush.bf16.msra.mxu0 %v10562
    %11493 = vmatmul.bf16.gmra.mxu0 %v3676
    %v11494 = vpop.f32.mrf.mxu0
    %v11495 = vadd.f32 %v11482, %v11494
    %v11496 = vpop.f32.mrf.mxu0
    %11497 = vdwg.mxu0
    %11498 = vmatpush.bf16.msra.mxu0 %v10682
    %11499 = vmatpush.bf16.msra.mxu0 %v10674
    %11500 = vmatpush.bf16.msra.mxu0 %v10666
    %11501 = vmatpush.bf16.msra.mxu0 %v10658
    %11502 = vmatpush.bf16.msra.mxu0 %v10650
    %11503 = vmatpush.bf16.msra.mxu0 %v10642
    %11504 = vmatpush.bf16.msra.mxu0 %v10634
    %11505 = vmatpush.bf16.msra.mxu0 %v10626
    %11506 = vmatmul.bf16.gmra.mxu0 %v3677
    %v11507 = vpop.f32.mrf.mxu0
    %v11508 = vadd.f32 %v11495, %v11507
    %v11509 = vpop.f32.mrf.mxu0
    %11510 = vdwg.mxu0
    %11511 = vmatpush.bf16.msra.mxu0 %v10746
    %11512 = vmatpush.bf16.msra.mxu0 %v10738
    %11513 = vmatpush.bf16.msra.mxu0 %v10730
    %11514 = vmatpush.bf16.msra.mxu0 %v10722
    %11515 = vmatpush.bf16.msra.mxu0 %v10714
    %11516 = vmatpush.bf16.msra.mxu0 %v10706
    %11517 = vmatpush.bf16.msra.mxu0 %v10698
    %11518 = vmatpush.bf16.msra.mxu0 %v10690
    %11519 = vmatmul.bf16.gmra.mxu0 %v3678
    %v11520 = vpop.f32.mrf.mxu0
    %v11521 = vadd.f32 %v11508, %v11520
    %v11522 = vpop.f32.mrf.mxu0
    %11523 = vdwg.mxu0
    %11524 = vmatpush.bf16.msra.mxu0 %v10810
    %11525 = vmatpush.bf16.msra.mxu0 %v10802
    %11526 = vmatpush.bf16.msra.mxu0 %v10794
    %11527 = vmatpush.bf16.msra.mxu0 %v10786
    %11528 = vmatpush.bf16.msra.mxu0 %v10778
    %11529 = vmatpush.bf16.msra.mxu0 %v10770
    %11530 = vmatpush.bf16.msra.mxu0 %v10762
    %11531 = vmatpush.bf16.msra.mxu0 %v10754
    %11532 = vmatmul.bf16.gmra.mxu0 %v3679
    %v11533 = vpop.f32.mrf.mxu0
    %v11534 = vadd.f32 %v11521, %v11533
    %v11535 = vpop.f32.mrf.mxu0
    %11536 = vdwg.mxu0
    %11537 = vmatpush.bf16.msra.mxu0 %v10363
    %11538 = vmatpush.bf16.msra.mxu0 %v10355
    %11539 = vmatpush.bf16.msra.mxu0 %v10347
    %11540 = vmatpush.bf16.msra.mxu0 %v10339
    %11541 = vmatpush.bf16.msra.mxu0 %v10331
    %11542 = vmatpush.bf16.msra.mxu0 %v10323
    %11543 = vmatpush.bf16.msra.mxu0 %v10315
    %11544 = vmatpush.bf16.msra.mxu0 %v10307
    %11545 = vmatmul.bf16.gmra.mxu0 %v3672
    %v11546 = vpop.f32.mrf.mxu0
    %v11547 = vadd.f32 %v8755, %v11546
    %v11548 = vpop.f32.mrf.mxu0
    %11549 = vdwg.mxu0
    %11550 = vmatpush.bf16.msra.mxu0 %v10427
    %11551 = vmatpush.bf16.msra.mxu0 %v10419
    %11552 = vmatpush.bf16.msra.mxu0 %v10411
    %11553 = vmatpush.bf16.msra.mxu0 %v10403
    %11554 = vmatpush.bf16.msra.mxu0 %v10395
    %11555 = vmatpush.bf16.msra.mxu0 %v10387
    %11556 = vmatpush.bf16.msra.mxu0 %v10379
    %11557 = vmatpush.bf16.msra.mxu0 %v10371
    %11558 = vmatmul.bf16.gmra.mxu0 %v3673
    %v11559 = vpop.f32.mrf.mxu0
    %v11560 = vadd.f32 %v11547, %v11559
    %v11561 = vpop.f32.mrf.mxu0
    %11562 = vdwg.mxu0
    %11563 = vmatpush.bf16.msra.mxu0 %v10491
    %11564 = vmatpush.bf16.msra.mxu0 %v10483
    %11565 = vmatpush.bf16.msra.mxu0 %v10475
    %11566 = vmatpush.bf16.msra.mxu0 %v10467
    %11567 = vmatpush.bf16.msra.mxu0 %v10459
    %11568 = vmatpush.bf16.msra.mxu0 %v10451
    %11569 = vmatpush.bf16.msra.mxu0 %v10443
    %11570 = vmatpush.bf16.msra.mxu0 %v10435
    %11571 = vmatmul.bf16.gmra.mxu0 %v3674
    %v11572 = vpop.f32.mrf.mxu0
    %v11573 = vadd.f32 %v11560, %v11572
    %v11574 = vpop.f32.mrf.mxu0
    %11575 = vdwg.mxu0
    %11576 = vmatpush.bf16.msra.mxu0 %v10555
    %11577 = vmatpush.bf16.msra.mxu0 %v10547
    %11578 = vmatpush.bf16.msra.mxu0 %v10539
    %11579 = vmatpush.bf16.msra.mxu0 %v10531
    %11580 = vmatpush.bf16.msra.mxu0 %v10523
    %11581 = vmatpush.bf16.msra.mxu0 %v10515
    %11582 = vmatpush.bf16.msra.mxu0 %v10507
    %11583 = vmatpush.bf16.msra.mxu0 %v10499
    %11584 = vmatmul.bf16.gmra.mxu0 %v3675
    %v11585 = vpop.f32.mrf.mxu0
    %v11586 = vadd.f32 %v11573, %v11585
    %v11587 = vpop.f32.mrf.mxu0
    %11588 = vdwg.mxu0
    %11589 = vmatpush.bf16.msra.mxu0 %v10619
    %11590 = vmatpush.bf16.msra.mxu0 %v10611
    %11591 = vmatpush.bf16.msra.mxu0 %v10603
    %11592 = vmatpush.bf16.msra.mxu0 %v10595
    %11593 = vmatpush.bf16.msra.mxu0 %v10587
    %11594 = vmatpush.bf16.msra.mxu0 %v10579
    %11595 = vmatpush.bf16.msra.mxu0 %v10571
    %11596 = vmatpush.bf16.msra.mxu0 %v10563
    %11597 = vmatmul.bf16.gmra.mxu0 %v3676
    %v11598 = vpop.f32.mrf.mxu0
    %v11599 = vadd.f32 %v11586, %v11598
    %v11600 = vpop.f32.mrf.mxu0
    %11601 = vdwg.mxu0
    %11602 = vmatpush.bf16.msra.mxu0 %v10683
    %11603 = vmatpush.bf16.msra.mxu0 %v10675
    %11604 = vmatpush.bf16.msra.mxu0 %v10667
    %11605 = vmatpush.bf16.msra.mxu0 %v10659
    %11606 = vmatpush.bf16.msra.mxu0 %v10651
    %11607 = vmatpush.bf16.msra.mxu0 %v10643
    %11608 = vmatpush.bf16.msra.mxu0 %v10635
    %11609 = vmatpush.bf16.msra.mxu0 %v10627
    %11610 = vmatmul.bf16.gmra.mxu0 %v3677
    %v11611 = vpop.f32.mrf.mxu0
    %v11612 = vadd.f32 %v11599, %v11611
    %v11613 = vpop.f32.mrf.mxu0
    %11614 = vdwg.mxu0
    %11615 = vmatpush.bf16.msra.mxu0 %v10747
    %11616 = vmatpush.bf16.msra.mxu0 %v10739
    %11617 = vmatpush.bf16.msra.mxu0 %v10731
    %11618 = vmatpush.bf16.msra.mxu0 %v10723
    %11619 = vmatpush.bf16.msra.mxu0 %v10715
    %11620 = vmatpush.bf16.msra.mxu0 %v10707
    %11621 = vmatpush.bf16.msra.mxu0 %v10699
    %11622 = vmatpush.bf16.msra.mxu0 %v10691
    %11623 = vmatmul.bf16.gmra.mxu0 %v3678
    %v11624 = vpop.f32.mrf.mxu0
    %v11625 = vadd.f32 %v11612, %v11624
    %v11626 = vpop.f32.mrf.mxu0
    %11627 = vdwg.mxu0
    %11628 = vmatpush.bf16.msra.mxu0 %v10811
    %11629 = vmatpush.bf16.msra.mxu0 %v10803
    %11630 = vmatpush.bf16.msra.mxu0 %v10795
    %11631 = vmatpush.bf16.msra.mxu0 %v10787
    %11632 = vmatpush.bf16.msra.mxu0 %v10779
    %11633 = vmatpush.bf16.msra.mxu0 %v10771
    %11634 = vmatpush.bf16.msra.mxu0 %v10763
    %11635 = vmatpush.bf16.msra.mxu0 %v10755
    %11636 = vmatmul.bf16.gmra.mxu0 %v3679
    %v11637 = vpop.f32.mrf.mxu0
    %v11638 = vadd.f32 %v11625, %v11637
    %v11639 = vpop.f32.mrf.mxu0
    %11640 = vdwg.mxu0
    %11641 = vmatpush.bf16.msra.mxu0 %v10364
    %11642 = vmatpush.bf16.msra.mxu0 %v10356
    %11643 = vmatpush.bf16.msra.mxu0 %v10348
    %11644 = vmatpush.bf16.msra.mxu0 %v10340
    %11645 = vmatpush.bf16.msra.mxu0 %v10332
    %11646 = vmatpush.bf16.msra.mxu0 %v10324
    %11647 = vmatpush.bf16.msra.mxu0 %v10316
    %11648 = vmatpush.bf16.msra.mxu0 %v10308
    %11649 = vmatmul.bf16.gmra.mxu0 %v3672
    %v11650 = vpop.f32.mrf.mxu0
    %v11651 = vadd.f32 %v8756, %v11650
    %v11652 = vpop.f32.mrf.mxu0
    %11653 = vdwg.mxu0
    %11654 = vmatpush.bf16.msra.mxu0 %v10428
    %11655 = vmatpush.bf16.msra.mxu0 %v10420
    %11656 = vmatpush.bf16.msra.mxu0 %v10412
    %11657 = vmatpush.bf16.msra.mxu0 %v10404
    %11658 = vmatpush.bf16.msra.mxu0 %v10396
    %11659 = vmatpush.bf16.msra.mxu0 %v10388
    %11660 = vmatpush.bf16.msra.mxu0 %v10380
    %11661 = vmatpush.bf16.msra.mxu0 %v10372
    %11662 = vmatmul.bf16.gmra.mxu0 %v3673
    %v11663 = vpop.f32.mrf.mxu0
    %v11664 = vadd.f32 %v11651, %v11663
    %v11665 = vpop.f32.mrf.mxu0
    %11666 = vdwg.mxu0
    %11667 = vmatpush.bf16.msra.mxu0 %v10492
    %11668 = vmatpush.bf16.msra.mxu0 %v10484
    %11669 = vmatpush.bf16.msra.mxu0 %v10476
    %11670 = vmatpush.bf16.msra.mxu0 %v10468
    %11671 = vmatpush.bf16.msra.mxu0 %v10460
    %11672 = vmatpush.bf16.msra.mxu0 %v10452
    %11673 = vmatpush.bf16.msra.mxu0 %v10444
    %11674 = vmatpush.bf16.msra.mxu0 %v10436
    %11675 = vmatmul.bf16.gmra.mxu0 %v3674
    %v11676 = vpop.f32.mrf.mxu0
    %v11677 = vadd.f32 %v11664, %v11676
    %v11678 = vpop.f32.mrf.mxu0
    %11679 = vdwg.mxu0
    %11680 = vmatpush.bf16.msra.mxu0 %v10556
    %11681 = vmatpush.bf16.msra.mxu0 %v10548
    %11682 = vmatpush.bf16.msra.mxu0 %v10540
    %11683 = vmatpush.bf16.msra.mxu0 %v10532
    %11684 = vmatpush.bf16.msra.mxu0 %v10524
    %11685 = vmatpush.bf16.msra.mxu0 %v10516
    %11686 = vmatpush.bf16.msra.mxu0 %v10508
    %11687 = vmatpush.bf16.msra.mxu0 %v10500
    %11688 = vmatmul.bf16.gmra.mxu0 %v3675
    %v11689 = vpop.f32.mrf.mxu0
    %v11690 = vadd.f32 %v11677, %v11689
    %v11691 = vpop.f32.mrf.mxu0
    %11692 = vdwg.mxu0
    %11693 = vmatpush.bf16.msra.mxu0 %v10620
    %11694 = vmatpush.bf16.msra.mxu0 %v10612
    %11695 = vmatpush.bf16.msra.mxu0 %v10604
    %11696 = vmatpush.bf16.msra.mxu0 %v10596
    %11697 = vmatpush.bf16.msra.mxu0 %v10588
    %11698 = vmatpush.bf16.msra.mxu0 %v10580
    %11699 = vmatpush.bf16.msra.mxu0 %v10572
    %11700 = vmatpush.bf16.msra.mxu0 %v10564
    %11701 = vmatmul.bf16.gmra.mxu0 %v3676
    %v11702 = vpop.f32.mrf.mxu0
    %v11703 = vadd.f32 %v11690, %v11702
    %v11704 = vpop.f32.mrf.mxu0
    %11705 = vdwg.mxu0
    %11706 = vmatpush.bf16.msra.mxu0 %v10684
    %11707 = vmatpush.bf16.msra.mxu0 %v10676
    %11708 = vmatpush.bf16.msra.mxu0 %v10668
    %11709 = vmatpush.bf16.msra.mxu0 %v10660
    %11710 = vmatpush.bf16.msra.mxu0 %v10652
    %11711 = vmatpush.bf16.msra.mxu0 %v10644
    %11712 = vmatpush.bf16.msra.mxu0 %v10636
    %11713 = vmatpush.bf16.msra.mxu0 %v10628
    %11714 = vmatmul.bf16.gmra.mxu0 %v3677
    %v11715 = vpop.f32.mrf.mxu0
    %v11716 = vadd.f32 %v11703, %v11715
    %v11717 = vpop.f32.mrf.mxu0
    %11718 = vdwg.mxu0
    %11719 = vmatpush.bf16.msra.mxu0 %v10748
    %11720 = vmatpush.bf16.msra.mxu0 %v10740
    %11721 = vmatpush.bf16.msra.mxu0 %v10732
    %11722 = vmatpush.bf16.msra.mxu0 %v10724
    %11723 = vmatpush.bf16.msra.mxu0 %v10716
    %11724 = vmatpush.bf16.msra.mxu0 %v10708
    %11725 = vmatpush.bf16.msra.mxu0 %v10700
    %11726 = vmatpush.bf16.msra.mxu0 %v10692
    %11727 = vmatmul.bf16.gmra.mxu0 %v3678
    %v11728 = vpop.f32.mrf.mxu0
    %v11729 = vadd.f32 %v11716, %v11728
    %v11730 = vpop.f32.mrf.mxu0
    %11731 = vdwg.mxu0
    %11732 = vmatpush.bf16.msra.mxu0 %v10812
    %11733 = vmatpush.bf16.msra.mxu0 %v10804
    %11734 = vmatpush.bf16.msra.mxu0 %v10796
    %11735 = vmatpush.bf16.msra.mxu0 %v10788
    %11736 = vmatpush.bf16.msra.mxu0 %v10780
    %11737 = vmatpush.bf16.msra.mxu0 %v10772
    %11738 = vmatpush.bf16.msra.mxu0 %v10764
    %11739 = vmatpush.bf16.msra.mxu0 %v10756
    %11740 = vmatmul.bf16.gmra.mxu0 %v3679
    %v11741 = vpop.f32.mrf.mxu0
    %v11742 = vadd.f32 %v11729, %v11741
    %v11743 = vpop.f32.mrf.mxu0
    %11744 = vdwg.mxu0
    %11745 = vmatpush.bf16.msra.mxu0 %v10365
    %11746 = vmatpush.bf16.msra.mxu0 %v10357
    %11747 = vmatpush.bf16.msra.mxu0 %v10349
    %11748 = vmatpush.bf16.msra.mxu0 %v10341
    %11749 = vmatpush.bf16.msra.mxu0 %v10333
    %11750 = vmatpush.bf16.msra.mxu0 %v10325
    %11751 = vmatpush.bf16.msra.mxu0 %v10317
    %11752 = vmatpush.bf16.msra.mxu0 %v10309
    %11753 = vmatmul.bf16.gmra.mxu0 %v3672
    %v11754 = vpop.f32.mrf.mxu0
    %v11755 = vadd.f32 %v8757, %v11754
    %v11756 = vpop.f32.mrf.mxu0
    %11757 = vdwg.mxu0
    %11758 = vmatpush.bf16.msra.mxu0 %v10429
    %11759 = vmatpush.bf16.msra.mxu0 %v10421
    %11760 = vmatpush.bf16.msra.mxu0 %v10413
    %11761 = vmatpush.bf16.msra.mxu0 %v10405
    %11762 = vmatpush.bf16.msra.mxu0 %v10397
    %11763 = vmatpush.bf16.msra.mxu0 %v10389
    %11764 = vmatpush.bf16.msra.mxu0 %v10381
    %11765 = vmatpush.bf16.msra.mxu0 %v10373
    %11766 = vmatmul.bf16.gmra.mxu0 %v3673
    %v11767 = vpop.f32.mrf.mxu0
    %v11768 = vadd.f32 %v11755, %v11767
    %v11769 = vpop.f32.mrf.mxu0
    %11770 = vdwg.mxu0
    %11771 = vmatpush.bf16.msra.mxu0 %v10493
    %11772 = vmatpush.bf16.msra.mxu0 %v10485
    %11773 = vmatpush.bf16.msra.mxu0 %v10477
    %11774 = vmatpush.bf16.msra.mxu0 %v10469
    %11775 = vmatpush.bf16.msra.mxu0 %v10461
    %11776 = vmatpush.bf16.msra.mxu0 %v10453
    %11777 = vmatpush.bf16.msra.mxu0 %v10445
    %11778 = vmatpush.bf16.msra.mxu0 %v10437
    %11779 = vmatmul.bf16.gmra.mxu0 %v3674
    %v11780 = vpop.f32.mrf.mxu0
    %v11781 = vadd.f32 %v11768, %v11780
    %v11782 = vpop.f32.mrf.mxu0
    %11783 = vdwg.mxu0
    %11784 = vmatpush.bf16.msra.mxu0 %v10557
    %11785 = vmatpush.bf16.msra.mxu0 %v10549
    %11786 = vmatpush.bf16.msra.mxu0 %v10541
    %11787 = vmatpush.bf16.msra.mxu0 %v10533
    %11788 = vmatpush.bf16.msra.mxu0 %v10525
    %11789 = vmatpush.bf16.msra.mxu0 %v10517
    %11790 = vmatpush.bf16.msra.mxu0 %v10509
    %11791 = vmatpush.bf16.msra.mxu0 %v10501
    %11792 = vmatmul.bf16.gmra.mxu0 %v3675
    %v11793 = vpop.f32.mrf.mxu0
    %v11794 = vadd.f32 %v11781, %v11793
    %v11795 = vpop.f32.mrf.mxu0
    %11796 = vdwg.mxu0
    %11797 = vmatpush.bf16.msra.mxu0 %v10621
    %11798 = vmatpush.bf16.msra.mxu0 %v10613
    %11799 = vmatpush.bf16.msra.mxu0 %v10605
    %11800 = vmatpush.bf16.msra.mxu0 %v10597
    %11801 = vmatpush.bf16.msra.mxu0 %v10589
    %11802 = vmatpush.bf16.msra.mxu0 %v10581
    %11803 = vmatpush.bf16.msra.mxu0 %v10573
    %11804 = vmatpush.bf16.msra.mxu0 %v10565
    %11805 = vmatmul.bf16.gmra.mxu0 %v3676
    %v11806 = vpop.f32.mrf.mxu0
    %v11807 = vadd.f32 %v11794, %v11806
    %v11808 = vpop.f32.mrf.mxu0
    %11809 = vdwg.mxu0
    %11810 = vmatpush.bf16.msra.mxu0 %v10685
    %11811 = vmatpush.bf16.msra.mxu0 %v10677
    %11812 = vmatpush.bf16.msra.mxu0 %v10669
    %11813 = vmatpush.bf16.msra.mxu0 %v10661
    %11814 = vmatpush.bf16.msra.mxu0 %v10653
    %11815 = vmatpush.bf16.msra.mxu0 %v10645
    %11816 = vmatpush.bf16.msra.mxu0 %v10637
    %11817 = vmatpush.bf16.msra.mxu0 %v10629
    %11818 = vmatmul.bf16.gmra.mxu0 %v3677
    %v11819 = vpop.f32.mrf.mxu0
    %v11820 = vadd.f32 %v11807, %v11819
    %v11821 = vpop.f32.mrf.mxu0
    %11822 = vdwg.mxu0
    %11823 = vmatpush.bf16.msra.mxu0 %v10749
    %11824 = vmatpush.bf16.msra.mxu0 %v10741
    %11825 = vmatpush.bf16.msra.mxu0 %v10733
    %11826 = vmatpush.bf16.msra.mxu0 %v10725
    %11827 = vmatpush.bf16.msra.mxu0 %v10717
    %11828 = vmatpush.bf16.msra.mxu0 %v10709
    %11829 = vmatpush.bf16.msra.mxu0 %v10701
    %11830 = vmatpush.bf16.msra.mxu0 %v10693
    %11831 = vmatmul.bf16.gmra.mxu0 %v3678
    %v11832 = vpop.f32.mrf.mxu0
    %v11833 = vadd.f32 %v11820, %v11832
    %v11834 = vpop.f32.mrf.mxu0
    %11835 = vdwg.mxu0
    %11836 = vmatpush.bf16.msra.mxu0 %v10813
    %11837 = vmatpush.bf16.msra.mxu0 %v10805
    %11838 = vmatpush.bf16.msra.mxu0 %v10797
    %11839 = vmatpush.bf16.msra.mxu0 %v10789
    %11840 = vmatpush.bf16.msra.mxu0 %v10781
    %11841 = vmatpush.bf16.msra.mxu0 %v10773
    %11842 = vmatpush.bf16.msra.mxu0 %v10765
    %11843 = vmatpush.bf16.msra.mxu0 %v10757
    %11844 = vmatmul.bf16.gmra.mxu0 %v3679
    %v11845 = vpop.f32.mrf.mxu0
    %v11846 = vadd.f32 %v11833, %v11845
    %v11847 = vpop.f32.mrf.mxu0
    %11848 = vdwg.mxu0
    %11849 = vmatpush.bf16.msra.mxu0 %v10366
    %11850 = vmatpush.bf16.msra.mxu0 %v10358
    %11851 = vmatpush.bf16.msra.mxu0 %v10350
    %11852 = vmatpush.bf16.msra.mxu0 %v10342
    %11853 = vmatpush.bf16.msra.mxu0 %v10334
    %11854 = vmatpush.bf16.msra.mxu0 %v10326
    %11855 = vmatpush.bf16.msra.mxu0 %v10318
    %11856 = vmatpush.bf16.msra.mxu0 %v10310
    %11857 = vmatmul.bf16.gmra.mxu0 %v3672
    %v11858 = vpop.f32.mrf.mxu0
    %v11859 = vadd.f32 %v8758, %v11858
    %v11860 = vpop.f32.mrf.mxu0
    %11861 = vdwg.mxu0
    %11862 = vmatpush.bf16.msra.mxu0 %v10430
    %11863 = vmatpush.bf16.msra.mxu0 %v10422
    %11864 = vmatpush.bf16.msra.mxu0 %v10414
    %11865 = vmatpush.bf16.msra.mxu0 %v10406
    %11866 = vmatpush.bf16.msra.mxu0 %v10398
    %11867 = vmatpush.bf16.msra.mxu0 %v10390
    %11868 = vmatpush.bf16.msra.mxu0 %v10382
    %11869 = vmatpush.bf16.msra.mxu0 %v10374
    %11870 = vmatmul.bf16.gmra.mxu0 %v3673
    %v11871 = vpop.f32.mrf.mxu0
    %v11872 = vadd.f32 %v11859, %v11871
    %v11873 = vpop.f32.mrf.mxu0
    %11874 = vdwg.mxu0
    %11875 = vmatpush.bf16.msra.mxu0 %v10494
    %11876 = vmatpush.bf16.msra.mxu0 %v10486
    %11877 = vmatpush.bf16.msra.mxu0 %v10478
    %11878 = vmatpush.bf16.msra.mxu0 %v10470
    %11879 = vmatpush.bf16.msra.mxu0 %v10462
    %11880 = vmatpush.bf16.msra.mxu0 %v10454
    %11881 = vmatpush.bf16.msra.mxu0 %v10446
    %11882 = vmatpush.bf16.msra.mxu0 %v10438
    %11883 = vmatmul.bf16.gmra.mxu0 %v3674
    %v11884 = vpop.f32.mrf.mxu0
    %v11885 = vadd.f32 %v11872, %v11884
    %v11886 = vpop.f32.mrf.mxu0
    %11887 = vdwg.mxu0
    %11888 = vmatpush.bf16.msra.mxu0 %v10558
    %11889 = vmatpush.bf16.msra.mxu0 %v10550
    %11890 = vmatpush.bf16.msra.mxu0 %v10542
    %11891 = vmatpush.bf16.msra.mxu0 %v10534
    %11892 = vmatpush.bf16.msra.mxu0 %v10526
    %11893 = vmatpush.bf16.msra.mxu0 %v10518
    %11894 = vmatpush.bf16.msra.mxu0 %v10510
    %11895 = vmatpush.bf16.msra.mxu0 %v10502
    %11896 = vmatmul.bf16.gmra.mxu0 %v3675
    %v11897 = vpop.f32.mrf.mxu0
    %v11898 = vadd.f32 %v11885, %v11897
    %v11899 = vpop.f32.mrf.mxu0
    %11900 = vdwg.mxu0
    %11901 = vmatpush.bf16.msra.mxu0 %v10622
    %11902 = vmatpush.bf16.msra.mxu0 %v10614
    %11903 = vmatpush.bf16.msra.mxu0 %v10606
    %11904 = vmatpush.bf16.msra.mxu0 %v10598
    %11905 = vmatpush.bf16.msra.mxu0 %v10590
    %11906 = vmatpush.bf16.msra.mxu0 %v10582
    %11907 = vmatpush.bf16.msra.mxu0 %v10574
    %11908 = vmatpush.bf16.msra.mxu0 %v10566
    %11909 = vmatmul.bf16.gmra.mxu0 %v3676
    %v11910 = vpop.f32.mrf.mxu0
    %v11911 = vadd.f32 %v11898, %v11910
    %v11912 = vpop.f32.mrf.mxu0
    %11913 = vdwg.mxu0
    %11914 = vmatpush.bf16.msra.mxu0 %v10686
    %11915 = vmatpush.bf16.msra.mxu0 %v10678
    %11916 = vmatpush.bf16.msra.mxu0 %v10670
    %11917 = vmatpush.bf16.msra.mxu0 %v10662
    %11918 = vmatpush.bf16.msra.mxu0 %v10654
    %11919 = vmatpush.bf16.msra.mxu0 %v10646
    %11920 = vmatpush.bf16.msra.mxu0 %v10638
    %11921 = vmatpush.bf16.msra.mxu0 %v10630
    %11922 = vmatmul.bf16.gmra.mxu0 %v3677
    %v11923 = vpop.f32.mrf.mxu0
    %v11924 = vadd.f32 %v11911, %v11923
    %v11925 = vpop.f32.mrf.mxu0
    %11926 = vdwg.mxu0
    %11927 = vmatpush.bf16.msra.mxu0 %v10750
    %11928 = vmatpush.bf16.msra.mxu0 %v10742
    %11929 = vmatpush.bf16.msra.mxu0 %v10734
    %11930 = vmatpush.bf16.msra.mxu0 %v10726
    %11931 = vmatpush.bf16.msra.mxu0 %v10718
    %11932 = vmatpush.bf16.msra.mxu0 %v10710
    %11933 = vmatpush.bf16.msra.mxu0 %v10702
    %11934 = vmatpush.bf16.msra.mxu0 %v10694
    %11935 = vmatmul.bf16.gmra.mxu0 %v3678
    %v11936 = vpop.f32.mrf.mxu0
    %v11937 = vadd.f32 %v11924, %v11936
    %v11938 = vpop.f32.mrf.mxu0
    %11939 = vdwg.mxu0
    %11940 = vmatpush.bf16.msra.mxu0 %v10814
    %11941 = vmatpush.bf16.msra.mxu0 %v10806
    %11942 = vmatpush.bf16.msra.mxu0 %v10798
    %11943 = vmatpush.bf16.msra.mxu0 %v10790
    %11944 = vmatpush.bf16.msra.mxu0 %v10782
    %11945 = vmatpush.bf16.msra.mxu0 %v10774
    %11946 = vmatpush.bf16.msra.mxu0 %v10766
    %11947 = vmatpush.bf16.msra.mxu0 %v10758
    %11948 = vmatmul.bf16.gmra.mxu0 %v3679
    %v11949 = vpop.f32.mrf.mxu0
    %v11950 = vadd.f32 %v11937, %v11949
    %v11951 = vpop.f32.mrf.mxu0
    %11952 = vdwg.mxu0
    %11953 = vmatpush.bf16.msra.mxu0 %v10367
    %11954 = vmatpush.bf16.msra.mxu0 %v10359
    %11955 = vmatpush.bf16.msra.mxu0 %v10351
    %11956 = vmatpush.bf16.msra.mxu0 %v10343
    %11957 = vmatpush.bf16.msra.mxu0 %v10335
    %11958 = vmatpush.bf16.msra.mxu0 %v10327
    %11959 = vmatpush.bf16.msra.mxu0 %v10319
    %11960 = vmatpush.bf16.msra.mxu0 %v10311
    %11961 = vmatmul.bf16.gmra.mxu0 %v3672
    %v11962 = vpop.f32.mrf.mxu0
    %v11963 = vadd.f32 %v8759, %v11962
    %v11964 = vpop.f32.mrf.mxu0
    %11965 = vdwg.mxu0
    %11966 = vmatpush.bf16.msra.mxu0 %v10431
    %11967 = vmatpush.bf16.msra.mxu0 %v10423
    %11968 = vmatpush.bf16.msra.mxu0 %v10415
    %11969 = vmatpush.bf16.msra.mxu0 %v10407
    %11970 = vmatpush.bf16.msra.mxu0 %v10399
    %11971 = vmatpush.bf16.msra.mxu0 %v10391
    %11972 = vmatpush.bf16.msra.mxu0 %v10383
    %11973 = vmatpush.bf16.msra.mxu0 %v10375
    %11974 = vmatmul.bf16.gmra.mxu0 %v3673
    %v11975 = vpop.f32.mrf.mxu0
    %v11976 = vadd.f32 %v11963, %v11975
    %v11977 = vpop.f32.mrf.mxu0
    %11978 = vdwg.mxu0
    %11979 = vmatpush.bf16.msra.mxu0 %v10495
    %11980 = vmatpush.bf16.msra.mxu0 %v10487
    %11981 = vmatpush.bf16.msra.mxu0 %v10479
    %11982 = vmatpush.bf16.msra.mxu0 %v10471
    %11983 = vmatpush.bf16.msra.mxu0 %v10463
    %11984 = vmatpush.bf16.msra.mxu0 %v10455
    %11985 = vmatpush.bf16.msra.mxu0 %v10447
    %11986 = vmatpush.bf16.msra.mxu0 %v10439
    %11987 = vmatmul.bf16.gmra.mxu0 %v3674
    %v11988 = vpop.f32.mrf.mxu0
    %v11989 = vadd.f32 %v11976, %v11988
    %v11990 = vpop.f32.mrf.mxu0
    %11991 = vdwg.mxu0
    %11992 = vmatpush.bf16.msra.mxu0 %v10559
    %11993 = vmatpush.bf16.msra.mxu0 %v10551
    %11994 = vmatpush.bf16.msra.mxu0 %v10543
    %11995 = vmatpush.bf16.msra.mxu0 %v10535
    %11996 = vmatpush.bf16.msra.mxu0 %v10527
    %11997 = vmatpush.bf16.msra.mxu0 %v10519
    %11998 = vmatpush.bf16.msra.mxu0 %v10511
    %11999 = vmatpush.bf16.msra.mxu0 %v10503
    %12000 = vmatmul.bf16.gmra.mxu0 %v3675
    %v12001 = vpop.f32.mrf.mxu0
    %v12002 = vadd.f32 %v11989, %v12001
    %v12003 = vpop.f32.mrf.mxu0
    %12004 = vdwg.mxu0
    %12005 = vmatpush.bf16.msra.mxu0 %v10623
    %12006 = vmatpush.bf16.msra.mxu0 %v10615
    %12007 = vmatpush.bf16.msra.mxu0 %v10607
    %12008 = vmatpush.bf16.msra.mxu0 %v10599
    %12009 = vmatpush.bf16.msra.mxu0 %v10591
    %12010 = vmatpush.bf16.msra.mxu0 %v10583
    %12011 = vmatpush.bf16.msra.mxu0 %v10575
    %12012 = vmatpush.bf16.msra.mxu0 %v10567
    %12013 = vmatmul.bf16.gmra.mxu0 %v3676
    %v12014 = vpop.f32.mrf.mxu0
    %v12015 = vadd.f32 %v12002, %v12014
    %v12016 = vpop.f32.mrf.mxu0
    %12017 = vdwg.mxu0
    %12018 = vmatpush.bf16.msra.mxu0 %v10687
    %12019 = vmatpush.bf16.msra.mxu0 %v10679
    %12020 = vmatpush.bf16.msra.mxu0 %v10671
    %12021 = vmatpush.bf16.msra.mxu0 %v10663
    %12022 = vmatpush.bf16.msra.mxu0 %v10655
    %12023 = vmatpush.bf16.msra.mxu0 %v10647
    %12024 = vmatpush.bf16.msra.mxu0 %v10639
    %12025 = vmatpush.bf16.msra.mxu0 %v10631
    %12026 = vmatmul.bf16.gmra.mxu0 %v3677
    %v12027 = vpop.f32.mrf.mxu0
    %v12028 = vadd.f32 %v12015, %v12027
    %v12029 = vpop.f32.mrf.mxu0
    %12030 = vdwg.mxu0
    %12031 = vmatpush.bf16.msra.mxu0 %v10751
    %12032 = vmatpush.bf16.msra.mxu0 %v10743
    %12033 = vmatpush.bf16.msra.mxu0 %v10735
    %12034 = vmatpush.bf16.msra.mxu0 %v10727
    %12035 = vmatpush.bf16.msra.mxu0 %v10719
    %12036 = vmatpush.bf16.msra.mxu0 %v10711
    %12037 = vmatpush.bf16.msra.mxu0 %v10703
    %12038 = vmatpush.bf16.msra.mxu0 %v10695
    %12039 = vmatmul.bf16.gmra.mxu0 %v3678
    %v12040 = vpop.f32.mrf.mxu0
    %v12041 = vadd.f32 %v12028, %v12040
    %v12042 = vpop.f32.mrf.mxu0
    %12043 = vdwg.mxu0
    %12044 = vmatpush.bf16.msra.mxu0 %v10815
    %12045 = vmatpush.bf16.msra.mxu0 %v10807
    %12046 = vmatpush.bf16.msra.mxu0 %v10799
    %12047 = vmatpush.bf16.msra.mxu0 %v10791
    %12048 = vmatpush.bf16.msra.mxu0 %v10783
    %12049 = vmatpush.bf16.msra.mxu0 %v10775
    %12050 = vmatpush.bf16.msra.mxu0 %v10767
    %12051 = vmatpush.bf16.msra.mxu0 %v10759
    %12052 = vmatmul.bf16.gmra.mxu0 %v3679
    %v12053 = vpop.f32.mrf.mxu0
    %v12054 = vadd.f32 %v12041, %v12053
    %v12055 = vpop.f32.mrf.mxu0
    %12056 = vdwg.mxu0
    %12057 = vmatpush.bf16.msra.mxu0 %v10368
    %12058 = vmatpush.bf16.msra.mxu0 %v10360
    %12059 = vmatpush.bf16.msra.mxu0 %v10352
    %12060 = vmatpush.bf16.msra.mxu0 %v10344
    %12061 = vmatpush.bf16.msra.mxu0 %v10336
    %12062 = vmatpush.bf16.msra.mxu0 %v10328
    %12063 = vmatpush.bf16.msra.mxu0 %v10320
    %12064 = vmatpush.bf16.msra.mxu0 %v10312
    %12065 = vmatmul.bf16.gmra.mxu0 %v3672
    %v12066 = vpop.f32.mrf.mxu0
    %v12067 = vadd.f32 %v8760, %v12066
    %v12068 = vpop.f32.mrf.mxu0
    %12069 = vdwg.mxu0
    %12070 = vmatpush.bf16.msra.mxu0 %v10432
    %12071 = vmatpush.bf16.msra.mxu0 %v10424
    %12072 = vmatpush.bf16.msra.mxu0 %v10416
    %12073 = vmatpush.bf16.msra.mxu0 %v10408
    %12074 = vmatpush.bf16.msra.mxu0 %v10400
    %12075 = vmatpush.bf16.msra.mxu0 %v10392
    %12076 = vmatpush.bf16.msra.mxu0 %v10384
    %12077 = vmatpush.bf16.msra.mxu0 %v10376
    %12078 = vmatmul.bf16.gmra.mxu0 %v3673
    %v12079 = vpop.f32.mrf.mxu0
    %v12080 = vadd.f32 %v12067, %v12079
    %v12081 = vpop.f32.mrf.mxu0
    %12082 = vdwg.mxu0
    %12083 = vmatpush.bf16.msra.mxu0 %v10496
    %12084 = vmatpush.bf16.msra.mxu0 %v10488
    %12085 = vmatpush.bf16.msra.mxu0 %v10480
    %12086 = vmatpush.bf16.msra.mxu0 %v10472
    %12087 = vmatpush.bf16.msra.mxu0 %v10464
    %12088 = vmatpush.bf16.msra.mxu0 %v10456
    %12089 = vmatpush.bf16.msra.mxu0 %v10448
    %12090 = vmatpush.bf16.msra.mxu0 %v10440
    %12091 = vmatmul.bf16.gmra.mxu0 %v3674
    %v12092 = vpop.f32.mrf.mxu0
    %v12093 = vadd.f32 %v12080, %v12092
    %v12094 = vpop.f32.mrf.mxu0
    %12095 = vdwg.mxu0
    %12096 = vmatpush.bf16.msra.mxu0 %v10560
    %12097 = vmatpush.bf16.msra.mxu0 %v10552
    %12098 = vmatpush.bf16.msra.mxu0 %v10544
    %12099 = vmatpush.bf16.msra.mxu0 %v10536
    %12100 = vmatpush.bf16.msra.mxu0 %v10528
    %12101 = vmatpush.bf16.msra.mxu0 %v10520
    %12102 = vmatpush.bf16.msra.mxu0 %v10512
    %12103 = vmatpush.bf16.msra.mxu0 %v10504
    %12104 = vmatmul.bf16.gmra.mxu0 %v3675
    %v12105 = vpop.f32.mrf.mxu0
    %v12106 = vadd.f32 %v12093, %v12105
    %v12107 = vpop.f32.mrf.mxu0
    %12108 = vdwg.mxu0
    %12109 = vmatpush.bf16.msra.mxu0 %v10624
    %12110 = vmatpush.bf16.msra.mxu0 %v10616
    %12111 = vmatpush.bf16.msra.mxu0 %v10608
    %12112 = vmatpush.bf16.msra.mxu0 %v10600
    %12113 = vmatpush.bf16.msra.mxu0 %v10592
    %12114 = vmatpush.bf16.msra.mxu0 %v10584
    %12115 = vmatpush.bf16.msra.mxu0 %v10576
    %12116 = vmatpush.bf16.msra.mxu0 %v10568
    %12117 = vmatmul.bf16.gmra.mxu0 %v3676
    %v12118 = vpop.f32.mrf.mxu0
    %v12119 = vadd.f32 %v12106, %v12118
    %v12120 = vpop.f32.mrf.mxu0
    %12121 = vdwg.mxu0
    %12122 = vmatpush.bf16.msra.mxu0 %v10688
    %12123 = vmatpush.bf16.msra.mxu0 %v10680
    %12124 = vmatpush.bf16.msra.mxu0 %v10672
    %12125 = vmatpush.bf16.msra.mxu0 %v10664
    %12126 = vmatpush.bf16.msra.mxu0 %v10656
    %12127 = vmatpush.bf16.msra.mxu0 %v10648
    %12128 = vmatpush.bf16.msra.mxu0 %v10640
    %12129 = vmatpush.bf16.msra.mxu0 %v10632
    %12130 = vmatmul.bf16.gmra.mxu0 %v3677
    %v12131 = vpop.f32.mrf.mxu0
    %v12132 = vadd.f32 %v12119, %v12131
    %v12133 = vpop.f32.mrf.mxu0
    %12134 = vdwg.mxu0
    %12135 = vmatpush.bf16.msra.mxu0 %v10752
    %12136 = vmatpush.bf16.msra.mxu0 %v10744
    %12137 = vmatpush.bf16.msra.mxu0 %v10736
    %12138 = vmatpush.bf16.msra.mxu0 %v10728
    %12139 = vmatpush.bf16.msra.mxu0 %v10720
    %12140 = vmatpush.bf16.msra.mxu0 %v10712
    %12141 = vmatpush.bf16.msra.mxu0 %v10704
    %12142 = vmatpush.bf16.msra.mxu0 %v10696
    %12143 = vmatmul.bf16.gmra.mxu0 %v3678
    %v12144 = vpop.f32.mrf.mxu0
    %v12145 = vadd.f32 %v12132, %v12144
    %v12146 = vpop.f32.mrf.mxu0
    %12147 = vdwg.mxu0
    %12148 = vmatpush.bf16.msra.mxu0 %v10816
    %12149 = vmatpush.bf16.msra.mxu0 %v10808
    %12150 = vmatpush.bf16.msra.mxu0 %v10800
    %12151 = vmatpush.bf16.msra.mxu0 %v10792
    %12152 = vmatpush.bf16.msra.mxu0 %v10784
    %12153 = vmatpush.bf16.msra.mxu0 %v10776
    %12154 = vmatpush.bf16.msra.mxu0 %v10768
    %12155 = vmatpush.bf16.msra.mxu0 %v10760
    %12156 = vmatmul.bf16.gmra.mxu0 %v3679
    %v12157 = vpop.f32.mrf.mxu0
    %v12158 = vadd.f32 %v12145, %v12157
    %v12159 = vpop.f32.mrf.mxu0
    %12160 = vdwg.mxu0
    %v12161 = vmax.f32 %v11430, 0.0
    %v12162 = vmax.f32 %v11534, 0.0
    %v12163 = vmax.f32 %v11638, 0.0
    %v12164 = vmax.f32 %v11742, 0.0
    %v12165 = vmax.f32 %v11846, 0.0
    %v12166 = vmax.f32 %v11950, 0.0
    %v12167 = vmax.f32 %v12054, 0.0
    %v12168 = vmax.f32 %v12158, 0.0
    %v12169 = vpack.c.bf16 %v12161, %v12161
    %v12170 = vpack.c.bf16 %v12162, %v12162
    %v12171 = vpack.c.bf16 %v12163, %v12163
    %v12172 = vpack.c.bf16 %v12164, %v12164
    %v12173 = vpack.c.bf16 %v12165, %v12165
    %v12174 = vpack.c.bf16 %v12166, %v12166
    %v12175 = vpack.c.bf16 %v12167, %v12167
    %v12176 = vpack.c.bf16 %v12168, %v12168
    %v12177 = vld [vmem:[#allocation16] sm:$0xf]
    %v12178 = vld [vmem:[#allocation16 + $0x4] sm:$0xf]
    %v12179 = vld [vmem:[#allocation16 + $0x8] sm:$0xf]
    %v12180 = vld [vmem:[#allocation16 + $0xc] sm:$0xf]
    %v12181 = vld [vmem:[#allocation16 + $0x10] sm:$0xf]
    %v12182 = vld [vmem:[#allocation16 + $0x14] sm:$0xf]
    %v12183 = vld [vmem:[#allocation16 + $0x18] sm:$0xf]
    %v12184 = vld [vmem:[#allocation16 + $0x1c] sm:$0xf]
    %v12185 = vld [vmem:[#allocation16 + $0x20] sm:$0xf]
    %v12186 = vld [vmem:[#allocation16 + $0x24] sm:$0xf]
    %v12187 = vld [vmem:[#allocation16 + $0x28] sm:$0xf]
    %v12188 = vld [vmem:[#allocation16 + $0x2c] sm:$0xf]
    %v12189 = vld [vmem:[#allocation16 + $0x30] sm:$0xf]
    %v12190 = vld [vmem:[#allocation16 + $0x34] sm:$0xf]
    %v12191 = vld [vmem:[#allocation16 + $0x38] sm:$0xf]
    %v12192 = vld [vmem:[#allocation16 + $0x3c] sm:$0xf]
    %v12193 = vld [vmem:[#allocation16 + $0x40] sm:$0xf]
    %v12194 = vld [vmem:[#allocation16 + $0x44] sm:$0xf]
    %v12195 = vld [vmem:[#allocation16 + $0x48] sm:$0xf]
    %v12196 = vld [vmem:[#allocation16 + $0x4c] sm:$0xf]
    %v12197 = vld [vmem:[#allocation16 + $0x50] sm:$0xf]
    %v12198 = vld [vmem:[#allocation16 + $0x54] sm:$0xf]
    %v12199 = vld [vmem:[#allocation16 + $0x58] sm:$0xf]
    %v12200 = vld [vmem:[#allocation16 + $0x5c] sm:$0xf]
    %v12201 = vld [vmem:[#allocation16 + $0x60] sm:$0xf]
    %v12202 = vld [vmem:[#allocation16 + $0x64] sm:$0xf]
    %v12203 = vld [vmem:[#allocation16 + $0x68] sm:$0xf]
    %v12204 = vld [vmem:[#allocation16 + $0x6c] sm:$0xf]
    %v12205 = vld [vmem:[#allocation16 + $0x70] sm:$0xf]
    %v12206 = vld [vmem:[#allocation16 + $0x74] sm:$0xf]
    %v12207 = vld [vmem:[#allocation16 + $0x78] sm:$0xf]
    %v12208 = vld [vmem:[#allocation16 + $0x7c] sm:$0xf]
    %v12209 = vld [vmem:[#allocation16 + $0x80] sm:$0xf]
    %v12210 = vld [vmem:[#allocation16 + $0x84] sm:$0xf]
    %v12211 = vld [vmem:[#allocation16 + $0x88] sm:$0xf]
    %v12212 = vld [vmem:[#allocation16 + $0x8c] sm:$0xf]
    %v12213 = vld [vmem:[#allocation16 + $0x90] sm:$0xf]
    %v12214 = vld [vmem:[#allocation16 + $0x94] sm:$0xf]
    %v12215 = vld [vmem:[#allocation16 + $0x98] sm:$0xf]
    %v12216 = vld [vmem:[#allocation16 + $0x9c] sm:$0xf]
    %v12217 = vld [vmem:[#allocation16 + $0xa0] sm:$0xf]
    %v12218 = vld [vmem:[#allocation16 + $0xa4] sm:$0xf]
    %v12219 = vld [vmem:[#allocation16 + $0xa8] sm:$0xf]
    %v12220 = vld [vmem:[#allocation16 + $0xac] sm:$0xf]
    %v12221 = vld [vmem:[#allocation16 + $0xb0] sm:$0xf]
    %v12222 = vld [vmem:[#allocation16 + $0xb4] sm:$0xf]
    %v12223 = vld [vmem:[#allocation16 + $0xb8] sm:$0xf]
    %v12224 = vld [vmem:[#allocation16 + $0xbc] sm:$0xf]
    %v12225 = vld [vmem:[#allocation16 + $0xc0] sm:$0xf]
    %v12226 = vld [vmem:[#allocation16 + $0xc4] sm:$0xf]
    %v12227 = vld [vmem:[#allocation16 + $0xc8] sm:$0xf]
    %v12228 = vld [vmem:[#allocation16 + $0xcc] sm:$0xf]
    %v12229 = vld [vmem:[#allocation16 + $0xd0] sm:$0xf]
    %v12230 = vld [vmem:[#allocation16 + $0xd4] sm:$0xf]
    %v12231 = vld [vmem:[#allocation16 + $0xd8] sm:$0xf]
    %v12232 = vld [vmem:[#allocation16 + $0xdc] sm:$0xf]
    %v12233 = vld [vmem:[#allocation16 + $0xe0] sm:$0xf]
    %v12234 = vld [vmem:[#allocation16 + $0xe4] sm:$0xf]
    %v12235 = vld [vmem:[#allocation16 + $0xe8] sm:$0xf]
    %v12236 = vld [vmem:[#allocation16 + $0xec] sm:$0xf]
    %v12237 = vld [vmem:[#allocation16 + $0xf0] sm:$0xf]
    %v12238 = vld [vmem:[#allocation16 + $0xf4] sm:$0xf]
    %v12239 = vld [vmem:[#allocation16 + $0xf8] sm:$0xf]
    %v12240 = vld [vmem:[#allocation16 + $0xfc] sm:$0xf]
    %v12241 = vld [vmem:[#allocation16 + $0x100] sm:$0xf]
    %v12242 = vld [vmem:[#allocation16 + $0x104] sm:$0xf]
    %v12243 = vld [vmem:[#allocation16 + $0x108] sm:$0xf]
    %v12244 = vld [vmem:[#allocation16 + $0x10c] sm:$0xf]
    %v12245 = vld [vmem:[#allocation16 + $0x110] sm:$0xf]
    %v12246 = vld [vmem:[#allocation16 + $0x114] sm:$0xf]
    %v12247 = vld [vmem:[#allocation16 + $0x118] sm:$0xf]
    %v12248 = vld [vmem:[#allocation16 + $0x11c] sm:$0xf]
    %v12249 = vld [vmem:[#allocation16 + $0x120] sm:$0xf]
    %v12250 = vld [vmem:[#allocation16 + $0x124] sm:$0xf]
    %v12251 = vld [vmem:[#allocation16 + $0x128] sm:$0xf]
    %v12252 = vld [vmem:[#allocation16 + $0x12c] sm:$0xf]
    %v12253 = vld [vmem:[#allocation16 + $0x130] sm:$0xf]
    %v12254 = vld [vmem:[#allocation16 + $0x134] sm:$0xf]
    %v12255 = vld [vmem:[#allocation16 + $0x138] sm:$0xf]
    %v12256 = vld [vmem:[#allocation16 + $0x13c] sm:$0xf]
    %v12257 = vld [vmem:[#allocation16 + $0x140] sm:$0xf]
    %v12258 = vld [vmem:[#allocation16 + $0x144] sm:$0xf]
    %v12259 = vld [vmem:[#allocation16 + $0x148] sm:$0xf]
    %v12260 = vld [vmem:[#allocation16 + $0x14c] sm:$0xf]
    %v12261 = vld [vmem:[#allocation16 + $0x150] sm:$0xf]
    %v12262 = vld [vmem:[#allocation16 + $0x154] sm:$0xf]
    %v12263 = vld [vmem:[#allocation16 + $0x158] sm:$0xf]
    %v12264 = vld [vmem:[#allocation16 + $0x15c] sm:$0xf]
    %v12265 = vld [vmem:[#allocation16 + $0x160] sm:$0xf]
    %v12266 = vld [vmem:[#allocation16 + $0x164] sm:$0xf]
    %v12267 = vld [vmem:[#allocation16 + $0x168] sm:$0xf]
    %v12268 = vld [vmem:[#allocation16 + $0x16c] sm:$0xf]
    %v12269 = vld [vmem:[#allocation16 + $0x170] sm:$0xf]
    %v12270 = vld [vmem:[#allocation16 + $0x174] sm:$0xf]
    %v12271 = vld [vmem:[#allocation16 + $0x178] sm:$0xf]
    %v12272 = vld [vmem:[#allocation16 + $0x17c] sm:$0xf]
    %v12273 = vld [vmem:[#allocation16 + $0x180] sm:$0xf]
    %v12274 = vld [vmem:[#allocation16 + $0x184] sm:$0xf]
    %v12275 = vld [vmem:[#allocation16 + $0x188] sm:$0xf]
    %v12276 = vld [vmem:[#allocation16 + $0x18c] sm:$0xf]
    %v12277 = vld [vmem:[#allocation16 + $0x190] sm:$0xf]
    %v12278 = vld [vmem:[#allocation16 + $0x194] sm:$0xf]
    %v12279 = vld [vmem:[#allocation16 + $0x198] sm:$0xf]
    %v12280 = vld [vmem:[#allocation16 + $0x19c] sm:$0xf]
    %v12281 = vld [vmem:[#allocation16 + $0x1a0] sm:$0xf]
    %v12282 = vld [vmem:[#allocation16 + $0x1a4] sm:$0xf]
    %v12283 = vld [vmem:[#allocation16 + $0x1a8] sm:$0xf]
    %v12284 = vld [vmem:[#allocation16 + $0x1ac] sm:$0xf]
    %v12285 = vld [vmem:[#allocation16 + $0x1b0] sm:$0xf]
    %v12286 = vld [vmem:[#allocation16 + $0x1b4] sm:$0xf]
    %v12287 = vld [vmem:[#allocation16 + $0x1b8] sm:$0xf]
    %v12288 = vld [vmem:[#allocation16 + $0x1bc] sm:$0xf]
    %v12289 = vld [vmem:[#allocation16 + $0x1c0] sm:$0xf]
    %v12290 = vld [vmem:[#allocation16 + $0x1c4] sm:$0xf]
    %v12291 = vld [vmem:[#allocation16 + $0x1c8] sm:$0xf]
    %v12292 = vld [vmem:[#allocation16 + $0x1cc] sm:$0xf]
    %v12293 = vld [vmem:[#allocation16 + $0x1d0] sm:$0xf]
    %v12294 = vld [vmem:[#allocation16 + $0x1d4] sm:$0xf]
    %v12295 = vld [vmem:[#allocation16 + $0x1d8] sm:$0xf]
    %v12296 = vld [vmem:[#allocation16 + $0x1dc] sm:$0xf]
    %v12297 = vld [vmem:[#allocation16 + $0x1e0] sm:$0xf]
    %v12298 = vld [vmem:[#allocation16 + $0x1e4] sm:$0xf]
    %v12299 = vld [vmem:[#allocation16 + $0x1e8] sm:$0xf]
    %v12300 = vld [vmem:[#allocation16 + $0x1ec] sm:$0xf]
    %v12301 = vld [vmem:[#allocation16 + $0x1f0] sm:$0xf]
    %v12302 = vld [vmem:[#allocation16 + $0x1f4] sm:$0xf]
    %v12303 = vld [vmem:[#allocation16 + $0x1f8] sm:$0xf]
    %v12304 = vld [vmem:[#allocation16 + $0x1fc] sm:$0xf]
    %v12305 = vld [vmem:[#allocation18] sm:$0x1]
    %v12307 = vperm.slane %v12305, 0
    %v12437 = vunpack.c.l.b16 %v12177
    %v12438 = vunpack.c.l.b16 %v12178
    %v12439 = vunpack.c.l.b16 %v12179
    %v12440 = vunpack.c.l.b16 %v12180
    %v12441 = vunpack.c.l.b16 %v12181
    %v12442 = vunpack.c.l.b16 %v12182
    %v12443 = vunpack.c.l.b16 %v12183
    %v12444 = vunpack.c.l.b16 %v12184
    %v12445 = vunpack.c.l.b16 %v12185
    %v12446 = vunpack.c.l.b16 %v12186
    %v12447 = vunpack.c.l.b16 %v12187
    %v12448 = vunpack.c.l.b16 %v12188
    %v12449 = vunpack.c.l.b16 %v12189
    %v12450 = vunpack.c.l.b16 %v12190
    %v12451 = vunpack.c.l.b16 %v12191
    %v12452 = vunpack.c.l.b16 %v12192
    %v12453 = vunpack.c.l.b16 %v12193
    %v12454 = vunpack.c.l.b16 %v12194
    %v12455 = vunpack.c.l.b16 %v12195
    %v12456 = vunpack.c.l.b16 %v12196
    %v12457 = vunpack.c.l.b16 %v12197
    %v12458 = vunpack.c.l.b16 %v12198
    %v12459 = vunpack.c.l.b16 %v12199
    %v12460 = vunpack.c.l.b16 %v12200
    %v12461 = vunpack.c.l.b16 %v12201
    %v12462 = vunpack.c.l.b16 %v12202
    %v12463 = vunpack.c.l.b16 %v12203
    %v12464 = vunpack.c.l.b16 %v12204
    %v12465 = vunpack.c.l.b16 %v12205
    %v12466 = vunpack.c.l.b16 %v12206
    %v12467 = vunpack.c.l.b16 %v12207
    %v12468 = vunpack.c.l.b16 %v12208
    %v12469 = vunpack.c.l.b16 %v12209
    %v12470 = vunpack.c.l.b16 %v12210
    %v12471 = vunpack.c.l.b16 %v12211
    %v12472 = vunpack.c.l.b16 %v12212
    %v12473 = vunpack.c.l.b16 %v12213
    %v12474 = vunpack.c.l.b16 %v12214
    %v12475 = vunpack.c.l.b16 %v12215
    %v12476 = vunpack.c.l.b16 %v12216
    %v12477 = vunpack.c.l.b16 %v12217
    %v12478 = vunpack.c.l.b16 %v12218
    %v12479 = vunpack.c.l.b16 %v12219
    %v12480 = vunpack.c.l.b16 %v12220
    %v12481 = vunpack.c.l.b16 %v12221
    %v12482 = vunpack.c.l.b16 %v12222
    %v12483 = vunpack.c.l.b16 %v12223
    %v12484 = vunpack.c.l.b16 %v12224
    %v12485 = vunpack.c.l.b16 %v12225
    %v12486 = vunpack.c.l.b16 %v12226
    %v12487 = vunpack.c.l.b16 %v12227
    %v12488 = vunpack.c.l.b16 %v12228
    %v12489 = vunpack.c.l.b16 %v12229
    %v12490 = vunpack.c.l.b16 %v12230
    %v12491 = vunpack.c.l.b16 %v12231
    %v12492 = vunpack.c.l.b16 %v12232
    %v12493 = vunpack.c.l.b16 %v12233
    %v12494 = vunpack.c.l.b16 %v12234
    %v12495 = vunpack.c.l.b16 %v12235
    %v12496 = vunpack.c.l.b16 %v12236
    %v12497 = vunpack.c.l.b16 %v12237
    %v12498 = vunpack.c.l.b16 %v12238
    %v12499 = vunpack.c.l.b16 %v12239
    %v12500 = vunpack.c.l.b16 %v12240
    %v12501 = vunpack.c.l.b16 %v12241
    %v12502 = vunpack.c.l.b16 %v12242
    %v12503 = vunpack.c.l.b16 %v12243
    %v12504 = vunpack.c.l.b16 %v12244
    %v12505 = vunpack.c.l.b16 %v12245
    %v12506 = vunpack.c.l.b16 %v12246
    %v12507 = vunpack.c.l.b16 %v12247
    %v12508 = vunpack.c.l.b16 %v12248
    %v12509 = vunpack.c.l.b16 %v12249
    %v12510 = vunpack.c.l.b16 %v12250
    %v12511 = vunpack.c.l.b16 %v12251
    %v12512 = vunpack.c.l.b16 %v12252
    %v12513 = vunpack.c.l.b16 %v12253
    %v12514 = vunpack.c.l.b16 %v12254
    %v12515 = vunpack.c.l.b16 %v12255
    %v12516 = vunpack.c.l.b16 %v12256
    %v12517 = vunpack.c.l.b16 %v12257
    %v12518 = vunpack.c.l.b16 %v12258
    %v12519 = vunpack.c.l.b16 %v12259
    %v12520 = vunpack.c.l.b16 %v12260
    %v12521 = vunpack.c.l.b16 %v12261
    %v12522 = vunpack.c.l.b16 %v12262
    %v12523 = vunpack.c.l.b16 %v12263
    %v12524 = vunpack.c.l.b16 %v12264
    %v12525 = vunpack.c.l.b16 %v12265
    %v12526 = vunpack.c.l.b16 %v12266
    %v12527 = vunpack.c.l.b16 %v12267
    %v12528 = vunpack.c.l.b16 %v12268
    %v12529 = vunpack.c.l.b16 %v12269
    %v12530 = vunpack.c.l.b16 %v12270
    %v12531 = vunpack.c.l.b16 %v12271
    %v12532 = vunpack.c.l.b16 %v12272
    %v12533 = vunpack.c.l.b16 %v12273
    %v12534 = vunpack.c.l.b16 %v12274
    %v12535 = vunpack.c.l.b16 %v12275
    %v12536 = vunpack.c.l.b16 %v12276
    %v12537 = vunpack.c.l.b16 %v12277
    %v12538 = vunpack.c.l.b16 %v12278
    %v12539 = vunpack.c.l.b16 %v12279
    %v12540 = vunpack.c.l.b16 %v12280
    %v12541 = vunpack.c.l.b16 %v12281
    %v12542 = vunpack.c.l.b16 %v12282
    %v12543 = vunpack.c.l.b16 %v12283
    %v12544 = vunpack.c.l.b16 %v12284
    %v12545 = vunpack.c.l.b16 %v12285
    %v12546 = vunpack.c.l.b16 %v12286
    %v12547 = vunpack.c.l.b16 %v12287
    %v12548 = vunpack.c.l.b16 %v12288
    %v12549 = vunpack.c.l.b16 %v12289
    %v12550 = vunpack.c.l.b16 %v12290
    %v12551 = vunpack.c.l.b16 %v12291
    %v12552 = vunpack.c.l.b16 %v12292
    %v12553 = vunpack.c.l.b16 %v12293
    %v12554 = vunpack.c.l.b16 %v12294
    %v12555 = vunpack.c.l.b16 %v12295
    %v12556 = vunpack.c.l.b16 %v12296
    %v12557 = vunpack.c.l.b16 %v12297
    %v12558 = vunpack.c.l.b16 %v12298
    %v12559 = vunpack.c.l.b16 %v12299
    %v12560 = vunpack.c.l.b16 %v12300
    %v12561 = vunpack.c.l.b16 %v12301
    %v12562 = vunpack.c.l.b16 %v12302
    %v12563 = vunpack.c.l.b16 %v12303
    %v12564 = vunpack.c.l.b16 %v12304
    %v12565 = vpack.c.b16 %v12438, %v12437
    %v12566 = vpack.c.b16 %v12440, %v12439
    %v12567 = vpack.c.b16 %v12442, %v12441
    %v12568 = vpack.c.b16 %v12444, %v12443
    %v12569 = vpack.c.b16 %v12446, %v12445
    %v12570 = vpack.c.b16 %v12448, %v12447
    %v12571 = vpack.c.b16 %v12450, %v12449
    %v12572 = vpack.c.b16 %v12452, %v12451
    %v12573 = vpack.c.b16 %v12454, %v12453
    %v12574 = vpack.c.b16 %v12456, %v12455
    %v12575 = vpack.c.b16 %v12458, %v12457
    %v12576 = vpack.c.b16 %v12460, %v12459
    %v12577 = vpack.c.b16 %v12462, %v12461
    %v12578 = vpack.c.b16 %v12464, %v12463
    %v12579 = vpack.c.b16 %v12466, %v12465
    %v12580 = vpack.c.b16 %v12468, %v12467
    %v12581 = vpack.c.b16 %v12470, %v12469
    %v12582 = vpack.c.b16 %v12472, %v12471
    %v12583 = vpack.c.b16 %v12474, %v12473
    %v12584 = vpack.c.b16 %v12476, %v12475
    %v12585 = vpack.c.b16 %v12478, %v12477
    %v12586 = vpack.c.b16 %v12480, %v12479
    %v12587 = vpack.c.b16 %v12482, %v12481
    %v12588 = vpack.c.b16 %v12484, %v12483
    %v12589 = vpack.c.b16 %v12486, %v12485
    %v12590 = vpack.c.b16 %v12488, %v12487
    %v12591 = vpack.c.b16 %v12490, %v12489
    %v12592 = vpack.c.b16 %v12492, %v12491
    %v12593 = vpack.c.b16 %v12494, %v12493
    %v12594 = vpack.c.b16 %v12496, %v12495
    %v12595 = vpack.c.b16 %v12498, %v12497
    %v12596 = vpack.c.b16 %v12500, %v12499
    %v12597 = vpack.c.b16 %v12502, %v12501
    %v12598 = vpack.c.b16 %v12504, %v12503
    %v12599 = vpack.c.b16 %v12506, %v12505
    %v12600 = vpack.c.b16 %v12508, %v12507
    %v12601 = vpack.c.b16 %v12510, %v12509
    %v12602 = vpack.c.b16 %v12512, %v12511
    %v12603 = vpack.c.b16 %v12514, %v12513
    %v12604 = vpack.c.b16 %v12516, %v12515
    %v12605 = vpack.c.b16 %v12518, %v12517
    %v12606 = vpack.c.b16 %v12520, %v12519
    %v12607 = vpack.c.b16 %v12522, %v12521
    %v12608 = vpack.c.b16 %v12524, %v12523
    %v12609 = vpack.c.b16 %v12526, %v12525
    %v12610 = vpack.c.b16 %v12528, %v12527
    %v12611 = vpack.c.b16 %v12530, %v12529
    %v12612 = vpack.c.b16 %v12532, %v12531
    %v12613 = vpack.c.b16 %v12534, %v12533
    %v12614 = vpack.c.b16 %v12536, %v12535
    %v12615 = vpack.c.b16 %v12538, %v12537
    %v12616 = vpack.c.b16 %v12540, %v12539
    %v12617 = vpack.c.b16 %v12542, %v12541
    %v12618 = vpack.c.b16 %v12544, %v12543
    %v12619 = vpack.c.b16 %v12546, %v12545
    %v12620 = vpack.c.b16 %v12548, %v12547
    %v12621 = vpack.c.b16 %v12550, %v12549
    %v12622 = vpack.c.b16 %v12552, %v12551
    %v12623 = vpack.c.b16 %v12554, %v12553
    %v12624 = vpack.c.b16 %v12556, %v12555
    %v12625 = vpack.c.b16 %v12558, %v12557
    %v12626 = vpack.c.b16 %v12560, %v12559
    %v12627 = vpack.c.b16 %v12562, %v12561
    %v12628 = vpack.c.b16 %v12564, %v12563
    %12693 = vmatpush.bf16.msra.mxu0 %v12572
    %12694 = vmatpush.bf16.msra.mxu0 %v12571
    %12695 = vmatpush.bf16.msra.mxu0 %v12570
    %12696 = vmatpush.bf16.msra.mxu0 %v12569
    %12697 = vmatpush.bf16.msra.mxu0 %v12568
    %12698 = vmatpush.bf16.msra.mxu0 %v12567
    %12699 = vmatpush.bf16.msra.mxu0 %v12566
    %12700 = vmatpush.bf16.msra.mxu0 %v12565
    %12701 = vmatmul.bf16.gmra.mxu0 %v12169
    %v12702 = vpop.f32.mrf.mxu0
    %v12703 = vadd.f32 %v12307, %v12702
    %v12704 = vpop.f32.mrf.mxu0
    %12705 = vdwg.mxu0
    %12706 = vmatpush.bf16.msra.mxu0 %v12580
    %12707 = vmatpush.bf16.msra.mxu0 %v12579
    %12708 = vmatpush.bf16.msra.mxu0 %v12578
    %12709 = vmatpush.bf16.msra.mxu0 %v12577
    %12710 = vmatpush.bf16.msra.mxu0 %v12576
    %12711 = vmatpush.bf16.msra.mxu0 %v12575
    %12712 = vmatpush.bf16.msra.mxu0 %v12574
    %12713 = vmatpush.bf16.msra.mxu0 %v12573
    %12714 = vmatmul.bf16.gmra.mxu0 %v12170
    %v12715 = vpop.f32.mrf.mxu0
    %v12716 = vadd.f32 %v12703, %v12715
    %v12717 = vpop.f32.mrf.mxu0
    %12718 = vdwg.mxu0
    %12719 = vmatpush.bf16.msra.mxu0 %v12588
    %12720 = vmatpush.bf16.msra.mxu0 %v12587
    %12721 = vmatpush.bf16.msra.mxu0 %v12586
    %12722 = vmatpush.bf16.msra.mxu0 %v12585
    %12723 = vmatpush.bf16.msra.mxu0 %v12584
    %12724 = vmatpush.bf16.msra.mxu0 %v12583
    %12725 = vmatpush.bf16.msra.mxu0 %v12582
    %12726 = vmatpush.bf16.msra.mxu0 %v12581
    %12727 = vmatmul.bf16.gmra.mxu0 %v12171
    %v12728 = vpop.f32.mrf.mxu0
    %v12729 = vadd.f32 %v12716, %v12728
    %v12730 = vpop.f32.mrf.mxu0
    %12731 = vdwg.mxu0
    %12732 = vmatpush.bf16.msra.mxu0 %v12596
    %12733 = vmatpush.bf16.msra.mxu0 %v12595
    %12734 = vmatpush.bf16.msra.mxu0 %v12594
    %12735 = vmatpush.bf16.msra.mxu0 %v12593
    %12736 = vmatpush.bf16.msra.mxu0 %v12592
    %12737 = vmatpush.bf16.msra.mxu0 %v12591
    %12738 = vmatpush.bf16.msra.mxu0 %v12590
    %12739 = vmatpush.bf16.msra.mxu0 %v12589
    %12740 = vmatmul.bf16.gmra.mxu0 %v12172
    %v12741 = vpop.f32.mrf.mxu0
    %v12742 = vadd.f32 %v12729, %v12741
    %v12743 = vpop.f32.mrf.mxu0
    %12744 = vdwg.mxu0
    %12745 = vmatpush.bf16.msra.mxu0 %v12604
    %12746 = vmatpush.bf16.msra.mxu0 %v12603
    %12747 = vmatpush.bf16.msra.mxu0 %v12602
    %12748 = vmatpush.bf16.msra.mxu0 %v12601
    %12749 = vmatpush.bf16.msra.mxu0 %v12600
    %12750 = vmatpush.bf16.msra.mxu0 %v12599
    %12751 = vmatpush.bf16.msra.mxu0 %v12598
    %12752 = vmatpush.bf16.msra.mxu0 %v12597
    %12753 = vmatmul.bf16.gmra.mxu0 %v12173
    %v12754 = vpop.f32.mrf.mxu0
    %v12755 = vadd.f32 %v12742, %v12754
    %v12756 = vpop.f32.mrf.mxu0
    %12757 = vdwg.mxu0
    %12758 = vmatpush.bf16.msra.mxu0 %v12612
    %12759 = vmatpush.bf16.msra.mxu0 %v12611
    %12760 = vmatpush.bf16.msra.mxu0 %v12610
    %12761 = vmatpush.bf16.msra.mxu0 %v12609
    %12762 = vmatpush.bf16.msra.mxu0 %v12608
    %12763 = vmatpush.bf16.msra.mxu0 %v12607
    %12764 = vmatpush.bf16.msra.mxu0 %v12606
    %12765 = vmatpush.bf16.msra.mxu0 %v12605
    %12766 = vmatmul.bf16.gmra.mxu0 %v12174
    %v12767 = vpop.f32.mrf.mxu0
    %v12768 = vadd.f32 %v12755, %v12767
    %v12769 = vpop.f32.mrf.mxu0
    %12770 = vdwg.mxu0
    %12771 = vmatpush.bf16.msra.mxu0 %v12620
    %12772 = vmatpush.bf16.msra.mxu0 %v12619
    %12773 = vmatpush.bf16.msra.mxu0 %v12618
    %12774 = vmatpush.bf16.msra.mxu0 %v12617
    %12775 = vmatpush.bf16.msra.mxu0 %v12616
    %12776 = vmatpush.bf16.msra.mxu0 %v12615
    %12777 = vmatpush.bf16.msra.mxu0 %v12614
    %12778 = vmatpush.bf16.msra.mxu0 %v12613
    %12779 = vmatmul.bf16.gmra.mxu0 %v12175
    %v12780 = vpop.f32.mrf.mxu0
    %v12781 = vadd.f32 %v12768, %v12780
    %v12782 = vpop.f32.mrf.mxu0
    %12783 = vdwg.mxu0
    %12784 = vmatpush.bf16.msra.mxu0 %v12628
    %12785 = vmatpush.bf16.msra.mxu0 %v12627
    %12786 = vmatpush.bf16.msra.mxu0 %v12626
    %12787 = vmatpush.bf16.msra.mxu0 %v12625
    %12788 = vmatpush.bf16.msra.mxu0 %v12624
    %12789 = vmatpush.bf16.msra.mxu0 %v12623
    %12790 = vmatpush.bf16.msra.mxu0 %v12622
    %12791 = vmatpush.bf16.msra.mxu0 %v12621
    %12792 = vmatmul.bf16.gmra.mxu0 %v12176
    %v12793 = vpop.f32.mrf.mxu0
    %v12794 = vadd.f32 %v12781, %v12793
    %v12795 = vpop.f32.mrf.mxu0
    %12796 = vdwg.mxu0
    %12797 = vst [vmem:[%s14] sm:$0xff] %v12794
    // Predicated region
    $region98: #{classifier_forward.1} parent=1 // pred_check
      _
    $region99: #{classifier_forward.1} parent=1 // pred_check_branch
      %12799 = sbr.rel (0) target = $region101
    $region100: #{classifier_forward.1} parent=1 // pred_region
      _
    $region101: #{classifier_forward.1} parent=1 // pred_fallthru
      _
    // Predicated region
    $region102: #{classifier_forward.1} parent=1 // pred_check
      _
    $region103: #{classifier_forward.1} parent=1 // pred_check_branch
      %12801 = sbr.rel (0) target = $region105
    $region104: #{classifier_forward.1} parent=1 // pred_region
      _
    $region105: #{classifier_forward.1} parent=1 // pred_fallthru
      _
    // Predicated region
    $region106: #{classifier_forward.1} parent=1 // pred_check
      _
    $region107: #{classifier_forward.1} parent=1 // pred_check_branch
      %12803 = sbr.rel (0) target = $region109
    $region108: #{classifier_forward.1} parent=1 // pred_region
      _
    $region109: #{classifier_forward.1} parent=1 // pred_fallthru
      _
    // Predicated region
    $region110: #{classifier_forward.1} parent=1 // pred_check
      _
    $region111: #{classifier_forward.1} parent=1 // pred_check_branch
      %12805 = sbr.rel (0) target = $region113
    $region112: #{classifier_forward.1} parent=1 // pred_region
      _
    $region113: #{classifier_forward.1} parent=1 // pred_fallthru
      _
    // Predicated region
    $region114: #{classifier_forward.1} parent=1 // pred_check
      _
    $region115: #{classifier_forward.1} parent=1 // pred_check_branch
      %12807 = sbr.rel (0) target = $region117
    $region116: #{classifier_forward.1} parent=1 // pred_region
      _
    $region117: #{classifier_forward.1} parent=1 // pred_fallthru
      _
    // Predicated region
    $region118: #{classifier_forward.1} parent=1 // pred_check
      _
    $region119: #{classifier_forward.1} parent=1 // pred_check_branch
      %12809 = sbr.rel (0) target = $region121
    $region120: #{classifier_forward.1} parent=1 // pred_region
      _
    $region121: #{classifier_forward.1} parent=1 // pred_fallthru
      _
    %12810 = vsyncpa [#allocation3], 1
    %12811 = vsyncpa [#allocation5], 1
    %12812 = vsyncpa [#allocation8], 1
    %12813 = vsyncpa [#allocation11], 1
    %12814 = vsyncpa [#allocation14], 1
    %12815 = vsyncpa [#allocation17], 1

</llo_original>
